<compile_context>
chip_gen: v7x
topology: tpu7x:2x2x1
jax: 0.10.0
libtpu: 0.0.40
codegen_flags: <defaults>
</compile_context>

<pallas_src>
import functools
import jax
import jax.numpy as jnp
from jax.experimental import pallas as pl
from jax.experimental.pallas import tpu as pltpu

EPS_LN = 1e-5
EPS_GN = 1e-5
EPS_BN = 1e-5


def _gelu(x):
    # TODO(synk): PyTorch nn.GELU() defaults to the exact erf formulation; the tanh
    # approximation is used here for robust Mosaic lowering (deviation ~1e-3).
    return jax.nn.gelu(x, approximate=True)


def _round_up(n, m):
    return ((n + m - 1) // m) * m


def _row_tile(M, target=512):
    """Row tile: multiple of 8 sublanes, capped at `target` (memory-bound kernels)."""
    return min(target, _round_up(M, 8))


def _pick_spatial_tile(H):
    """Largest even divisor of H that is <= max(H // 2, 2) (row tile for the conv)."""
    cap = max(H // 2, 2)
    best = 2
    for d in range(2, cap + 1, 2):
        if H % d == 0:
            best = d
    return best


# ----------------------------- generic matmul (patch embedding) -----------------------------

def _mm_kernel(x_ref, w_ref, b_ref, o_ref):
    x = x_ref[...].astype(jnp.bfloat16)
    o_ref[...] = jnp.dot(x, w_ref[...], preferred_element_type=jnp.float32) + b_ref[...]


def matmul_bias(x, w_bf16, b):
    """(M,K) @ (K,N) + b.  Row-tiled grid, bf16 weights, no pad/slice copies."""
    M, K = x.shape
    N = w_bf16.shape[1]
    tm = _row_tile(M)
    return pl.pallas_call(
        _mm_kernel,
        grid=(pl.cdiv(M, tm),),
        out_shape=jax.ShapeDtypeStruct((M, N), jnp.float32),
        in_specs=[pl.BlockSpec((tm, K), lambda i: (i, 0)),
                  pl.BlockSpec((K, N), lambda i: (0, 0)),
                  pl.BlockSpec((1, N), lambda i: (0, 0))],
        out_specs=pl.BlockSpec((tm, N), lambda i: (i, 0)),
        compiler_params=pltpu.CompilerParams(dimension_semantics=("parallel",)),
    )(x, w_bf16, b.reshape(1, N))


# ----------------------------- GroupNorm(1, E) -----------------------------

def _gn_kernel(x_ref, g_ref, b_ref, o_ref):
    x = x_ref[...]                      # (1, L, E): per-sample stats over tokens+channels
    mu = jnp.mean(x, axis=(1, 2), keepdims=True)
    var = jnp.mean((x - mu) ** 2, axis=(1, 2), keepdims=True)
    o_ref[...] = (x - mu) * jax.lax.rsqrt(var + EPS_GN) * g_ref[...] + b_ref[...]


def groupnorm1(tokens, gamma, beta):
    B, L, E = tokens.shape
    return pl.pallas_call(
        _gn_kernel,
        grid=(B,),
        out_shape=jax.ShapeDtypeStruct((B, L, E), jnp.float32),
        in_specs=[pl.BlockSpec((1, L, E), lambda b: (b, 0, 0)),
                  pl.BlockSpec((1, E), lambda b: (0, 0)),
                  pl.BlockSpec((1, E), lambda b: (0, 0))],
        out_specs=pl.BlockSpec((1, L, E), lambda b: (b, 0, 0)),
        compiler_params=pltpu.CompilerParams(dimension_semantics=("parallel",)),
    )(tokens, gamma.reshape(1, E), beta.reshape(1, E))


# ------------------ fused LN1 + depthwise 3x3 q/k/v convs (+GELU+eval-BN) ------------------
#
# The padded image is passed with column pairs packed into the lane dim:
#   packed[b, i, j, :E] = padded col 2j, packed[b, i, j, E:] = padded col 2j+1.
# This lets the stride-2 k/v conv (and the even/odd halves of the stride-1 q conv)
# use only contiguous slices + leading-dim reshapes (no strided loads).

def _dw_ln_qkv_kernel(x_ref, ln_ref, w_ref, b_ref, sc_ref, sh_ref,
                      xn_ref, q_ref, k_ref, v_ref, *, H, th):
    t = pl.program_id(1)
    th2 = th // 2
    W2 = q_ref.shape[2]
    E = k_ref.shape[3]
    Wp2 = W2 + 1

    xt = x_ref[0, pl.ds(t * th, th + 2), :, :]        # (th+2, Wp2, 2E) halo rows
    xa = xt[:, :, :E]                                  # even padded columns
    xb = xt[:, :, E:]                                  # odd  padded columns

    ln_g = ln_ref[0]
    ln_b = ln_ref[1]

    def _ln(v):
        mu = jnp.mean(v, axis=-1, keepdims=True)
        var = jnp.mean((v - mu) ** 2, axis=-1, keepdims=True)
        return (v - mu) * jax.lax.rsqrt(var + EPS_LN) * ln_g + ln_b

    na = _ln(xa)
    nb = _ln(xb)

    # zero the conv zero-padding border (LN(0) != 0, so mask explicitly)
    row_g = jax.lax.broadcasted_iota(jnp.int32, (th + 2, 1, 1), 0) + t * th
    row_ok = jnp.logical_and(row_g != 0, row_g != H + 1)
    col = jax.lax.broadcasted_iota(jnp.int32, (1, Wp2, 1), 1)
    na = jnp.where(jnp.logical_and(row_ok, col != 0), na, 0.0)
    nb = jnp.where(jnp.logical_and(row_ok, col != W2), nb, 0.0)

    # LayerNorm-1 output (residual), interior rows, column pairs packed back.
    xn_ref[0] = jnp.concatenate([nb[1:th + 1, 0:W2], na[1:th + 1, 1:W2 + 1]], axis=-1)

    wq, wk, wv = w_ref[0], w_ref[1], w_ref[2]          # (9, E) taps, row-major

    acc_qe = jnp.zeros((th, W2, E), jnp.float32)
    acc_qo = jnp.zeros((th, W2, E), jnp.float32)
    acc_k = jnp.zeros((th2, W2, E), jnp.float32)
    acc_v = jnp.zeros((th2, W2, E), jnp.float32)

    for di in range(3):
        na_d = na[di:di + th]                          # (th, Wp2, E)
        nb_d = nb[di:di + th]
        a0, a1 = na_d[:, 0:W2], na_d[:, 1:W2 + 1]
        b0, b1 = nb_d[:, 0:W2], nb_d[:, 1:W2 + 1]
        # q, stride 1: even / odd output columns
        acc_qe = acc_qe + a0 * wq[di * 3 + 0] + b0 * wq[di * 3 + 1] + a1 * wq[di * 3 + 2]
        acc_qo = acc_qo + b0 * wq[di * 3 + 0] + a1 * wq[di * 3 + 1] + b1 * wq[di * 3 + 2]
        # k / v, stride 2: keep every other input row (row 2r+di) via leading-dim reshape
        na_e = na_d.reshape(th2, 2, Wp2, E)[:, 0]
        nb_e = nb_d.reshape(th2, 2, Wp2, E)[:, 0]
        ae0, ae1 = na_e[:, 0:W2], na_e[:, 1:W2 + 1]
        be0 = nb_e[:, 0:W2]
        acc_k = acc_k + ae0 * wk[di * 3 + 0] + be0 * wk[di * 3 + 1] + ae1 * wk[di * 3 + 2]
        acc_v = acc_v + ae0 * wv[di * 3 + 0] + be0 * wv[di * 3 + 1] + ae1 * wv[di * 3 + 2]

    def _post(acc, c):
        # GELU -> (eval) BatchNorm folded to per-channel affine
        return _gelu(acc + b_ref[c]) * sc_ref[c] + sh_ref[c]

    q_e = _post(acc_qe, 0)
    q_o = _post(acc_qo, 0)
    q_ref[0] = jnp.concatenate([q_e, q_o], axis=-1).astype(q_ref.dtype)
    k_ref[0] = _post(acc_k, 1).astype(k_ref.dtype)
    v_ref[0] = _post(acc_v, 2).astype(v_ref.dtype)


def depthwise_ln_qkv(x_tokens, H, W, p):
    """LN1 + all three depthwise Conv2d(3, pad=1, groups=C)+GELU+BN(eval) in one kernel.

    Returns (xn, q_tok, k_tok, v_tok); q at stride 1 (L = H*W tokens), k/v computed
    directly on the stride-2 grid ((H/2)*(W/2) tokens), q/k/v in bf16.
    """
    B, L, E = x_tokens.shape
    W2, H2 = W // 2, H // 2
    img = x_tokens.reshape(B, H, W, E)
    img = jnp.pad(img, ((0, 0), (1, 1), (1, 1), (0, 0)))
    packed = img.reshape(B, H + 2, W2 + 1, 2 * E)      # column pairs -> lane dim (free reshape)
    th = _pick_spatial_tile(H)
    nT = H // th
    th2 = th // 2

    kernel = functools.partial(_dw_ln_qkv_kernel, H=H, th=th)
    xn, q, k, v = pl.pallas_call(
        kernel,
        grid=(B, nT),
        out_shape=(jax.ShapeDtypeStruct((B, H, W2, 2 * E), jnp.float32),
                   jax.ShapeDtypeStruct((B, H, W2, 2 * E), jnp.bfloat16),
                   jax.ShapeDtypeStruct((B, H2, W2, E), jnp.bfloat16),
                   jax.ShapeDtypeStruct((B, H2, W2, E), jnp.bfloat16)),
        in_specs=[pl.BlockSpec((1, H + 2, W2 + 1, 2 * E), lambda b, t: (b, 0, 0, 0)),
                  pl.BlockSpec((2, E), lambda b, t: (0, 0)),
                  pl.BlockSpec((3, 9, E), lambda b, t: (0, 0, 0)),
                  pl.BlockSpec((3, E), lambda b, t: (0, 0)),
                  pl.BlockSpec((3, E), lambda b, t: (0, 0)),
                  pl.BlockSpec((3, E), lambda b, t: (0, 0))],
        out_specs=(pl.BlockSpec((1, th, W2, 2 * E), lambda b, t: (b, t, 0, 0)),
                   pl.BlockSpec((1, th, W2, 2 * E), lambda b, t: (b, t, 0, 0)),
                   pl.BlockSpec((1, th2, W2, E), lambda b, t: (b, t, 0, 0)),
                   pl.BlockSpec((1, th2, W2, E), lambda b, t: (b, t, 0, 0))),
        compiler_params=pltpu.CompilerParams(
            dimension_semantics=("parallel", "parallel")),
    )(packed, p["ln1"], p["dw_w"], p["dw_b"], p["dw_sc"], p["dw_sh"])

    xn = xn.reshape(B, L, E)
    q = q.reshape(B, L, E)
    k = k.reshape(B, H2 * W2, E)
    v = v.reshape(B, H2 * W2, E)
    return xn, q, k, v


# ------------- fused attention: in-proj (q/k/v) + MHA + out-proj + residual -------------

def _attn_kernel(q_ref, k_ref, v_ref, xn_ref, w_ref, b_ref, o_ref, kp_ref, vp_ref,
                 *, num_heads, scale):
    qi = pl.program_id(1)

    # Project K/V once per batch element into VMEM scratch (grid's q axis is "arbitrary").
    @pl.when(qi == 0)
    def _():
        kp_ref[...] = (jnp.dot(k_ref[0], w_ref[1], preferred_element_type=jnp.float32)
                       + b_ref[1]).astype(jnp.bfloat16)
        vp_ref[...] = (jnp.dot(v_ref[0], w_ref[2], preferred_element_type=jnp.float32)
                       + b_ref[2]).astype(jnp.bfloat16)

    Q = (jnp.dot(q_ref[0], w_ref[0], preferred_element_type=jnp.float32)
         + b_ref[0]).astype(jnp.bfloat16)
    E = Q.shape[-1]
    d = E // num_heads
    K = kp_ref[...]
    V = vp_ref[...]

    heads = []
    for h in range(num_heads):
        qh = Q[:, h * d:(h + 1) * d]
        kh = K[:, h * d:(h + 1) * d]
        vh = V[:, h * d:(h + 1) * d]
        s = jax.lax.dot_general(qh, kh, (((1,), (1,)), ((), ())),
                                preferred_element_type=jnp.float32) * scale
        s = s - jnp.max(s, axis=-1, keepdims=True)
        pr = jnp.exp(s)
        pr = pr / jnp.sum(pr, axis=-1, keepdims=True)
        heads.append(jnp.dot(pr.astype(jnp.bfloat16), vh,
                             preferred_element_type=jnp.float32))
    attn = jnp.concatenate(heads, axis=-1)             # (tq, E) lane-dense
    proj = jnp.dot(attn.astype(jnp.bfloat16), w_ref[3],
                   preferred_element_type=jnp.float32) + b_ref[3]
    o_ref[0] = xn_ref[0] + proj                        # residual on the LN1 output


def attention_block(q_tok, k_tok, v_tok, xn, p, num_heads):
    B, Lq, E = q_tok.shape
    Lk = k_tok.shape[1]
    d = E // num_heads
    tq = _row_tile(Lq)
    nQ = pl.cdiv(Lq, tq)
    kernel = functools.partial(_attn_kernel, num_heads=num_heads, scale=1.0 / (d ** 0.5))
    return pl.pallas_call(
        kernel,
        grid=(B, nQ),
        out_shape=jax.ShapeDtypeStruct((B, Lq, E), jnp.float32),
        in_specs=[pl.BlockSpec((1, tq, E), lambda b, i: (b, i, 0)),
                  pl.BlockSpec((1, Lk, E), lambda b, i: (b, 0, 0)),
                  pl.BlockSpec((1, Lk, E), lambda b, i: (b, 0, 0)),
                  pl.BlockSpec((1, tq, E), lambda b, i: (b, i, 0)),
                  pl.BlockSpec((4, E, E), lambda b, i: (0, 0, 0)),
                  pl.BlockSpec((4, E), lambda b, i: (0, 0))],
        out_specs=pl.BlockSpec((1, tq, E), lambda b, i: (b, i, 0)),
        scratch_shapes=[pltpu.VMEM((Lk, E), jnp.bfloat16),
                        pltpu.VMEM((Lk, E), jnp.bfloat16)],
        compiler_params=pltpu.CompilerParams(
            dimension_semantics=("parallel", "arbitrary")),
    )(q_tok, k_tok, v_tok, xn, p["w_attn"], p["b_attn"])


# --------------------------- fused MLP: x + GELU(LN2(x)W1+b1)W2+b2 ---------------------------

def _mlp_kernel(x_ref, g_ref, b_ref, w1_ref, b1_ref, w2_ref, b2_ref, o_ref):
    x = x_ref[...]
    mu = jnp.mean(x, axis=-1, keepdims=True)
    var = jnp.mean((x - mu) ** 2, axis=-1, keepdims=True)
    xn = (x - mu) * jax.lax.rsqrt(var + EPS_LN) * g_ref[...] + b_ref[...]
    h = jnp.dot(xn.astype(jnp.bfloat16), w1_ref[...],
                preferred_element_type=jnp.float32) + b1_ref[...]
    h = _gelu(h)
    y = jnp.dot(h.astype(jnp.bfloat16), w2_ref[...],
                preferred_element_type=jnp.float32) + b2_ref[...]
    o_ref[...] = x + y


def mlp_block(x2d, p):
    M, E = x2d.shape
    Hd = p["W1"].shape[1]
    tm = _row_tile(M)
    return pl.pallas_call(
        _mlp_kernel,
        grid=(pl.cdiv(M, tm),),
        out_shape=jax.ShapeDtypeStruct((M, E), jnp.float32),
        in_specs=[pl.BlockSpec((tm, E), lambda i: (i, 0)),
                  pl.BlockSpec((1, E), lambda i: (0, 0)),
                  pl.BlockSpec((1, E), lambda i: (0, 0)),
                  pl.BlockSpec((E, Hd), lambda i: (0, 0)),
                  pl.BlockSpec((1, Hd), lambda i: (0, 0)),
                  pl.BlockSpec((Hd, E), lambda i: (0, 0)),
                  pl.BlockSpec((1, E), lambda i: (0, 0))],
        out_specs=pl.BlockSpec((tm, E), lambda i: (i, 0)),
        compiler_params=pltpu.CompilerParams(dimension_semantics=("parallel",)),
    )(x2d, p["ln2_g"].reshape(1, E), p["ln2_b"].reshape(1, E),
      p["W1"], p["b1"].reshape(1, Hd), p["W2"], p["b2"].reshape(1, E))


# ------------------------------- model forward (glue) -------------------------------

def conv_transformer_block(x, h, w, p, num_heads):
    B, L, E = x.shape
    # NB: the PyTorch block overwrites x with layer_norm_1(x); both residuals build on
    # the normalized tensor, not the raw block input. Reproduced exactly.
    xn, q_tok, k_tok, v_tok = depthwise_ln_qkv(x, h, w, p)
    x = attention_block(q_tok, k_tok, v_tok, xn, p, num_heads)   # xn + attn(q, k, v)
    x = mlp_block(x.reshape(B * L, E), p).reshape(B, L, E)       # x + mlp(ln2(x))
    return x


def cvt_stage_forward(x_nchw, params, *, patch_size, patch_stride, patch_padding, num_heads):
    x = jnp.transpose(x_nchw, (0, 2, 3, 1)).astype(jnp.float32)  # NCHW -> NHWC
    B, H, W, Cin = x.shape
    ps, st, pd = patch_size, patch_stride, patch_padding

    # conv_embedding: Conv2d(Cin, E, ps, st, pd) via im2col + tiled Pallas matmul.
    # TODO(synk): patch-embedding im2col stays in the XLA wrapper (runs once per stage).
    xp = jnp.pad(x, ((0, 0), (pd, pd), (pd, pd), (0, 0)))
    Ho = (H + 2 * pd - ps) // st + 1
    Wo = (W + 2 * pd - ps) // st + 1
    cols = []
    for i in range(ps):
        for j in range(ps):
            cols.append(xp[:, i:i + (Ho - 1) * st + 1:st, j:j + (Wo - 1) * st + 1:st, :])
    patches = jnp.stack(cols, axis=3).reshape(B * Ho * Wo, ps * ps * Cin)
    emb = matmul_bias(patches, params["emb_w"], params["emb_b"])
    E = emb.shape[-1]
    tokens = emb.reshape(B, Ho * Wo, E)
    tokens = groupnorm1(tokens, params["gn_g"], params["gn_b"])

    # TODO(synk): odd token grids and the class_token=True path (prepend learned token,
    # split/concat around the depthwise convs) are not implemented; CvTStage default
    # is class_token=False and even grids.
    assert Ho % 2 == 0 and Wo % 2 == 0, "stride-2 k/v convs require an even token grid"

    for p in params["blocks"]:
        tokens = conv_transformer_block(tokens, Ho, Wo, p, num_heads)

    out = tokens.reshape(B, Ho, Wo, E).transpose(0, 3, 1, 2)     # back to NCHW
    return out, None


# ------------------------------ parameter init ------------------------------

def init_params(key, *, in_ch, embed_dim, hidden_dim, patch_size, num_layers):
    def nrm(k, shape, std):
        return std * jax.random.normal(k, shape, jnp.float32)

    keys = iter(jax.random.split(key, 512))
    E, Hd = embed_dim, hidden_dim
    params = {
        "emb_w": nrm(next(keys), (patch_size * patch_size * in_ch, E), 0.1).astype(jnp.bfloat16),
        "emb_b": nrm(next(keys), (E,), 0.02),
        "gn_g": 1.0 + nrm(next(keys), (E,), 0.02),
        "gn_b": nrm(next(keys), (E,), 0.02),
        "blocks": [],
    }
    for _ in range(num_layers):
        dw_w, dw_b, dw_sc, dw_sh = [], [], [], []
        for _c in range(3):                     # q, k, v depthwise convs
            w = nrm(next(keys), (9, E), 0.1)    # 3x3 taps row-major, per channel
            b = nrm(next(keys), (E,), 0.02)
            bn_g = 1.0 + nrm(next(keys), (E,), 0.02)
            bn_b = nrm(next(keys), (E,), 0.02)
            run_mean = jnp.zeros((E,), jnp.float32)
            run_var = jnp.ones((E,), jnp.float32)
            scale = bn_g * jax.lax.rsqrt(run_var + EPS_BN)
            shift = bn_b - run_mean * scale
            dw_w.append(w); dw_b.append(b); dw_sc.append(scale); dw_sh.append(shift)
        w_attn = jnp.stack([nrm(next(keys), (E, E), 0.1) for _ in range(4)])  # Wq,Wk,Wv,Wo
        b_attn = jnp.stack([nrm(next(keys), (E,), 0.02) for _ in range(4)])
        blk = {
            "ln1": jnp.stack([1.0 + nrm(next(keys), (E,), 0.02),
                              nrm(next(keys), (E,), 0.02)]),
            "ln2_g": 1.0 + nrm(next(keys), (E,), 0.02),
            "ln2_b": nrm(next(keys), (E,), 0.02),
            "dw_w": jnp.stack(dw_w), "dw_b": jnp.stack(dw_b),
            "dw_sc": jnp.stack(dw_sc), "dw_sh": jnp.stack(dw_sh),
            "w_attn": w_attn.astype(jnp.bfloat16), "b_attn": b_attn,
            "W1": nrm(next(keys), (E, Hd), 0.1).astype(jnp.bfloat16),
            "b1": nrm(next(keys), (Hd,), 0.02),
            "W2": nrm(next(keys), (Hd, E), 0.1).astype(jnp.bfloat16),
            "b2": nrm(next(keys), (E,), 0.02),
        }
        params["blocks"].append(blk)
    return params


if __name__ == "__main__":
    key = jax.random.PRNGKey(0)
    k_x, k_p = jax.random.split(key)

    B, Cin, H, W = 2, 4, 16, 16
    embed_dim, hidden_dim, num_heads, num_layers = 32, 64, 4, 2
    patch_size, patch_stride, patch_padding = 3, 2, 1

    x = jax.random.normal(k_x, (B, Cin, H, W), jnp.float32)
    params = init_params(k_p, in_ch=Cin, embed_dim=embed_dim, hidden_dim=hidden_dim,
                         patch_size=patch_size, num_layers=num_layers)

    fwd = jax.jit(functools.partial(
        cvt_stage_forward,
        patch_size=patch_size, patch_stride=patch_stride,
        patch_padding=patch_padding, num_heads=num_heads))

    out, cls_tok = fwd(x, params)
    jax.block_until_ready(out)
    assert out.shape == (B, embed_dim, 8, 8), out.shape
    assert cls_tok is None
    print("KERNEL_OK")
</pallas_src>

<mosaic_0001>
module attributes {stable_mosaic.version = 11 : i64} {
  func.func @_mm_kernel(%arg0: i32, %arg1: memref<128x36xf32, #tpu.memory_space<vmem>>, %arg2: memref<36x32xbf16, #tpu.memory_space<vmem>>, %arg3: memref<1x32xf32, #tpu.memory_space<vmem>>, %arg4: memref<128x32xf32, #tpu.memory_space<vmem>>) attributes {dimension_semantics = [#tpu.dimension_semantics<parallel>], iteration_bounds = array<i64: 1>, scalar_prefetch = 0 : i64, scratch_operands = 0 : i64, tpu.core_type = #tpu.core_type<tc>, window_params = [{transform_indices = @transform_0, window_bounds = array<i64: 128, 36>}, {pipeline_mode = #tpu.pipeline_mode<synchronous>, transform_indices = @transform_1, window_bounds = array<i64: 36, 32>}, {pipeline_mode = #tpu.pipeline_mode<synchronous>, transform_indices = @transform_2, window_bounds = array<i64: 1, 32>}, {transform_indices = @transform_3, window_bounds = array<i64: 128, 32>}]} {
    %c0 = arith.constant 0 : index
    %c0_0 = arith.constant 0 : index
    %0 = vector.load %arg1[%c0, %c0_0] : memref<128x36xf32, #tpu.memory_space<vmem>>, vector<128x36xf32>
    %1 = arith.truncf %0 : vector<128x36xf32> to vector<128x36xbf16>
    %c0_1 = arith.constant 0 : index
    %c0_2 = arith.constant 0 : index
    %2 = vector.load %arg2[%c0_1, %c0_2] : memref<36x32xbf16, #tpu.memory_space<vmem>>, vector<36x32xbf16>
    %cst = arith.constant dense<0.000000e+00> : vector<128x32xf32>
    %3 = tpu.matmul %1, %2, %cst {dimension_numbers = #tpu.dot_dimension_numbers<[1], [0], [0], [1], [0, 0, 1, 1], [], []>} : vector<128x36xbf16>, vector<36x32xbf16>, vector<128x32xf32> -> vector<128x32xf32>
    %c0_3 = arith.constant 0 : index
    %c0_4 = arith.constant 0 : index
    %4 = vector.load %arg3[%c0_3, %c0_4] : memref<1x32xf32, #tpu.memory_space<vmem>>, vector<1x32xf32>
    %5 = vector.broadcast %4 : vector<1x32xf32> to vector<128x32xf32>
    %6 = arith.addf %3, %5 : vector<128x32xf32>
    %c0_5 = arith.constant 0 : index
    %c0_6 = arith.constant 0 : index
    %7 = vector.load %arg4[%c0_5, %c0_6] : memref<128x32xf32, #tpu.memory_space<vmem>>, vector<128x32xf32>
    tpu.vector_store %arg4[%c0_5, %c0_6], %6 {strides = array<i32>} : memref<128x32xf32, #tpu.memory_space<vmem>>, vector<128x32xf32>,
    return
  }
  func.func @transform_0(%arg0: i32) -> (i32, i32) {
    %c0_i32 = arith.constant 0 : i32
    %c0_i32_0 = arith.constant 0 : i32
    return %arg0, %c0_i32 : i32, i32
  }
  func.func @transform_1(%arg0: i32) -> (i32, i32) {
    %c0_i32 = arith.constant 0 : i32
    %c0_i32_0 = arith.constant 0 : i32
    %c0_i32_1 = arith.constant 0 : i32
    return %c0_i32, %c0_i32_0 : i32, i32
  }
  func.func @transform_2(%arg0: i32) -> (i32, i32) {
    %c0_i32 = arith.constant 0 : i32
    %c0_i32_0 = arith.constant 0 : i32
    %c0_i32_1 = arith.constant 0 : i32
    return %c0_i32, %c0_i32_0 : i32, i32
  }
  func.func @transform_3(%arg0: i32) -> (i32, i32) {
    %c0_i32 = arith.constant 0 : i32
    %c0_i32_0 = arith.constant 0 : i32
    return %arg0, %c0_i32 : i32, i32
  }
}

module attributes {stable_mosaic.version = 11 : i64} {
  func.func @_gn_kernel(%arg0: i32, %arg1: memref<1x64x32xf32, #tpu.memory_space<vmem>>, %arg2: memref<1x32xf32, #tpu.memory_space<vmem>>, %arg3: memref<1x32xf32, #tpu.memory_space<vmem>>, %arg4: memref<1x64x32xf32, #tpu.memory_space<vmem>>) attributes {dimension_semantics = [#tpu.dimension_semantics<parallel>], iteration_bounds = array<i64: 2>, scalar_prefetch = 0 : i64, scratch_operands = 0 : i64, tpu.core_type = #tpu.core_type<tc>, window_params = [{transform_indices = @transform_0, window_bounds = array<i64: 1, 64, 32>}, {pipeline_mode = #tpu.pipeline_mode<synchronous>, transform_indices = @transform_1, window_bounds = array<i64: 1, 32>}, {pipeline_mode = #tpu.pipeline_mode<synchronous>, transform_indices = @transform_2, window_bounds = array<i64: 1, 32>}, {transform_indices = @transform_3, window_bounds = array<i64: 1, 64, 32>}]} {
    %c0 = arith.constant 0 : index
    %c0_0 = arith.constant 0 : index
    %c0_1 = arith.constant 0 : index
    %0 = vector.load %arg1[%c0, %c0_0, %c0_1] : memref<1x64x32xf32, #tpu.memory_space<vmem>>, vector<1x64x32xf32>
    %cst = arith.constant dense<0.000000e+00> : vector<1xf32>
    %1 = vector.multi_reduction <add>, %0, %cst [1, 2] : vector<1x64x32xf32> to vector<1xf32>
    %2 = vector.shape_cast %1 : vector<1xf32> to vector<1x1x1xf32>
    %cst_2 = arith.constant 2.048000e+03 : f32
    %3 = vector.broadcast %cst_2 : f32 to vector<1x1x1xf32>
    %4 = arith.divf %2, %3 : vector<1x1x1xf32>
    %5 = vector.broadcast %4 : vector<1x1x1xf32> to vector<1x64x32xf32>
    %6 = arith.subf %0, %5 : vector<1x64x32xf32>
    %7 = arith.mulf %6, %6 : vector<1x64x32xf32>
    %cst_3 = arith.constant dense<0.000000e+00> : vector<1xf32>
    %8 = vector.multi_reduction <add>, %7, %cst_3 [1, 2] : vector<1x64x32xf32> to vector<1xf32>
    %9 = vector.shape_cast %8 : vector<1xf32> to vector<1x1x1xf32>
    %cst_4 = arith.constant 2.048000e+03 : f32
    %10 = vector.broadcast %cst_4 : f32 to vector<1x1x1xf32>
    %11 = arith.divf %9, %10 : vector<1x1x1xf32>
    %12 = vector.broadcast %4 : vector<1x1x1xf32> to vector<1x64x32xf32>
    %13 = arith.subf %0, %12 : vector<1x64x32xf32>
    %cst_5 = arith.constant 9.99999974E-6 : f32
    %14 = vector.broadcast %cst_5 : f32 to vector<1x1x1xf32>
    %15 = arith.addf %11, %14 : vector<1x1x1xf32>
    %16 = math.rsqrt %15 : vector<1x1x1xf32>
    %17 = vector.broadcast %16 : vector<1x1x1xf32> to vector<1x64x32xf32>
    %18 = arith.mulf %13, %17 : vector<1x64x32xf32>
    %c0_6 = arith.constant 0 : index
    %c0_7 = arith.constant 0 : index
    %19 = vector.load %arg2[%c0_6, %c0_7] : memref<1x32xf32, #tpu.memory_space<vmem>>, vector<1x32xf32>
    %20 = vector.shape_cast %19 : vector<1x32xf32> to vector<1x1x32xf32>
    %21 = vector.broadcast %20 : vector<1x1x32xf32> to vector<1x64x32xf32>
    %22 = arith.mulf %18, %21 : vector<1x64x32xf32>
    %c0_8 = arith.constant 0 : index
    %c0_9 = arith.constant 0 : index
    %23 = vector.load %arg3[%c0_8, %c0_9] : memref<1x32xf32, #tpu.memory_space<vmem>>, vector<1x32xf32>
    %24 = vector.shape_cast %23 : vector<1x32xf32> to vector<1x1x32xf32>
    %25 = vector.broadcast %24 : vector<1x1x32xf32> to vector<1x64x32xf32>
    %26 = arith.addf %22, %25 : vector<1x64x32xf32>
    %c0_10 = arith.constant 0 : index
    %c0_11 = arith.constant 0 : index
    %c0_12 = arith.constant 0 : index
    %27 = vector.load %arg4[%c0_10, %c0_11, %c0_12] : memref<1x64x32xf32, #tpu.memory_space<vmem>>, vector<1x64x32xf32>
    tpu.vector_store %arg4[%c0_10, %c0_11, %c0_12], %26 {strides = array<i32>} : memref<1x64x32xf32, #tpu.memory_space<vmem>>, vector<1x64x32xf32>,
    return
  }
  func.func @transform_0(%arg0: i32) -> (i32, i32, i32) {
    %c0_i32 = arith.constant 0 : i32
    %c0_i32_0 = arith.constant 0 : i32
    %c0_i32_1 = arith.constant 0 : i32
    return %arg0, %c0_i32, %c0_i32_0 : i32, i32, i32
  }
  func.func @transform_1(%arg0: i32) -> (i32, i32) {
    %c0_i32 = arith.constant 0 : i32
    %c0_i32_0 = arith.constant 0 : i32
    %c0_i32_1 = arith.constant 0 : i32
    return %c0_i32, %c0_i32_0 : i32, i32
  }
  func.func @transform_2(%arg0: i32) -> (i32, i32) {
    %c0_i32 = arith.constant 0 : i32
    %c0_i32_0 = arith.constant 0 : i32
    %c0_i32_1 = arith.constant 0 : i32
    return %c0_i32, %c0_i32_0 : i32, i32
  }
  func.func @transform_3(%arg0: i32) -> (i32, i32, i32) {
    %c0_i32 = arith.constant 0 : i32
    %c0_i32_0 = arith.constant 0 : i32
    %c0_i32_1 = arith.constant 0 : i32
    return %arg0, %c0_i32, %c0_i32_0 : i32, i32, i32
  }
}

module attributes {stable_mosaic.version = 11 : i64} {
  func.func @_dw_ln_qkv_kernel(%arg0: i32, %arg1: i32, %arg2: memref<1x10x5x64xf32, #tpu.memory_space<vmem>>, %arg3: memref<2x32xf32, #tpu.memory_space<vmem>>, %arg4: memref<3x9x32xf32, #tpu.memory_space<vmem>>, %arg5: memref<3x32xf32, #tpu.memory_space<vmem>>, %arg6: memref<3x32xf32, #tpu.memory_space<vmem>>, %arg7: memref<3x32xf32, #tpu.memory_space<vmem>>, %arg8: memref<1x4x4x64xf32, #tpu.memory_space<vmem>>, %arg9: memref<1x4x4x64xbf16, #tpu.memory_space<vmem>>, %arg10: memref<1x2x4x32xbf16, #tpu.memory_space<vmem>>, %arg11: memref<1x2x4x32xbf16, #tpu.memory_space<vmem>>) attributes {dimension_semantics = [#tpu.dimension_semantics<parallel>, #tpu.dimension_semantics<parallel>], iteration_bounds = array<i64: 2, 2>, scalar_prefetch = 0 : i64, scratch_operands = 0 : i64, tpu.core_type = #tpu.core_type<tc>, window_params = [{transform_indices = @transform_0, window_bounds = array<i64: 1, 10, 5, 64>}, {pipeline_mode = #tpu.pipeline_mode<synchronous>, transform_indices = @transform_1, window_bounds = array<i64: 2, 32>}, {pipeline_mode = #tpu.pipeline_mode<synchronous>, transform_indices = @transform_2, window_bounds = array<i64: 3, 9, 32>}, {pipeline_mode = #tpu.pipeline_mode<synchronous>, transform_indices = @transform_3, window_bounds = array<i64: 3, 32>}, {pipeline_mode = #tpu.pipeline_mode<synchronous>, transform_indices = @transform_4, window_bounds = array<i64: 3, 32>}, {pipeline_mode = #tpu.pipeline_mode<synchronous>, transform_indices = @transform_5, window_bounds = array<i64: 3, 32>}, {transform_indices = @transform_6, window_bounds = array<i64: 1, 4, 4, 64>}, {transform_indices = @transform_7, window_bounds = array<i64: 1, 4, 4, 64>}, {transform_indices = @transform_8, window_bounds = array<i64: 1, 2, 4, 32>}, {transform_indices = @transform_9, window_bounds = array<i64: 1, 2, 4, 32>}]} {
    %c4_i32 = arith.constant 4 : i32
    %0 = arith.muli %arg1, %c4_i32 : i32
    %c0 = arith.constant 0 : index
    %1 = arith.index_cast %0 : i32 to index
    %c0_0 = arith.constant 0 : index
    %c0_1 = arith.constant 0 : index
    %2 = vector.load %arg2[%c0, %1, %c0_0, %c0_1] : memref<1x10x5x64xf32, #tpu.memory_space<vmem>>, vector<1x6x5x64xf32>
    %3 = vector.shape_cast %2 : vector<1x6x5x64xf32> to vector<6x5x64xf32>
    %4 = vector.extract_strided_slice %3 {offsets = [0, 0, 0], sizes = [6, 5, 32], strides = [1, 1, 1]} : vector<6x5x64xf32> to vector<6x5x32xf32>
    %5 = vector.extract_strided_slice %3 {offsets = [0, 0, 32], sizes = [6, 5, 32], strides = [1, 1, 1]} : vector<6x5x64xf32> to vector<6x5x32xf32>
    %c0_2 = arith.constant 0 : index
    %c0_3 = arith.constant 0 : index
    %6 = vector.load %arg3[%c0_2, %c0_3] : memref<2x32xf32, #tpu.memory_space<vmem>>, vector<1x32xf32>
    %7 = vector.shape_cast %6 : vector<1x32xf32> to vector<32xf32>
    %c1 = arith.constant 1 : index
    %c0_4 = arith.constant 0 : index
    %8 = vector.load %arg3[%c1, %c0_4] : memref<2x32xf32, #tpu.memory_space<vmem>>, vector<1x32xf32>
    %9 = vector.shape_cast %8 : vector<1x32xf32> to vector<32xf32>
    %cst = arith.constant dense<0.000000e+00> : vector<6x5xf32>
    %10 = vector.multi_reduction <add>, %4, %cst [2] : vector<6x5x32xf32> to vector<6x5xf32>
    %11 = vector.shape_cast %10 : vector<6x5xf32> to vector<6x5x1xf32>
    %cst_5 = arith.constant 3.200000e+01 : f32
    %12 = vector.broadcast %cst_5 : f32 to vector<6x5x1xf32>
    %13 = arith.divf %11, %12 : vector<6x5x1xf32>
    %14 = vector.broadcast %13 : vector<6x5x1xf32> to vector<6x5x32xf32>
    %15 = arith.subf %4, %14 : vector<6x5x32xf32>
    %16 = arith.mulf %15, %15 : vector<6x5x32xf32>
    %cst_6 = arith.constant dense<0.000000e+00> : vector<6x5xf32>
    %17 = vector.multi_reduction <add>, %16, %cst_6 [2] : vector<6x5x32xf32> to vector<6x5xf32>
    %18 = vector.shape_cast %17 : vector<6x5xf32> to vector<6x5x1xf32>
    %cst_7 = arith.constant 3.200000e+01 : f32
    %19 = vector.broadcast %cst_7 : f32 to vector<6x5x1xf32>
    %20 = arith.divf %18, %19 : vector<6x5x1xf32>
    %21 = vector.broadcast %13 : vector<6x5x1xf32> to vector<6x5x32xf32>
    %22 = arith.subf %4, %21 : vector<6x5x32xf32>
    %cst_8 = arith.constant 9.99999974E-6 : f32
    %23 = vector.broadcast %cst_8 : f32 to vector<6x5x1xf32>
    %24 = arith.addf %20, %23 : vector<6x5x1xf32>
    %25 = math.rsqrt %24 : vector<6x5x1xf32>
    %26 = vector.broadcast %25 : vector<6x5x1xf32> to vector<6x5x32xf32>
    %27 = arith.mulf %22, %26 : vector<6x5x32xf32>
    %28 = vector.shape_cast %7 : vector<32xf32> to vector<1x1x32xf32>
    %29 = vector.broadcast %28 : vector<1x1x32xf32> to vector<6x5x32xf32>
    %30 = arith.mulf %27, %29 : vector<6x5x32xf32>
    %31 = vector.shape_cast %9 : vector<32xf32> to vector<1x1x32xf32>
    %32 = vector.broadcast %31 : vector<1x1x32xf32> to vector<6x5x32xf32>
    %33 = arith.addf %30, %32 : vector<6x5x32xf32>
    %cst_9 = arith.constant dense<0.000000e+00> : vector<6x5xf32>
    %34 = vector.multi_reduction <add>, %5, %cst_9 [2] : vector<6x5x32xf32> to vector<6x5xf32>
    %35 = vector.shape_cast %34 : vector<6x5xf32> to vector<6x5x1xf32>
    %cst_10 = arith.constant 3.200000e+01 : f32
    %36 = vector.broadcast %cst_10 : f32 to vector<6x5x1xf32>
    %37 = arith.divf %35, %36 : vector<6x5x1xf32>
    %38 = vector.broadcast %37 : vector<6x5x1xf32> to vector<6x5x32xf32>
    %39 = arith.subf %5, %38 : vector<6x5x32xf32>
    %40 = arith.mulf %39, %39 : vector<6x5x32xf32>
    %cst_11 = arith.constant dense<0.000000e+00> : vector<6x5xf32>
    %41 = vector.multi_reduction <add>, %40, %cst_11 [2] : vector<6x5x32xf32> to vector<6x5xf32>
    %42 = vector.shape_cast %41 : vector<6x5xf32> to vector<6x5x1xf32>
    %cst_12 = arith.constant 3.200000e+01 : f32
    %43 = vector.broadcast %cst_12 : f32 to vector<6x5x1xf32>
    %44 = arith.divf %42, %43 : vector<6x5x1xf32>
    %45 = vector.broadcast %37 : vector<6x5x1xf32> to vector<6x5x32xf32>
    %46 = arith.subf %5, %45 : vector<6x5x32xf32>
    %cst_13 = arith.constant 9.99999974E-6 : f32
    %47 = vector.broadcast %cst_13 : f32 to vector<6x5x1xf32>
    %48 = arith.addf %44, %47 : vector<6x5x1xf32>
    %49 = math.rsqrt %48 : vector<6x5x1xf32>
    %50 = vector.broadcast %49 : vector<6x5x1xf32> to vector<6x5x32xf32>
    %51 = arith.mulf %46, %50 : vector<6x5x32xf32>
    %52 = vector.shape_cast %7 : vector<32xf32> to vector<1x1x32xf32>
    %53 = vector.broadcast %52 : vector<1x1x32xf32> to vector<6x5x32xf32>
    %54 = arith.mulf %51, %53 : vector<6x5x32xf32>
    %55 = vector.shape_cast %9 : vector<32xf32> to vector<1x1x32xf32>
    %56 = vector.broadcast %55 : vector<1x1x32xf32> to vector<6x5x32xf32>
    %57 = arith.addf %54, %56 : vector<6x5x32xf32>
    %58 = tpu.iota {dimensions = array<i32: 0>} : vector<6x1x1xi32>
    %c4_i32_14 = arith.constant 4 : i32
    %59 = arith.muli %arg1, %c4_i32_14 : i32
    %60 = vector.broadcast %59 : i32 to vector<6x1x1xi32>
    %61 = arith.addi %58, %60 : vector<6x1x1xi32>
    %c0_i32 = arith.constant 0 : i32
    %62 = vector.broadcast %c0_i32 : i32 to vector<6x1x1xi32>
    %63 = arith.cmpi ne, %61, %62 : vector<6x1x1xi32>
    %c9_i32 = arith.constant 9 : i32
    %64 = vector.broadcast %c9_i32 : i32 to vector<6x1x1xi32>
    %65 = arith.cmpi ne, %61, %64 : vector<6x1x1xi32>
    %66 = arith.andi %63, %65 : vector<6x1x1xi1>
    %67 = tpu.iota {dimensions = array<i32: 1>} : vector<1x5x1xi32>
    %c0_i32_15 = arith.constant 0 : i32
    %68 = vector.broadcast %c0_i32_15 : i32 to vector<1x5x1xi32>
    %69 = arith.cmpi ne, %67, %68 : vector<1x5x1xi32>
    %70 = vector.broadcast %66 : vector<6x1x1xi1> to vector<6x5x1xi1>
    %71 = vector.broadcast %69 : vector<1x5x1xi1> to vector<6x5x1xi1>
    %72 = arith.andi %70, %71 : vector<6x5x1xi1>
    %cst_16 = arith.constant 0.000000e+00 : f32
    %73 = vector.shape_cast %72 : vector<6x5x1xi1> to vector<6x5x1xi1>
    %74 = vector.broadcast %73 : vector<6x5x1xi1> to vector<6x5x32xi1>
    %75 = vector.broadcast %cst_16 : f32 to vector<6x5x32xf32>
    %76 = arith.select %74, %33, %75 : vector<6x5x32xi1>, vector<6x5x32xf32>
    %c4_i32_17 = arith.constant 4 : i32
    %77 = vector.broadcast %c4_i32_17 : i32 to vector<1x5x1xi32>
    %78 = arith.cmpi ne, %67, %77 : vector<1x5x1xi32>
    %79 = vector.broadcast %66 : vector<6x1x1xi1> to vector<6x5x1xi1>
    %80 = vector.broadcast %78 : vector<1x5x1xi1> to vector<6x5x1xi1>
    %81 = arith.andi %79, %80 : vector<6x5x1xi1>
    %cst_18 = arith.constant 0.000000e+00 : f32
    %82 = vector.shape_cast %81 : vector<6x5x1xi1> to vector<6x5x1xi1>
    %83 = vector.broadcast %82 : vector<6x5x1xi1> to vector<6x5x32xi1>
    %84 = vector.broadcast %cst_18 : f32 to vector<6x5x32xf32>
    %85 = arith.select %83, %57, %84 : vector<6x5x32xi1>, vector<6x5x32xf32>
    %86 = vector.extract_strided_slice %85 {offsets = [1, 0, 0], sizes = [4, 4, 32], strides = [1, 1, 1]} : vector<6x5x32xf32> to vector<4x4x32xf32>
    %87 = vector.extract_strided_slice %76 {offsets = [1, 1, 0], sizes = [4, 4, 32], strides = [1, 1, 1]} : vector<6x5x32xf32> to vector<4x4x32xf32>
    %88 = tpu.concatenate %86, %87 in 2 : vector<4x4x32xf32>, vector<4x4x32xf32> -> vector<4x4x64xf32>
    %c0_19 = arith.constant 0 : index
    %c0_20 = arith.constant 0 : index
    %c0_21 = arith.constant 0 : index
    %c0_22 = arith.constant 0 : index
    %89 = vector.load %arg8[%c0_19, %c0_20, %c0_21, %c0_22] : memref<1x4x4x64xf32, #tpu.memory_space<vmem>>, vector<1x4x4x64xf32>
    %90 = vector.shape_cast %89 : vector<1x4x4x64xf32> to vector<4x4x64xf32>
    %91 = vector.shape_cast %88 : vector<4x4x64xf32> to vector<1x4x4x64xf32>
    tpu.vector_store %arg8[%c0_19, %c0_20, %c0_21, %c0_22], %91 {strides = array<i32>} : memref<1x4x4x64xf32, #tpu.memory_space<vmem>>, vector<1x4x4x64xf32>,
    %c0_23 = arith.constant 0 : index
    %c0_24 = arith.constant 0 : index
    %c0_25 = arith.constant 0 : index
    %92 = vector.load %arg4[%c0_23, %c0_24, %c0_25] : memref<3x9x32xf32, #tpu.memory_space<vmem>>, vector<1x9x32xf32>
    %93 = vector.shape_cast %92 : vector<1x9x32xf32> to vector<9x32xf32>
    %c1_26 = arith.constant 1 : index
    %c0_27 = arith.constant 0 : index
    %c0_28 = arith.constant 0 : index
    %94 = vector.load %arg4[%c1_26, %c0_27, %c0_28] : memref<3x9x32xf32, #tpu.memory_space<vmem>>, vector<1x9x32xf32>
    %95 = vector.shape_cast %94 : vector<1x9x32xf32> to vector<9x32xf32>
    %c2 = arith.constant 2 : index
    %c0_29 = arith.constant 0 : index
    %c0_30 = arith.constant 0 : index
    %96 = vector.load %arg4[%c2, %c0_29, %c0_30] : memref<3x9x32xf32, #tpu.memory_space<vmem>>, vector<1x9x32xf32>
    %97 = vector.shape_cast %96 : vector<1x9x32xf32> to vector<9x32xf32>
    %cst_31 = arith.constant 0.000000e+00 : f32
    %98 = vector.broadcast %cst_31 : f32 to vector<4x4x32xf32>
    %cst_32 = arith.constant 0.000000e+00 : f32
    %99 = vector.broadcast %cst_32 : f32 to vector<4x4x32xf32>
    %cst_33 = arith.constant 0.000000e+00 : f32
    %100 = vector.broadcast %cst_33 : f32 to vector<2x4x32xf32>
    %cst_34 = arith.constant 0.000000e+00 : f32
    %101 = vector.broadcast %cst_34 : f32 to vector<2x4x32xf32>
    %102 = vector.extract_strided_slice %76 {offsets = [0, 0, 0], sizes = [4, 5, 32], strides = [1, 1, 1]} : vector<6x5x32xf32> to vector<4x5x32xf32>
    %103 = vector.extract_strided_slice %85 {offsets = [0, 0, 0], sizes = [4, 5, 32], strides = [1, 1, 1]} : vector<6x5x32xf32> to vector<4x5x32xf32>
    %104 = vector.extract_strided_slice %102 {offsets = [0, 0, 0], sizes = [4, 4, 32], strides = [1, 1, 1]} : vector<4x5x32xf32> to vector<4x4x32xf32>
    %105 = vector.extract_strided_slice %102 {offsets = [0, 1, 0], sizes = [4, 4, 32], strides = [1, 1, 1]} : vector<4x5x32xf32> to vector<4x4x32xf32>
    %106 = vector.extract_strided_slice %103 {offsets = [0, 0, 0], sizes = [4, 4, 32], strides = [1, 1, 1]} : vector<4x5x32xf32> to vector<4x4x32xf32>
    %107 = vector.extract_strided_slice %103 {offsets = [0, 1, 0], sizes = [4, 4, 32], strides = [1, 1, 1]} : vector<4x5x32xf32> to vector<4x4x32xf32>
    %108 = vector.extract_strided_slice %93 {offsets = [0, 0], sizes = [1, 32], strides = [1, 1]} : vector<9x32xf32> to vector<1x32xf32>
    %109 = vector.shape_cast %108 : vector<1x32xf32> to vector<32xf32>
    %110 = vector.shape_cast %109 : vector<32xf32> to vector<1x1x32xf32>
    %111 = vector.broadcast %110 : vector<1x1x32xf32> to vector<4x4x32xf32>
    %112 = arith.mulf %104, %111 : vector<4x4x32xf32>
    %113 = arith.addf %98, %112 : vector<4x4x32xf32>
    %114 = vector.extract_strided_slice %93 {offsets = [1, 0], sizes = [1, 32], strides = [1, 1]} : vector<9x32xf32> to vector<1x32xf32>
    %115 = vector.shape_cast %114 : vector<1x32xf32> to vector<32xf32>
    %116 = vector.shape_cast %115 : vector<32xf32> to vector<1x1x32xf32>
    %117 = vector.broadcast %116 : vector<1x1x32xf32> to vector<4x4x32xf32>
    %118 = arith.mulf %106, %117 : vector<4x4x32xf32>
    %119 = arith.addf %113, %118 : vector<4x4x32xf32>
    %120 = vector.extract_strided_slice %93 {offsets = [2, 0], sizes = [1, 32], strides = [1, 1]} : vector<9x32xf32> to vector<1x32xf32>
    %121 = vector.shape_cast %120 : vector<1x32xf32> to vector<32xf32>
    %122 = vector.shape_cast %121 : vector<32xf32> to vector<1x1x32xf32>
    %123 = vector.broadcast %122 : vector<1x1x32xf32> to vector<4x4x32xf32>
    %124 = arith.mulf %105, %123 : vector<4x4x32xf32>
    %125 = arith.addf %119, %124 : vector<4x4x32xf32>
    %126 = vector.extract_strided_slice %93 {offsets = [0, 0], sizes = [1, 32], strides = [1, 1]} : vector<9x32xf32> to vector<1x32xf32>
    %127 = vector.shape_cast %126 : vector<1x32xf32> to vector<32xf32>
    %128 = vector.shape_cast %127 : vector<32xf32> to vector<1x1x32xf32>
    %129 = vector.broadcast %128 : vector<1x1x32xf32> to vector<4x4x32xf32>
    %130 = arith.mulf %106, %129 : vector<4x4x32xf32>
    %131 = arith.addf %99, %130 : vector<4x4x32xf32>
    %132 = vector.extract_strided_slice %93 {offsets = [1, 0], sizes = [1, 32], strides = [1, 1]} : vector<9x32xf32> to vector<1x32xf32>
    %133 = vector.shape_cast %132 : vector<1x32xf32> to vector<32xf32>
    %134 = vector.shape_cast %133 : vector<32xf32> to vector<1x1x32xf32>
    %135 = vector.broadcast %134 : vector<1x1x32xf32> to vector<4x4x32xf32>
    %136 = arith.mulf %105, %135 : vector<4x4x32xf32>
    %137 = arith.addf %131, %136 : vector<4x4x32xf32>
    %138 = vector.extract_strided_slice %93 {offsets = [2, 0], sizes = [1, 32], strides = [1, 1]} : vector<9x32xf32> to vector<1x32xf32>
    %139 = vector.shape_cast %138 : vector<1x32xf32> to vector<32xf32>
    %140 = vector.shape_cast %139 : vector<32xf32> to vector<1x1x32xf32>
    %141 = vector.broadcast %140 : vector<1x1x32xf32> to vector<4x4x32xf32>
    %142 = arith.mulf %107, %141 : vector<4x4x32xf32>
    %143 = arith.addf %137, %142 : vector<4x4x32xf32>
    %144 = vector.shape_cast %102 : vector<4x5x32xf32> to vector<2x2x5x32xf32>
    %145 = vector.extract_strided_slice %144 {offsets = [0, 0, 0, 0], sizes = [2, 1, 5, 32], strides = [1, 1, 1, 1]} : vector<2x2x5x32xf32> to vector<2x1x5x32xf32>
    %146 = vector.shape_cast %145 : vector<2x1x5x32xf32> to vector<2x5x32xf32>
    %147 = vector.shape_cast %103 : vector<4x5x32xf32> to vector<2x2x5x32xf32>
    %148 = vector.extract_strided_slice %147 {offsets = [0, 0, 0, 0], sizes = [2, 1, 5, 32], strides = [1, 1, 1, 1]} : vector<2x2x5x32xf32> to vector<2x1x5x32xf32>
    %149 = vector.shape_cast %148 : vector<2x1x5x32xf32> to vector<2x5x32xf32>
    %150 = vector.extract_strided_slice %146 {offsets = [0, 0, 0], sizes = [2, 4, 32], strides = [1, 1, 1]} : vector<2x5x32xf32> to vector<2x4x32xf32>
    %151 = vector.extract_strided_slice %146 {offsets = [0, 1, 0], sizes = [2, 4, 32], strides = [1, 1, 1]} : vector<2x5x32xf32> to vector<2x4x32xf32>
    %152 = vector.extract_strided_slice %149 {offsets = [0, 0, 0], sizes = [2, 4, 32], strides = [1, 1, 1]} : vector<2x5x32xf32> to vector<2x4x32xf32>
    %153 = vector.extract_strided_slice %95 {offsets = [0, 0], sizes = [1, 32], strides = [1, 1]} : vector<9x32xf32> to vector<1x32xf32>
    %154 = vector.shape_cast %153 : vector<1x32xf32> to vector<32xf32>
    %155 = vector.shape_cast %154 : vector<32xf32> to vector<1x1x32xf32>
    %156 = vector.broadcast %155 : vector<1x1x32xf32> to vector<2x4x32xf32>
    %157 = arith.mulf %150, %156 : vector<2x4x32xf32>
    %158 = arith.addf %100, %157 : vector<2x4x32xf32>
    %159 = vector.extract_strided_slice %95 {offsets = [1, 0], sizes = [1, 32], strides = [1, 1]} : vector<9x32xf32> to vector<1x32xf32>
    %160 = vector.shape_cast %159 : vector<1x32xf32> to vector<32xf32>
    %161 = vector.shape_cast %160 : vector<32xf32> to vector<1x1x32xf32>
    %162 = vector.broadcast %161 : vector<1x1x32xf32> to vector<2x4x32xf32>
    %163 = arith.mulf %152, %162 : vector<2x4x32xf32>
    %164 = arith.addf %158, %163 : vector<2x4x32xf32>
    %165 = vector.extract_strided_slice %95 {offsets = [2, 0], sizes = [1, 32], strides = [1, 1]} : vector<9x32xf32> to vector<1x32xf32>
    %166 = vector.shape_cast %165 : vector<1x32xf32> to vector<32xf32>
    %167 = vector.shape_cast %166 : vector<32xf32> to vector<1x1x32xf32>
    %168 = vector.broadcast %167 : vector<1x1x32xf32> to vector<2x4x32xf32>
    %169 = arith.mulf %151, %168 : vector<2x4x32xf32>
    %170 = arith.addf %164, %169 : vector<2x4x32xf32>
    %171 = vector.extract_strided_slice %97 {offsets = [0, 0], sizes = [1, 32], strides = [1, 1]} : vector<9x32xf32> to vector<1x32xf32>
    %172 = vector.shape_cast %171 : vector<1x32xf32> to vector<32xf32>
    %173 = vector.shape_cast %172 : vector<32xf32> to vector<1x1x32xf32>
    %174 = vector.broadcast %173 : vector<1x1x32xf32> to vector<2x4x32xf32>
    %175 = arith.mulf %150, %174 : vector<2x4x32xf32>
    %176 = arith.addf %101, %175 : vector<2x4x32xf32>
    %177 = vector.extract_strided_slice %97 {offsets = [1, 0], sizes = [1, 32], strides = [1, 1]} : vector<9x32xf32> to vector<1x32xf32>
    %178 = vector.shape_cast %177 : vector<1x32xf32> to vector<32xf32>
    %179 = vector.shape_cast %178 : vector<32xf32> to vector<1x1x32xf32>
    %180 = vector.broadcast %179 : vector<1x1x32xf32> to vector<2x4x32xf32>
    %181 = arith.mulf %152, %180 : vector<2x4x32xf32>
    %182 = arith.addf %176, %181 : vector<2x4x32xf32>
    %183 = vector.extract_strided_slice %97 {offsets = [2, 0], sizes = [1, 32], strides = [1, 1]} : vector<9x32xf32> to vector<1x32xf32>
    %184 = vector.shape_cast %183 : vector<1x32xf32> to vector<32xf32>
    %185 = vector.shape_cast %184 : vector<32xf32> to vector<1x1x32xf32>
    %186 = vector.broadcast %185 : vector<1x1x32xf32> to vector<2x4x32xf32>
    %187 = arith.mulf %151, %186 : vector<2x4x32xf32>
    %188 = arith.addf %182, %187 : vector<2x4x32xf32>
    %189 = vector.extract_strided_slice %76 {offsets = [1, 0, 0], sizes = [4, 5, 32], strides = [1, 1, 1]} : vector<6x5x32xf32> to vector<4x5x32xf32>
    %190 = vector.extract_strided_slice %85 {offsets = [1, 0, 0], sizes = [4, 5, 32], strides = [1, 1, 1]} : vector<6x5x32xf32> to vector<4x5x32xf32>
    %191 = vector.extract_strided_slice %189 {offsets = [0, 0, 0], sizes = [4, 4, 32], strides = [1, 1, 1]} : vector<4x5x32xf32> to vector<4x4x32xf32>
    %192 = vector.extract_strided_slice %189 {offsets = [0, 1, 0], sizes = [4, 4, 32], strides = [1, 1, 1]} : vector<4x5x32xf32> to vector<4x4x32xf32>
    %193 = vector.extract_strided_slice %190 {offsets = [0, 0, 0], sizes = [4, 4, 32], strides = [1, 1, 1]} : vector<4x5x32xf32> to vector<4x4x32xf32>
    %194 = vector.extract_strided_slice %190 {offsets = [0, 1, 0], sizes = [4, 4, 32], strides = [1, 1, 1]} : vector<4x5x32xf32> to vector<4x4x32xf32>
    %195 = vector.extract_strided_slice %93 {offsets = [3, 0], sizes = [1, 32], strides = [1, 1]} : vector<9x32xf32> to vector<1x32xf32>
    %196 = vector.shape_cast %195 : vector<1x32xf32> to vector<32xf32>
    %197 = vector.shape_cast %196 : vector<32xf32> to vector<1x1x32xf32>
    %198 = vector.broadcast %197 : vector<1x1x32xf32> to vector<4x4x32xf32>
    %199 = arith.mulf %191, %198 : vector<4x4x32xf32>
    %200 = arith.addf %125, %199 : vector<4x4x32xf32>
    %201 = vector.extract_strided_slice %93 {offsets = [4, 0], sizes = [1, 32], strides = [1, 1]} : vector<9x32xf32> to vector<1x32xf32>
    %202 = vector.shape_cast %201 : vector<1x32xf32> to vector<32xf32>
    %203 = vector.shape_cast %202 : vector<32xf32> to vector<1x1x32xf32>
    %204 = vector.broadcast %203 : vector<1x1x32xf32> to vector<4x4x32xf32>
    %205 = arith.mulf %193, %204 : vector<4x4x32xf32>
    %206 = arith.addf %200, %205 : vector<4x4x32xf32>
    %207 = vector.extract_strided_slice %93 {offsets = [5, 0], sizes = [1, 32], strides = [1, 1]} : vector<9x32xf32> to vector<1x32xf32>
    %208 = vector.shape_cast %207 : vector<1x32xf32> to vector<32xf32>
    %209 = vector.shape_cast %208 : vector<32xf32> to vector<1x1x32xf32>
    %210 = vector.broadcast %209 : vector<1x1x32xf32> to vector<4x4x32xf32>
    %211 = arith.mulf %192, %210 : vector<4x4x32xf32>
    %212 = arith.addf %206, %211 : vector<4x4x32xf32>
    %213 = vector.extract_strided_slice %93 {offsets = [3, 0], sizes = [1, 32], strides = [1, 1]} : vector<9x32xf32> to vector<1x32xf32>
    %214 = vector.shape_cast %213 : vector<1x32xf32> to vector<32xf32>
    %215 = vector.shape_cast %214 : vector<32xf32> to vector<1x1x32xf32>
    %216 = vector.broadcast %215 : vector<1x1x32xf32> to vector<4x4x32xf32>
    %217 = arith.mulf %193, %216 : vector<4x4x32xf32>
    %218 = arith.addf %143, %217 : vector<4x4x32xf32>
    %219 = vector.extract_strided_slice %93 {offsets = [4, 0], sizes = [1, 32], strides = [1, 1]} : vector<9x32xf32> to vector<1x32xf32>
    %220 = vector.shape_cast %219 : vector<1x32xf32> to vector<32xf32>
    %221 = vector.shape_cast %220 : vector<32xf32> to vector<1x1x32xf32>
    %222 = vector.broadcast %221 : vector<1x1x32xf32> to vector<4x4x32xf32>
    %223 = arith.mulf %192, %222 : vector<4x4x32xf32>
    %224 = arith.addf %218, %223 : vector<4x4x32xf32>
    %225 = vector.extract_strided_slice %93 {offsets = [5, 0], sizes = [1, 32], strides = [1, 1]} : vector<9x32xf32> to vector<1x32xf32>
    %226 = vector.shape_cast %225 : vector<1x32xf32> to vector<32xf32>
    %227 = vector.shape_cast %226 : vector<32xf32> to vector<1x1x32xf32>
    %228 = vector.broadcast %227 : vector<1x1x32xf32> to vector<4x4x32xf32>
    %229 = arith.mulf %194, %228 : vector<4x4x32xf32>
    %230 = arith.addf %224, %229 : vector<4x4x32xf32>
    %231 = vector.shape_cast %189 : vector<4x5x32xf32> to vector<2x2x5x32xf32>
    %232 = vector.extract_strided_slice %231 {offsets = [0, 0, 0, 0], sizes = [2, 1, 5, 32], strides = [1, 1, 1, 1]} : vector<2x2x5x32xf32> to vector<2x1x5x32xf32>
    %233 = vector.shape_cast %232 : vector<2x1x5x32xf32> to vector<2x5x32xf32>
    %234 = vector.shape_cast %190 : vector<4x5x32xf32> to vector<2x2x5x32xf32>
    %235 = vector.extract_strided_slice %234 {offsets = [0, 0, 0, 0], sizes = [2, 1, 5, 32], strides = [1, 1, 1, 1]} : vector<2x2x5x32xf32> to vector<2x1x5x32xf32>
    %236 = vector.shape_cast %235 : vector<2x1x5x32xf32> to vector<2x5x32xf32>
    %237 = vector.extract_strided_slice %233 {offsets = [0, 0, 0], sizes = [2, 4, 32], strides = [1, 1, 1]} : vector<2x5x32xf32> to vector<2x4x32xf32>
    %238 = vector.extract_strided_slice %233 {offsets = [0, 1, 0], sizes = [2, 4, 32], strides = [1, 1, 1]} : vector<2x5x32xf32> to vector<2x4x32xf32>
    %239 = vector.extract_strided_slice %236 {offsets = [0, 0, 0], sizes = [2, 4, 32], strides = [1, 1, 1]} : vector<2x5x32xf32> to vector<2x4x32xf32>
    %240 = vector.extract_strided_slice %95 {offsets = [3, 0], sizes = [1, 32], strides = [1, 1]} : vector<9x32xf32> to vector<1x32xf32>
    %241 = vector.shape_cast %240 : vector<1x32xf32> to vector<32xf32>
    %242 = vector.shape_cast %241 : vector<32xf32> to vector<1x1x32xf32>
    %243 = vector.broadcast %242 : vector<1x1x32xf32> to vector<2x4x32xf32>
    %244 = arith.mulf %237, %243 : vector<2x4x32xf32>
    %245 = arith.addf %170, %244 : vector<2x4x32xf32>
    %246 = vector.extract_strided_slice %95 {offsets = [4, 0], sizes = [1, 32], strides = [1, 1]} : vector<9x32xf32> to vector<1x32xf32>
    %247 = vector.shape_cast %246 : vector<1x32xf32> to vector<32xf32>
    %248 = vector.shape_cast %247 : vector<32xf32> to vector<1x1x32xf32>
    %249 = vector.broadcast %248 : vector<1x1x32xf32> to vector<2x4x32xf32>
    %250 = arith.mulf %239, %249 : vector<2x4x32xf32>
    %251 = arith.addf %245, %250 : vector<2x4x32xf32>
    %252 = vector.extract_strided_slice %95 {offsets = [5, 0], sizes = [1, 32], strides = [1, 1]} : vector<9x32xf32> to vector<1x32xf32>
    %253 = vector.shape_cast %252 : vector<1x32xf32> to vector<32xf32>
    %254 = vector.shape_cast %253 : vector<32xf32> to vector<1x1x32xf32>
    %255 = vector.broadcast %254 : vector<1x1x32xf32> to vector<2x4x32xf32>
    %256 = arith.mulf %238, %255 : vector<2x4x32xf32>
    %257 = arith.addf %251, %256 : vector<2x4x32xf32>
    %258 = vector.extract_strided_slice %97 {offsets = [3, 0], sizes = [1, 32], strides = [1, 1]} : vector<9x32xf32> to vector<1x32xf32>
    %259 = vector.shape_cast %258 : vector<1x32xf32> to vector<32xf32>
    %260 = vector.shape_cast %259 : vector<32xf32> to vector<1x1x32xf32>
    %261 = vector.broadcast %260 : vector<1x1x32xf32> to vector<2x4x32xf32>
    %262 = arith.mulf %237, %261 : vector<2x4x32xf32>
    %263 = arith.addf %188, %262 : vector<2x4x32xf32>
    %264 = vector.extract_strided_slice %97 {offsets = [4, 0], sizes = [1, 32], strides = [1, 1]} : vector<9x32xf32> to vector<1x32xf32>
    %265 = vector.shape_cast %264 : vector<1x32xf32> to vector<32xf32>
    %266 = vector.shape_cast %265 : vector<32xf32> to vector<1x1x32xf32>
    %267 = vector.broadcast %266 : vector<1x1x32xf32> to vector<2x4x32xf32>
    %268 = arith.mulf %239, %267 : vector<2x4x32xf32>
    %269 = arith.addf %263, %268 : vector<2x4x32xf32>
    %270 = vector.extract_strided_slice %97 {offsets = [5, 0], sizes = [1, 32], strides = [1, 1]} : vector<9x32xf32> to vector<1x32xf32>
    %271 = vector.shape_cast %270 : vector<1x32xf32> to vector<32xf32>
    %272 = vector.shape_cast %271 : vector<32xf32> to vector<1x1x32xf32>
    %273 = vector.broadcast %272 : vector<1x1x32xf32> to vector<2x4x32xf32>
    %274 = arith.mulf %238, %273 : vector<2x4x32xf32>
    %275 = arith.addf %269, %274 : vector<2x4x32xf32>
    %276 = vector.extract_strided_slice %76 {offsets = [2, 0, 0], sizes = [4, 5, 32], strides = [1, 1, 1]} : vector<6x5x32xf32> to vector<4x5x32xf32>
    %277 = vector.extract_strided_slice %85 {offsets = [2, 0, 0], sizes = [4, 5, 32], strides = [1, 1, 1]} : vector<6x5x32xf32> to vector<4x5x32xf32>
    %278 = vector.extract_strided_slice %276 {offsets = [0, 0, 0], sizes = [4, 4, 32], strides = [1, 1, 1]} : vector<4x5x32xf32> to vector<4x4x32xf32>
    %279 = vector.extract_strided_slice %276 {offsets = [0, 1, 0], sizes = [4, 4, 32], strides = [1, 1, 1]} : vector<4x5x32xf32> to vector<4x4x32xf32>
    %280 = vector.extract_strided_slice %277 {offsets = [0, 0, 0], sizes = [4, 4, 32], strides = [1, 1, 1]} : vector<4x5x32xf32> to vector<4x4x32xf32>
    %281 = vector.extract_strided_slice %277 {offsets = [0, 1, 0], sizes = [4, 4, 32], strides = [1, 1, 1]} : vector<4x5x32xf32> to vector<4x4x32xf32>
    %282 = vector.extract_strided_slice %93 {offsets = [6, 0], sizes = [1, 32], strides = [1, 1]} : vector<9x32xf32> to vector<1x32xf32>
    %283 = vector.shape_cast %282 : vector<1x32xf32> to vector<32xf32>
    %284 = vector.shape_cast %283 : vector<32xf32> to vector<1x1x32xf32>
    %285 = vector.broadcast %284 : vector<1x1x32xf32> to vector<4x4x32xf32>
    %286 = arith.mulf %278, %285 : vector<4x4x32xf32>
    %287 = arith.addf %212, %286 : vector<4x4x32xf32>
    %288 = vector.extract_strided_slice %93 {offsets = [7, 0], sizes = [1, 32], strides = [1, 1]} : vector<9x32xf32> to vector<1x32xf32>
    %289 = vector.shape_cast %288 : vector<1x32xf32> to vector<32xf32>
    %290 = vector.shape_cast %289 : vector<32xf32> to vector<1x1x32xf32>
    %291 = vector.broadcast %290 : vector<1x1x32xf32> to vector<4x4x32xf32>
    %292 = arith.mulf %280, %291 : vector<4x4x32xf32>
    %293 = arith.addf %287, %292 : vector<4x4x32xf32>
    %294 = vector.extract_strided_slice %93 {offsets = [8, 0], sizes = [1, 32], strides = [1, 1]} : vector<9x32xf32> to vector<1x32xf32>
    %295 = vector.shape_cast %294 : vector<1x32xf32> to vector<32xf32>
    %296 = vector.shape_cast %295 : vector<32xf32> to vector<1x1x32xf32>
    %297 = vector.broadcast %296 : vector<1x1x32xf32> to vector<4x4x32xf32>
    %298 = arith.mulf %279, %297 : vector<4x4x32xf32>
    %299 = arith.addf %293, %298 : vector<4x4x32xf32>
    %300 = vector.extract_strided_slice %93 {offsets = [6, 0], sizes = [1, 32], strides = [1, 1]} : vector<9x32xf32> to vector<1x32xf32>
    %301 = vector.shape_cast %300 : vector<1x32xf32> to vector<32xf32>
    %302 = vector.shape_cast %301 : vector<32xf32> to vector<1x1x32xf32>
    %303 = vector.broadcast %302 : vector<1x1x32xf32> to vector<4x4x32xf32>
    %304 = arith.mulf %280, %303 : vector<4x4x32xf32>
    %305 = arith.addf %230, %304 : vector<4x4x32xf32>
    %306 = vector.extract_strided_slice %93 {offsets = [7, 0], sizes = [1, 32], strides = [1, 1]} : vector<9x32xf32> to vector<1x32xf32>
    %307 = vector.shape_cast %306 : vector<1x32xf32> to vector<32xf32>
    %308 = vector.shape_cast %307 : vector<32xf32> to vector<1x1x32xf32>
    %309 = vector.broadcast %308 : vector<1x1x32xf32> to vector<4x4x32xf32>
    %310 = arith.mulf %279, %309 : vector<4x4x32xf32>
    %311 = arith.addf %305, %310 : vector<4x4x32xf32>
    %312 = vector.extract_strided_slice %93 {offsets = [8, 0], sizes = [1, 32], strides = [1, 1]} : vector<9x32xf32> to vector<1x32xf32>
    %313 = vector.shape_cast %312 : vector<1x32xf32> to vector<32xf32>
    %314 = vector.shape_cast %313 : vector<32xf32> to vector<1x1x32xf32>
    %315 = vector.broadcast %314 : vector<1x1x32xf32> to vector<4x4x32xf32>
    %316 = arith.mulf %281, %315 : vector<4x4x32xf32>
    %317 = arith.addf %311, %316 : vector<4x4x32xf32>
    %318 = vector.shape_cast %276 : vector<4x5x32xf32> to vector<2x2x5x32xf32>
    %319 = vector.extract_strided_slice %318 {offsets = [0, 0, 0, 0], sizes = [2, 1, 5, 32], strides = [1, 1, 1, 1]} : vector<2x2x5x32xf32> to vector<2x1x5x32xf32>
    %320 = vector.shape_cast %319 : vector<2x1x5x32xf32> to vector<2x5x32xf32>
    %321 = vector.shape_cast %277 : vector<4x5x32xf32> to vector<2x2x5x32xf32>
    %322 = vector.extract_strided_slice %321 {offsets = [0, 0, 0, 0], sizes = [2, 1, 5, 32], strides = [1, 1, 1, 1]} : vector<2x2x5x32xf32> to vector<2x1x5x32xf32>
    %323 = vector.shape_cast %322 : vector<2x1x5x32xf32> to vector<2x5x32xf32>
    %324 = vector.extract_strided_slice %320 {offsets = [0, 0, 0], sizes = [2, 4, 32], strides = [1, 1, 1]} : vector<2x5x32xf32> to vector<2x4x32xf32>
    %325 = vector.extract_strided_slice %320 {offsets = [0, 1, 0], sizes = [2, 4, 32], strides = [1, 1, 1]} : vector<2x5x32xf32> to vector<2x4x32xf32>
    %326 = vector.extract_strided_slice %323 {offsets = [0, 0, 0], sizes = [2, 4, 32], strides = [1, 1, 1]} : vector<2x5x32xf32> to vector<2x4x32xf32>
    %327 = vector.extract_strided_slice %95 {offsets = [6, 0], sizes = [1, 32], strides = [1, 1]} : vector<9x32xf32> to vector<1x32xf32>
    %328 = vector.shape_cast %327 : vector<1x32xf32> to vector<32xf32>
    %329 = vector.shape_cast %328 : vector<32xf32> to vector<1x1x32xf32>
    %330 = vector.broadcast %329 : vector<1x1x32xf32> to vector<2x4x32xf32>
    %331 = arith.mulf %324, %330 : vector<2x4x32xf32>
    %332 = arith.addf %257, %331 : vector<2x4x32xf32>
    %333 = vector.extract_strided_slice %95 {offsets = [7, 0], sizes = [1, 32], strides = [1, 1]} : vector<9x32xf32> to vector<1x32xf32>
    %334 = vector.shape_cast %333 : vector<1x32xf32> to vector<32xf32>
    %335 = vector.shape_cast %334 : vector<32xf32> to vector<1x1x32xf32>
    %336 = vector.broadcast %335 : vector<1x1x32xf32> to vector<2x4x32xf32>
    %337 = arith.mulf %326, %336 : vector<2x4x32xf32>
    %338 = arith.addf %332, %337 : vector<2x4x32xf32>
    %339 = vector.extract_strided_slice %95 {offsets = [8, 0], sizes = [1, 32], strides = [1, 1]} : vector<9x32xf32> to vector<1x32xf32>
    %340 = vector.shape_cast %339 : vector<1x32xf32> to vector<32xf32>
    %341 = vector.shape_cast %340 : vector<32xf32> to vector<1x1x32xf32>
    %342 = vector.broadcast %341 : vector<1x1x32xf32> to vector<2x4x32xf32>
    %343 = arith.mulf %325, %342 : vector<2x4x32xf32>
    %344 = arith.addf %338, %343 : vector<2x4x32xf32>
    %345 = vector.extract_strided_slice %97 {offsets = [6, 0], sizes = [1, 32], strides = [1, 1]} : vector<9x32xf32> to vector<1x32xf32>
    %346 = vector.shape_cast %345 : vector<1x32xf32> to vector<32xf32>
    %347 = vector.shape_cast %346 : vector<32xf32> to vector<1x1x32xf32>
    %348 = vector.broadcast %347 : vector<1x1x32xf32> to vector<2x4x32xf32>
    %349 = arith.mulf %324, %348 : vector<2x4x32xf32>
    %350 = arith.addf %275, %349 : vector<2x4x32xf32>
    %351 = vector.extract_strided_slice %97 {offsets = [7, 0], sizes = [1, 32], strides = [1, 1]} : vector<9x32xf32> to vector<1x32xf32>
    %352 = vector.shape_cast %351 : vector<1x32xf32> to vector<32xf32>
    %353 = vector.shape_cast %352 : vector<32xf32> to vector<1x1x32xf32>
    %354 = vector.broadcast %353 : vector<1x1x32xf32> to vector<2x4x32xf32>
    %355 = arith.mulf %326, %354 : vector<2x4x32xf32>
    %356 = arith.addf %350, %355 : vector<2x4x32xf32>
    %357 = vector.extract_strided_slice %97 {offsets = [8, 0], sizes = [1, 32], strides = [1, 1]} : vector<9x32xf32> to vector<1x32xf32>
    %358 = vector.shape_cast %357 : vector<1x32xf32> to vector<32xf32>
    %359 = vector.shape_cast %358 : vector<32xf32> to vector<1x1x32xf32>
    %360 = vector.broadcast %359 : vector<1x1x32xf32> to vector<2x4x32xf32>
    %361 = arith.mulf %325, %360 : vector<2x4x32xf32>
    %362 = arith.addf %356, %361 : vector<2x4x32xf32>
    %c0_35 = arith.constant 0 : index
    %c0_36 = arith.constant 0 : index
    %363 = vector.load %arg5[%c0_35, %c0_36] : memref<3x32xf32, #tpu.memory_space<vmem>>, vector<1x32xf32>
    %364 = vector.shape_cast %363 : vector<1x32xf32> to vector<32xf32>
    %365 = vector.shape_cast %364 : vector<32xf32> to vector<1x1x32xf32>
    %366 = vector.broadcast %365 : vector<1x1x32xf32> to vector<4x4x32xf32>
    %367 = arith.addf %299, %366 : vector<4x4x32xf32>
    %368 = arith.mulf %367, %367 : vector<4x4x32xf32>
    %369 = arith.mulf %367, %368 : vector<4x4x32xf32>
    %cst_37 = arith.constant 4.471500e-02 : f32
    %370 = vector.broadcast %cst_37 : f32 to vector<4x4x32xf32>
    %371 = arith.mulf %370, %369 : vector<4x4x32xf32>
    %372 = arith.addf %367, %371 : vector<4x4x32xf32>
    %cst_38 = arith.constant 0.797884583 : f32
    %373 = vector.broadcast %cst_38 : f32 to vector<4x4x32xf32>
    %374 = arith.mulf %373, %372 : vector<4x4x32xf32>
    %375 = math.tanh %374 : vector<4x4x32xf32>
    %cst_39 = arith.constant 1.000000e+00 : f32
    %376 = vector.broadcast %cst_39 : f32 to vector<4x4x32xf32>
    %377 = arith.addf %376, %375 : vector<4x4x32xf32>
    %cst_40 = arith.constant 5.000000e-01 : f32
    %378 = vector.broadcast %cst_40 : f32 to vector<4x4x32xf32>
    %379 = arith.mulf %378, %377 : vector<4x4x32xf32>
    %380 = arith.mulf %367, %379 : vector<4x4x32xf32>
    %c0_41 = arith.constant 0 : index
    %c0_42 = arith.constant 0 : index
    %381 = vector.load %arg6[%c0_41, %c0_42] : memref<3x32xf32, #tpu.memory_space<vmem>>, vector<1x32xf32>
    %382 = vector.shape_cast %381 : vector<1x32xf32> to vector<32xf32>
    %383 = vector.shape_cast %382 : vector<32xf32> to vector<1x1x32xf32>
    %384 = vector.broadcast %383 : vector<1x1x32xf32> to vector<4x4x32xf32>
    %385 = arith.mulf %380, %384 : vector<4x4x32xf32>
    %c0_43 = arith.constant 0 : index
    %c0_44 = arith.constant 0 : index
    %386 = vector.load %arg7[%c0_43, %c0_44] : memref<3x32xf32, #tpu.memory_space<vmem>>, vector<1x32xf32>
    %387 = vector.shape_cast %386 : vector<1x32xf32> to vector<32xf32>
    %388 = vector.shape_cast %387 : vector<32xf32> to vector<1x1x32xf32>
    %389 = vector.broadcast %388 : vector<1x1x32xf32> to vector<4x4x32xf32>
    %390 = arith.addf %385, %389 : vector<4x4x32xf32>
    %c0_45 = arith.constant 0 : index
    %c0_46 = arith.constant 0 : index
    %391 = vector.load %arg5[%c0_45, %c0_46] : memref<3x32xf32, #tpu.memory_space<vmem>>, vector<1x32xf32>
    %392 = vector.shape_cast %391 : vector<1x32xf32> to vector<32xf32>
    %393 = vector.shape_cast %392 : vector<32xf32> to vector<1x1x32xf32>
    %394 = vector.broadcast %393 : vector<1x1x32xf32> to vector<4x4x32xf32>
    %395 = arith.addf %317, %394 : vector<4x4x32xf32>
    %396 = arith.mulf %395, %395 : vector<4x4x32xf32>
    %397 = arith.mulf %395, %396 : vector<4x4x32xf32>
    %cst_47 = arith.constant 4.471500e-02 : f32
    %398 = vector.broadcast %cst_47 : f32 to vector<4x4x32xf32>
    %399 = arith.mulf %398, %397 : vector<4x4x32xf32>
    %400 = arith.addf %395, %399 : vector<4x4x32xf32>
    %cst_48 = arith.constant 0.797884583 : f32
    %401 = vector.broadcast %cst_48 : f32 to vector<4x4x32xf32>
    %402 = arith.mulf %401, %400 : vector<4x4x32xf32>
    %403 = math.tanh %402 : vector<4x4x32xf32>
    %cst_49 = arith.constant 1.000000e+00 : f32
    %404 = vector.broadcast %cst_49 : f32 to vector<4x4x32xf32>
    %405 = arith.addf %404, %403 : vector<4x4x32xf32>
    %cst_50 = arith.constant 5.000000e-01 : f32
    %406 = vector.broadcast %cst_50 : f32 to vector<4x4x32xf32>
    %407 = arith.mulf %406, %405 : vector<4x4x32xf32>
    %408 = arith.mulf %395, %407 : vector<4x4x32xf32>
    %c0_51 = arith.constant 0 : index
    %c0_52 = arith.constant 0 : index
    %409 = vector.load %arg6[%c0_51, %c0_52] : memref<3x32xf32, #tpu.memory_space<vmem>>, vector<1x32xf32>
    %410 = vector.shape_cast %409 : vector<1x32xf32> to vector<32xf32>
    %411 = vector.shape_cast %410 : vector<32xf32> to vector<1x1x32xf32>
    %412 = vector.broadcast %411 : vector<1x1x32xf32> to vector<4x4x32xf32>
    %413 = arith.mulf %408, %412 : vector<4x4x32xf32>
    %c0_53 = arith.constant 0 : index
    %c0_54 = arith.constant 0 : index
    %414 = vector.load %arg7[%c0_53, %c0_54] : memref<3x32xf32, #tpu.memory_space<vmem>>, vector<1x32xf32>
    %415 = vector.shape_cast %414 : vector<1x32xf32> to vector<32xf32>
    %416 = vector.shape_cast %415 : vector<32xf32> to vector<1x1x32xf32>
    %417 = vector.broadcast %416 : vector<1x1x32xf32> to vector<4x4x32xf32>
    %418 = arith.addf %413, %417 : vector<4x4x32xf32>
    %419 = tpu.concatenate %390, %418 in 2 : vector<4x4x32xf32>, vector<4x4x32xf32> -> vector<4x4x64xf32>
    %420 = arith.truncf %419 : vector<4x4x64xf32> to vector<4x4x64xbf16>
    %c0_55 = arith.constant 0 : index
    %c0_56 = arith.constant 0 : index
    %c0_57 = arith.constant 0 : index
    %c0_58 = arith.constant 0 : index
    %421 = vector.load %arg9[%c0_55, %c0_56, %c0_57, %c0_58] : memref<1x4x4x64xbf16, #tpu.memory_space<vmem>>, vector<1x4x4x64xbf16>
    %422 = vector.shape_cast %421 : vector<1x4x4x64xbf16> to vector<4x4x64xbf16>
    %423 = vector.shape_cast %420 : vector<4x4x64xbf16> to vector<1x4x4x64xbf16>
    tpu.vector_store %arg9[%c0_55, %c0_56, %c0_57, %c0_58], %423 {strides = array<i32>} : memref<1x4x4x64xbf16, #tpu.memory_space<vmem>>, vector<1x4x4x64xbf16>,
    %c1_59 = arith.constant 1 : index
    %c0_60 = arith.constant 0 : index
    %424 = vector.load %arg5[%c1_59, %c0_60] : memref<3x32xf32, #tpu.memory_space<vmem>>, vector<1x32xf32>
    %425 = vector.shape_cast %424 : vector<1x32xf32> to vector<32xf32>
    %426 = vector.shape_cast %425 : vector<32xf32> to vector<1x1x32xf32>
    %427 = vector.broadcast %426 : vector<1x1x32xf32> to vector<2x4x32xf32>
    %428 = arith.addf %344, %427 : vector<2x4x32xf32>
    %429 = arith.mulf %428, %428 : vector<2x4x32xf32>
    %430 = arith.mulf %428, %429 : vector<2x4x32xf32>
    %cst_61 = arith.constant 4.471500e-02 : f32
    %431 = vector.broadcast %cst_61 : f32 to vector<2x4x32xf32>
    %432 = arith.mulf %431, %430 : vector<2x4x32xf32>
    %433 = arith.addf %428, %432 : vector<2x4x32xf32>
    %cst_62 = arith.constant 0.797884583 : f32
    %434 = vector.broadcast %cst_62 : f32 to vector<2x4x32xf32>
    %435 = arith.mulf %434, %433 : vector<2x4x32xf32>
    %436 = math.tanh %435 : vector<2x4x32xf32>
    %cst_63 = arith.constant 1.000000e+00 : f32
    %437 = vector.broadcast %cst_63 : f32 to vector<2x4x32xf32>
    %438 = arith.addf %437, %436 : vector<2x4x32xf32>
    %cst_64 = arith.constant 5.000000e-01 : f32
    %439 = vector.broadcast %cst_64 : f32 to vector<2x4x32xf32>
    %440 = arith.mulf %439, %438 : vector<2x4x32xf32>
    %441 = arith.mulf %428, %440 : vector<2x4x32xf32>
    %c1_65 = arith.constant 1 : index
    %c0_66 = arith.constant 0 : index
    %442 = vector.load %arg6[%c1_65, %c0_66] : memref<3x32xf32, #tpu.memory_space<vmem>>, vector<1x32xf32>
    %443 = vector.shape_cast %442 : vector<1x32xf32> to vector<32xf32>
    %444 = vector.shape_cast %443 : vector<32xf32> to vector<1x1x32xf32>
    %445 = vector.broadcast %444 : vector<1x1x32xf32> to vector<2x4x32xf32>
    %446 = arith.mulf %441, %445 : vector<2x4x32xf32>
    %c1_67 = arith.constant 1 : index
    %c0_68 = arith.constant 0 : index
    %447 = vector.load %arg7[%c1_67, %c0_68] : memref<3x32xf32, #tpu.memory_space<vmem>>, vector<1x32xf32>
    %448 = vector.shape_cast %447 : vector<1x32xf32> to vector<32xf32>
    %449 = vector.shape_cast %448 : vector<32xf32> to vector<1x1x32xf32>
    %450 = vector.broadcast %449 : vector<1x1x32xf32> to vector<2x4x32xf32>
    %451 = arith.addf %446, %450 : vector<2x4x32xf32>
    %452 = arith.truncf %451 : vector<2x4x32xf32> to vector<2x4x32xbf16>
    %c0_69 = arith.constant 0 : index
    %c0_70 = arith.constant 0 : index
    %c0_71 = arith.constant 0 : index
    %c0_72 = arith.constant 0 : index
    %453 = vector.load %arg10[%c0_69, %c0_70, %c0_71, %c0_72] : memref<1x2x4x32xbf16, #tpu.memory_space<vmem>>, vector<1x2x4x32xbf16>
    %454 = vector.shape_cast %453 : vector<1x2x4x32xbf16> to vector<2x4x32xbf16>
    %455 = vector.shape_cast %452 : vector<2x4x32xbf16> to vector<1x2x4x32xbf16>
    tpu.vector_store %arg10[%c0_69, %c0_70, %c0_71, %c0_72], %455 {strides = array<i32>} : memref<1x2x4x32xbf16, #tpu.memory_space<vmem>>, vector<1x2x4x32xbf16>,
    %c2_73 = arith.constant 2 : index
    %c0_74 = arith.constant 0 : index
    %456 = vector.load %arg5[%c2_73, %c0_74] : memref<3x32xf32, #tpu.memory_space<vmem>>, vector<1x32xf32>
    %457 = vector.shape_cast %456 : vector<1x32xf32> to vector<32xf32>
    %458 = vector.shape_cast %457 : vector<32xf32> to vector<1x1x32xf32>
    %459 = vector.broadcast %458 : vector<1x1x32xf32> to vector<2x4x32xf32>
    %460 = arith.addf %362, %459 : vector<2x4x32xf32>
    %461 = arith.mulf %460, %460 : vector<2x4x32xf32>
    %462 = arith.mulf %460, %461 : vector<2x4x32xf32>
    %cst_75 = arith.constant 4.471500e-02 : f32
    %463 = vector.broadcast %cst_75 : f32 to vector<2x4x32xf32>
    %464 = arith.mulf %463, %462 : vector<2x4x32xf32>
    %465 = arith.addf %460, %464 : vector<2x4x32xf32>
    %cst_76 = arith.constant 0.797884583 : f32
    %466 = vector.broadcast %cst_76 : f32 to vector<2x4x32xf32>
    %467 = arith.mulf %466, %465 : vector<2x4x32xf32>
    %468 = math.tanh %467 : vector<2x4x32xf32>
    %cst_77 = arith.constant 1.000000e+00 : f32
    %469 = vector.broadcast %cst_77 : f32 to vector<2x4x32xf32>
    %470 = arith.addf %469, %468 : vector<2x4x32xf32>
    %cst_78 = arith.constant 5.000000e-01 : f32
    %471 = vector.broadcast %cst_78 : f32 to vector<2x4x32xf32>
    %472 = arith.mulf %471, %470 : vector<2x4x32xf32>
    %473 = arith.mulf %460, %472 : vector<2x4x32xf32>
    %c2_79 = arith.constant 2 : index
    %c0_80 = arith.constant 0 : index
    %474 = vector.load %arg6[%c2_79, %c0_80] : memref<3x32xf32, #tpu.memory_space<vmem>>, vector<1x32xf32>
    %475 = vector.shape_cast %474 : vector<1x32xf32> to vector<32xf32>
    %476 = vector.shape_cast %475 : vector<32xf32> to vector<1x1x32xf32>
    %477 = vector.broadcast %476 : vector<1x1x32xf32> to vector<2x4x32xf32>
    %478 = arith.mulf %473, %477 : vector<2x4x32xf32>
    %c2_81 = arith.constant 2 : index
    %c0_82 = arith.constant 0 : index
    %479 = vector.load %arg7[%c2_81, %c0_82] : memref<3x32xf32, #tpu.memory_space<vmem>>, vector<1x32xf32>
    %480 = vector.shape_cast %479 : vector<1x32xf32> to vector<32xf32>
    %481 = vector.shape_cast %480 : vector<32xf32> to vector<1x1x32xf32>
    %482 = vector.broadcast %481 : vector<1x1x32xf32> to vector<2x4x32xf32>
    %483 = arith.addf %478, %482 : vector<2x4x32xf32>
    %484 = arith.truncf %483 : vector<2x4x32xf32> to vector<2x4x32xbf16>
    %c0_83 = arith.constant 0 : index
    %c0_84 = arith.constant 0 : index
    %c0_85 = arith.constant 0 : index
    %c0_86 = arith.constant 0 : index
    %485 = vector.load %arg11[%c0_83, %c0_84, %c0_85, %c0_86] : memref<1x2x4x32xbf16, #tpu.memory_space<vmem>>, vector<1x2x4x32xbf16>
    %486 = vector.shape_cast %485 : vector<1x2x4x32xbf16> to vector<2x4x32xbf16>
    %487 = vector.shape_cast %484 : vector<2x4x32xbf16> to vector<1x2x4x32xbf16>
    tpu.vector_store %arg11[%c0_83, %c0_84, %c0_85, %c0_86], %487 {strides = array<i32>} : memref<1x2x4x32xbf16, #tpu.memory_space<vmem>>, vector<1x2x4x32xbf16>,
    return
  }
  func.func @transform_0(%arg0: i32, %arg1: i32) -> (i32, i32, i32, i32) {
    %c0_i32 = arith.constant 0 : i32
    %c0_i32_0 = arith.constant 0 : i32
    %c0_i32_1 = arith.constant 0 : i32
    %c0_i32_2 = arith.constant 0 : i32
    return %arg0, %c0_i32, %c0_i32_0, %c0_i32_1 : i32, i32, i32, i32
  }
  func.func @transform_1(%arg0: i32, %arg1: i32) -> (i32, i32) {
    %c0_i32 = arith.constant 0 : i32
    %c0_i32_0 = arith.constant 0 : i32
    %c0_i32_1 = arith.constant 0 : i32
    return %c0_i32, %c0_i32_0 : i32, i32
  }
  func.func @transform_2(%arg0: i32, %arg1: i32) -> (i32, i32, i32) {
    %c0_i32 = arith.constant 0 : i32
    %c0_i32_0 = arith.constant 0 : i32
    %c0_i32_1 = arith.constant 0 : i32
    %c0_i32_2 = arith.constant 0 : i32
    return %c0_i32, %c0_i32_0, %c0_i32_1 : i32, i32, i32
  }
  func.func @transform_3(%arg0: i32, %arg1: i32) -> (i32, i32) {
    %c0_i32 = arith.constant 0 : i32
    %c0_i32_0 = arith.constant 0 : i32
    %c0_i32_1 = arith.constant 0 : i32
    return %c0_i32, %c0_i32_0 : i32, i32
  }
  func.func @transform_4(%arg0: i32, %arg1: i32) -> (i32, i32) {
    %c0_i32 = arith.constant 0 : i32
    %c0_i32_0 = arith.constant 0 : i32
    %c0_i32_1 = arith.constant 0 : i32
    return %c0_i32, %c0_i32_0 : i32, i32
  }
  func.func @transform_5(%arg0: i32, %arg1: i32) -> (i32, i32) {
    %c0_i32 = arith.constant 0 : i32
    %c0_i32_0 = arith.constant 0 : i32
    %c0_i32_1 = arith.constant 0 : i32
    return %c0_i32, %c0_i32_0 : i32, i32
  }
  func.func @transform_6(%arg0: i32, %arg1: i32) -> (i32, i32, i32, i32) {
    %c0_i32 = arith.constant 0 : i32
    %c0_i32_0 = arith.constant 0 : i32
    %c0_i32_1 = arith.constant 0 : i32
    return %arg0, %arg1, %c0_i32, %c0_i32_0 : i32, i32, i32, i32
  }
  func.func @transform_7(%arg0: i32, %arg1: i32) -> (i32, i32, i32, i32) {
    %c0_i32 = arith.constant 0 : i32
    %c0_i32_0 = arith.constant 0 : i32
    %c0_i32_1 = arith.constant 0 : i32
    return %arg0, %arg1, %c0_i32, %c0_i32_0 : i32, i32, i32, i32
  }
  func.func @transform_8(%arg0: i32, %arg1: i32) -> (i32, i32, i32, i32) {
    %c0_i32 = arith.constant 0 : i32
    %c0_i32_0 = arith.constant 0 : i32
    %c0_i32_1 = arith.constant 0 : i32
    return %arg0, %arg1, %c0_i32, %c0_i32_0 : i32, i32, i32, i32
  }
  func.func @transform_9(%arg0: i32, %arg1: i32) -> (i32, i32, i32, i32) {
    %c0_i32 = arith.constant 0 : i32
    %c0_i32_0 = arith.constant 0 : i32
    %c0_i32_1 = arith.constant 0 : i32
    return %arg0, %arg1, %c0_i32, %c0_i32_0 : i32, i32, i32, i32
  }
}

module attributes {stable_mosaic.version = 11 : i64} {
  func.func @_attn_kernel(%arg0: i32, %arg1: i32, %arg2: memref<1x64x32xbf16, #tpu.memory_space<vmem>>, %arg3: memref<1x16x32xbf16, #tpu.memory_space<vmem>>, %arg4: memref<1x16x32xbf16, #tpu.memory_space<vmem>>, %arg5: memref<1x64x32xf32, #tpu.memory_space<vmem>>, %arg6: memref<4x32x32xbf16, #tpu.memory_space<vmem>>, %arg7: memref<4x32xf32, #tpu.memory_space<vmem>>, %arg8: memref<1x64x32xf32, #tpu.memory_space<vmem>>, %arg9: memref<16x32xbf16, #tpu.memory_space<vmem>>, %arg10: memref<16x32xbf16, #tpu.memory_space<vmem>>) attributes {dimension_semantics = [#tpu.dimension_semantics<parallel>, #tpu.dimension_semantics<arbitrary>], iteration_bounds = array<i64: 2, 1>, scalar_prefetch = 0 : i64, scratch_operands = 2 : i64, tpu.core_type = #tpu.core_type<tc>, window_params = [{transform_indices = @transform_0, window_bounds = array<i64: 1, 64, 32>}, {transform_indices = @transform_1, window_bounds = array<i64: 1, 16, 32>}, {transform_indices = @transform_2, window_bounds = array<i64: 1, 16, 32>}, {transform_indices = @transform_3, window_bounds = array<i64: 1, 64, 32>}, {pipeline_mode = #tpu.pipeline_mode<synchronous>, transform_indices = @transform_4, window_bounds = array<i64: 4, 32, 32>}, {pipeline_mode = #tpu.pipeline_mode<synchronous>, transform_indices = @transform_5, window_bounds = array<i64: 4, 32>}, {transform_indices = @transform_6, window_bounds = array<i64: 1, 64, 32>}]} {
    %c0_i32 = arith.constant 0 : i32
    %0 = arith.cmpi eq, %arg1, %c0_i32 : i32
    %1 = arith.extui %0 : i1 to i32
    %c0_i32_0 = arith.constant 0 : i32
    %2 = arith.cmpi ne, %1, %c0_i32_0 : i32
    scf.if %2 {
      %c0_43 = arith.constant 0 : index
      %c0_44 = arith.constant 0 : index
      %c0_45 = arith.constant 0 : index
      %100 = vector.load %arg3[%c0_43, %c0_44, %c0_45] : memref<1x16x32xbf16, #tpu.memory_space<vmem>>, vector<1x16x32xbf16>
      %101 = vector.shape_cast %100 : vector<1x16x32xbf16> to vector<16x32xbf16>
      %c1 = arith.constant 1 : index
      %c0_46 = arith.constant 0 : index
      %c0_47 = arith.constant 0 : index
      %102 = vector.load %arg6[%c1, %c0_46, %c0_47] : memref<4x32x32xbf16, #tpu.memory_space<vmem>>, vector<1x32x32xbf16>
      %103 = vector.shape_cast %102 : vector<1x32x32xbf16> to vector<32x32xbf16>
      %cst_48 = arith.constant dense<0.000000e+00> : vector<16x32xf32>
      %104 = tpu.matmul %101, %103, %cst_48 {dimension_numbers = #tpu.dot_dimension_numbers<[1], [0], [0], [1], [0, 0, 1, 1], [], []>} : vector<16x32xbf16>, vector<32x32xbf16>, vector<16x32xf32> -> vector<16x32xf32>
      %c1_49 = arith.constant 1 : index
      %c0_50 = arith.constant 0 : index
      %105 = vector.load %arg7[%c1_49, %c0_50] : memref<4x32xf32, #tpu.memory_space<vmem>>, vector<1x32xf32>
      %106 = vector.shape_cast %105 : vector<1x32xf32> to vector<32xf32>
      %107 = vector.shape_cast %106 : vector<32xf32> to vector<1x32xf32>
      %108 = vector.broadcast %107 : vector<1x32xf32> to vector<16x32xf32>
      %109 = arith.addf %104, %108 : vector<16x32xf32>
      %110 = arith.truncf %109 : vector<16x32xf32> to vector<16x32xbf16>
      %c0_51 = arith.constant 0 : index
      %c0_52 = arith.constant 0 : index
      %111 = vector.load %arg9[%c0_51, %c0_52] : memref<16x32xbf16, #tpu.memory_space<vmem>>, vector<16x32xbf16>
      tpu.vector_store %arg9[%c0_51, %c0_52], %110 {strides = array<i32>} : memref<16x32xbf16, #tpu.memory_space<vmem>>, vector<16x32xbf16>,
      %c0_53 = arith.constant 0 : index
      %c0_54 = arith.constant 0 : index
      %c0_55 = arith.constant 0 : index
      %112 = vector.load %arg4[%c0_53, %c0_54, %c0_55] : memref<1x16x32xbf16, #tpu.memory_space<vmem>>, vector<1x16x32xbf16>
      %113 = vector.shape_cast %112 : vector<1x16x32xbf16> to vector<16x32xbf16>
      %c2 = arith.constant 2 : index
      %c0_56 = arith.constant 0 : index
      %c0_57 = arith.constant 0 : index
      %114 = vector.load %arg6[%c2, %c0_56, %c0_57] : memref<4x32x32xbf16, #tpu.memory_space<vmem>>, vector<1x32x32xbf16>
      %115 = vector.shape_cast %114 : vector<1x32x32xbf16> to vector<32x32xbf16>
      %cst_58 = arith.constant dense<0.000000e+00> : vector<16x32xf32>
      %116 = tpu.matmul %113, %115, %cst_58 {dimension_numbers = #tpu.dot_dimension_numbers<[1], [0], [0], [1], [0, 0, 1, 1], [], []>} : vector<16x32xbf16>, vector<32x32xbf16>, vector<16x32xf32> -> vector<16x32xf32>
      %c2_59 = arith.constant 2 : index
      %c0_60 = arith.constant 0 : index
      %117 = vector.load %arg7[%c2_59, %c0_60] : memref<4x32xf32, #tpu.memory_space<vmem>>, vector<1x32xf32>
      %118 = vector.shape_cast %117 : vector<1x32xf32> to vector<32xf32>
      %119 = vector.shape_cast %118 : vector<32xf32> to vector<1x32xf32>
      %120 = vector.broadcast %119 : vector<1x32xf32> to vector<16x32xf32>
      %121 = arith.addf %116, %120 : vector<16x32xf32>
      %122 = arith.truncf %121 : vector<16x32xf32> to vector<16x32xbf16>
      %c0_61 = arith.constant 0 : index
      %c0_62 = arith.constant 0 : index
      %123 = vector.load %arg10[%c0_61, %c0_62] : memref<16x32xbf16, #tpu.memory_space<vmem>>, vector<16x32xbf16>
      tpu.vector_store %arg10[%c0_61, %c0_62], %122 {strides = array<i32>} : memref<16x32xbf16, #tpu.memory_space<vmem>>, vector<16x32xbf16>,
    } else {
    }
    %c0 = arith.constant 0 : index
    %c0_1 = arith.constant 0 : index
    %c0_2 = arith.constant 0 : index
    %3 = vector.load %arg2[%c0, %c0_1, %c0_2] : memref<1x64x32xbf16, #tpu.memory_space<vmem>>, vector<1x64x32xbf16>
    %4 = vector.shape_cast %3 : vector<1x64x32xbf16> to vector<64x32xbf16>
    %c0_3 = arith.constant 0 : index
    %c0_4 = arith.constant 0 : index
    %c0_5 = arith.constant 0 : index
    %5 = vector.load %arg6[%c0_3, %c0_4, %c0_5] : memref<4x32x32xbf16, #tpu.memory_space<vmem>>, vector<1x32x32xbf16>
    %6 = vector.shape_cast %5 : vector<1x32x32xbf16> to vector<32x32xbf16>
    %cst = arith.constant dense<0.000000e+00> : vector<64x32xf32>
    %7 = tpu.matmul %4, %6, %cst {dimension_numbers = #tpu.dot_dimension_numbers<[1], [0], [0], [1], [0, 0, 1, 1], [], []>} : vector<64x32xbf16>, vector<32x32xbf16>, vector<64x32xf32> -> vector<64x32xf32>
    %c0_6 = arith.constant 0 : index
    %c0_7 = arith.constant 0 : index
    %8 = vector.load %arg7[%c0_6, %c0_7] : memref<4x32xf32, #tpu.memory_space<vmem>>, vector<1x32xf32>
    %9 = vector.shape_cast %8 : vector<1x32xf32> to vector<32xf32>
    %10 = vector.shape_cast %9 : vector<32xf32> to vector<1x32xf32>
    %11 = vector.broadcast %10 : vector<1x32xf32> to vector<64x32xf32>
    %12 = arith.addf %7, %11 : vector<64x32xf32>
    %13 = arith.truncf %12 : vector<64x32xf32> to vector<64x32xbf16>
    %c0_8 = arith.constant 0 : index
    %c0_9 = arith.constant 0 : index
    %14 = vector.load %arg9[%c0_8, %c0_9] : memref<16x32xbf16, #tpu.memory_space<vmem>>, vector<16x32xbf16>
    %c0_10 = arith.constant 0 : index
    %c0_11 = arith.constant 0 : index
    %15 = vector.load %arg10[%c0_10, %c0_11] : memref<16x32xbf16, #tpu.memory_space<vmem>>, vector<16x32xbf16>
    %16 = vector.extract_strided_slice %13 {offsets = [0, 0], sizes = [64, 8], strides = [1, 1]} : vector<64x32xbf16> to vector<64x8xbf16>
    %17 = vector.extract_strided_slice %14 {offsets = [0, 0], sizes = [16, 8], strides = [1, 1]} : vector<16x32xbf16> to vector<16x8xbf16>
    %18 = vector.extract_strided_slice %15 {offsets = [0, 0], sizes = [16, 8], strides = [1, 1]} : vector<16x32xbf16> to vector<16x8xbf16>
    %cst_12 = arith.constant dense<0.000000e+00> : vector<64x16xf32>
    %19 = tpu.matmul %16, %17, %cst_12 {dimension_numbers = #tpu.dot_dimension_numbers<[1], [1], [0], [0], [0, 0, 1, 0], [], []>} : vector<64x8xbf16>, vector<16x8xbf16>, vector<64x16xf32> -> vector<64x16xf32>
    %cst_13 = arith.constant 0.353553385 : f32
    %20 = vector.broadcast %cst_13 : f32 to vector<64x16xf32>
    %21 = arith.mulf %19, %20 : vector<64x16xf32>
    %cst_14 = arith.constant dense<0xFF800000> : vector<64xf32>
    %22 = vector.multi_reduction <maximumf>, %21, %cst_14 [1] : vector<64x16xf32> to vector<64xf32>
    %23 = vector.shape_cast %22 : vector<64xf32> to vector<64x1xf32>
    %24 = vector.broadcast %23 : vector<64x1xf32> to vector<64x16xf32>
    %25 = arith.subf %21, %24 : vector<64x16xf32>
    %26 = math.exp %25 : vector<64x16xf32>
    %cst_15 = arith.constant dense<0.000000e+00> : vector<64xf32>
    %27 = vector.multi_reduction <add>, %26, %cst_15 [1] : vector<64x16xf32> to vector<64xf32>
    %28 = vector.shape_cast %27 : vector<64xf32> to vector<64x1xf32>
    %29 = vector.broadcast %28 : vector<64x1xf32> to vector<64x16xf32>
    %30 = arith.divf %26, %29 : vector<64x16xf32>
    %31 = arith.truncf %30 : vector<64x16xf32> to vector<64x16xbf16>
    %cst_16 = arith.constant dense<0.000000e+00> : vector<64x8xf32>
    %32 = tpu.matmul %31, %18, %cst_16 {dimension_numbers = #tpu.dot_dimension_numbers<[1], [0], [0], [1], [0, 0, 1, 1], [], []>} : vector<64x16xbf16>, vector<16x8xbf16>, vector<64x8xf32> -> vector<64x8xf32>
    %33 = vector.extract_strided_slice %13 {offsets = [0, 8], sizes = [64, 8], strides = [1, 1]} : vector<64x32xbf16> to vector<64x8xbf16>
    %34 = vector.extract_strided_slice %14 {offsets = [0, 8], sizes = [16, 8], strides = [1, 1]} : vector<16x32xbf16> to vector<16x8xbf16>
    %35 = vector.extract_strided_slice %15 {offsets = [0, 8], sizes = [16, 8], strides = [1, 1]} : vector<16x32xbf16> to vector<16x8xbf16>
    %cst_17 = arith.constant dense<0.000000e+00> : vector<64x16xf32>
    %36 = tpu.matmul %33, %34, %cst_17 {dimension_numbers = #tpu.dot_dimension_numbers<[1], [1], [0], [0], [0, 0, 1, 0], [], []>} : vector<64x8xbf16>, vector<16x8xbf16>, vector<64x16xf32> -> vector<64x16xf32>
    %cst_18 = arith.constant 0.353553385 : f32
    %37 = vector.broadcast %cst_18 : f32 to vector<64x16xf32>
    %38 = arith.mulf %36, %37 : vector<64x16xf32>
    %cst_19 = arith.constant dense<0xFF800000> : vector<64xf32>
    %39 = vector.multi_reduction <maximumf>, %38, %cst_19 [1] : vector<64x16xf32> to vector<64xf32>
    %40 = vector.shape_cast %39 : vector<64xf32> to vector<64x1xf32>
    %41 = vector.broadcast %40 : vector<64x1xf32> to vector<64x16xf32>
    %42 = arith.subf %38, %41 : vector<64x16xf32>
    %43 = math.exp %42 : vector<64x16xf32>
    %cst_20 = arith.constant dense<0.000000e+00> : vector<64xf32>
    %44 = vector.multi_reduction <add>, %43, %cst_20 [1] : vector<64x16xf32> to vector<64xf32>
    %45 = vector.shape_cast %44 : vector<64xf32> to vector<64x1xf32>
    %46 = vector.broadcast %45 : vector<64x1xf32> to vector<64x16xf32>
    %47 = arith.divf %43, %46 : vector<64x16xf32>
    %48 = arith.truncf %47 : vector<64x16xf32> to vector<64x16xbf16>
    %cst_21 = arith.constant dense<0.000000e+00> : vector<64x8xf32>
    %49 = tpu.matmul %48, %35, %cst_21 {dimension_numbers = #tpu.dot_dimension_numbers<[1], [0], [0], [1], [0, 0, 1, 1], [], []>} : vector<64x16xbf16>, vector<16x8xbf16>, vector<64x8xf32> -> vector<64x8xf32>
    %50 = vector.extract_strided_slice %13 {offsets = [0, 16], sizes = [64, 8], strides = [1, 1]} : vector<64x32xbf16> to vector<64x8xbf16>
    %51 = vector.extract_strided_slice %14 {offsets = [0, 16], sizes = [16, 8], strides = [1, 1]} : vector<16x32xbf16> to vector<16x8xbf16>
    %52 = vector.extract_strided_slice %15 {offsets = [0, 16], sizes = [16, 8], strides = [1, 1]} : vector<16x32xbf16> to vector<16x8xbf16>
    %cst_22 = arith.constant dense<0.000000e+00> : vector<64x16xf32>
    %53 = tpu.matmul %50, %51, %cst_22 {dimension_numbers = #tpu.dot_dimension_numbers<[1], [1], [0], [0], [0, 0, 1, 0], [], []>} : vector<64x8xbf16>, vector<16x8xbf16>, vector<64x16xf32> -> vector<64x16xf32>
    %cst_23 = arith.constant 0.353553385 : f32
    %54 = vector.broadcast %cst_23 : f32 to vector<64x16xf32>
    %55 = arith.mulf %53, %54 : vector<64x16xf32>
    %cst_24 = arith.constant dense<0xFF800000> : vector<64xf32>
    %56 = vector.multi_reduction <maximumf>, %55, %cst_24 [1] : vector<64x16xf32> to vector<64xf32>
    %57 = vector.shape_cast %56 : vector<64xf32> to vector<64x1xf32>
    %58 = vector.broadcast %57 : vector<64x1xf32> to vector<64x16xf32>
    %59 = arith.subf %55, %58 : vector<64x16xf32>
    %60 = math.exp %59 : vector<64x16xf32>
    %cst_25 = arith.constant dense<0.000000e+00> : vector<64xf32>
    %61 = vector.multi_reduction <add>, %60, %cst_25 [1] : vector<64x16xf32> to vector<64xf32>
    %62 = vector.shape_cast %61 : vector<64xf32> to vector<64x1xf32>
    %63 = vector.broadcast %62 : vector<64x1xf32> to vector<64x16xf32>
    %64 = arith.divf %60, %63 : vector<64x16xf32>
    %65 = arith.truncf %64 : vector<64x16xf32> to vector<64x16xbf16>
    %cst_26 = arith.constant dense<0.000000e+00> : vector<64x8xf32>
    %66 = tpu.matmul %65, %52, %cst_26 {dimension_numbers = #tpu.dot_dimension_numbers<[1], [0], [0], [1], [0, 0, 1, 1], [], []>} : vector<64x16xbf16>, vector<16x8xbf16>, vector<64x8xf32> -> vector<64x8xf32>
    %67 = vector.extract_strided_slice %13 {offsets = [0, 24], sizes = [64, 8], strides = [1, 1]} : vector<64x32xbf16> to vector<64x8xbf16>
    %68 = vector.extract_strided_slice %14 {offsets = [0, 24], sizes = [16, 8], strides = [1, 1]} : vector<16x32xbf16> to vector<16x8xbf16>
    %69 = vector.extract_strided_slice %15 {offsets = [0, 24], sizes = [16, 8], strides = [1, 1]} : vector<16x32xbf16> to vector<16x8xbf16>
    %cst_27 = arith.constant dense<0.000000e+00> : vector<64x16xf32>
    %70 = tpu.matmul %67, %68, %cst_27 {dimension_numbers = #tpu.dot_dimension_numbers<[1], [1], [0], [0], [0, 0, 1, 0], [], []>} : vector<64x8xbf16>, vector<16x8xbf16>, vector<64x16xf32> -> vector<64x16xf32>
    %cst_28 = arith.constant 0.353553385 : f32
    %71 = vector.broadcast %cst_28 : f32 to vector<64x16xf32>
    %72 = arith.mulf %70, %71 : vector<64x16xf32>
    %cst_29 = arith.constant dense<0xFF800000> : vector<64xf32>
    %73 = vector.multi_reduction <maximumf>, %72, %cst_29 [1] : vector<64x16xf32> to vector<64xf32>
    %74 = vector.shape_cast %73 : vector<64xf32> to vector<64x1xf32>
    %75 = vector.broadcast %74 : vector<64x1xf32> to vector<64x16xf32>
    %76 = arith.subf %72, %75 : vector<64x16xf32>
    %77 = math.exp %76 : vector<64x16xf32>
    %cst_30 = arith.constant dense<0.000000e+00> : vector<64xf32>
    %78 = vector.multi_reduction <add>, %77, %cst_30 [1] : vector<64x16xf32> to vector<64xf32>
    %79 = vector.shape_cast %78 : vector<64xf32> to vector<64x1xf32>
    %80 = vector.broadcast %79 : vector<64x1xf32> to vector<64x16xf32>
    %81 = arith.divf %77, %80 : vector<64x16xf32>
    %82 = arith.truncf %81 : vector<64x16xf32> to vector<64x16xbf16>
    %cst_31 = arith.constant dense<0.000000e+00> : vector<64x8xf32>
    %83 = tpu.matmul %82, %69, %cst_31 {dimension_numbers = #tpu.dot_dimension_numbers<[1], [0], [0], [1], [0, 0, 1, 1], [], []>} : vector<64x16xbf16>, vector<16x8xbf16>, vector<64x8xf32> -> vector<64x8xf32>
    %84 = tpu.concatenate %32, %49, %66, %83 in 1 : vector<64x8xf32>, vector<64x8xf32>, vector<64x8xf32>, vector<64x8xf32> -> vector<64x32xf32>
    %85 = arith.truncf %84 : vector<64x32xf32> to vector<64x32xbf16>
    %c3 = arith.constant 3 : index
    %c0_32 = arith.constant 0 : index
    %c0_33 = arith.constant 0 : index
    %86 = vector.load %arg6[%c3, %c0_32, %c0_33] : memref<4x32x32xbf16, #tpu.memory_space<vmem>>, vector<1x32x32xbf16>
    %87 = vector.shape_cast %86 : vector<1x32x32xbf16> to vector<32x32xbf16>
    %cst_34 = arith.constant dense<0.000000e+00> : vector<64x32xf32>
    %88 = tpu.matmul %85, %87, %cst_34 {dimension_numbers = #tpu.dot_dimension_numbers<[1], [0], [0], [1], [0, 0, 1, 1], [], []>} : vector<64x32xbf16>, vector<32x32xbf16>, vector<64x32xf32> -> vector<64x32xf32>
    %c3_35 = arith.constant 3 : index
    %c0_36 = arith.constant 0 : index
    %89 = vector.load %arg7[%c3_35, %c0_36] : memref<4x32xf32, #tpu.memory_space<vmem>>, vector<1x32xf32>
    %90 = vector.shape_cast %89 : vector<1x32xf32> to vector<32xf32>
    %91 = vector.shape_cast %90 : vector<32xf32> to vector<1x32xf32>
    %92 = vector.broadcast %91 : vector<1x32xf32> to vector<64x32xf32>
    %93 = arith.addf %88, %92 : vector<64x32xf32>
    %c0_37 = arith.constant 0 : index
    %c0_38 = arith.constant 0 : index
    %c0_39 = arith.constant 0 : index
    %94 = vector.load %arg5[%c0_37, %c0_38, %c0_39] : memref<1x64x32xf32, #tpu.memory_space<vmem>>, vector<1x64x32xf32>
    %95 = vector.shape_cast %94 : vector<1x64x32xf32> to vector<64x32xf32>
    %96 = arith.addf %95, %93 : vector<64x32xf32>
    %c0_40 = arith.constant 0 : index
    %c0_41 = arith.constant 0 : index
    %c0_42 = arith.constant 0 : index
    %97 = vector.load %arg8[%c0_40, %c0_41, %c0_42] : memref<1x64x32xf32, #tpu.memory_space<vmem>>, vector<1x64x32xf32>
    %98 = vector.shape_cast %97 : vector<1x64x32xf32> to vector<64x32xf32>
    %99 = vector.shape_cast %96 : vector<64x32xf32> to vector<1x64x32xf32>
    tpu.vector_store %arg8[%c0_40, %c0_41, %c0_42], %99 {strides = array<i32>} : memref<1x64x32xf32, #tpu.memory_space<vmem>>, vector<1x64x32xf32>,
    return
  }
  func.func @transform_0(%arg0: i32, %arg1: i32) -> (i32, i32, i32) {
    %c0_i32 = arith.constant 0 : i32
    %c0_i32_0 = arith.constant 0 : i32
    return %arg0, %arg1, %c0_i32 : i32, i32, i32
  }
  func.func @transform_1(%arg0: i32, %arg1: i32) -> (i32, i32, i32) {
    %c0_i32 = arith.constant 0 : i32
    %c0_i32_0 = arith.constant 0 : i32
    %c0_i32_1 = arith.constant 0 : i32
    return %arg0, %c0_i32, %c0_i32_0 : i32, i32, i32
  }
  func.func @transform_2(%arg0: i32, %arg1: i32) -> (i32, i32, i32) {
    %c0_i32 = arith.constant 0 : i32
    %c0_i32_0 = arith.constant 0 : i32
    %c0_i32_1 = arith.constant 0 : i32
    return %arg0, %c0_i32, %c0_i32_0 : i32, i32, i32
  }
  func.func @transform_3(%arg0: i32, %arg1: i32) -> (i32, i32, i32) {
    %c0_i32 = arith.constant 0 : i32
    %c0_i32_0 = arith.constant 0 : i32
    return %arg0, %arg1, %c0_i32 : i32, i32, i32
  }
  func.func @transform_4(%arg0: i32, %arg1: i32) -> (i32, i32, i32) {
    %c0_i32 = arith.constant 0 : i32
    %c0_i32_0 = arith.constant 0 : i32
    %c0_i32_1 = arith.constant 0 : i32
    %c0_i32_2 = arith.constant 0 : i32
    return %c0_i32, %c0_i32_0, %c0_i32_1 : i32, i32, i32
  }
  func.func @transform_5(%arg0: i32, %arg1: i32) -> (i32, i32) {
    %c0_i32 = arith.constant 0 : i32
    %c0_i32_0 = arith.constant 0 : i32
    %c0_i32_1 = arith.constant 0 : i32
    return %c0_i32, %c0_i32_0 : i32, i32
  }
  func.func @transform_6(%arg0: i32, %arg1: i32) -> (i32, i32, i32) {
    %c0_i32 = arith.constant 0 : i32
    %c0_i32_0 = arith.constant 0 : i32
    return %arg0, %arg1, %c0_i32 : i32, i32, i32
  }
}

module attributes {stable_mosaic.version = 11 : i64} {
  func.func @_mlp_kernel(%arg0: i32, %arg1: memref<128x32xf32, #tpu.memory_space<vmem>>, %arg2: memref<1x32xf32, #tpu.memory_space<vmem>>, %arg3: memref<1x32xf32, #tpu.memory_space<vmem>>, %arg4: memref<32x64xbf16, #tpu.memory_space<vmem>>, %arg5: memref<1x64xf32, #tpu.memory_space<vmem>>, %arg6: memref<64x32xbf16, #tpu.memory_space<vmem>>, %arg7: memref<1x32xf32, #tpu.memory_space<vmem>>, %arg8: memref<128x32xf32, #tpu.memory_space<vmem>>) attributes {dimension_semantics = [#tpu.dimension_semantics<parallel>], iteration_bounds = array<i64: 1>, scalar_prefetch = 0 : i64, scratch_operands = 0 : i64, tpu.core_type = #tpu.core_type<tc>, window_params = [{transform_indices = @transform_0, window_bounds = array<i64: 128, 32>}, {pipeline_mode = #tpu.pipeline_mode<synchronous>, transform_indices = @transform_1, window_bounds = array<i64: 1, 32>}, {pipeline_mode = #tpu.pipeline_mode<synchronous>, transform_indices = @transform_2, window_bounds = array<i64: 1, 32>}, {pipeline_mode = #tpu.pipeline_mode<synchronous>, transform_indices = @transform_3, window_bounds = array<i64: 32, 64>}, {pipeline_mode = #tpu.pipeline_mode<synchronous>, transform_indices = @transform_4, window_bounds = array<i64: 1, 64>}, {pipeline_mode = #tpu.pipeline_mode<synchronous>, transform_indices = @transform_5, window_bounds = array<i64: 64, 32>}, {pipeline_mode = #tpu.pipeline_mode<synchronous>, transform_indices = @transform_6, window_bounds = array<i64: 1, 32>}, {transform_indices = @transform_7, window_bounds = array<i64: 128, 32>}]} {
    %c0 = arith.constant 0 : index
    %c0_0 = arith.constant 0 : index
    %0 = vector.load %arg1[%c0, %c0_0] : memref<128x32xf32, #tpu.memory_space<vmem>>, vector<128x32xf32>
    %cst = arith.constant dense<0.000000e+00> : vector<128xf32>
    %1 = vector.multi_reduction <add>, %0, %cst [1] : vector<128x32xf32> to vector<128xf32>
    %2 = vector.shape_cast %1 : vector<128xf32> to vector<128x1xf32>
    %cst_1 = arith.constant 3.200000e+01 : f32
    %3 = vector.broadcast %cst_1 : f32 to vector<128x1xf32>
    %4 = arith.divf %2, %3 : vector<128x1xf32>
    %5 = vector.broadcast %4 : vector<128x1xf32> to vector<128x32xf32>
    %6 = arith.subf %0, %5 : vector<128x32xf32>
    %7 = arith.mulf %6, %6 : vector<128x32xf32>
    %cst_2 = arith.constant dense<0.000000e+00> : vector<128xf32>
    %8 = vector.multi_reduction <add>, %7, %cst_2 [1] : vector<128x32xf32> to vector<128xf32>
    %9 = vector.shape_cast %8 : vector<128xf32> to vector<128x1xf32>
    %cst_3 = arith.constant 3.200000e+01 : f32
    %10 = vector.broadcast %cst_3 : f32 to vector<128x1xf32>
    %11 = arith.divf %9, %10 : vector<128x1xf32>
    %12 = vector.broadcast %4 : vector<128x1xf32> to vector<128x32xf32>
    %13 = arith.subf %0, %12 : vector<128x32xf32>
    %cst_4 = arith.constant 9.99999974E-6 : f32
    %14 = vector.broadcast %cst_4 : f32 to vector<128x1xf32>
    %15 = arith.addf %11, %14 : vector<128x1xf32>
    %16 = math.rsqrt %15 : vector<128x1xf32>
    %17 = vector.broadcast %16 : vector<128x1xf32> to vector<128x32xf32>
    %18 = arith.mulf %13, %17 : vector<128x32xf32>
    %c0_5 = arith.constant 0 : index
    %c0_6 = arith.constant 0 : index
    %19 = vector.load %arg2[%c0_5, %c0_6] : memref<1x32xf32, #tpu.memory_space<vmem>>, vector<1x32xf32>
    %20 = vector.broadcast %19 : vector<1x32xf32> to vector<128x32xf32>
    %21 = arith.mulf %18, %20 : vector<128x32xf32>
    %c0_7 = arith.constant 0 : index
    %c0_8 = arith.constant 0 : index
    %22 = vector.load %arg3[%c0_7, %c0_8] : memref<1x32xf32, #tpu.memory_space<vmem>>, vector<1x32xf32>
    %23 = vector.broadcast %22 : vector<1x32xf32> to vector<128x32xf32>
    %24 = arith.addf %21, %23 : vector<128x32xf32>
    %25 = arith.truncf %24 : vector<128x32xf32> to vector<128x32xbf16>
    %c0_9 = arith.constant 0 : index
    %c0_10 = arith.constant 0 : index
    %26 = vector.load %arg4[%c0_9, %c0_10] : memref<32x64xbf16, #tpu.memory_space<vmem>>, vector<32x64xbf16>
    %cst_11 = arith.constant dense<0.000000e+00> : vector<128x64xf32>
    %27 = tpu.matmul %25, %26, %cst_11 {dimension_numbers = #tpu.dot_dimension_numbers<[1], [0], [0], [1], [0, 0, 1, 1], [], []>} : vector<128x32xbf16>, vector<32x64xbf16>, vector<128x64xf32> -> vector<128x64xf32>
    %c0_12 = arith.constant 0 : index
    %c0_13 = arith.constant 0 : index
    %28 = vector.load %arg5[%c0_12, %c0_13] : memref<1x64xf32, #tpu.memory_space<vmem>>, vector<1x64xf32>
    %29 = vector.broadcast %28 : vector<1x64xf32> to vector<128x64xf32>
    %30 = arith.addf %27, %29 : vector<128x64xf32>
    %31 = arith.mulf %30, %30 : vector<128x64xf32>
    %32 = arith.mulf %30, %31 : vector<128x64xf32>
    %cst_14 = arith.constant 4.471500e-02 : f32
    %33 = vector.broadcast %cst_14 : f32 to vector<128x64xf32>
    %34 = arith.mulf %33, %32 : vector<128x64xf32>
    %35 = arith.addf %30, %34 : vector<128x64xf32>
    %cst_15 = arith.constant 0.797884583 : f32
    %36 = vector.broadcast %cst_15 : f32 to vector<128x64xf32>
    %37 = arith.mulf %36, %35 : vector<128x64xf32>
    %38 = math.tanh %37 : vector<128x64xf32>
    %cst_16 = arith.constant 1.000000e+00 : f32
    %39 = vector.broadcast %cst_16 : f32 to vector<128x64xf32>
    %40 = arith.addf %39, %38 : vector<128x64xf32>
    %cst_17 = arith.constant 5.000000e-01 : f32
    %41 = vector.broadcast %cst_17 : f32 to vector<128x64xf32>
    %42 = arith.mulf %41, %40 : vector<128x64xf32>
    %43 = arith.mulf %30, %42 : vector<128x64xf32>
    %44 = arith.truncf %43 : vector<128x64xf32> to vector<128x64xbf16>
    %c0_18 = arith.constant 0 : index
    %c0_19 = arith.constant 0 : index
    %45 = vector.load %arg6[%c0_18, %c0_19] : memref<64x32xbf16, #tpu.memory_space<vmem>>, vector<64x32xbf16>
    %cst_20 = arith.constant dense<0.000000e+00> : vector<128x32xf32>
    %46 = tpu.matmul %44, %45, %cst_20 {dimension_numbers = #tpu.dot_dimension_numbers<[1], [0], [0], [1], [0, 0, 1, 1], [], []>} : vector<128x64xbf16>, vector<64x32xbf16>, vector<128x32xf32> -> vector<128x32xf32>
    %c0_21 = arith.constant 0 : index
    %c0_22 = arith.constant 0 : index
    %47 = vector.load %arg7[%c0_21, %c0_22] : memref<1x32xf32, #tpu.memory_space<vmem>>, vector<1x32xf32>
    %48 = vector.broadcast %47 : vector<1x32xf32> to vector<128x32xf32>
    %49 = arith.addf %46, %48 : vector<128x32xf32>
    %50 = arith.addf %0, %49 : vector<128x32xf32>
    %c0_23 = arith.constant 0 : index
    %c0_24 = arith.constant 0 : index
    %51 = vector.load %arg8[%c0_23, %c0_24] : memref<128x32xf32, #tpu.memory_space<vmem>>, vector<128x32xf32>
    tpu.vector_store %arg8[%c0_23, %c0_24], %50 {strides = array<i32>} : memref<128x32xf32, #tpu.memory_space<vmem>>, vector<128x32xf32>,
    return
  }
  func.func @transform_0(%arg0: i32) -> (i32, i32) {
    %c0_i32 = arith.constant 0 : i32
    %c0_i32_0 = arith.constant 0 : i32
    return %arg0, %c0_i32 : i32, i32
  }
  func.func @transform_1(%arg0: i32) -> (i32, i32) {
    %c0_i32 = arith.constant 0 : i32
    %c0_i32_0 = arith.constant 0 : i32
    %c0_i32_1 = arith.constant 0 : i32
    return %c0_i32, %c0_i32_0 : i32, i32
  }
  func.func @transform_2(%arg0: i32) -> (i32, i32) {
    %c0_i32 = arith.constant 0 : i32
    %c0_i32_0 = arith.constant 0 : i32
    %c0_i32_1 = arith.constant 0 : i32
    return %c0_i32, %c0_i32_0 : i32, i32
  }
  func.func @transform_3(%arg0: i32) -> (i32, i32) {
    %c0_i32 = arith.constant 0 : i32
    %c0_i32_0 = arith.constant 0 : i32
    %c0_i32_1 = arith.constant 0 : i32
    return %c0_i32, %c0_i32_0 : i32, i32
  }
  func.func @transform_4(%arg0: i32) -> (i32, i32) {
    %c0_i32 = arith.constant 0 : i32
    %c0_i32_0 = arith.constant 0 : i32
    %c0_i32_1 = arith.constant 0 : i32
    return %c0_i32, %c0_i32_0 : i32, i32
  }
  func.func @transform_5(%arg0: i32) -> (i32, i32) {
    %c0_i32 = arith.constant 0 : i32
    %c0_i32_0 = arith.constant 0 : i32
    %c0_i32_1 = arith.constant 0 : i32
    return %c0_i32, %c0_i32_0 : i32, i32
  }
  func.func @transform_6(%arg0: i32) -> (i32, i32) {
    %c0_i32 = arith.constant 0 : i32
    %c0_i32_0 = arith.constant 0 : i32
    %c0_i32_1 = arith.constant 0 : i32
    return %c0_i32, %c0_i32_0 : i32, i32
  }
  func.func @transform_7(%arg0: i32) -> (i32, i32) {
    %c0_i32 = arith.constant 0 : i32
    %c0_i32_0 = arith.constant 0 : i32
    return %arg0, %c0_i32 : i32, i32
  }
}

module attributes {stable_mosaic.version = 11 : i64} {
  func.func @_mlp_kernel(%arg0: i32, %arg1: memref<128x32xf32, #tpu.memory_space<vmem>>, %arg2: memref<1x32xf32, #tpu.memory_space<vmem>>, %arg3: memref<1x32xf32, #tpu.memory_space<vmem>>, %arg4: memref<32x64xbf16, #tpu.memory_space<vmem>>, %arg5: memref<1x64xf32, #tpu.memory_space<vmem>>, %arg6: memref<64x32xbf16, #tpu.memory_space<vmem>>, %arg7: memref<1x32xf32, #tpu.memory_space<vmem>>, %arg8: memref<128x32xf32, #tpu.memory_space<vmem>>) attributes {dimension_semantics = [#tpu.dimension_semantics<parallel>], iteration_bounds = array<i64: 1>, scalar_prefetch = 0 : i64, scratch_operands = 0 : i64, tpu.core_type = #tpu.core_type<tc>, window_params = [{transform_indices = @transform_0, window_bounds = array<i64: 128, 32>}, {pipeline_mode = #tpu.pipeline_mode<synchronous>, transform_indices = @transform_1, window_bounds = array<i64: 1, 32>}, {pipeline_mode = #tpu.pipeline_mode<synchronous>, transform_indices = @transform_2, window_bounds = array<i64: 1, 32>}, {pipeline_mode = #tpu.pipeline_mode<synchronous>, transform_indices = @transform_3, window_bounds = array<i64: 32, 64>}, {pipeline_mode = #tpu.pipeline_mode<synchronous>, transform_indices = @transform_4, window_bounds = array<i64: 1, 64>}, {pipeline_mode = #tpu.pipeline_mode<synchronous>, transform_indices = @transform_5, window_bounds = array<i64: 64, 32>}, {pipeline_mode = #tpu.pipeline_mode<synchronous>, transform_indices = @transform_6, window_bounds = array<i64: 1, 32>}, {transform_indices = @transform_7, window_bounds = array<i64: 128, 32>}]} {
    %c0 = arith.constant 0 : index
    %c0_0 = arith.constant 0 : index
    %0 = vector.load %arg1[%c0, %c0_0] : memref<128x32xf32, #tpu.memory_space<vmem>>, vector<128x32xf32>
    %cst = arith.constant dense<0.000000e+00> : vector<128xf32>
    %1 = vector.multi_reduction <add>, %0, %cst [1] : vector<128x32xf32> to vector<128xf32>
    %2 = vector.shape_cast %1 : vector<128xf32> to vector<128x1xf32>
    %cst_1 = arith.constant 3.200000e+01 : f32
    %3 = vector.broadcast %cst_1 : f32 to vector<128x1xf32>
    %4 = arith.divf %2, %3 : vector<128x1xf32>
    %5 = vector.broadcast %4 : vector<128x1xf32> to vector<128x32xf32>
    %6 = arith.subf %0, %5 : vector<128x32xf32>
    %7 = arith.mulf %6, %6 : vector<128x32xf32>
    %cst_2 = arith.constant dense<0.000000e+00> : vector<128xf32>
    %8 = vector.multi_reduction <add>, %7, %cst_2 [1] : vector<128x32xf32> to vector<128xf32>
    %9 = vector.shape_cast %8 : vector<128xf32> to vector<128x1xf32>
    %cst_3 = arith.constant 3.200000e+01 : f32
    %10 = vector.broadcast %cst_3 : f32 to vector<128x1xf32>
    %11 = arith.divf %9, %10 : vector<128x1xf32>
    %12 = vector.broadcast %4 : vector<128x1xf32> to vector<128x32xf32>
    %13 = arith.subf %0, %12 : vector<128x32xf32>
    %cst_4 = arith.constant 9.99999974E-6 : f32
    %14 = vector.broadcast %cst_4 : f32 to vector<128x1xf32>
    %15 = arith.addf %11, %14 : vector<128x1xf32>
    %16 = math.rsqrt %15 : vector<128x1xf32>
    %17 = vector.broadcast %16 : vector<128x1xf32> to vector<128x32xf32>
    %18 = arith.mulf %13, %17 : vector<128x32xf32>
    %c0_5 = arith.constant 0 : index
    %c0_6 = arith.constant 0 : index
    %19 = vector.load %arg2[%c0_5, %c0_6] : memref<1x32xf32, #tpu.memory_space<vmem>>, vector<1x32xf32>
    %20 = vector.broadcast %19 : vector<1x32xf32> to vector<128x32xf32>
    %21 = arith.mulf %18, %20 : vector<128x32xf32>
    %c0_7 = arith.constant 0 : index
    %c0_8 = arith.constant 0 : index
    %22 = vector.load %arg3[%c0_7, %c0_8] : memref<1x32xf32, #tpu.memory_space<vmem>>, vector<1x32xf32>
    %23 = vector.broadcast %22 : vector<1x32xf32> to vector<128x32xf32>
    %24 = arith.addf %21, %23 : vector<128x32xf32>
    %25 = arith.truncf %24 : vector<128x32xf32> to vector<128x32xbf16>
    %c0_9 = arith.constant 0 : index
    %c0_10 = arith.constant 0 : index
    %26 = vector.load %arg4[%c0_9, %c0_10] : memref<32x64xbf16, #tpu.memory_space<vmem>>, vector<32x64xbf16>
    %cst_11 = arith.constant dense<0.000000e+00> : vector<128x64xf32>
    %27 = tpu.matmul %25, %26, %cst_11 {dimension_numbers = #tpu.dot_dimension_numbers<[1], [0], [0], [1], [0, 0, 1, 1], [], []>} : vector<128x32xbf16>, vector<32x64xbf16>, vector<128x64xf32> -> vector<128x64xf32>
    %c0_12 = arith.constant 0 : index
    %c0_13 = arith.constant 0 : index
    %28 = vector.load %arg5[%c0_12, %c0_13] : memref<1x64xf32, #tpu.memory_space<vmem>>, vector<1x64xf32>
    %29 = vector.broadcast %28 : vector<1x64xf32> to vector<128x64xf32>
    %30 = arith.addf %27, %29 : vector<128x64xf32>
    %31 = arith.mulf %30, %30 : vector<128x64xf32>
    %32 = arith.mulf %30, %31 : vector<128x64xf32>
    %cst_14 = arith.constant 4.471500e-02 : f32
    %33 = vector.broadcast %cst_14 : f32 to vector<128x64xf32>
    %34 = arith.mulf %33, %32 : vector<128x64xf32>
    %35 = arith.addf %30, %34 : vector<128x64xf32>
    %cst_15 = arith.constant 0.797884583 : f32
    %36 = vector.broadcast %cst_15 : f32 to vector<128x64xf32>
    %37 = arith.mulf %36, %35 : vector<128x64xf32>
    %38 = math.tanh %37 : vector<128x64xf32>
    %cst_16 = arith.constant 1.000000e+00 : f32
    %39 = vector.broadcast %cst_16 : f32 to vector<128x64xf32>
    %40 = arith.addf %39, %38 : vector<128x64xf32>
    %cst_17 = arith.constant 5.000000e-01 : f32
    %41 = vector.broadcast %cst_17 : f32 to vector<128x64xf32>
    %42 = arith.mulf %41, %40 : vector<128x64xf32>
    %43 = arith.mulf %30, %42 : vector<128x64xf32>
    %44 = arith.truncf %43 : vector<128x64xf32> to vector<128x64xbf16>
    %c0_18 = arith.constant 0 : index
    %c0_19 = arith.constant 0 : index
    %45 = vector.load %arg6[%c0_18, %c0_19] : memref<64x32xbf16, #tpu.memory_space<vmem>>, vector<64x32xbf16>
    %cst_20 = arith.constant dense<0.000000e+00> : vector<128x32xf32>
    %46 = tpu.matmul %44, %45, %cst_20 {dimension_numbers = #tpu.dot_dimension_numbers<[1], [0], [0], [1], [0, 0, 1, 1], [], []>} : vector<128x64xbf16>, vector<64x32xbf16>, vector<128x32xf32> -> vector<128x32xf32>
    %c0_21 = arith.constant 0 : index
    %c0_22 = arith.constant 0 : index
    %47 = vector.load %arg7[%c0_21, %c0_22] : memref<1x32xf32, #tpu.memory_space<vmem>>, vector<1x32xf32>
    %48 = vector.broadcast %47 : vector<1x32xf32> to vector<128x32xf32>
    %49 = arith.addf %46, %48 : vector<128x32xf32>
    %50 = arith.addf %0, %49 : vector<128x32xf32>
    %c0_23 = arith.constant 0 : index
    %c0_24 = arith.constant 0 : index
    %51 = vector.load %arg8[%c0_23, %c0_24] : memref<128x32xf32, #tpu.memory_space<vmem>>, vector<128x32xf32>
    tpu.vector_store %arg8[%c0_23, %c0_24], %50 {strides = array<i32>} : memref<128x32xf32, #tpu.memory_space<vmem>>, vector<128x32xf32>,
    return
  }
  func.func @transform_0(%arg0: i32) -> (i32, i32) {
    %c0_i32 = arith.constant 0 : i32
    %c0_i32_0 = arith.constant 0 : i32
    return %arg0, %c0_i32 : i32, i32
  }
  func.func @transform_1(%arg0: i32) -> (i32, i32) {
    %c0_i32 = arith.constant 0 : i32
    %c0_i32_0 = arith.constant 0 : i32
    %c0_i32_1 = arith.constant 0 : i32
    return %c0_i32, %c0_i32_0 : i32, i32
  }
  func.func @transform_2(%arg0: i32) -> (i32, i32) {
    %c0_i32 = arith.constant 0 : i32
    %c0_i32_0 = arith.constant 0 : i32
    %c0_i32_1 = arith.constant 0 : i32
    return %c0_i32, %c0_i32_0 : i32, i32
  }
  func.func @transform_3(%arg0: i32) -> (i32, i32) {
    %c0_i32 = arith.constant 0 : i32
    %c0_i32_0 = arith.constant 0 : i32
    %c0_i32_1 = arith.constant 0 : i32
    return %c0_i32, %c0_i32_0 : i32, i32
  }
  func.func @transform_4(%arg0: i32) -> (i32, i32) {
    %c0_i32 = arith.constant 0 : i32
    %c0_i32_0 = arith.constant 0 : i32
    %c0_i32_1 = arith.constant 0 : i32
    return %c0_i32, %c0_i32_0 : i32, i32
  }
  func.func @transform_5(%arg0: i32) -> (i32, i32) {
    %c0_i32 = arith.constant 0 : i32
    %c0_i32_0 = arith.constant 0 : i32
    %c0_i32_1 = arith.constant 0 : i32
    return %c0_i32, %c0_i32_0 : i32, i32
  }
  func.func @transform_6(%arg0: i32) -> (i32, i32) {
    %c0_i32 = arith.constant 0 : i32
    %c0_i32_0 = arith.constant 0 : i32
    %c0_i32_1 = arith.constant 0 : i32
    return %c0_i32, %c0_i32_0 : i32, i32
  }
  func.func @transform_7(%arg0: i32) -> (i32, i32) {
    %c0_i32 = arith.constant 0 : i32
    %c0_i32_0 = arith.constant 0 : i32
    return %arg0, %c0_i32 : i32, i32
  }
}

</mosaic_0001>

<llo_original>
// kernel: cvt_stage_forward.9
$region0: #{cvt_stage_forward.9}
  #allocation0 [shape = 'u32[]', space=smem, size = 0x4, offset = 0x4, fixed_abs, tag = 'smem constant byte address 0x4 - core index']
  #allocation1 [shape = 'u32[144,128]{1,0:T(1,128)}', space=vmem, size = 0x12000, scoped, tag = 'internal scratch']
  %s0 = inlined_call_operand.vmem [shape: f32[2,64,32], index: 0, kind: input, shape index: {}]
  %s1 = inlined_call_operand.vmem [shape: f32[1,32], index: 1, kind: input, shape index: {}]
  %s2 = inlined_call_operand.vmem [shape: f32[1,32], index: 2, kind: input, shape index: {}]
  %s3 = inlined_call_operand.vmem [shape: f32[2,64,32], index: 3, kind: output, shape index: {}]
  %s4 = sld [smem:[#allocation0]]
  $region45: #{cvt_stage_forward.9} parent=0
    _
  %s6 = ssub.s32 1, %s4
  %s7 = scalar_select 0, %s6, %s4
  loop: start=0, step=1, limit=4
  $region2: #{cvt_stage_forward.9} parent=0 // loop_pre_header
    _
  $region3: #{cvt_stage_forward.9} parent=0 // loop_header
    %s9 = sphi 0, %s13
    %p10 = scmp.ge.s32.totalorder %s9, 4
    %s19 = sphi 0, %s21
    %s22 = sphi 0, %s19
    %s23 = sphi 0, %s22
    %s39 = sphi 0, %s23
    %s43 = sphi 0, %s43
    %s45 = sphi 0, %s43
    %s46 = sphi 0, %s45
    %s60 = sphi 0, %s46
    %s64 = sphi 0, %s64
    %s66 = sphi 0, %s64
    %s67 = sphi 0, %s66
    %s81 = sphi 0, %s67
    %s87 = sphi 0, %s89
    %s90 = sphi 0, %s87
    %s91 = sphi 0, %s90
    %s107 = sphi 0, %s91
  $region4: #{cvt_stage_forward.9} parent=0 // loop_header_branch
    %12 = sbr.rel (%p10) target = $region8
  $region5: #{cvt_stage_forward.9} parent=0 // loop_body
    %s14 = ssub.s32 %s9, 1
    %s15 = ssub.s32 %s9, 2
    %s16 = sadd.s32 %s9, 1
    %s17 = ssub.s32 %s9, %s16
    %p18 = scmp.eq.s32.totalorder %s17, 0
    %s20 = sadd.s32 %s19, 1
    %s21 = scalar_select %p18, %s19, %s20
    %p24 = pneg %p18
    %p25 = scmp.eq.s32.totalorder %s9, 1
    %p26 = por %p24, %p25
    %p27 = scmp.ne.s32.totalorder %s19, %s22
    %p28 = scmp.eq.s32.totalorder %s9, 0
    %p29 = por %p27, %p28
    %p30 = scmp.ne.s32.totalorder %s19, %s22
    %p31 = scmp.eq.s32.totalorder %s14, 1
    %p32 = por %p30, %p31
    %p33 = scmp.ne.s32.totalorder %s22, %s23
    %p34 = scmp.eq.s32.totalorder %s14, 0
    %p35 = por %p33, %p34
    %p36 = scmp.ne.s32.totalorder %s22, %s23
    %p37 = scmp.eq.s32.totalorder %s15, 1
    %p38 = por %p36, %p37
    %p40 = scmp.ne.s32.totalorder %s23, %s39
    %p41 = scmp.eq.s32.totalorder %s15, 0
    %p42 = por %p40, %p41
    %s44 = sadd.s32 %s43, 1
    %p47 = scmp.eq.s32.totalorder %s9, 1
    %p48 = scmp.ne.s32.totalorder %s43, %s45
    %p49 = scmp.eq.s32.totalorder %s9, 0
    %p50 = por %p48, %p49
    %p51 = scmp.ne.s32.totalorder %s43, %s45
    %p52 = scmp.eq.s32.totalorder %s14, 1
    %p53 = por %p51, %p52
    %p54 = scmp.ne.s32.totalorder %s45, %s46
    %p55 = scmp.eq.s32.totalorder %s14, 0
    %p56 = por %p54, %p55
    %p57 = scmp.ne.s32.totalorder %s45, %s46
    %p58 = scmp.eq.s32.totalorder %s15, 1
    %p59 = por %p57, %p58
    %p61 = scmp.ne.s32.totalorder %s46, %s60
    %p62 = scmp.eq.s32.totalorder %s15, 0
    %p63 = por %p61, %p62
    %s65 = sadd.s32 %s64, 1
    %p68 = scmp.eq.s32.totalorder %s9, 1
    %p69 = scmp.ne.s32.totalorder %s64, %s66
    %p70 = scmp.eq.s32.totalorder %s9, 0
    %p71 = por %p69, %p70
    %p72 = scmp.ne.s32.totalorder %s64, %s66
    %p73 = scmp.eq.s32.totalorder %s14, 1
    %p74 = por %p72, %p73
    %p75 = scmp.ne.s32.totalorder %s66, %s67
    %p76 = scmp.eq.s32.totalorder %s14, 0
    %p77 = por %p75, %p76
    %p78 = scmp.ne.s32.totalorder %s66, %s67
    %p79 = scmp.eq.s32.totalorder %s15, 1
    %p80 = por %p78, %p79
    %p82 = scmp.ne.s32.totalorder %s67, %s81
    %p83 = scmp.eq.s32.totalorder %s15, 0
    %p84 = por %p82, %p83
    %s85 = ssub.s32 %s9, %s16
    %p86 = scmp.eq.s32.totalorder %s85, 0
    %s88 = sadd.s32 %s87, 1
    %s89 = scalar_select %p86, %s87, %s88
    %p92 = pneg %p86
    %p93 = scmp.eq.s32.totalorder %s9, 1
    %p94 = por %p92, %p93
    %p95 = scmp.ne.s32.totalorder %s87, %s90
    %p96 = scmp.eq.s32.totalorder %s9, 0
    %p97 = por %p95, %p96
    %p98 = scmp.ne.s32.totalorder %s87, %s90
    %p99 = scmp.eq.s32.totalorder %s14, 1
    %p100 = por %p98, %p99
    %p101 = scmp.ne.s32.totalorder %s90, %s91
    %p102 = scmp.eq.s32.totalorder %s14, 0
    %p103 = por %p101, %p102
    %p104 = scmp.ne.s32.totalorder %s90, %s91
    %p105 = scmp.eq.s32.totalorder %s15, 1
    %p106 = por %p104, %p105
    %p108 = scmp.ne.s32.totalorder %s91, %s107
    %p109 = scmp.eq.s32.totalorder %s15, 0
    %p110 = por %p108, %p109
    %p111 = scmp.le.s32.totalorder 1, %s9
    %p112 = scmp.lt.s32.totalorder %s9, 3
    %p113 = pnand %p111, %p112
    %p114 = pneg %p113
    // Predicated region
    $region9: #{cvt_stage_forward.9} parent=5 // pred_check
      _
    $region10: #{cvt_stage_forward.9} parent=5 // pred_check_branch
      %116 = sbr.rel (%p113) target = $region12
    $region11: #{cvt_stage_forward.9} parent=5 // pred_region
      %s117 = ssub.s32 %s9, 1
      // Predicated region
      $region13: #{cvt_stage_forward.9} parent=11 // pred_check
        %p118 = pneg %p56
      $region14: #{cvt_stage_forward.9} parent=11 // pred_check_branch
        %120 = sbr.rel (%p118) target = $region16
      $region15: #{cvt_stage_forward.9} parent=11 // pred_region
        _
      $region16: #{cvt_stage_forward.9} parent=11 // pred_fallthru
        _
      // Predicated region
      $region17: #{cvt_stage_forward.9} parent=11 // pred_check
        %p121 = pneg %p77
      $region18: #{cvt_stage_forward.9} parent=11 // pred_check_branch
        %123 = sbr.rel (%p121) target = $region20
      $region19: #{cvt_stage_forward.9} parent=11 // pred_region
        _
      $region20: #{cvt_stage_forward.9} parent=11 // pred_fallthru
        _
    $region12: #{cvt_stage_forward.9} parent=5 // pred_fallthru
      _
    %p124 = scmp.lt.s32.totalorder %s9, 2
    // Predicated region
    $region21: #{cvt_stage_forward.9} parent=5 // pred_check
      %p125 = pneg %p124
    $region22: #{cvt_stage_forward.9} parent=5 // pred_check_branch
      %127 = sbr.rel (%p125) target = $region24
    $region23: #{cvt_stage_forward.9} parent=5 // pred_region
      // Predicated region
      $region25: #{cvt_stage_forward.9} parent=23 // pred_check
        %p128 = pneg %p29
      $region26: #{cvt_stage_forward.9} parent=23 // pred_check_branch
        %130 = sbr.rel (%p128) target = $region28
      $region27: #{cvt_stage_forward.9} parent=23 // pred_region
        %p131 = scmp.lt.s32.totalorder %s9, 1
        %s132 = scalar_select %p131, %s9, 1
        %s133 = smul.addr %s132, 8
        %s134 = smul.addr %s133, 8
        %s135 = scalar_lea.vmem %s0, %s134
      $region28: #{cvt_stage_forward.9} parent=23 // pred_fallthru
        _
    $region24: #{cvt_stage_forward.9} parent=5 // pred_fallthru
      _
    %p136 = scmp.le.s32.totalorder 1, %s9
    %p137 = scmp.lt.s32.totalorder %s9, 3
    %p138 = pnand %p136, %p137
    %p139 = pneg %p138
    // Predicated region
    $region29: #{cvt_stage_forward.9} parent=5 // pred_check
      _
    $region30: #{cvt_stage_forward.9} parent=5 // pred_check_branch
      %141 = sbr.rel (%p138) target = $region32
    $region31: #{cvt_stage_forward.9} parent=5 // pred_region
      %s142 = ssub.s32 %s9, 1
      %p143 = scmp.lt.s32.totalorder %s14, 1
      %s144 = scalar_select %p143, %s14, 1
      %s145 = smul.addr %s144, 8
      %s146 = smul.addr %s145, 8
      %s147 = scalar_lea.vmem %s0, %s146
      %p148 = pneg %p35
      %p149 = pneg %p32
      %p150 = pneg %p56
      %p151 = pneg %p53
      %p152 = pneg %p77
      %p153 = pneg %p74
      %p154 = pneg %p103
      %p155 = pneg %p100
      %p156 = scmp.lt.s32.totalorder %s14, 1
      %s157 = scalar_select %p156, %s14, 1
      %s158 = smul.addr %s157, 8
      %s159 = smul.addr %s158, 8
      %s160 = scalar_lea.vmem %s3, %s159
      %p161 = scmp.lt.s32.totalorder %s14, 1
      %s162 = scalar_select %p161, %s14, 1
      %s163 = smul.addr %s162, 8
      %s164 = smul.addr %s163, 8
      %s165 = scalar_lea.vmem %s0, %s164
      %p166 = scmp.lt.s32.totalorder %s14, 1
      %s167 = scalar_select %p166, %s14, 1
      %s168 = smul.addr %s167, 8
      %s169 = smul.addr %s168, 8
      %s170 = scalar_lea.vmem %s3, %s169
      %v171 = vld [vmem:[%s165] sm:$0xff]
      %v172 = vld [vmem:[%s165 + $0x8] sm:$0xff]
      %v173 = vld [vmem:[%s165 + $0x10] sm:$0xff]
      %v174 = vld [vmem:[%s165 + $0x18] sm:$0xff]
      %v175 = vld [vmem:[%s165 + $0x20] sm:$0xff]
      %v176 = vld [vmem:[%s165 + $0x28] sm:$0xff]
      %v177 = vld [vmem:[%s165 + $0x30] sm:$0xff]
      %v178 = vld [vmem:[%s165 + $0x38] sm:$0xff]
      %vm179 = vcmask 261120
      %v180 = vsel %vm179, %v171, 0.0
      %v181 = vsel %vm179, %v172, 0.0
      %v182 = vadd.f32 %v180, %v181
      %v183 = vsel %vm179, %v173, 0.0
      %v184 = vadd.f32 %v182, %v183
      %v185 = vsel %vm179, %v174, 0.0
      %v186 = vadd.f32 %v184, %v185
      %v187 = vsel %vm179, %v175, 0.0
      %v188 = vadd.f32 %v186, %v187
      %v189 = vsel %vm179, %v176, 0.0
      %v190 = vadd.f32 %v188, %v189
      %v191 = vsel %vm179, %v177, 0.0
      %v192 = vadd.f32 %v190, %v191
      %v193 = vsel %vm179, %v178, 0.0
      %v194 = vadd.f32 %v192, %v193
      %195 = vadd.xlane.f32.xlu0 %v194
      %v196 = vpop.xlane.xlu0 %195
      %v197 = vrot.slane %v196, 4
      %v198 = vadd.f32 %v196, %v197
      %v199 = vrot.slane %v198, 2
      %v200 = vadd.f32 %v198, %v199
      %v201 = vrot.slane %v200, 1
      %v202 = vadd.f32 %v200, %v201
      %v203 = vrcp.pop 2048.0
      %v204 = vmul.f32 %v202, %v203
      %v205 = vsub.f32 %v171, %v204
      %v206 = vsub.f32 %v172, %v204
      %v207 = vsub.f32 %v173, %v204
      %v208 = vsub.f32 %v174, %v204
      %v209 = vsub.f32 %v175, %v204
      %v210 = vsub.f32 %v176, %v204
      %v211 = vsub.f32 %v177, %v204
      %v212 = vsub.f32 %v178, %v204
      %v213 = vmul.f32 %v205, %v205
      %v214 = vmul.f32 %v206, %v206
      %v215 = vmul.f32 %v207, %v207
      %v216 = vmul.f32 %v208, %v208
      %v217 = vmul.f32 %v209, %v209
      %v218 = vmul.f32 %v210, %v210
      %v219 = vmul.f32 %v211, %v211
      %v220 = vmul.f32 %v212, %v212
      %v221 = vsel %vm179, %v213, 0.0
      %v222 = vsel %vm179, %v214, 0.0
      %v223 = vadd.f32 %v221, %v222
      %v224 = vsel %vm179, %v215, 0.0
      %v225 = vadd.f32 %v223, %v224
      %v226 = vsel %vm179, %v216, 0.0
      %v227 = vadd.f32 %v225, %v226
      %v228 = vsel %vm179, %v217, 0.0
      %v229 = vadd.f32 %v227, %v228
      %v230 = vsel %vm179, %v218, 0.0
      %v231 = vadd.f32 %v229, %v230
      %v232 = vsel %vm179, %v219, 0.0
      %v233 = vadd.f32 %v231, %v232
      %v234 = vsel %vm179, %v220, 0.0
      %v235 = vadd.f32 %v233, %v234
      %236 = vadd.xlane.f32.xlu0 %v235
      %v237 = vpop.xlane.xlu0 %236
      %v238 = vrot.slane %v237, 4
      %v239 = vadd.f32 %v237, %v238
      %v240 = vrot.slane %v239, 2
      %v241 = vadd.f32 %v239, %v240
      %v242 = vrot.slane %v241, 1
      %v243 = vadd.f32 %v241, %v242
      %v244 = vmul.f32 %v243, %v203
      %v245 = vadd.f32 %v244, 1e-05
      %v246 = vrsqrt.pop %v245
      %v247 = vmul.f32 %v205, %v246
      %v248 = vmul.f32 %v206, %v246
      %v249 = vmul.f32 %v207, %v246
      %v250 = vmul.f32 %v208, %v246
      %v251 = vmul.f32 %v209, %v246
      %v252 = vmul.f32 %v210, %v246
      %v253 = vmul.f32 %v211, %v246
      %v254 = vmul.f32 %v212, %v246
      %v255 = vld [vmem:[%s1] sm:$0x1]
      %v257 = vlaneseq
      %v258 = vshrl.u32 %v257, 7
      %v259 = vsub.s32 0, %v258
      %v260 = vrot.slane %v255, %v259
      %v262 = vmul.f32 %v247, %v260
      %v263 = vmul.f32 %v248, %v260
      %v264 = vmul.f32 %v249, %v260
      %v265 = vmul.f32 %v250, %v260
      %v266 = vmul.f32 %v251, %v260
      %v267 = vmul.f32 %v252, %v260
      %v268 = vmul.f32 %v253, %v260
      %v269 = vmul.f32 %v254, %v260
      %v270 = vld [vmem:[%s2] sm:$0x1]
      %v272 = vlaneseq
      %v273 = vshrl.u32 %v272, 7
      %v274 = vsub.s32 0, %v273
      %v275 = vrot.slane %v270, %v274
      %v277 = vadd.f32 %v262, %v275
      %v278 = vadd.f32 %v263, %v275
      %v279 = vadd.f32 %v264, %v275
      %v280 = vadd.f32 %v265, %v275
      %v281 = vadd.f32 %v266, %v275
      %v282 = vadd.f32 %v267, %v275
      %v283 = vadd.f32 %v268, %v275
      %v284 = vadd.f32 %v269, %v275
      %285 = vst.msk [vmem:[%s170] sm:$0xff] %vm179, %v277
      %286 = vst.msk [vmem:[%s170 + $0x8] sm:$0xff] %vm179, %v278
      %287 = vst.msk [vmem:[%s170 + $0x10] sm:$0xff] %vm179, %v279
      %288 = vst.msk [vmem:[%s170 + $0x18] sm:$0xff] %vm179, %v280
      %289 = vst.msk [vmem:[%s170 + $0x20] sm:$0xff] %vm179, %v281
      %290 = vst.msk [vmem:[%s170 + $0x28] sm:$0xff] %vm179, %v282
      %291 = vst.msk [vmem:[%s170 + $0x30] sm:$0xff] %vm179, %v283
      %292 = vst.msk [vmem:[%s170 + $0x38] sm:$0xff] %vm179, %v284
      %p293 = scmp.lt.s32.totalorder %s14, 1
      %s294 = scalar_select %p293, %s14, 1
      %s295 = smul.addr %s294, 8
      %s296 = smul.addr %s295, 8
      %s297 = scalar_lea.vmem %s3, %s296
      // Predicated region
      $region33: #{cvt_stage_forward.9} parent=31 // pred_check
        %p298 = pneg %p100
      $region34: #{cvt_stage_forward.9} parent=31 // pred_check_branch
        %300 = sbr.rel (%p298) target = $region36
      $region35: #{cvt_stage_forward.9} parent=31 // pred_region
        _
      $region36: #{cvt_stage_forward.9} parent=31 // pred_fallthru
        _
    $region32: #{cvt_stage_forward.9} parent=5 // pred_fallthru
      _
    %p301 = scmp.le.s32.totalorder 2, %s9
    // Predicated region
    $region37: #{cvt_stage_forward.9} parent=5 // pred_check
      %p302 = pneg %p301
    $region38: #{cvt_stage_forward.9} parent=5 // pred_check_branch
      %304 = sbr.rel (%p302) target = $region40
    $region39: #{cvt_stage_forward.9} parent=5 // pred_region
      %s305 = ssub.s32 %s9, 2
      // Predicated region
      $region41: #{cvt_stage_forward.9} parent=39 // pred_check
        %p306 = pneg %p106
      $region42: #{cvt_stage_forward.9} parent=39 // pred_check_branch
        %308 = sbr.rel (%p306) target = $region44
      $region43: #{cvt_stage_forward.9} parent=39 // pred_region
        %p309 = scmp.lt.s32.totalorder %s15, 1
        %s310 = scalar_select %p309, %s15, 1
        %s311 = smul.addr %s310, 8
        %s312 = smul.addr %s311, 8
        %s313 = scalar_lea.vmem %s3, %s312
      $region44: #{cvt_stage_forward.9} parent=39 // pred_fallthru
        _
    $region40: #{cvt_stage_forward.9} parent=5 // pred_fallthru
      _
  $region6: #{cvt_stage_forward.9} parent=0 // loop_footer
    %s13 = sadd.s32 1, %s9
  $region7: #{cvt_stage_forward.9} parent=0 // loop_footer_branch
    %8 = sbr.rel target = $region3
  $region8: #{cvt_stage_forward.9} parent=0 // loop_exit
    _

// kernel: cvt_stage_forward.8
$region0: #{cvt_stage_forward.8}
  #allocation0 [shape = 'u32[]', space=smem, size = 0x4, offset = 0x4, fixed_abs, tag = 'smem constant byte address 0x4 - core index']
  #allocation1 [shape = 'u32[144,128]{1,0:T(1,128)}', space=vmem, size = 0x12000, scoped, tag = 'internal scratch']
  %s0 = inlined_call_operand.vmem [shape: f32[128,36], index: 0, kind: input, shape index: {}]
  %s1 = inlined_call_operand.vmem [shape: bf16[36,32], index: 1, kind: input, shape index: {}]
  %s2 = inlined_call_operand.vmem [shape: f32[1,32], index: 2, kind: input, shape index: {}]
  %s3 = inlined_call_operand.vmem [shape: f32[128,32], index: 3, kind: output, shape index: {}]
  %s4 = sld [smem:[#allocation0]]
  $region22: #{cvt_stage_forward.8} parent=0
    _
  %s6 = ssub.s32 1, %s4
  %s7 = scalar_select 0, %s6, %s4
  // Predicated region
  $region2: #{cvt_stage_forward.8} parent=0 // pred_check
    _
  $region3: #{cvt_stage_forward.8} parent=0 // pred_check_branch
    %9 = sbr.rel (0) target = $region5
  $region4: #{cvt_stage_forward.8} parent=0 // pred_region
    _
  $region5: #{cvt_stage_forward.8} parent=0 // pred_fallthru
    _
  // Predicated region
  $region6: #{cvt_stage_forward.8} parent=0 // pred_check
    _
  $region7: #{cvt_stage_forward.8} parent=0 // pred_check_branch
    %11 = sbr.rel (0) target = $region9
  $region8: #{cvt_stage_forward.8} parent=0 // pred_region
    _
  $region9: #{cvt_stage_forward.8} parent=0 // pred_fallthru
    _
  // Predicated region
  $region10: #{cvt_stage_forward.8} parent=0 // pred_check
    _
  $region11: #{cvt_stage_forward.8} parent=0 // pred_check_branch
    %13 = sbr.rel (0) target = $region13
  $region12: #{cvt_stage_forward.8} parent=0 // pred_region
    _
  $region13: #{cvt_stage_forward.8} parent=0 // pred_fallthru
    _
  %v15 = vld [vmem:[%s0] sm:$0xff]
  %v16 = vld [vmem:[%s0 + $0x8] sm:$0xff]
  %v17 = vld [vmem:[%s0 + $0x10] sm:$0xff]
  %v18 = vld [vmem:[%s0 + $0x18] sm:$0xff]
  %v19 = vld [vmem:[%s0 + $0x20] sm:$0xff]
  %v20 = vld [vmem:[%s0 + $0x28] sm:$0xff]
  %v21 = vld [vmem:[%s0 + $0x30] sm:$0xff]
  %v22 = vld [vmem:[%s0 + $0x38] sm:$0xff]
  %v23 = vld [vmem:[%s0 + $0x40] sm:$0xff]
  %v24 = vld [vmem:[%s0 + $0x48] sm:$0xff]
  %v25 = vld [vmem:[%s0 + $0x50] sm:$0xff]
  %v26 = vld [vmem:[%s0 + $0x58] sm:$0xff]
  %v27 = vld [vmem:[%s0 + $0x60] sm:$0xff]
  %v28 = vld [vmem:[%s0 + $0x68] sm:$0xff]
  %v29 = vld [vmem:[%s0 + $0x70] sm:$0xff]
  %v30 = vld [vmem:[%s0 + $0x78] sm:$0xff]
  %v31 = vpack.c.bf16 %v16, %v15
  %v32 = vpack.c.bf16 %v18, %v17
  %v33 = vpack.c.bf16 %v20, %v19
  %v34 = vpack.c.bf16 %v22, %v21
  %v35 = vpack.c.bf16 %v24, %v23
  %v36 = vpack.c.bf16 %v26, %v25
  %v37 = vpack.c.bf16 %v28, %v27
  %v38 = vpack.c.bf16 %v30, %v29
  %v39 = vld [vmem:[%s1] sm:$0xf]
  %v40 = vld [vmem:[%s1 + $0x4] sm:$0xf]
  %v41 = vld [vmem:[%s1 + $0x8] sm:$0xf]
  %v42 = vld [vmem:[%s1 + $0xc] sm:$0xf]
  %v43 = vld [vmem:[%s1 + $0x10] sm:$0x3]
  %v44 = vld [vmem:[%s2] sm:$0x1]
  %v46 = vlaneseq
  %v47 = vshrl.u32 %v46, 7
  %v48 = vsub.s32 0, %v47
  %v49 = vrot.slane %v44, %v48
  %v56 = vunpack.c.l.b16 %v39
  %v57 = vunpack.c.l.b16 %v40
  %v58 = vunpack.c.l.b16 %v41
  %v59 = vunpack.c.l.b16 %v42
  %v60 = vunpack.c.l.b16 %v43
  %v61 = vpack.c.b16 %v57, %v56
  %v62 = vpack.c.b16 %v59, %v58
  %v63 = vpack.c.b16 %v60, %v60
  %vm66 = vcmask 293888
  %v68 = vsel %vm66, %v31, 0
  %v71 = vsel %vm66, %v32, 0
  %v74 = vsel %vm66, %v33, 0
  %v77 = vsel %vm66, %v34, 0
  %v80 = vsel %vm66, %v35, 0
  %v83 = vsel %vm66, %v36, 0
  %v86 = vsel %vm66, %v37, 0
  %v89 = vsel %vm66, %v38, 0
  %vm91 = vcmask 1041408
  %v93 = vsel %vm91, %v63, 0
  %95 = vmatprep.subr.bf16.mxu0 0
  %96 = vmatpush1.bf16.msra.mxu0 %v61
  %97 = vmatprep.subr.bf16.mxu0 0
  %98 = vmatpush1.bf16.msra.mxu0 %v62
  %99 = vmatprep.subr.bf16.mxu0 0
  %100 = vmatpush1.bf16.msra.mxu0 %v93
  %101 = vmatprep.subr.bf16.mxu0 0
  %102 = vmatpush1.bf16.msra.mxu0 0
  %103 = vmatprep.subr.bf16.mxu0 0
  %104 = vmatpush1.bf16.msra.mxu0 0
  %105 = vmatprep.subr.bf16.mxu0 0
  %106 = vmatpush1.bf16.msra.mxu0 0
  %107 = vmatprep.subr.bf16.mxu0 0
  %108 = vmatpush1.bf16.msra.mxu0 0
  %109 = vmatprep.subr.bf16.mxu0 0
  %110 = vmatpush1.bf16.msra.mxu0 0
  %111 = vmatprep.subr.bf16.mxu0 0
  %112 = vmatpush1.bf16.msra.mxu0 0
  %113 = vmatprep.subr.bf16.mxu0 0
  %114 = vmatpush1.bf16.msra.mxu0 0
  %115 = vmatprep.subr.bf16.mxu0 0
  %116 = vmatpush1.bf16.msra.mxu0 0
  %117 = vmatprep.subr.bf16.mxu0 0
  %118 = vmatpush1.bf16.msra.mxu0 0
  %119 = vmatprep.subr.bf16.mxu0 0
  %120 = vmatpush1.bf16.msra.mxu0 0
  %121 = vmatprep.subr.bf16.mxu0 0
  %122 = vmatpush1.bf16.msra.mxu0 0
  %123 = vmatprep.subr.bf16.mxu0 0
  %124 = vmatpush1.bf16.msra.mxu0 0
  %125 = vmatprep.subr.bf16.mxu0 0
  %126 = vmatpush1.bf16.msra.mxu0 0
  %127 = vmatprep.mubr.bf16.mxu0 0
  %128 = vmatmul.mubr.bf16.gmra.mrb[0].mxu0 %v68
  %v129 = vpop.f32.mrb[0].mxu0
  %v130 = vadd.f32 %v49, %v129
  %v131 = vpop.f32.mrb[0].mxu0
  %v132 = vpop.f32.mrb[0].mxu0
  %v133 = vadd.f32 %v49, %v132
  %v134 = vpop.f32.mrb[0].mxu0
  %135 = vmatprep.mubr.bf16.mxu0 0
  %136 = vmatmul.mubr.bf16.gmra.mrb[0].mxu0 %v71
  %v137 = vpop.f32.mrb[0].mxu0
  %v138 = vadd.f32 %v49, %v137
  %v139 = vpop.f32.mrb[0].mxu0
  %v140 = vpop.f32.mrb[0].mxu0
  %v141 = vadd.f32 %v49, %v140
  %v142 = vpop.f32.mrb[0].mxu0
  %143 = vmatprep.mubr.bf16.mxu0 0
  %144 = vmatmul.mubr.bf16.gmra.mrb[0].mxu0 %v74
  %v145 = vpop.f32.mrb[0].mxu0
  %v146 = vadd.f32 %v49, %v145
  %v147 = vpop.f32.mrb[0].mxu0
  %v148 = vpop.f32.mrb[0].mxu0
  %v149 = vadd.f32 %v49, %v148
  %v150 = vpop.f32.mrb[0].mxu0
  %151 = vmatprep.mubr.bf16.mxu0 0
  %152 = vmatmul.mubr.bf16.gmra.mrb[0].mxu0 %v77
  %v153 = vpop.f32.mrb[0].mxu0
  %v154 = vadd.f32 %v49, %v153
  %v155 = vpop.f32.mrb[0].mxu0
  %v156 = vpop.f32.mrb[0].mxu0
  %v157 = vadd.f32 %v49, %v156
  %v158 = vpop.f32.mrb[0].mxu0
  %159 = vmatprep.mubr.bf16.mxu0 0
  %160 = vmatmul.mubr.bf16.gmra.mrb[0].mxu0 %v80
  %v161 = vpop.f32.mrb[0].mxu0
  %v162 = vadd.f32 %v49, %v161
  %v163 = vpop.f32.mrb[0].mxu0
  %v164 = vpop.f32.mrb[0].mxu0
  %v165 = vadd.f32 %v49, %v164
  %v166 = vpop.f32.mrb[0].mxu0
  %167 = vmatprep.mubr.bf16.mxu0 0
  %168 = vmatmul.mubr.bf16.gmra.mrb[0].mxu0 %v83
  %v169 = vpop.f32.mrb[0].mxu0
  %v170 = vadd.f32 %v49, %v169
  %v171 = vpop.f32.mrb[0].mxu0
  %v172 = vpop.f32.mrb[0].mxu0
  %v173 = vadd.f32 %v49, %v172
  %v174 = vpop.f32.mrb[0].mxu0
  %175 = vmatprep.mubr.bf16.mxu0 0
  %176 = vmatmul.mubr.bf16.gmra.mrb[0].mxu0 %v86
  %v177 = vpop.f32.mrb[0].mxu0
  %v178 = vadd.f32 %v49, %v177
  %v179 = vpop.f32.mrb[0].mxu0
  %v180 = vpop.f32.mrb[0].mxu0
  %v181 = vadd.f32 %v49, %v180
  %v182 = vpop.f32.mrb[0].mxu0
  %183 = vmatprep.mubr.bf16.mxu0 0
  %184 = vmatmul.mubr.bf16.gmra.mrb[0].mxu0 %v89
  %v185 = vpop.f32.mrb[0].mxu0
  %v186 = vadd.f32 %v49, %v185
  %v187 = vpop.f32.mrb[0].mxu0
  %v188 = vpop.f32.mrb[0].mxu0
  %v189 = vadd.f32 %v49, %v188
  %v190 = vpop.f32.mrb[0].mxu0
  %191 = vdwg.mxu0
  %vm192 = vcmask 261120
  %193 = vst.msk [vmem:[%s3] sm:$0xff] %vm192, %v130
  %194 = vst.msk [vmem:[%s3 + $0x8] sm:$0xff] %vm192, %v133
  %195 = vst.msk [vmem:[%s3 + $0x10] sm:$0xff] %vm192, %v138
  %196 = vst.msk [vmem:[%s3 + $0x18] sm:$0xff] %vm192, %v141
  %197 = vst.msk [vmem:[%s3 + $0x20] sm:$0xff] %vm192, %v146
  %198 = vst.msk [vmem:[%s3 + $0x28] sm:$0xff] %vm192, %v149
  %199 = vst.msk [vmem:[%s3 + $0x30] sm:$0xff] %vm192, %v154
  %200 = vst.msk [vmem:[%s3 + $0x38] sm:$0xff] %vm192, %v157
  %201 = vst.msk [vmem:[%s3 + $0x40] sm:$0xff] %vm192, %v162
  %202 = vst.msk [vmem:[%s3 + $0x48] sm:$0xff] %vm192, %v165
  %203 = vst.msk [vmem:[%s3 + $0x50] sm:$0xff] %vm192, %v170
  %204 = vst.msk [vmem:[%s3 + $0x58] sm:$0xff] %vm192, %v173
  %205 = vst.msk [vmem:[%s3 + $0x60] sm:$0xff] %vm192, %v178
  %206 = vst.msk [vmem:[%s3 + $0x68] sm:$0xff] %vm192, %v181
  %207 = vst.msk [vmem:[%s3 + $0x70] sm:$0xff] %vm192, %v186
  %208 = vst.msk [vmem:[%s3 + $0x78] sm:$0xff] %vm192, %v189
  // Predicated region
  $region14: #{cvt_stage_forward.8} parent=0 // pred_check
    _
  $region15: #{cvt_stage_forward.8} parent=0 // pred_check_branch
    %210 = sbr.rel (0) target = $region17
  $region16: #{cvt_stage_forward.8} parent=0 // pred_region
    _
  $region17: #{cvt_stage_forward.8} parent=0 // pred_fallthru
    _
  // Predicated region
  $region18: #{cvt_stage_forward.8} parent=0 // pred_check
    _
  $region19: #{cvt_stage_forward.8} parent=0 // pred_check_branch
    %212 = sbr.rel (0) target = $region21
  $region20: #{cvt_stage_forward.8} parent=0 // pred_region
    _
  $region21: #{cvt_stage_forward.8} parent=0 // pred_fallthru
    _

// kernel: cvt_stage_forward.10
$region0: #{cvt_stage_forward.10}
  #allocation0 [shape = 'u32[]', space=smem, size = 0x4, offset = 0x4, fixed_abs, tag = 'smem constant byte address 0x4 - core index']
  #allocation1 [shape = 'u32[144,128]{1,0:T(1,128)}', space=vmem, size = 0x12000, scoped, tag = 'internal scratch']
  %s0 = inlined_call_operand.vmem [shape: f32[2,10,5,64], index: 0, kind: input, shape index: {}]
  %s1 = inlined_call_operand.vmem [shape: f32[2,32], index: 1, kind: input, shape index: {}]
  %s2 = inlined_call_operand.vmem [shape: f32[3,9,32], index: 2, kind: input, shape index: {}]
  %s3 = inlined_call_operand.vmem [shape: f32[3,32], index: 3, kind: input, shape index: {}]
  %s4 = inlined_call_operand.vmem [shape: f32[3,32], index: 4, kind: input, shape index: {}]
  %s5 = inlined_call_operand.vmem [shape: f32[3,32], index: 5, kind: input, shape index: {}]
  %s6 = inlined_call_operand.vmem [shape: f32[2,8,4,64], index: 6, kind: output, shape index: {0}]
  %s7 = inlined_call_operand.vmem [shape: bf16[2,8,4,64], index: 7, kind: output, shape index: {1}]
  %s8 = inlined_call_operand.vmem [shape: bf16[2,4,4,32], index: 8, kind: output, shape index: {2}]
  %s9 = inlined_call_operand.vmem [shape: bf16[2,4,4,32], index: 9, kind: output, shape index: {3}]
  %10 = xla_tuple %s6, %s7, %s8, %s9
  %s11 = sld [smem:[#allocation0]]
  $region81: #{cvt_stage_forward.10} parent=0
    _
  %s13 = ssub.s32 1, %s11
  %s14 = scalar_select 0, %s13, %s11
  loop: start=0, step=1, limit=6
  $region2: #{cvt_stage_forward.10} parent=0 // loop_pre_header
    _
  $region3: #{cvt_stage_forward.10} parent=0 // loop_header
    %s16 = sphi 0, %s20
    %p17 = scmp.ge.s32.totalorder %s16, 6
    %s23 = sphi 0, %s35
    %s24 = sphi 0, %s31
    %s25 = sphi 0, %s23
    %s26 = sphi 0, %s24
    %s27 = sphi 0, %s25
    %s28 = sphi 0, %s26
    %s38 = sphi 0, %s40
    %s41 = sphi 0, %s38
    %s42 = sphi 0, %s41
    %s58 = sphi 0, %s42
    %s62 = sphi 0, %s62
    %s64 = sphi 0, %s62
    %s65 = sphi 0, %s64
    %s79 = sphi 0, %s65
    %s83 = sphi 0, %s83
    %s85 = sphi 0, %s83
    %s86 = sphi 0, %s85
    %s100 = sphi 0, %s86
    %s104 = sphi 0, %s104
    %s106 = sphi 0, %s104
    %s107 = sphi 0, %s106
    %s121 = sphi 0, %s107
    %s125 = sphi 0, %s125
    %s127 = sphi 0, %s125
    %s128 = sphi 0, %s127
    %s142 = sphi 0, %s128
    %s146 = sphi 0, %s146
    %s148 = sphi 0, %s146
    %s149 = sphi 0, %s148
    %s163 = sphi 0, %s149
    %s171 = sphi 0, %s173
    %s174 = sphi 0, %s171
    %s175 = sphi 0, %s174
    %s191 = sphi 0, %s175
    %s199 = sphi 0, %s201
    %s202 = sphi 0, %s199
    %s203 = sphi 0, %s202
    %s219 = sphi 0, %s203
    %s227 = sphi 0, %s229
    %s230 = sphi 0, %s227
    %s231 = sphi 0, %s230
    %s247 = sphi 0, %s231
    %s255 = sphi 0, %s257
    %s258 = sphi 0, %s255
    %s259 = sphi 0, %s258
    %s275 = sphi 0, %s259
  $region4: #{cvt_stage_forward.10} parent=0 // loop_header_branch
    %19 = sbr.rel (%p17) target = $region8
  $region5: #{cvt_stage_forward.10} parent=0 // loop_body
    %s21 = ssub.s32 %s16, 1
    %s22 = ssub.s32 %s16, 2
    %s29 = sadd.s32 1, %s24
    %p30 = scmp.ge.s32.totalorder %s29, 2
    %s31 = scalar_select %p30, 0, %s29
    %s32 = sadd.s32 1, %s23
    %s33 = scalar_select %p30, %s32, %s23
    %p34 = scmp.ge.s32.totalorder %s33, 2
    %s35 = scalar_select %p34, 0, %s33
    %s36 = ssub.s32 %s23, %s35
    %p37 = scmp.eq.s32.totalorder %s36, 0
    %s39 = sadd.s32 %s38, 1
    %s40 = scalar_select %p37, %s38, %s39
    %p43 = pneg %p37
    %p44 = scmp.eq.s32.totalorder %s16, 3
    %p45 = por %p43, %p44
    %p46 = scmp.ne.s32.totalorder %s38, %s41
    %p47 = scmp.eq.s32.totalorder %s16, 0
    %p48 = por %p46, %p47
    %p49 = scmp.ne.s32.totalorder %s38, %s41
    %p50 = scmp.eq.s32.totalorder %s21, 3
    %p51 = por %p49, %p50
    %p52 = scmp.ne.s32.totalorder %s41, %s42
    %p53 = scmp.eq.s32.totalorder %s21, 0
    %p54 = por %p52, %p53
    %p55 = scmp.ne.s32.totalorder %s41, %s42
    %p56 = scmp.eq.s32.totalorder %s22, 3
    %p57 = por %p55, %p56
    %p59 = scmp.ne.s32.totalorder %s42, %s58
    %p60 = scmp.eq.s32.totalorder %s22, 0
    %p61 = por %p59, %p60
    %s63 = sadd.s32 %s62, 1
    %p66 = scmp.eq.s32.totalorder %s16, 3
    %p67 = scmp.ne.s32.totalorder %s62, %s64
    %p68 = scmp.eq.s32.totalorder %s16, 0
    %p69 = por %p67, %p68
    %p70 = scmp.ne.s32.totalorder %s62, %s64
    %p71 = scmp.eq.s32.totalorder %s21, 3
    %p72 = por %p70, %p71
    %p73 = scmp.ne.s32.totalorder %s64, %s65
    %p74 = scmp.eq.s32.totalorder %s21, 0
    %p75 = por %p73, %p74
    %p76 = scmp.ne.s32.totalorder %s64, %s65
    %p77 = scmp.eq.s32.totalorder %s22, 3
    %p78 = por %p76, %p77
    %p80 = scmp.ne.s32.totalorder %s65, %s79
    %p81 = scmp.eq.s32.totalorder %s22, 0
    %p82 = por %p80, %p81
    %s84 = sadd.s32 %s83, 1
    %p87 = scmp.eq.s32.totalorder %s16, 3
    %p88 = scmp.ne.s32.totalorder %s83, %s85
    %p89 = scmp.eq.s32.totalorder %s16, 0
    %p90 = por %p88, %p89
    %p91 = scmp.ne.s32.totalorder %s83, %s85
    %p92 = scmp.eq.s32.totalorder %s21, 3
    %p93 = por %p91, %p92
    %p94 = scmp.ne.s32.totalorder %s85, %s86
    %p95 = scmp.eq.s32.totalorder %s21, 0
    %p96 = por %p94, %p95
    %p97 = scmp.ne.s32.totalorder %s85, %s86
    %p98 = scmp.eq.s32.totalorder %s22, 3
    %p99 = por %p97, %p98
    %p101 = scmp.ne.s32.totalorder %s86, %s100
    %p102 = scmp.eq.s32.totalorder %s22, 0
    %p103 = por %p101, %p102
    %s105 = sadd.s32 %s104, 1
    %p108 = scmp.eq.s32.totalorder %s16, 3
    %p109 = scmp.ne.s32.totalorder %s104, %s106
    %p110 = scmp.eq.s32.totalorder %s16, 0
    %p111 = por %p109, %p110
    %p112 = scmp.ne.s32.totalorder %s104, %s106
    %p113 = scmp.eq.s32.totalorder %s21, 3
    %p114 = por %p112, %p113
    %p115 = scmp.ne.s32.totalorder %s106, %s107
    %p116 = scmp.eq.s32.totalorder %s21, 0
    %p117 = por %p115, %p116
    %p118 = scmp.ne.s32.totalorder %s106, %s107
    %p119 = scmp.eq.s32.totalorder %s22, 3
    %p120 = por %p118, %p119
    %p122 = scmp.ne.s32.totalorder %s107, %s121
    %p123 = scmp.eq.s32.totalorder %s22, 0
    %p124 = por %p122, %p123
    %s126 = sadd.s32 %s125, 1
    %p129 = scmp.eq.s32.totalorder %s16, 3
    %p130 = scmp.ne.s32.totalorder %s125, %s127
    %p131 = scmp.eq.s32.totalorder %s16, 0
    %p132 = por %p130, %p131
    %p133 = scmp.ne.s32.totalorder %s125, %s127
    %p134 = scmp.eq.s32.totalorder %s21, 3
    %p135 = por %p133, %p134
    %p136 = scmp.ne.s32.totalorder %s127, %s128
    %p137 = scmp.eq.s32.totalorder %s21, 0
    %p138 = por %p136, %p137
    %p139 = scmp.ne.s32.totalorder %s127, %s128
    %p140 = scmp.eq.s32.totalorder %s22, 3
    %p141 = por %p139, %p140
    %p143 = scmp.ne.s32.totalorder %s128, %s142
    %p144 = scmp.eq.s32.totalorder %s22, 0
    %p145 = por %p143, %p144
    %s147 = sadd.s32 %s146, 1
    %p150 = scmp.eq.s32.totalorder %s16, 3
    %p151 = scmp.ne.s32.totalorder %s146, %s148
    %p152 = scmp.eq.s32.totalorder %s16, 0
    %p153 = por %p151, %p152
    %p154 = scmp.ne.s32.totalorder %s146, %s148
    %p155 = scmp.eq.s32.totalorder %s21, 3
    %p156 = por %p154, %p155
    %p157 = scmp.ne.s32.totalorder %s148, %s149
    %p158 = scmp.eq.s32.totalorder %s21, 0
    %p159 = por %p157, %p158
    %p160 = scmp.ne.s32.totalorder %s148, %s149
    %p161 = scmp.eq.s32.totalorder %s22, 3
    %p162 = por %p160, %p161
    %p164 = scmp.ne.s32.totalorder %s149, %s163
    %p165 = scmp.eq.s32.totalorder %s22, 0
    %p166 = por %p164, %p165
    %s167 = ssub.s32 %s23, %s35
    %s168 = ssub.s32 %s24, %s31
    %s169 = sor.u32 %s167, %s168
    %p170 = scmp.eq.s32.totalorder %s169, 0
    %s172 = sadd.s32 %s171, 1
    %s173 = scalar_select %p170, %s171, %s172
    %p176 = pneg %p170
    %p177 = scmp.eq.s32.totalorder %s16, 3
    %p178 = por %p176, %p177
    %p179 = scmp.ne.s32.totalorder %s171, %s174
    %p180 = scmp.eq.s32.totalorder %s16, 0
    %p181 = por %p179, %p180
    %p182 = scmp.ne.s32.totalorder %s171, %s174
    %p183 = scmp.eq.s32.totalorder %s21, 3
    %p184 = por %p182, %p183
    %p185 = scmp.ne.s32.totalorder %s174, %s175
    %p186 = scmp.eq.s32.totalorder %s21, 0
    %p187 = por %p185, %p186
    %p188 = scmp.ne.s32.totalorder %s174, %s175
    %p189 = scmp.eq.s32.totalorder %s22, 3
    %p190 = por %p188, %p189
    %p192 = scmp.ne.s32.totalorder %s175, %s191
    %p193 = scmp.eq.s32.totalorder %s22, 0
    %p194 = por %p192, %p193
    %s195 = ssub.s32 %s23, %s35
    %s196 = ssub.s32 %s24, %s31
    %s197 = sor.u32 %s195, %s196
    %p198 = scmp.eq.s32.totalorder %s197, 0
    %s200 = sadd.s32 %s199, 1
    %s201 = scalar_select %p198, %s199, %s200
    %p204 = pneg %p198
    %p205 = scmp.eq.s32.totalorder %s16, 3
    %p206 = por %p204, %p205
    %p207 = scmp.ne.s32.totalorder %s199, %s202
    %p208 = scmp.eq.s32.totalorder %s16, 0
    %p209 = por %p207, %p208
    %p210 = scmp.ne.s32.totalorder %s199, %s202
    %p211 = scmp.eq.s32.totalorder %s21, 3
    %p212 = por %p210, %p211
    %p213 = scmp.ne.s32.totalorder %s202, %s203
    %p214 = scmp.eq.s32.totalorder %s21, 0
    %p215 = por %p213, %p214
    %p216 = scmp.ne.s32.totalorder %s202, %s203
    %p217 = scmp.eq.s32.totalorder %s22, 3
    %p218 = por %p216, %p217
    %p220 = scmp.ne.s32.totalorder %s203, %s219
    %p221 = scmp.eq.s32.totalorder %s22, 0
    %p222 = por %p220, %p221
    %s223 = ssub.s32 %s23, %s35
    %s224 = ssub.s32 %s24, %s31
    %s225 = sor.u32 %s223, %s224
    %p226 = scmp.eq.s32.totalorder %s225, 0
    %s228 = sadd.s32 %s227, 1
    %s229 = scalar_select %p226, %s227, %s228
    %p232 = pneg %p226
    %p233 = scmp.eq.s32.totalorder %s16, 3
    %p234 = por %p232, %p233
    %p235 = scmp.ne.s32.totalorder %s227, %s230
    %p236 = scmp.eq.s32.totalorder %s16, 0
    %p237 = por %p235, %p236
    %p238 = scmp.ne.s32.totalorder %s227, %s230
    %p239 = scmp.eq.s32.totalorder %s21, 3
    %p240 = por %p238, %p239
    %p241 = scmp.ne.s32.totalorder %s230, %s231
    %p242 = scmp.eq.s32.totalorder %s21, 0
    %p243 = por %p241, %p242
    %p244 = scmp.ne.s32.totalorder %s230, %s231
    %p245 = scmp.eq.s32.totalorder %s22, 3
    %p246 = por %p244, %p245
    %p248 = scmp.ne.s32.totalorder %s231, %s247
    %p249 = scmp.eq.s32.totalorder %s22, 0
    %p250 = por %p248, %p249
    %s251 = ssub.s32 %s23, %s35
    %s252 = ssub.s32 %s24, %s31
    %s253 = sor.u32 %s251, %s252
    %p254 = scmp.eq.s32.totalorder %s253, 0
    %s256 = sadd.s32 %s255, 1
    %s257 = scalar_select %p254, %s255, %s256
    %p260 = pneg %p254
    %p261 = scmp.eq.s32.totalorder %s16, 3
    %p262 = por %p260, %p261
    %p263 = scmp.ne.s32.totalorder %s255, %s258
    %p264 = scmp.eq.s32.totalorder %s16, 0
    %p265 = por %p263, %p264
    %p266 = scmp.ne.s32.totalorder %s255, %s258
    %p267 = scmp.eq.s32.totalorder %s21, 3
    %p268 = por %p266, %p267
    %p269 = scmp.ne.s32.totalorder %s258, %s259
    %p270 = scmp.eq.s32.totalorder %s21, 0
    %p271 = por %p269, %p270
    %p272 = scmp.ne.s32.totalorder %s258, %s259
    %p273 = scmp.eq.s32.totalorder %s22, 3
    %p274 = por %p272, %p273
    %p276 = scmp.ne.s32.totalorder %s259, %s275
    %p277 = scmp.eq.s32.totalorder %s22, 0
    %p278 = por %p276, %p277
    %p279 = scmp.le.s32.totalorder 1, %s16
    %p280 = scmp.lt.s32.totalorder %s16, 5
    %p281 = pnand %p279, %p280
    %p282 = pneg %p281
    // Predicated region
    $region9: #{cvt_stage_forward.10} parent=5 // pred_check
      _
    $region10: #{cvt_stage_forward.10} parent=5 // pred_check_branch
      %284 = sbr.rel (%p281) target = $region12
    $region11: #{cvt_stage_forward.10} parent=5 // pred_region
      %s285 = ssub.s32 %s16, 1
      // Predicated region
      $region13: #{cvt_stage_forward.10} parent=11 // pred_check
        %p286 = pneg %p75
      $region14: #{cvt_stage_forward.10} parent=11 // pred_check_branch
        %288 = sbr.rel (%p286) target = $region16
      $region15: #{cvt_stage_forward.10} parent=11 // pred_region
        _
      $region16: #{cvt_stage_forward.10} parent=11 // pred_fallthru
        _
      // Predicated region
      $region17: #{cvt_stage_forward.10} parent=11 // pred_check
        %p289 = pneg %p96
      $region18: #{cvt_stage_forward.10} parent=11 // pred_check_branch
        %291 = sbr.rel (%p289) target = $region20
      $region19: #{cvt_stage_forward.10} parent=11 // pred_region
        _
      $region20: #{cvt_stage_forward.10} parent=11 // pred_fallthru
        _
      // Predicated region
      $region21: #{cvt_stage_forward.10} parent=11 // pred_check
        %p292 = pneg %p117
      $region22: #{cvt_stage_forward.10} parent=11 // pred_check_branch
        %294 = sbr.rel (%p292) target = $region24
      $region23: #{cvt_stage_forward.10} parent=11 // pred_region
        _
      $region24: #{cvt_stage_forward.10} parent=11 // pred_fallthru
        _
      // Predicated region
      $region25: #{cvt_stage_forward.10} parent=11 // pred_check
        %p295 = pneg %p138
      $region26: #{cvt_stage_forward.10} parent=11 // pred_check_branch
        %297 = sbr.rel (%p295) target = $region28
      $region27: #{cvt_stage_forward.10} parent=11 // pred_region
        _
      $region28: #{cvt_stage_forward.10} parent=11 // pred_fallthru
        _
      // Predicated region
      $region29: #{cvt_stage_forward.10} parent=11 // pred_check
        %p298 = pneg %p159
      $region30: #{cvt_stage_forward.10} parent=11 // pred_check_branch
        %300 = sbr.rel (%p298) target = $region32
      $region31: #{cvt_stage_forward.10} parent=11 // pred_region
        _
      $region32: #{cvt_stage_forward.10} parent=11 // pred_fallthru
        _
    $region12: #{cvt_stage_forward.10} parent=5 // pred_fallthru
      _
    %p301 = scmp.lt.s32.totalorder %s16, 4
    // Predicated region
    $region33: #{cvt_stage_forward.10} parent=5 // pred_check
      %p302 = pneg %p301
    $region34: #{cvt_stage_forward.10} parent=5 // pred_check_branch
      %304 = sbr.rel (%p302) target = $region36
    $region35: #{cvt_stage_forward.10} parent=5 // pred_region
      // Predicated region
      $region37: #{cvt_stage_forward.10} parent=35 // pred_check
        %p305 = pneg %p48
      $region38: #{cvt_stage_forward.10} parent=35 // pred_check_branch
        %307 = sbr.rel (%p305) target = $region40
      $region39: #{cvt_stage_forward.10} parent=35 // pred_region
        %p308 = scmp.lt.s32.totalorder %s23, 1
        %s309 = scalar_select %p308, %s23, 1
        %s310 = smul.addr %s309, 10
        %s311 = smul.addr %s310, 8
        %s312 = scalar_lea.vmem %s0, %s311
      $region40: #{cvt_stage_forward.10} parent=35 // pred_fallthru
        _
    $region36: #{cvt_stage_forward.10} parent=5 // pred_fallthru
      _
    %p313 = scmp.le.s32.totalorder 1, %s16
    %p314 = scmp.lt.s32.totalorder %s16, 5
    %p315 = pnand %p313, %p314
    %p316 = pneg %p315
    // Predicated region
    $region41: #{cvt_stage_forward.10} parent=5 // pred_check
      _
    $region42: #{cvt_stage_forward.10} parent=5 // pred_check_branch
      %318 = sbr.rel (%p315) target = $region44
    $region43: #{cvt_stage_forward.10} parent=5 // pred_region
      %s319 = ssub.s32 %s16, 1
      %p320 = scmp.lt.s32.totalorder %s25, 1
      %s321 = scalar_select %p320, %s25, 1
      %s322 = smul.addr %s321, 10
      %s323 = smul.addr %s322, 8
      %s324 = scalar_lea.vmem %s0, %s323
      %p325 = pneg %p54
      %p326 = pneg %p51
      %p327 = pneg %p75
      %p328 = pneg %p72
      %p329 = pneg %p96
      %p330 = pneg %p93
      %p331 = pneg %p117
      %p332 = pneg %p114
      %p333 = pneg %p138
      %p334 = pneg %p135
      %p335 = pneg %p159
      %p336 = pneg %p156
      %p337 = pneg %p187
      %p338 = pneg %p184
      %s339 = smul.u32 4, %s26
      %p340 = scmp.lt.s32.totalorder %s25, 1
      %s341 = scalar_select %p340, %s25, 1
      %p342 = scmp.lt.s32.totalorder %s339, 7
      %s343 = scalar_select %p342, %s339, 7
      %s344 = smul.addr %s341, 8
      %s345 = sadd.s32 %s343, %s344
      %s346 = smul.addr %s345, 4
      %s347 = scalar_lea.vmem %s6, %s346
      %p348 = pneg %p215
      %p349 = pneg %p212
      %s350 = smul.u32 4, %s26
      %p351 = scmp.lt.s32.totalorder %s25, 1
      %s352 = scalar_select %p351, %s25, 1
      %p353 = scmp.lt.s32.totalorder %s350, 7
      %s354 = scalar_select %p353, %s350, 7
      %s355 = smul.addr %s352, 8
      %s356 = sadd.s32 %s354, %s355
      %s357 = smul.addr %s356, 2
      %s358 = scalar_lea.vmem %s7, %s357
      %p359 = pneg %p243
      %p360 = pneg %p240
      %s361 = smul.u32 2, %s26
      %p362 = scmp.lt.s32.totalorder %s25, 1
      %s363 = scalar_select %p362, %s25, 1
      %p364 = scmp.lt.s32.totalorder %s361, 3
      %s365 = scalar_select %p364, %s361, 3
      %s366 = smul.addr %s363, 4
      %s367 = sadd.s32 %s365, %s366
      %s368 = smul.addr %s367, 2
      %s369 = scalar_lea.vmem %s8, %s368
      %p370 = pneg %p271
      %p371 = pneg %p268
      %s372 = smul.u32 2, %s26
      %p373 = scmp.lt.s32.totalorder %s25, 1
      %s374 = scalar_select %p373, %s25, 1
      %p375 = scmp.lt.s32.totalorder %s372, 3
      %s376 = scalar_select %p375, %s372, 3
      %s377 = smul.addr %s374, 4
      %s378 = sadd.s32 %s376, %s377
      %s379 = smul.addr %s378, 2
      %s380 = scalar_lea.vmem %s9, %s379
      %p381 = scmp.lt.s32.totalorder %s25, 1
      %s382 = scalar_select %p381, %s25, 1
      %s383 = smul.addr %s382, 10
      %s384 = smul.addr %s383, 8
      %s385 = scalar_lea.vmem %s0, %s384
      %s386 = smul.u32 4, %s26
      %p387 = scmp.lt.s32.totalorder %s25, 1
      %s388 = scalar_select %p387, %s25, 1
      %p389 = scmp.lt.s32.totalorder %s386, 7
      %s390 = scalar_select %p389, %s386, 7
      %s391 = smul.addr %s388, 8
      %s392 = sadd.s32 %s390, %s391
      %s393 = smul.addr %s392, 4
      %s394 = scalar_lea.vmem %s6, %s393
      %s395 = smul.u32 4, %s26
      %s396 = smul.u32 4, %s26
      %p397 = scmp.lt.s32.totalorder %s25, 1
      %s398 = scalar_select %p397, %s25, 1
      %p399 = scmp.lt.s32.totalorder %s396, 7
      %s400 = scalar_select %p399, %s396, 7
      %s401 = smul.addr %s398, 8
      %s402 = sadd.s32 %s400, %s401
      %s403 = smul.addr %s402, 2
      %s404 = scalar_lea.vmem %s7, %s403
      %s405 = smul.u32 4, %s26
      %s406 = smul.u32 2, %s26
      %p407 = scmp.lt.s32.totalorder %s25, 1
      %s408 = scalar_select %p407, %s25, 1
      %p409 = scmp.lt.s32.totalorder %s406, 3
      %s410 = scalar_select %p409, %s406, 3
      %s411 = smul.addr %s408, 4
      %s412 = sadd.s32 %s410, %s411
      %s413 = smul.addr %s412, 2
      %s414 = scalar_lea.vmem %s8, %s413
      %s415 = smul.u32 2, %s26
      %s416 = smul.u32 2, %s26
      %p417 = scmp.lt.s32.totalorder %s25, 1
      %s418 = scalar_select %p417, %s25, 1
      %p419 = scmp.lt.s32.totalorder %s416, 3
      %s420 = scalar_select %p419, %s416, 3
      %s421 = smul.addr %s418, 4
      %s422 = sadd.s32 %s420, %s421
      %s423 = smul.addr %s422, 2
      %s424 = scalar_lea.vmem %s9, %s423
      %s425 = smul.u32 2, %s26
      %s426 = smul.u32 %s26, 4
      %s427 = smul.u32 %s426, 8
      %s428 = scalar_lea.vmem %s385, %s427
      %v429 = vld [vmem:[%s428] sm:$0x1f]
      %v430 = vld [vmem:[%s428 + $0x8] sm:$0x1f]
      %v431 = vld [vmem:[%s428 + $0x10] sm:$0x1f]
      %v432 = vld [vmem:[%s428 + $0x18] sm:$0x1f]
      %v433 = vld [vmem:[%s428 + $0x20] sm:$0x1f]
      %v434 = vld [vmem:[%s428 + $0x28] sm:$0x1f]
      %v435 = vld [vmem:[%s1] sm:$0x1]
      %v436 = vld [vmem:[%s1 + $0x1] sm:$0x1]
      %vm437 = vcmask 258048
      %v438 = vsel %vm437, %v429, 0.0
      %439 = vadd.xlane.f32.xlu0 %v438
      %v440 = vpop.xlane.xlu0 %439
      %v441 = vsel %vm437, %v430, 0.0
      %442 = vadd.xlane.f32.xlu0 %v441
      %v443 = vpop.xlane.xlu0 %442
      %v444 = vsel %vm437, %v431, 0.0
      %445 = vadd.xlane.f32.xlu0 %v444
      %v446 = vpop.xlane.xlu0 %445
      %v447 = vsel %vm437, %v432, 0.0
      %448 = vadd.xlane.f32.xlu0 %v447
      %v449 = vpop.xlane.xlu0 %448
      %v450 = vsel %vm437, %v433, 0.0
      %451 = vadd.xlane.f32.xlu0 %v450
      %v452 = vpop.xlane.xlu0 %451
      %v453 = vsel %vm437, %v434, 0.0
      %454 = vadd.xlane.f32.xlu0 %v453
      %v455 = vpop.xlane.xlu0 %454
      %v456 = vrcp.pop 32.0
      %v457 = vmul.f32 %v440, %v456
      %v458 = vmul.f32 %v443, %v456
      %v459 = vmul.f32 %v446, %v456
      %v460 = vmul.f32 %v449, %v456
      %v461 = vmul.f32 %v452, %v456
      %v462 = vmul.f32 %v455, %v456
      %v463 = vsub.f32 %v429, %v457
      %v464 = vsub.f32 %v430, %v458
      %v465 = vsub.f32 %v431, %v459
      %v466 = vsub.f32 %v432, %v460
      %v467 = vsub.f32 %v433, %v461
      %v468 = vsub.f32 %v434, %v462
      %v469 = vmul.f32 %v463, %v463
      %v470 = vmul.f32 %v464, %v464
      %v471 = vmul.f32 %v465, %v465
      %v472 = vmul.f32 %v466, %v466
      %v473 = vmul.f32 %v467, %v467
      %v474 = vmul.f32 %v468, %v468
      %v475 = vsel %vm437, %v469, 0.0
      %476 = vadd.xlane.f32.xlu0 %v475
      %v477 = vpop.xlane.xlu0 %476
      %v478 = vsel %vm437, %v470, 0.0
      %479 = vadd.xlane.f32.xlu0 %v478
      %v480 = vpop.xlane.xlu0 %479
      %v481 = vsel %vm437, %v471, 0.0
      %482 = vadd.xlane.f32.xlu0 %v481
      %v483 = vpop.xlane.xlu0 %482
      %v484 = vsel %vm437, %v472, 0.0
      %485 = vadd.xlane.f32.xlu0 %v484
      %v486 = vpop.xlane.xlu0 %485
      %v487 = vsel %vm437, %v473, 0.0
      %488 = vadd.xlane.f32.xlu0 %v487
      %v489 = vpop.xlane.xlu0 %488
      %v490 = vsel %vm437, %v474, 0.0
      %491 = vadd.xlane.f32.xlu0 %v490
      %v492 = vpop.xlane.xlu0 %491
      %v493 = vmul.f32 %v477, %v456
      %v494 = vmul.f32 %v480, %v456
      %v495 = vmul.f32 %v483, %v456
      %v496 = vmul.f32 %v486, %v456
      %v497 = vmul.f32 %v489, %v456
      %v498 = vmul.f32 %v492, %v456
      %v499 = vadd.f32 %v493, 1e-05
      %v500 = vadd.f32 %v494, 1e-05
      %v501 = vadd.f32 %v495, 1e-05
      %v502 = vadd.f32 %v496, 1e-05
      %v503 = vadd.f32 %v497, 1e-05
      %v504 = vadd.f32 %v498, 1e-05
      %v505 = vrsqrt.pop %v499
      %v506 = vrsqrt.pop %v500
      %v507 = vrsqrt.pop %v501
      %v508 = vrsqrt.pop %v502
      %v509 = vrsqrt.pop %v503
      %v510 = vrsqrt.pop %v504
      %v511 = vmul.f32 %v463, %v505
      %v512 = vmul.f32 %v464, %v506
      %v513 = vmul.f32 %v465, %v507
      %v514 = vmul.f32 %v466, %v508
      %v515 = vmul.f32 %v467, %v509
      %v516 = vmul.f32 %v468, %v510
      %v517 = vlaneseq
      %v518 = vshrl.u32 %v517, 7
      %v519 = vsub.s32 0, %v518
      %v520 = vrot.slane %v435, %v519
      %v521 = vmul.f32 %v511, %v520
      %v522 = vmul.f32 %v512, %v520
      %v523 = vmul.f32 %v513, %v520
      %v524 = vmul.f32 %v514, %v520
      %v525 = vmul.f32 %v515, %v520
      %v526 = vmul.f32 %v516, %v520
      %v527 = vlaneseq
      %v528 = vshrl.u32 %v527, 7
      %v529 = vsub.s32 0, %v528
      %v530 = vrot.slane %v436, %v529
      %v531 = vadd.f32 %v521, %v530
      %v532 = vadd.f32 %v522, %v530
      %v533 = vadd.f32 %v523, %v530
      %v534 = vadd.f32 %v524, %v530
      %v535 = vadd.f32 %v525, %v530
      %v536 = vadd.f32 %v526, %v530
      %543 = vrot.lane.b32.xlu0 %v429, 96
      %v544 = vpop.permute.xlu0 %543
      %545 = vrot.lane.b32.xlu0 %v430, 96
      %v546 = vpop.permute.xlu0 %545
      %547 = vrot.lane.b32.xlu0 %v431, 96
      %v548 = vpop.permute.xlu0 %547
      %549 = vrot.lane.b32.xlu0 %v432, 96
      %v550 = vpop.permute.xlu0 %549
      %551 = vrot.lane.b32.xlu0 %v433, 96
      %v552 = vpop.permute.xlu0 %551
      %553 = vrot.lane.b32.xlu0 %v434, 96
      %v554 = vpop.permute.xlu0 %553
      %v561 = vsel %vm437, %v544, 0.0
      %562 = vadd.xlane.f32.xlu0 %v561
      %v563 = vpop.xlane.xlu0 %562
      %v564 = vsel %vm437, %v546, 0.0
      %565 = vadd.xlane.f32.xlu0 %v564
      %v566 = vpop.xlane.xlu0 %565
      %v567 = vsel %vm437, %v548, 0.0
      %568 = vadd.xlane.f32.xlu0 %v567
      %v569 = vpop.xlane.xlu0 %568
      %v570 = vsel %vm437, %v550, 0.0
      %571 = vadd.xlane.f32.xlu0 %v570
      %v572 = vpop.xlane.xlu0 %571
      %v573 = vsel %vm437, %v552, 0.0
      %574 = vadd.xlane.f32.xlu0 %v573
      %v575 = vpop.xlane.xlu0 %574
      %v576 = vsel %vm437, %v554, 0.0
      %577 = vadd.xlane.f32.xlu0 %v576
      %v578 = vpop.xlane.xlu0 %577
      %v579 = vmul.f32 %v563, %v456
      %v580 = vmul.f32 %v566, %v456
      %v581 = vmul.f32 %v569, %v456
      %v582 = vmul.f32 %v572, %v456
      %v583 = vmul.f32 %v575, %v456
      %v584 = vmul.f32 %v578, %v456
      %v585 = vsub.f32 %v429, %v579
      %v586 = vsub.f32 %v430, %v580
      %v587 = vsub.f32 %v431, %v581
      %v588 = vsub.f32 %v432, %v582
      %v589 = vsub.f32 %v433, %v583
      %v590 = vsub.f32 %v434, %v584
      %v591 = vmul.f32 %v585, %v585
      %v592 = vmul.f32 %v586, %v586
      %v593 = vmul.f32 %v587, %v587
      %v594 = vmul.f32 %v588, %v588
      %v595 = vmul.f32 %v589, %v589
      %v596 = vmul.f32 %v590, %v590
      %603 = vrot.lane.b32.xlu0 %v591, 96
      %v604 = vpop.permute.xlu0 %603
      %605 = vrot.lane.b32.xlu0 %v592, 96
      %v606 = vpop.permute.xlu0 %605
      %607 = vrot.lane.b32.xlu0 %v593, 96
      %v608 = vpop.permute.xlu0 %607
      %609 = vrot.lane.b32.xlu0 %v594, 96
      %v610 = vpop.permute.xlu0 %609
      %611 = vrot.lane.b32.xlu0 %v595, 96
      %v612 = vpop.permute.xlu0 %611
      %613 = vrot.lane.b32.xlu0 %v596, 96
      %v614 = vpop.permute.xlu0 %613
      %v621 = vsel %vm437, %v604, 0.0
      %622 = vadd.xlane.f32.xlu0 %v621
      %v623 = vpop.xlane.xlu0 %622
      %v624 = vsel %vm437, %v606, 0.0
      %625 = vadd.xlane.f32.xlu0 %v624
      %v626 = vpop.xlane.xlu0 %625
      %v627 = vsel %vm437, %v608, 0.0
      %628 = vadd.xlane.f32.xlu0 %v627
      %v629 = vpop.xlane.xlu0 %628
      %v630 = vsel %vm437, %v610, 0.0
      %631 = vadd.xlane.f32.xlu0 %v630
      %v632 = vpop.xlane.xlu0 %631
      %v633 = vsel %vm437, %v612, 0.0
      %634 = vadd.xlane.f32.xlu0 %v633
      %v635 = vpop.xlane.xlu0 %634
      %v636 = vsel %vm437, %v614, 0.0
      %637 = vadd.xlane.f32.xlu0 %v636
      %v638 = vpop.xlane.xlu0 %637
      %v639 = vmul.f32 %v623, %v456
      %v640 = vmul.f32 %v626, %v456
      %v641 = vmul.f32 %v629, %v456
      %v642 = vmul.f32 %v632, %v456
      %v643 = vmul.f32 %v635, %v456
      %v644 = vmul.f32 %v638, %v456
      %v645 = vadd.f32 %v639, 1e-05
      %v646 = vadd.f32 %v640, 1e-05
      %v647 = vadd.f32 %v641, 1e-05
      %v648 = vadd.f32 %v642, 1e-05
      %v649 = vadd.f32 %v643, 1e-05
      %v650 = vadd.f32 %v644, 1e-05
      %v651 = vrsqrt.pop %v645
      %v652 = vrsqrt.pop %v646
      %v653 = vrsqrt.pop %v647
      %v654 = vrsqrt.pop %v648
      %v655 = vrsqrt.pop %v649
      %v656 = vrsqrt.pop %v650
      %v657 = vmul.f32 %v585, %v651
      %v658 = vmul.f32 %v586, %v652
      %v659 = vmul.f32 %v587, %v653
      %v660 = vmul.f32 %v588, %v654
      %v661 = vmul.f32 %v589, %v655
      %v662 = vmul.f32 %v590, %v656
      %664 = vrot.lane.b32.xlu0 %v520, 32
      %v665 = vpop.permute.xlu0 %664
      %v667 = vmul.f32 %v657, %v665
      %v668 = vmul.f32 %v658, %v665
      %v669 = vmul.f32 %v659, %v665
      %v670 = vmul.f32 %v660, %v665
      %v671 = vmul.f32 %v661, %v665
      %v672 = vmul.f32 %v662, %v665
      %674 = vrot.lane.b32.xlu0 %v530, 32
      %v675 = vpop.permute.xlu0 %674
      %v677 = vadd.f32 %v667, %v675
      %v678 = vadd.f32 %v668, %v675
      %v679 = vadd.f32 %v669, %v675
      %v680 = vadd.f32 %v670, %v675
      %v681 = vadd.f32 %v671, %v675
      %v682 = vadd.f32 %v672, %v675
      %v683 = vstv %s426
      %v684 = vadd.s32 %v683, 1
      %v685 = vadd.s32 %v683, 2
      %v686 = vadd.s32 %v683, 3
      %v687 = vadd.s32 %v683, 4
      %v688 = vadd.s32 %v683, 5
      %vm689 = vcmp.ne.s32.totalorder %v683, 0
      %vm690 = vcmp.ne.s32.totalorder %v684, 0
      %vm691 = vcmp.ne.s32.totalorder %v685, 0
      %vm692 = vcmp.ne.s32.totalorder %v686, 0
      %vm693 = vcmp.ne.s32.totalorder %v687, 0
      %vm694 = vcmp.ne.s32.totalorder %v688, 0
      %vm695 = vcmp.ne.s32.totalorder %v683, 9
      %vm696 = vcmp.ne.s32.totalorder %v684, 9
      %vm697 = vcmp.ne.s32.totalorder %v685, 9
      %vm698 = vcmp.ne.s32.totalorder %v686, 9
      %vm699 = vcmp.ne.s32.totalorder %v687, 9
      %vm700 = vcmp.ne.s32.totalorder %v688, 9
      %vm701 = vmand %vm689, %vm695
      %vm702 = vmand %vm690, %vm696
      %vm703 = vmand %vm691, %vm697
      %vm704 = vmand %vm692, %vm698
      %vm705 = vmand %vm693, %vm699
      %vm706 = vmand %vm694, %vm700
      %v707 = vlaneseq
      %v708 = vshrl.u32 %v707, 7
      %vm709 = vcmp.ne.s32.totalorder %v708, 0
      %v710 = vsel %vm701, 1, 0
      %v711 = vsel %vm702, 1, 0
      %v712 = vsel %vm703, 1, 0
      %v713 = vsel %vm704, 1, 0
      %v714 = vsel %vm705, 1, 0
      %v715 = vsel %vm706, 1, 0
      %vm716 = vcmp.eq.s32.totalorder %v710, 1
      %vm717 = vcmp.eq.s32.totalorder %v711, 1
      %vm718 = vcmp.eq.s32.totalorder %v712, 1
      %vm719 = vcmp.eq.s32.totalorder %v713, 1
      %vm720 = vcmp.eq.s32.totalorder %v714, 1
      %vm721 = vcmp.eq.s32.totalorder %v715, 1
      %v722 = vsel %vm709, 1, 0
      %vm723 = vcmp.eq.s32.totalorder %v722, 1
      %vm724 = vmand %vm716, %vm723
      %vm725 = vmand %vm717, %vm723
      %vm726 = vmand %vm718, %vm723
      %vm727 = vmand %vm719, %vm723
      %vm728 = vmand %vm720, %vm723
      %vm729 = vmand %vm721, %vm723
      %v730 = vsel %vm724, 1, 0
      %v731 = vsel %vm725, 1, 0
      %v732 = vsel %vm726, 1, 0
      %v733 = vsel %vm727, 1, 0
      %v734 = vsel %vm728, 1, 0
      %v735 = vsel %vm729, 1, 0
      %vm736 = vcmp.eq.s32.totalorder %v730, 1
      %vm737 = vcmp.eq.s32.totalorder %v731, 1
      %vm738 = vcmp.eq.s32.totalorder %v732, 1
      %vm739 = vcmp.eq.s32.totalorder %v733, 1
      %vm740 = vcmp.eq.s32.totalorder %v734, 1
      %vm741 = vcmp.eq.s32.totalorder %v735, 1
      %v742 = vsel %vm736, %v531, 0.0
      %v743 = vsel %vm737, %v532, 0.0
      %v744 = vsel %vm738, %v533, 0.0
      %v745 = vsel %vm739, %v534, 0.0
      %v746 = vsel %vm740, %v535, 0.0
      %v747 = vsel %vm741, %v536, 0.0
      %vm748 = vcmp.ne.s32.totalorder %v708, 4
      %v749 = vsel %vm748, 1, 0
      %vm750 = vcmp.eq.s32.totalorder %v749, 1
      %vm751 = vmand %vm716, %vm750
      %vm752 = vmand %vm717, %vm750
      %vm753 = vmand %vm718, %vm750
      %vm754 = vmand %vm719, %vm750
      %vm755 = vmand %vm720, %vm750
      %vm756 = vmand %vm721, %vm750
      %v757 = vsel %vm751, 1, 0
      %v758 = vsel %vm752, 1, 0
      %v759 = vsel %vm753, 1, 0
      %v760 = vsel %vm754, 1, 0
      %v761 = vsel %vm755, 1, 0
      %v762 = vsel %vm756, 1, 0
      %vm763 = vcmp.eq.s32.totalorder %v757, 1
      %vm764 = vcmp.eq.s32.totalorder %v758, 1
      %vm765 = vcmp.eq.s32.totalorder %v759, 1
      %vm766 = vcmp.eq.s32.totalorder %v760, 1
      %vm767 = vcmp.eq.s32.totalorder %v761, 1
      %vm768 = vcmp.eq.s32.totalorder %v762, 1
      %v769 = vsel %vm763, %v677, 0.0
      %v770 = vsel %vm764, %v678, 0.0
      %v771 = vsel %vm765, %v679, 0.0
      %v772 = vsel %vm766, %v680, 0.0
      %v773 = vsel %vm767, %v681, 0.0
      %v774 = vsel %vm768, %v682, 0.0
      %779 = vrot.lane.b32.xlu0 %v770, 96
      %v780 = vpop.permute.xlu0 %779
      %781 = vrot.lane.b32.xlu0 %v771, 96
      %v782 = vpop.permute.xlu0 %781
      %783 = vrot.lane.b32.xlu0 %v772, 96
      %v784 = vpop.permute.xlu0 %783
      %785 = vrot.lane.b32.xlu0 %v773, 96
      %v786 = vpop.permute.xlu0 %785
      %v795 = vrot.slane %v743, 1
      %v796 = vrot.slane %v744, 1
      %v797 = vrot.slane %v745, 1
      %v798 = vrot.slane %v746, 1
      %799 = vrot.lane.b32.xlu0 %v795, 32
      %v800 = vpop.permute.xlu0 %799
      %801 = vrot.lane.b32.xlu0 %v796, 32
      %v802 = vpop.permute.xlu0 %801
      %803 = vrot.lane.b32.xlu0 %v797, 32
      %v804 = vpop.permute.xlu0 %803
      %805 = vrot.lane.b32.xlu0 %v798, 32
      %v806 = vpop.permute.xlu0 %805
      %vm811 = vcmask 261120
      %v812 = vsel %vm811, %v780, %v800
      %v813 = vsel %vm811, %v782, %v802
      %v814 = vsel %vm811, %v784, %v804
      %v815 = vsel %vm811, %v786, %v806
      %vm816 = vcmask 519168
      %817 = vst.msk [vmem:[%s394] sm:$0xf] %vm816, %v812
      %818 = vst.msk [vmem:[%s394 + $0x4] sm:$0xf] %vm816, %v813
      %819 = vst.msk [vmem:[%s394 + $0x8] sm:$0xf] %vm816, %v814
      %820 = vst.msk [vmem:[%s394 + $0xc] sm:$0xf] %vm816, %v815
      %v821 = vld [vmem:[%s2] sm:$0xff]
      %v822 = vld [vmem:[%s2 + $0x8] sm:$0x1]
      %s823 = scalar_lea.vmem %s2, 16
      %v824 = vld [vmem:[%s823] sm:$0xff]
      %v825 = vld [vmem:[%s823 + $0x8] sm:$0x1]
      %s826 = scalar_lea.vmem %s2, 32
      %v827 = vld [vmem:[%s826] sm:$0xff]
      %v828 = vld [vmem:[%s826 + $0x8] sm:$0x1]
      %v829 = vlaneseq
      %v830 = vshrl.u32 %v829, 7
      %v831 = vsub.s32 0, %v830
      %v832 = vrot.slane %v821, %v831
      %v833 = vmul.f32 %v742, %v832
      %v834 = vmul.f32 %v743, %v832
      %v835 = vmul.f32 %v744, %v832
      %v836 = vmul.f32 %v745, %v832
      %v837 = vadd.f32 %v833, 0.0
      %v838 = vadd.f32 %v834, 0.0
      %v839 = vadd.f32 %v835, 0.0
      %v840 = vadd.f32 %v836, 0.0
      %v841 = vlaneseq
      %v842 = vshrl.u32 %v841, 7
      %v843 = vsub.s32 1, %v842
      %v844 = vrot.slane %v821, %v843
      %846 = vrot.lane.b32.xlu0 %v844, 32
      %v847 = vpop.permute.xlu0 %846
      %v849 = vmul.f32 %v769, %v847
      %v850 = vmul.f32 %v770, %v847
      %v851 = vmul.f32 %v771, %v847
      %v852 = vmul.f32 %v772, %v847
      %857 = vrot.lane.b32.xlu0 %v849, 96
      %v858 = vpop.permute.xlu0 %857
      %859 = vrot.lane.b32.xlu0 %v850, 96
      %v860 = vpop.permute.xlu0 %859
      %861 = vrot.lane.b32.xlu0 %v851, 96
      %v862 = vpop.permute.xlu0 %861
      %863 = vrot.lane.b32.xlu0 %v852, 96
      %v864 = vpop.permute.xlu0 %863
      %v869 = vadd.f32 %v837, %v858
      %v870 = vadd.f32 %v838, %v860
      %v871 = vadd.f32 %v839, %v862
      %v872 = vadd.f32 %v840, %v864
      %v873 = vlaneseq
      %v874 = vshrl.u32 %v873, 7
      %v875 = vsub.s32 2, %v874
      %v876 = vrot.slane %v821, %v875
      %v877 = vmul.f32 %v742, %v876
      %v878 = vmul.f32 %v743, %v876
      %v879 = vmul.f32 %v744, %v876
      %v880 = vmul.f32 %v745, %v876
      %v885 = vrot.slane %v877, 1
      %v886 = vrot.slane %v878, 1
      %v887 = vrot.slane %v879, 1
      %v888 = vrot.slane %v880, 1
      %v893 = vadd.f32 %v869, %v885
      %v894 = vadd.f32 %v870, %v886
      %v895 = vadd.f32 %v871, %v887
      %v896 = vadd.f32 %v872, %v888
      %898 = vrot.lane.b32.xlu0 %v832, 32
      %v899 = vpop.permute.xlu0 %898
      %v901 = vmul.f32 %v769, %v899
      %v902 = vmul.f32 %v770, %v899
      %v903 = vmul.f32 %v771, %v899
      %v904 = vmul.f32 %v772, %v899
      %v905 = vadd.f32 %v901, 0.0
      %v906 = vadd.f32 %v902, 0.0
      %v907 = vadd.f32 %v903, 0.0
      %v908 = vadd.f32 %v904, 0.0
      %v909 = vmul.f32 %v742, %v844
      %v910 = vmul.f32 %v743, %v844
      %v911 = vmul.f32 %v744, %v844
      %v912 = vmul.f32 %v745, %v844
      %v917 = vrot.slane %v909, 1
      %v918 = vrot.slane %v910, 1
      %v919 = vrot.slane %v911, 1
      %v920 = vrot.slane %v912, 1
      %921 = vrot.lane.b32.xlu0 %v917, 32
      %v922 = vpop.permute.xlu0 %921
      %923 = vrot.lane.b32.xlu0 %v918, 32
      %v924 = vpop.permute.xlu0 %923
      %925 = vrot.lane.b32.xlu0 %v919, 32
      %v926 = vpop.permute.xlu0 %925
      %927 = vrot.lane.b32.xlu0 %v920, 32
      %v928 = vpop.permute.xlu0 %927
      %v933 = vadd.f32 %v905, %v922
      %v934 = vadd.f32 %v906, %v924
      %v935 = vadd.f32 %v907, %v926
      %v936 = vadd.f32 %v908, %v928
      %938 = vrot.lane.b32.xlu0 %v876, 32
      %v939 = vpop.permute.xlu0 %938
      %v941 = vmul.f32 %v769, %v939
      %v942 = vmul.f32 %v770, %v939
      %v943 = vmul.f32 %v771, %v939
      %v944 = vmul.f32 %v772, %v939
      %v949 = vrot.slane %v941, 1
      %v950 = vrot.slane %v942, 1
      %v951 = vrot.slane %v943, 1
      %v952 = vrot.slane %v944, 1
      %v957 = vadd.f32 %v933, %v949
      %v958 = vadd.f32 %v934, %v950
      %v959 = vadd.f32 %v935, %v951
      %v960 = vadd.f32 %v936, %v952
      %v961 = vlaneseq
      %v962 = vshrl.u32 %v961, 7
      %v963 = vsub.s32 0, %v962
      %v964 = vrot.slane %v824, %v963
      %v965 = vmul.f32 %v742, %v964
      %v966 = vmul.f32 %v744, %v964
      %v967 = vadd.f32 %v965, 0.0
      %v968 = vadd.f32 %v966, 0.0
      %v969 = vlaneseq
      %v970 = vshrl.u32 %v969, 7
      %v971 = vsub.s32 1, %v970
      %v972 = vrot.slane %v824, %v971
      %974 = vrot.lane.b32.xlu0 %v972, 32
      %v975 = vpop.permute.xlu0 %974
      %v977 = vmul.f32 %v769, %v975
      %v978 = vmul.f32 %v771, %v975
      %981 = vrot.lane.b32.xlu0 %v977, 96
      %v982 = vpop.permute.xlu0 %981
      %983 = vrot.lane.b32.xlu0 %v978, 96
      %v984 = vpop.permute.xlu0 %983
      %v987 = vadd.f32 %v967, %v982
      %v988 = vadd.f32 %v968, %v984
      %v989 = vlaneseq
      %v990 = vshrl.u32 %v989, 7
      %v991 = vsub.s32 2, %v990
      %v992 = vrot.slane %v824, %v991
      %v993 = vmul.f32 %v742, %v992
      %v994 = vmul.f32 %v744, %v992
      %v997 = vrot.slane %v993, 1
      %v998 = vrot.slane %v994, 1
      %v1001 = vadd.f32 %v987, %v997
      %v1002 = vadd.f32 %v988, %v998
      %v1003 = vlaneseq
      %v1004 = vshrl.u32 %v1003, 7
      %v1005 = vsub.s32 0, %v1004
      %v1006 = vrot.slane %v827, %v1005
      %v1007 = vmul.f32 %v742, %v1006
      %v1008 = vmul.f32 %v744, %v1006
      %v1009 = vadd.f32 %v1007, 0.0
      %v1010 = vadd.f32 %v1008, 0.0
      %v1011 = vlaneseq
      %v1012 = vshrl.u32 %v1011, 7
      %v1013 = vsub.s32 1, %v1012
      %v1014 = vrot.slane %v827, %v1013
      %1016 = vrot.lane.b32.xlu0 %v1014, 32
      %v1017 = vpop.permute.xlu0 %1016
      %v1019 = vmul.f32 %v769, %v1017
      %v1020 = vmul.f32 %v771, %v1017
      %1023 = vrot.lane.b32.xlu0 %v1019, 96
      %v1024 = vpop.permute.xlu0 %1023
      %1025 = vrot.lane.b32.xlu0 %v1020, 96
      %v1026 = vpop.permute.xlu0 %1025
      %v1029 = vadd.f32 %v1009, %v1024
      %v1030 = vadd.f32 %v1010, %v1026
      %v1031 = vlaneseq
      %v1032 = vshrl.u32 %v1031, 7
      %v1033 = vsub.s32 2, %v1032
      %v1034 = vrot.slane %v827, %v1033
      %v1035 = vmul.f32 %v742, %v1034
      %v1036 = vmul.f32 %v744, %v1034
      %v1039 = vrot.slane %v1035, 1
      %v1040 = vrot.slane %v1036, 1
      %v1043 = vadd.f32 %v1029, %v1039
      %v1044 = vadd.f32 %v1030, %v1040
      %v1045 = vlaneseq
      %v1046 = vshrl.u32 %v1045, 7
      %v1047 = vsub.s32 3, %v1046
      %v1048 = vrot.slane %v821, %v1047
      %v1049 = vmul.f32 %v743, %v1048
      %v1050 = vmul.f32 %v744, %v1048
      %v1051 = vmul.f32 %v745, %v1048
      %v1052 = vmul.f32 %v746, %v1048
      %v1053 = vadd.f32 %v893, %v1049
      %v1054 = vadd.f32 %v894, %v1050
      %v1055 = vadd.f32 %v895, %v1051
      %v1056 = vadd.f32 %v896, %v1052
      %v1057 = vlaneseq
      %v1058 = vshrl.u32 %v1057, 7
      %v1059 = vsub.s32 4, %v1058
      %v1060 = vrot.slane %v821, %v1059
      %1062 = vrot.lane.b32.xlu0 %v1060, 32
      %v1063 = vpop.permute.xlu0 %1062
      %v1065 = vmul.f32 %v770, %v1063
      %v1066 = vmul.f32 %v771, %v1063
      %v1067 = vmul.f32 %v772, %v1063
      %v1068 = vmul.f32 %v773, %v1063
      %1073 = vrot.lane.b32.xlu0 %v1065, 96
      %v1074 = vpop.permute.xlu0 %1073
      %1075 = vrot.lane.b32.xlu0 %v1066, 96
      %v1076 = vpop.permute.xlu0 %1075
      %1077 = vrot.lane.b32.xlu0 %v1067, 96
      %v1078 = vpop.permute.xlu0 %1077
      %1079 = vrot.lane.b32.xlu0 %v1068, 96
      %v1080 = vpop.permute.xlu0 %1079
      %v1085 = vadd.f32 %v1053, %v1074
      %v1086 = vadd.f32 %v1054, %v1076
      %v1087 = vadd.f32 %v1055, %v1078
      %v1088 = vadd.f32 %v1056, %v1080
      %v1089 = vlaneseq
      %v1090 = vshrl.u32 %v1089, 7
      %v1091 = vsub.s32 5, %v1090
      %v1092 = vrot.slane %v821, %v1091
      %v1093 = vmul.f32 %v743, %v1092
      %v1094 = vmul.f32 %v744, %v1092
      %v1095 = vmul.f32 %v745, %v1092
      %v1096 = vmul.f32 %v746, %v1092
      %v1101 = vrot.slane %v1093, 1
      %v1102 = vrot.slane %v1094, 1
      %v1103 = vrot.slane %v1095, 1
      %v1104 = vrot.slane %v1096, 1
      %v1109 = vadd.f32 %v1085, %v1101
      %v1110 = vadd.f32 %v1086, %v1102
      %v1111 = vadd.f32 %v1087, %v1103
      %v1112 = vadd.f32 %v1088, %v1104
      %1114 = vrot.lane.b32.xlu0 %v1048, 32
      %v1115 = vpop.permute.xlu0 %1114
      %v1117 = vmul.f32 %v770, %v1115
      %v1118 = vmul.f32 %v771, %v1115
      %v1119 = vmul.f32 %v772, %v1115
      %v1120 = vmul.f32 %v773, %v1115
      %v1121 = vadd.f32 %v957, %v1117
      %v1122 = vadd.f32 %v958, %v1118
      %v1123 = vadd.f32 %v959, %v1119
      %v1124 = vadd.f32 %v960, %v1120
      %v1125 = vmul.f32 %v743, %v1060
      %v1126 = vmul.f32 %v744, %v1060
      %v1127 = vmul.f32 %v745, %v1060
      %v1128 = vmul.f32 %v746, %v1060
      %v1133 = vrot.slane %v1125, 1
      %v1134 = vrot.slane %v1126, 1
      %v1135 = vrot.slane %v1127, 1
      %v1136 = vrot.slane %v1128, 1
      %1137 = vrot.lane.b32.xlu0 %v1133, 32
      %v1138 = vpop.permute.xlu0 %1137
      %1139 = vrot.lane.b32.xlu0 %v1134, 32
      %v1140 = vpop.permute.xlu0 %1139
      %1141 = vrot.lane.b32.xlu0 %v1135, 32
      %v1142 = vpop.permute.xlu0 %1141
      %1143 = vrot.lane.b32.xlu0 %v1136, 32
      %v1144 = vpop.permute.xlu0 %1143
      %v1149 = vadd.f32 %v1121, %v1138
      %v1150 = vadd.f32 %v1122, %v1140
      %v1151 = vadd.f32 %v1123, %v1142
      %v1152 = vadd.f32 %v1124, %v1144
      %1154 = vrot.lane.b32.xlu0 %v1092, 32
      %v1155 = vpop.permute.xlu0 %1154
      %v1157 = vmul.f32 %v770, %v1155
      %v1158 = vmul.f32 %v771, %v1155
      %v1159 = vmul.f32 %v772, %v1155
      %v1160 = vmul.f32 %v773, %v1155
      %v1165 = vrot.slane %v1157, 1
      %v1166 = vrot.slane %v1158, 1
      %v1167 = vrot.slane %v1159, 1
      %v1168 = vrot.slane %v1160, 1
      %v1173 = vadd.f32 %v1149, %v1165
      %v1174 = vadd.f32 %v1150, %v1166
      %v1175 = vadd.f32 %v1151, %v1167
      %v1176 = vadd.f32 %v1152, %v1168
      %v1177 = vlaneseq
      %v1178 = vshrl.u32 %v1177, 7
      %v1179 = vsub.s32 3, %v1178
      %v1180 = vrot.slane %v824, %v1179
      %v1181 = vmul.f32 %v743, %v1180
      %v1182 = vmul.f32 %v745, %v1180
      %v1183 = vadd.f32 %v1001, %v1181
      %v1184 = vadd.f32 %v1002, %v1182
      %v1185 = vlaneseq
      %v1186 = vshrl.u32 %v1185, 7
      %v1187 = vsub.s32 4, %v1186
      %v1188 = vrot.slane %v824, %v1187
      %1190 = vrot.lane.b32.xlu0 %v1188, 32
      %v1191 = vpop.permute.xlu0 %1190
      %v1193 = vmul.f32 %v770, %v1191
      %v1194 = vmul.f32 %v772, %v1191
      %1197 = vrot.lane.b32.xlu0 %v1193, 96
      %v1198 = vpop.permute.xlu0 %1197
      %1199 = vrot.lane.b32.xlu0 %v1194, 96
      %v1200 = vpop.permute.xlu0 %1199
      %v1203 = vadd.f32 %v1183, %v1198
      %v1204 = vadd.f32 %v1184, %v1200
      %v1205 = vlaneseq
      %v1206 = vshrl.u32 %v1205, 7
      %v1207 = vsub.s32 5, %v1206
      %v1208 = vrot.slane %v824, %v1207
      %v1209 = vmul.f32 %v743, %v1208
      %v1210 = vmul.f32 %v745, %v1208
      %v1213 = vrot.slane %v1209, 1
      %v1214 = vrot.slane %v1210, 1
      %v1217 = vadd.f32 %v1203, %v1213
      %v1218 = vadd.f32 %v1204, %v1214
      %v1219 = vlaneseq
      %v1220 = vshrl.u32 %v1219, 7
      %v1221 = vsub.s32 3, %v1220
      %v1222 = vrot.slane %v827, %v1221
      %v1223 = vmul.f32 %v743, %v1222
      %v1224 = vmul.f32 %v745, %v1222
      %v1225 = vadd.f32 %v1043, %v1223
      %v1226 = vadd.f32 %v1044, %v1224
      %v1227 = vlaneseq
      %v1228 = vshrl.u32 %v1227, 7
      %v1229 = vsub.s32 4, %v1228
      %v1230 = vrot.slane %v827, %v1229
      %1232 = vrot.lane.b32.xlu0 %v1230, 32
      %v1233 = vpop.permute.xlu0 %1232
      %v1235 = vmul.f32 %v770, %v1233
      %v1236 = vmul.f32 %v772, %v1233
      %1239 = vrot.lane.b32.xlu0 %v1235, 96
      %v1240 = vpop.permute.xlu0 %1239
      %1241 = vrot.lane.b32.xlu0 %v1236, 96
      %v1242 = vpop.permute.xlu0 %1241
      %v1245 = vadd.f32 %v1225, %v1240
      %v1246 = vadd.f32 %v1226, %v1242
      %v1247 = vlaneseq
      %v1248 = vshrl.u32 %v1247, 7
      %v1249 = vsub.s32 5, %v1248
      %v1250 = vrot.slane %v827, %v1249
      %v1251 = vmul.f32 %v743, %v1250
      %v1252 = vmul.f32 %v745, %v1250
      %v1255 = vrot.slane %v1251, 1
      %v1256 = vrot.slane %v1252, 1
      %v1259 = vadd.f32 %v1245, %v1255
      %v1260 = vadd.f32 %v1246, %v1256
      %v1261 = vlaneseq
      %v1262 = vshrl.u32 %v1261, 7
      %v1263 = vsub.s32 6, %v1262
      %v1264 = vrot.slane %v821, %v1263
      %v1265 = vmul.f32 %v744, %v1264
      %v1266 = vmul.f32 %v745, %v1264
      %v1267 = vmul.f32 %v746, %v1264
      %v1268 = vmul.f32 %v747, %v1264
      %v1269 = vadd.f32 %v1109, %v1265
      %v1270 = vadd.f32 %v1110, %v1266
      %v1271 = vadd.f32 %v1111, %v1267
      %v1272 = vadd.f32 %v1112, %v1268
      %v1273 = vlaneseq
      %v1274 = vshrl.u32 %v1273, 7
      %v1275 = vsub.s32 7, %v1274
      %v1276 = vrot.slane %v821, %v1275
      %1278 = vrot.lane.b32.xlu0 %v1276, 32
      %v1279 = vpop.permute.xlu0 %1278
      %v1281 = vmul.f32 %v771, %v1279
      %v1282 = vmul.f32 %v772, %v1279
      %v1283 = vmul.f32 %v773, %v1279
      %v1284 = vmul.f32 %v774, %v1279
      %1289 = vrot.lane.b32.xlu0 %v1281, 96
      %v1290 = vpop.permute.xlu0 %1289
      %1291 = vrot.lane.b32.xlu0 %v1282, 96
      %v1292 = vpop.permute.xlu0 %1291
      %1293 = vrot.lane.b32.xlu0 %v1283, 96
      %v1294 = vpop.permute.xlu0 %1293
      %1295 = vrot.lane.b32.xlu0 %v1284, 96
      %v1296 = vpop.permute.xlu0 %1295
      %v1301 = vadd.f32 %v1269, %v1290
      %v1302 = vadd.f32 %v1270, %v1292
      %v1303 = vadd.f32 %v1271, %v1294
      %v1304 = vadd.f32 %v1272, %v1296
      %v1305 = vlaneseq
      %v1306 = vshrl.u32 %v1305, 7
      %v1307 = vsub.s32 0, %v1306
      %v1308 = vrot.slane %v822, %v1307
      %v1309 = vmul.f32 %v744, %v1308
      %v1310 = vmul.f32 %v745, %v1308
      %v1311 = vmul.f32 %v746, %v1308
      %v1312 = vmul.f32 %v747, %v1308
      %v1317 = vrot.slane %v1309, 1
      %v1318 = vrot.slane %v1310, 1
      %v1319 = vrot.slane %v1311, 1
      %v1320 = vrot.slane %v1312, 1
      %v1325 = vadd.f32 %v1301, %v1317
      %v1326 = vadd.f32 %v1302, %v1318
      %v1327 = vadd.f32 %v1303, %v1319
      %v1328 = vadd.f32 %v1304, %v1320
      %1330 = vrot.lane.b32.xlu0 %v1264, 32
      %v1331 = vpop.permute.xlu0 %1330
      %v1333 = vmul.f32 %v771, %v1331
      %v1334 = vmul.f32 %v772, %v1331
      %v1335 = vmul.f32 %v773, %v1331
      %v1336 = vmul.f32 %v774, %v1331
      %v1337 = vadd.f32 %v1173, %v1333
      %v1338 = vadd.f32 %v1174, %v1334
      %v1339 = vadd.f32 %v1175, %v1335
      %v1340 = vadd.f32 %v1176, %v1336
      %v1341 = vmul.f32 %v744, %v1276
      %v1342 = vmul.f32 %v745, %v1276
      %v1343 = vmul.f32 %v746, %v1276
      %v1344 = vmul.f32 %v747, %v1276
      %v1349 = vrot.slane %v1341, 1
      %v1350 = vrot.slane %v1342, 1
      %v1351 = vrot.slane %v1343, 1
      %v1352 = vrot.slane %v1344, 1
      %1353 = vrot.lane.b32.xlu0 %v1349, 32
      %v1354 = vpop.permute.xlu0 %1353
      %1355 = vrot.lane.b32.xlu0 %v1350, 32
      %v1356 = vpop.permute.xlu0 %1355
      %1357 = vrot.lane.b32.xlu0 %v1351, 32
      %v1358 = vpop.permute.xlu0 %1357
      %1359 = vrot.lane.b32.xlu0 %v1352, 32
      %v1360 = vpop.permute.xlu0 %1359
      %v1365 = vadd.f32 %v1337, %v1354
      %v1366 = vadd.f32 %v1338, %v1356
      %v1367 = vadd.f32 %v1339, %v1358
      %v1368 = vadd.f32 %v1340, %v1360
      %1370 = vrot.lane.b32.xlu0 %v1308, 32
      %v1371 = vpop.permute.xlu0 %1370
      %v1373 = vmul.f32 %v771, %v1371
      %v1374 = vmul.f32 %v772, %v1371
      %v1375 = vmul.f32 %v773, %v1371
      %v1376 = vmul.f32 %v774, %v1371
      %v1381 = vrot.slane %v1373, 1
      %v1382 = vrot.slane %v1374, 1
      %v1383 = vrot.slane %v1375, 1
      %v1384 = vrot.slane %v1376, 1
      %v1389 = vadd.f32 %v1365, %v1381
      %v1390 = vadd.f32 %v1366, %v1382
      %v1391 = vadd.f32 %v1367, %v1383
      %v1392 = vadd.f32 %v1368, %v1384
      %v1393 = vlaneseq
      %v1394 = vshrl.u32 %v1393, 7
      %v1395 = vsub.s32 6, %v1394
      %v1396 = vrot.slane %v824, %v1395
      %v1397 = vmul.f32 %v744, %v1396
      %v1398 = vmul.f32 %v746, %v1396
      %v1399 = vadd.f32 %v1217, %v1397
      %v1400 = vadd.f32 %v1218, %v1398
      %v1401 = vlaneseq
      %v1402 = vshrl.u32 %v1401, 7
      %v1403 = vsub.s32 7, %v1402
      %v1404 = vrot.slane %v824, %v1403
      %1406 = vrot.lane.b32.xlu0 %v1404, 32
      %v1407 = vpop.permute.xlu0 %1406
      %v1409 = vmul.f32 %v771, %v1407
      %v1410 = vmul.f32 %v773, %v1407
      %1413 = vrot.lane.b32.xlu0 %v1409, 96
      %v1414 = vpop.permute.xlu0 %1413
      %1415 = vrot.lane.b32.xlu0 %v1410, 96
      %v1416 = vpop.permute.xlu0 %1415
      %v1419 = vadd.f32 %v1399, %v1414
      %v1420 = vadd.f32 %v1400, %v1416
      %v1421 = vlaneseq
      %v1422 = vshrl.u32 %v1421, 7
      %v1423 = vsub.s32 0, %v1422
      %v1424 = vrot.slane %v825, %v1423
      %v1425 = vmul.f32 %v744, %v1424
      %v1426 = vmul.f32 %v746, %v1424
      %v1429 = vrot.slane %v1425, 1
      %v1430 = vrot.slane %v1426, 1
      %v1433 = vadd.f32 %v1419, %v1429
      %v1434 = vadd.f32 %v1420, %v1430
      %v1435 = vlaneseq
      %v1436 = vshrl.u32 %v1435, 7
      %v1437 = vsub.s32 6, %v1436
      %v1438 = vrot.slane %v827, %v1437
      %v1439 = vmul.f32 %v744, %v1438
      %v1440 = vmul.f32 %v746, %v1438
      %v1441 = vadd.f32 %v1259, %v1439
      %v1442 = vadd.f32 %v1260, %v1440
      %v1443 = vlaneseq
      %v1444 = vshrl.u32 %v1443, 7
      %v1445 = vsub.s32 7, %v1444
      %v1446 = vrot.slane %v827, %v1445
      %1448 = vrot.lane.b32.xlu0 %v1446, 32
      %v1449 = vpop.permute.xlu0 %1448
      %v1451 = vmul.f32 %v771, %v1449
      %v1452 = vmul.f32 %v773, %v1449
      %1455 = vrot.lane.b32.xlu0 %v1451, 96
      %v1456 = vpop.permute.xlu0 %1455
      %1457 = vrot.lane.b32.xlu0 %v1452, 96
      %v1458 = vpop.permute.xlu0 %1457
      %v1461 = vadd.f32 %v1441, %v1456
      %v1462 = vadd.f32 %v1442, %v1458
      %v1463 = vlaneseq
      %v1464 = vshrl.u32 %v1463, 7
      %v1465 = vsub.s32 0, %v1464
      %v1466 = vrot.slane %v828, %v1465
      %v1467 = vmul.f32 %v744, %v1466
      %v1468 = vmul.f32 %v746, %v1466
      %v1471 = vrot.slane %v1467, 1
      %v1472 = vrot.slane %v1468, 1
      %v1475 = vadd.f32 %v1461, %v1471
      %v1476 = vadd.f32 %v1462, %v1472
      %v1477 = vld [vmem:[%s3] sm:$0x1]
      %v1478 = vlaneseq
      %v1479 = vshrl.u32 %v1478, 7
      %v1480 = vsub.s32 0, %v1479
      %v1481 = vrot.slane %v1477, %v1480
      %v1482 = vadd.f32 %v1325, %v1481
      %v1483 = vadd.f32 %v1326, %v1481
      %v1484 = vadd.f32 %v1327, %v1481
      %v1485 = vadd.f32 %v1328, %v1481
      %v1486 = vmul.f32 %v1482, %v1482
      %v1487 = vmul.f32 %v1483, %v1483
      %v1488 = vmul.f32 %v1484, %v1484
      %v1489 = vmul.f32 %v1485, %v1485
      %v1490 = vmul.f32 %v1482, %v1486
      %v1491 = vmul.f32 %v1483, %v1487
      %v1492 = vmul.f32 %v1484, %v1488
      %v1493 = vmul.f32 %v1485, %v1489
      %v1494 = vmul.f32 %v1490, 0.044715
      %v1495 = vmul.f32 %v1491, 0.044715
      %v1496 = vmul.f32 %v1492, 0.044715
      %v1497 = vmul.f32 %v1493, 0.044715
      %v1498 = vadd.f32 %v1482, %v1494
      %v1499 = vadd.f32 %v1483, %v1495
      %v1500 = vadd.f32 %v1484, %v1496
      %v1501 = vadd.f32 %v1485, %v1497
      %v1502 = vmul.f32 %v1498, 0.7978846
      %v1503 = vmul.f32 %v1499, 0.7978846
      %v1504 = vmul.f32 %v1500, 0.7978846
      %v1505 = vmul.f32 %v1501, 0.7978846
      %v1506 = vtanh.pop %v1502
      %v1507 = vtanh.pop %v1503
      %v1508 = vtanh.pop %v1504
      %v1509 = vtanh.pop %v1505
      %v1510 = vadd.f32 %v1506, 1.0
      %v1511 = vadd.f32 %v1507, 1.0
      %v1512 = vadd.f32 %v1508, 1.0
      %v1513 = vadd.f32 %v1509, 1.0
      %v1514 = vmul.f32 %v1510, 0.5
      %v1515 = vmul.f32 %v1511, 0.5
      %v1516 = vmul.f32 %v1512, 0.5
      %v1517 = vmul.f32 %v1513, 0.5
      %v1518 = vmul.f32 %v1482, %v1514
      %v1519 = vmul.f32 %v1483, %v1515
      %v1520 = vmul.f32 %v1484, %v1516
      %v1521 = vmul.f32 %v1485, %v1517
      %v1522 = vld [vmem:[%s4] sm:$0x1]
      %v1523 = vlaneseq
      %v1524 = vshrl.u32 %v1523, 7
      %v1525 = vsub.s32 0, %v1524
      %v1526 = vrot.slane %v1522, %v1525
      %v1527 = vmul.f32 %v1518, %v1526
      %v1528 = vmul.f32 %v1519, %v1526
      %v1529 = vmul.f32 %v1520, %v1526
      %v1530 = vmul.f32 %v1521, %v1526
      %v1531 = vld [vmem:[%s5] sm:$0x1]
      %v1532 = vlaneseq
      %v1533 = vshrl.u32 %v1532, 7
      %v1534 = vsub.s32 0, %v1533
      %v1535 = vrot.slane %v1531, %v1534
      %v1536 = vadd.f32 %v1527, %v1535
      %v1537 = vadd.f32 %v1528, %v1535
      %v1538 = vadd.f32 %v1529, %v1535
      %v1539 = vadd.f32 %v1530, %v1535
      %1541 = vrot.lane.b32.xlu0 %v1481, 32
      %v1542 = vpop.permute.xlu0 %1541
      %v1544 = vadd.f32 %v1389, %v1542
      %v1545 = vadd.f32 %v1390, %v1542
      %v1546 = vadd.f32 %v1391, %v1542
      %v1547 = vadd.f32 %v1392, %v1542
      %v1548 = vmul.f32 %v1544, %v1544
      %v1549 = vmul.f32 %v1545, %v1545
      %v1550 = vmul.f32 %v1546, %v1546
      %v1551 = vmul.f32 %v1547, %v1547
      %v1552 = vmul.f32 %v1544, %v1548
      %v1553 = vmul.f32 %v1545, %v1549
      %v1554 = vmul.f32 %v1546, %v1550
      %v1555 = vmul.f32 %v1547, %v1551
      %v1556 = vmul.f32 %v1552, 0.044715
      %v1557 = vmul.f32 %v1553, 0.044715
      %v1558 = vmul.f32 %v1554, 0.044715
      %v1559 = vmul.f32 %v1555, 0.044715
      %v1560 = vadd.f32 %v1544, %v1556
      %v1561 = vadd.f32 %v1545, %v1557
      %v1562 = vadd.f32 %v1546, %v1558
      %v1563 = vadd.f32 %v1547, %v1559
      %v1564 = vmul.f32 %v1560, 0.7978846
      %v1565 = vmul.f32 %v1561, 0.7978846
      %v1566 = vmul.f32 %v1562, 0.7978846
      %v1567 = vmul.f32 %v1563, 0.7978846
      %v1568 = vtanh.pop %v1564
      %v1569 = vtanh.pop %v1565
      %v1570 = vtanh.pop %v1566
      %v1571 = vtanh.pop %v1567
      %v1572 = vadd.f32 %v1568, 1.0
      %v1573 = vadd.f32 %v1569, 1.0
      %v1574 = vadd.f32 %v1570, 1.0
      %v1575 = vadd.f32 %v1571, 1.0
      %v1576 = vmul.f32 %v1572, 0.5
      %v1577 = vmul.f32 %v1573, 0.5
      %v1578 = vmul.f32 %v1574, 0.5
      %v1579 = vmul.f32 %v1575, 0.5
      %v1580 = vmul.f32 %v1544, %v1576
      %v1581 = vmul.f32 %v1545, %v1577
      %v1582 = vmul.f32 %v1546, %v1578
      %v1583 = vmul.f32 %v1547, %v1579
      %1585 = vrot.lane.b32.xlu0 %v1526, 32
      %v1586 = vpop.permute.xlu0 %1585
      %v1588 = vmul.f32 %v1580, %v1586
      %v1589 = vmul.f32 %v1581, %v1586
      %v1590 = vmul.f32 %v1582, %v1586
      %v1591 = vmul.f32 %v1583, %v1586
      %1593 = vrot.lane.b32.xlu0 %v1535, 32
      %v1594 = vpop.permute.xlu0 %1593
      %v1596 = vadd.f32 %v1588, %v1594
      %v1597 = vadd.f32 %v1589, %v1594
      %v1598 = vadd.f32 %v1590, %v1594
      %v1599 = vadd.f32 %v1591, %v1594
      %v1600 = vsel %vm811, %v1536, %v1596
      %v1601 = vsel %vm811, %v1537, %v1597
      %v1602 = vsel %vm811, %v1538, %v1598
      %v1603 = vsel %vm811, %v1539, %v1599
      %v1604 = vpack.c.bf16 %v1600, %v1600
      %v1605 = vpack.c.bf16 %v1601, %v1601
      %v1606 = vpack.c.bf16 %v1602, %v1602
      %v1607 = vpack.c.bf16 %v1603, %v1603
      %vm1608 = vcmask 517120
      %1609 = vst.msk [vmem:[%s404] sm:$0x3] %vm1608, %v1604
      %1610 = vst.msk [vmem:[%s404 + $0x2] sm:$0x3] %vm1608, %v1605
      %1611 = vst.msk [vmem:[%s404 + $0x4] sm:$0x3] %vm1608, %v1606
      %1612 = vst.msk [vmem:[%s404 + $0x6] sm:$0x3] %vm1608, %v1607
      %v1613 = vld [vmem:[%s3 + $0x1] sm:$0x1]
      %v1614 = vlaneseq
      %v1615 = vshrl.u32 %v1614, 7
      %v1616 = vsub.s32 0, %v1615
      %v1617 = vrot.slane %v1613, %v1616
      %v1618 = vadd.f32 %v1433, %v1617
      %v1619 = vadd.f32 %v1434, %v1617
      %v1620 = vmul.f32 %v1618, %v1618
      %v1621 = vmul.f32 %v1619, %v1619
      %v1622 = vmul.f32 %v1618, %v1620
      %v1623 = vmul.f32 %v1619, %v1621
      %v1624 = vmul.f32 %v1622, 0.044715
      %v1625 = vmul.f32 %v1623, 0.044715
      %v1626 = vadd.f32 %v1618, %v1624
      %v1627 = vadd.f32 %v1619, %v1625
      %v1628 = vmul.f32 %v1626, 0.7978846
      %v1629 = vmul.f32 %v1627, 0.7978846
      %v1630 = vtanh.pop %v1628
      %v1631 = vtanh.pop %v1629
      %v1632 = vadd.f32 %v1630, 1.0
      %v1633 = vadd.f32 %v1631, 1.0
      %v1634 = vmul.f32 %v1632, 0.5
      %v1635 = vmul.f32 %v1633, 0.5
      %v1636 = vmul.f32 %v1618, %v1634
      %v1637 = vmul.f32 %v1619, %v1635
      %v1638 = vld [vmem:[%s4 + $0x1] sm:$0x1]
      %v1639 = vlaneseq
      %v1640 = vshrl.u32 %v1639, 7
      %v1641 = vsub.s32 0, %v1640
      %v1642 = vrot.slane %v1638, %v1641
      %v1643 = vmul.f32 %v1636, %v1642
      %v1644 = vmul.f32 %v1637, %v1642
      %v1645 = vld [vmem:[%s5 + $0x1] sm:$0x1]
      %v1646 = vlaneseq
      %v1647 = vshrl.u32 %v1646, 7
      %v1648 = vsub.s32 0, %v1647
      %v1649 = vrot.slane %v1645, %v1648
      %v1650 = vadd.f32 %v1643, %v1649
      %v1651 = vadd.f32 %v1644, %v1649
      %v1652 = vpack.c.bf16 %v1650, %v1650
      %v1653 = vpack.c.bf16 %v1651, %v1651
      %vm1654 = vcmask 254976
      %1655 = vst.msk [vmem:[%s414] sm:$0x3] %vm1654, %v1652
      %1656 = vst.msk [vmem:[%s414 + $0x2] sm:$0x3] %vm1654, %v1653
      %v1657 = vld [vmem:[%s3 + $0x2] sm:$0x1]
      %v1658 = vlaneseq
      %v1659 = vshrl.u32 %v1658, 7
      %v1660 = vsub.s32 0, %v1659
      %v1661 = vrot.slane %v1657, %v1660
      %v1662 = vadd.f32 %v1475, %v1661
      %v1663 = vadd.f32 %v1476, %v1661
      %v1664 = vmul.f32 %v1662, %v1662
      %v1665 = vmul.f32 %v1663, %v1663
      %v1666 = vmul.f32 %v1662, %v1664
      %v1667 = vmul.f32 %v1663, %v1665
      %v1668 = vmul.f32 %v1666, 0.044715
      %v1669 = vmul.f32 %v1667, 0.044715
      %v1670 = vadd.f32 %v1662, %v1668
      %v1671 = vadd.f32 %v1663, %v1669
      %v1672 = vmul.f32 %v1670, 0.7978846
      %v1673 = vmul.f32 %v1671, 0.7978846
      %v1674 = vtanh.pop %v1672
      %v1675 = vtanh.pop %v1673
      %v1676 = vadd.f32 %v1674, 1.0
      %v1677 = vadd.f32 %v1675, 1.0
      %v1678 = vmul.f32 %v1676, 0.5
      %v1679 = vmul.f32 %v1677, 0.5
      %v1680 = vmul.f32 %v1662, %v1678
      %v1681 = vmul.f32 %v1663, %v1679
      %v1682 = vld [vmem:[%s4 + $0x2] sm:$0x1]
      %v1683 = vlaneseq
      %v1684 = vshrl.u32 %v1683, 7
      %v1685 = vsub.s32 0, %v1684
      %v1686 = vrot.slane %v1682, %v1685
      %v1687 = vmul.f32 %v1680, %v1686
      %v1688 = vmul.f32 %v1681, %v1686
      %v1689 = vld [vmem:[%s5 + $0x2] sm:$0x1]
      %v1690 = vlaneseq
      %v1691 = vshrl.u32 %v1690, 7
      %v1692 = vsub.s32 0, %v1691
      %v1693 = vrot.slane %v1689, %v1692
      %v1694 = vadd.f32 %v1687, %v1693
      %v1695 = vadd.f32 %v1688, %v1693
      %v1696 = vpack.c.bf16 %v1694, %v1694
      %v1697 = vpack.c.bf16 %v1695, %v1695
      %1698 = vst.msk [vmem:[%s424] sm:$0x3] %vm1654, %v1696
      %1699 = vst.msk [vmem:[%s424 + $0x2] sm:$0x3] %vm1654, %v1697
      %s1700 = smul.u32 4, %s26
      %p1701 = scmp.lt.s32.totalorder %s25, 1
      %s1702 = scalar_select %p1701, %s25, 1
      %p1703 = scmp.lt.s32.totalorder %s1700, 7
      %s1704 = scalar_select %p1703, %s1700, 7
      %s1705 = smul.addr %s1702, 8
      %s1706 = sadd.s32 %s1704, %s1705
      %s1707 = smul.addr %s1706, 4
      %s1708 = scalar_lea.vmem %s6, %s1707
      %s1709 = smul.u32 4, %s26
      %p1710 = scmp.lt.s32.totalorder %s25, 1
      %s1711 = scalar_select %p1710, %s25, 1
      %p1712 = scmp.lt.s32.totalorder %s1709, 7
      %s1713 = scalar_select %p1712, %s1709, 7
      %s1714 = smul.addr %s1711, 8
      %s1715 = sadd.s32 %s1713, %s1714
      %s1716 = smul.addr %s1715, 2
      %s1717 = scalar_lea.vmem %s7, %s1716
      %s1718 = smul.u32 2, %s26
      %p1719 = scmp.lt.s32.totalorder %s25, 1
      %s1720 = scalar_select %p1719, %s25, 1
      %p1721 = scmp.lt.s32.totalorder %s1718, 3
      %s1722 = scalar_select %p1721, %s1718, 3
      %s1723 = smul.addr %s1720, 4
      %s1724 = sadd.s32 %s1722, %s1723
      %s1725 = smul.addr %s1724, 2
      %s1726 = scalar_lea.vmem %s8, %s1725
      %s1727 = smul.u32 2, %s26
      %p1728 = scmp.lt.s32.totalorder %s25, 1
      %s1729 = scalar_select %p1728, %s25, 1
      %p1730 = scmp.lt.s32.totalorder %s1727, 3
      %s1731 = scalar_select %p1730, %s1727, 3
      %s1732 = smul.addr %s1729, 4
      %s1733 = sadd.s32 %s1731, %s1732
      %s1734 = smul.addr %s1733, 2
      %s1735 = scalar_lea.vmem %s9, %s1734
      // Predicated region
      $region45: #{cvt_stage_forward.10} parent=43 // pred_check
        %p1736 = pneg %p184
      $region46: #{cvt_stage_forward.10} parent=43 // pred_check_branch
        %1738 = sbr.rel (%p1736) target = $region48
      $region47: #{cvt_stage_forward.10} parent=43 // pred_region
        %s1739 = smul.u32 4, %s26
      $region48: #{cvt_stage_forward.10} parent=43 // pred_fallthru
        _
      // Predicated region
      $region49: #{cvt_stage_forward.10} parent=43 // pred_check
        %p1740 = pneg %p212
      $region50: #{cvt_stage_forward.10} parent=43 // pred_check_branch
        %1742 = sbr.rel (%p1740) target = $region52
      $region51: #{cvt_stage_forward.10} parent=43 // pred_region
        %s1743 = smul.u32 4, %s26
      $region52: #{cvt_stage_forward.10} parent=43 // pred_fallthru
        _
      // Predicated region
      $region53: #{cvt_stage_forward.10} parent=43 // pred_check
        %p1744 = pneg %p240
      $region54: #{cvt_stage_forward.10} parent=43 // pred_check_branch
        %1746 = sbr.rel (%p1744) target = $region56
      $region55: #{cvt_stage_forward.10} parent=43 // pred_region
        %s1747 = smul.u32 2, %s26
      $region56: #{cvt_stage_forward.10} parent=43 // pred_fallthru
        _
      // Predicated region
      $region57: #{cvt_stage_forward.10} parent=43 // pred_check
        %p1748 = pneg %p268
      $region58: #{cvt_stage_forward.10} parent=43 // pred_check_branch
        %1750 = sbr.rel (%p1748) target = $region60
      $region59: #{cvt_stage_forward.10} parent=43 // pred_region
        %s1751 = smul.u32 2, %s26
      $region60: #{cvt_stage_forward.10} parent=43 // pred_fallthru
        _
    $region44: #{cvt_stage_forward.10} parent=5 // pred_fallthru
      _
    %p1752 = scmp.le.s32.totalorder 2, %s16
    // Predicated region
    $region61: #{cvt_stage_forward.10} parent=5 // pred_check
      %p1753 = pneg %p1752
    $region62: #{cvt_stage_forward.10} parent=5 // pred_check_branch
      %1755 = sbr.rel (%p1753) target = $region64
    $region63: #{cvt_stage_forward.10} parent=5 // pred_region
      %s1756 = ssub.s32 %s16, 2
      // Predicated region
      $region65: #{cvt_stage_forward.10} parent=63 // pred_check
        %p1757 = pneg %p190
      $region66: #{cvt_stage_forward.10} parent=63 // pred_check_branch
        %1759 = sbr.rel (%p1757) target = $region68
      $region67: #{cvt_stage_forward.10} parent=63 // pred_region
        %s1760 = smul.u32 4, %s28
        %p1761 = scmp.lt.s32.totalorder %s27, 1
        %s1762 = scalar_select %p1761, %s27, 1
        %p1763 = scmp.lt.s32.totalorder %s1760, 7
        %s1764 = scalar_select %p1763, %s1760, 7
        %s1765 = smul.addr %s1762, 8
        %s1766 = sadd.s32 %s1764, %s1765
        %s1767 = smul.addr %s1766, 4
        %s1768 = scalar_lea.vmem %s6, %s1767
      $region68: #{cvt_stage_forward.10} parent=63 // pred_fallthru
        _
      // Predicated region
      $region69: #{cvt_stage_forward.10} parent=63 // pred_check
        %p1769 = pneg %p218
      $region70: #{cvt_stage_forward.10} parent=63 // pred_check_branch
        %1771 = sbr.rel (%p1769) target = $region72
      $region71: #{cvt_stage_forward.10} parent=63 // pred_region
        %s1772 = smul.u32 4, %s28
        %p1773 = scmp.lt.s32.totalorder %s27, 1
        %s1774 = scalar_select %p1773, %s27, 1
        %p1775 = scmp.lt.s32.totalorder %s1772, 7
        %s1776 = scalar_select %p1775, %s1772, 7
        %s1777 = smul.addr %s1774, 8
        %s1778 = sadd.s32 %s1776, %s1777
        %s1779 = smul.addr %s1778, 2
        %s1780 = scalar_lea.vmem %s7, %s1779
      $region72: #{cvt_stage_forward.10} parent=63 // pred_fallthru
        _
      // Predicated region
      $region73: #{cvt_stage_forward.10} parent=63 // pred_check
        %p1781 = pneg %p246
      $region74: #{cvt_stage_forward.10} parent=63 // pred_check_branch
        %1783 = sbr.rel (%p1781) target = $region76
      $region75: #{cvt_stage_forward.10} parent=63 // pred_region
        %s1784 = smul.u32 2, %s28
        %p1785 = scmp.lt.s32.totalorder %s27, 1
        %s1786 = scalar_select %p1785, %s27, 1
        %p1787 = scmp.lt.s32.totalorder %s1784, 3
        %s1788 = scalar_select %p1787, %s1784, 3
        %s1789 = smul.addr %s1786, 4
        %s1790 = sadd.s32 %s1788, %s1789
        %s1791 = smul.addr %s1790, 2
        %s1792 = scalar_lea.vmem %s8, %s1791
      $region76: #{cvt_stage_forward.10} parent=63 // pred_fallthru
        _
      // Predicated region
      $region77: #{cvt_stage_forward.10} parent=63 // pred_check
        %p1793 = pneg %p274
      $region78: #{cvt_stage_forward.10} parent=63 // pred_check_branch
        %1795 = sbr.rel (%p1793) target = $region80
      $region79: #{cvt_stage_forward.10} parent=63 // pred_region
        %s1796 = smul.u32 2, %s28
        %p1797 = scmp.lt.s32.totalorder %s27, 1
        %s1798 = scalar_select %p1797, %s27, 1
        %p1799 = scmp.lt.s32.totalorder %s1796, 3
        %s1800 = scalar_select %p1799, %s1796, 3
        %s1801 = smul.addr %s1798, 4
        %s1802 = sadd.s32 %s1800, %s1801
        %s1803 = smul.addr %s1802, 2
        %s1804 = scalar_lea.vmem %s9, %s1803
      $region80: #{cvt_stage_forward.10} parent=63 // pred_fallthru
        _
    $region64: #{cvt_stage_forward.10} parent=5 // pred_fallthru
      _
  $region6: #{cvt_stage_forward.10} parent=0 // loop_footer
    %s20 = sadd.s32 1, %s16
  $region7: #{cvt_stage_forward.10} parent=0 // loop_footer_branch
    %15 = sbr.rel target = $region3
  $region8: #{cvt_stage_forward.10} parent=0 // loop_exit
    _

// kernel: cvt_stage_forward.12
$region0: #{cvt_stage_forward.12}
  #allocation0 [shape = 'u32[]', space=smem, size = 0x4, offset = 0x4, fixed_abs, tag = 'smem constant byte address 0x4 - core index']
  #allocation1 [shape = 'u32[144,128]{1,0:T(1,128)}', space=vmem, size = 0x12000, scoped, tag = 'internal scratch']
  %s0 = inlined_call_operand.vmem [shape: f32[128,32], index: 0, kind: input, shape index: {}]
  %s1 = inlined_call_operand.vmem [shape: f32[1,32], index: 1, kind: input, shape index: {}]
  %s2 = inlined_call_operand.vmem [shape: f32[1,32], index: 2, kind: input, shape index: {}]
  %s3 = inlined_call_operand.vmem [shape: bf16[32,64], index: 3, kind: input, shape index: {}]
  %s4 = inlined_call_operand.vmem [shape: f32[1,64], index: 4, kind: input, shape index: {}]
  %s5 = inlined_call_operand.vmem [shape: bf16[64,32], index: 5, kind: input, shape index: {}]
  %s6 = inlined_call_operand.vmem [shape: f32[1,32], index: 6, kind: input, shape index: {}]
  %s7 = inlined_call_operand.vmem [shape: f32[128,32], index: 7, kind: output, shape index: {}]
  %s8 = sld [smem:[#allocation0]]
  $region38: #{cvt_stage_forward.12} parent=0
    _
  %s10 = ssub.s32 1, %s8
  %s11 = scalar_select 0, %s10, %s8
  // Predicated region
  $region2: #{cvt_stage_forward.12} parent=0 // pred_check
    _
  $region3: #{cvt_stage_forward.12} parent=0 // pred_check_branch
    %13 = sbr.rel (0) target = $region5
  $region4: #{cvt_stage_forward.12} parent=0 // pred_region
    _
  $region5: #{cvt_stage_forward.12} parent=0 // pred_fallthru
    _
  // Predicated region
  $region6: #{cvt_stage_forward.12} parent=0 // pred_check
    _
  $region7: #{cvt_stage_forward.12} parent=0 // pred_check_branch
    %15 = sbr.rel (0) target = $region9
  $region8: #{cvt_stage_forward.12} parent=0 // pred_region
    _
  $region9: #{cvt_stage_forward.12} parent=0 // pred_fallthru
    _
  // Predicated region
  $region10: #{cvt_stage_forward.12} parent=0 // pred_check
    _
  $region11: #{cvt_stage_forward.12} parent=0 // pred_check_branch
    %17 = sbr.rel (0) target = $region13
  $region12: #{cvt_stage_forward.12} parent=0 // pred_region
    _
  $region13: #{cvt_stage_forward.12} parent=0 // pred_fallthru
    _
  // Predicated region
  $region14: #{cvt_stage_forward.12} parent=0 // pred_check
    _
  $region15: #{cvt_stage_forward.12} parent=0 // pred_check_branch
    %19 = sbr.rel (0) target = $region17
  $region16: #{cvt_stage_forward.12} parent=0 // pred_region
    _
  $region17: #{cvt_stage_forward.12} parent=0 // pred_fallthru
    _
  // Predicated region
  $region18: #{cvt_stage_forward.12} parent=0 // pred_check
    _
  $region19: #{cvt_stage_forward.12} parent=0 // pred_check_branch
    %21 = sbr.rel (0) target = $region21
  $region20: #{cvt_stage_forward.12} parent=0 // pred_region
    _
  $region21: #{cvt_stage_forward.12} parent=0 // pred_fallthru
    _
  // Predicated region
  $region22: #{cvt_stage_forward.12} parent=0 // pred_check
    _
  $region23: #{cvt_stage_forward.12} parent=0 // pred_check_branch
    %23 = sbr.rel (0) target = $region25
  $region24: #{cvt_stage_forward.12} parent=0 // pred_region
    _
  $region25: #{cvt_stage_forward.12} parent=0 // pred_fallthru
    _
  // Predicated region
  $region26: #{cvt_stage_forward.12} parent=0 // pred_check
    _
  $region27: #{cvt_stage_forward.12} parent=0 // pred_check_branch
    %25 = sbr.rel (0) target = $region29
  $region28: #{cvt_stage_forward.12} parent=0 // pred_region
    _
  $region29: #{cvt_stage_forward.12} parent=0 // pred_fallthru
    _
  %v27 = vld [vmem:[%s0] sm:$0xff]
  %v28 = vld [vmem:[%s0 + $0x8] sm:$0xff]
  %v29 = vld [vmem:[%s0 + $0x10] sm:$0xff]
  %v30 = vld [vmem:[%s0 + $0x18] sm:$0xff]
  %v31 = vld [vmem:[%s0 + $0x20] sm:$0xff]
  %v32 = vld [vmem:[%s0 + $0x28] sm:$0xff]
  %v33 = vld [vmem:[%s0 + $0x30] sm:$0xff]
  %v34 = vld [vmem:[%s0 + $0x38] sm:$0xff]
  %v35 = vld [vmem:[%s0 + $0x40] sm:$0xff]
  %v36 = vld [vmem:[%s0 + $0x48] sm:$0xff]
  %v37 = vld [vmem:[%s0 + $0x50] sm:$0xff]
  %v38 = vld [vmem:[%s0 + $0x58] sm:$0xff]
  %v39 = vld [vmem:[%s0 + $0x60] sm:$0xff]
  %v40 = vld [vmem:[%s0 + $0x68] sm:$0xff]
  %v41 = vld [vmem:[%s0 + $0x70] sm:$0xff]
  %v42 = vld [vmem:[%s0 + $0x78] sm:$0xff]
  %vm43 = vcmask 261120
  %v44 = vsel %vm43, %v27, 0.0
  %45 = vadd.xlane.f32.xlu0 %v44
  %v46 = vpop.xlane.xlu0 %45
  %v47 = vsel %vm43, %v28, 0.0
  %48 = vadd.xlane.f32.xlu0 %v47
  %v49 = vpop.xlane.xlu0 %48
  %v50 = vsel %vm43, %v29, 0.0
  %51 = vadd.xlane.f32.xlu0 %v50
  %v52 = vpop.xlane.xlu0 %51
  %v53 = vsel %vm43, %v30, 0.0
  %54 = vadd.xlane.f32.xlu0 %v53
  %v55 = vpop.xlane.xlu0 %54
  %v56 = vsel %vm43, %v31, 0.0
  %57 = vadd.xlane.f32.xlu0 %v56
  %v58 = vpop.xlane.xlu0 %57
  %v59 = vsel %vm43, %v32, 0.0
  %60 = vadd.xlane.f32.xlu0 %v59
  %v61 = vpop.xlane.xlu0 %60
  %v62 = vsel %vm43, %v33, 0.0
  %63 = vadd.xlane.f32.xlu0 %v62
  %v64 = vpop.xlane.xlu0 %63
  %v65 = vsel %vm43, %v34, 0.0
  %66 = vadd.xlane.f32.xlu0 %v65
  %v67 = vpop.xlane.xlu0 %66
  %v68 = vsel %vm43, %v35, 0.0
  %69 = vadd.xlane.f32.xlu0 %v68
  %v70 = vpop.xlane.xlu0 %69
  %v71 = vsel %vm43, %v36, 0.0
  %72 = vadd.xlane.f32.xlu0 %v71
  %v73 = vpop.xlane.xlu0 %72
  %v74 = vsel %vm43, %v37, 0.0
  %75 = vadd.xlane.f32.xlu0 %v74
  %v76 = vpop.xlane.xlu0 %75
  %v77 = vsel %vm43, %v38, 0.0
  %78 = vadd.xlane.f32.xlu0 %v77
  %v79 = vpop.xlane.xlu0 %78
  %v80 = vsel %vm43, %v39, 0.0
  %81 = vadd.xlane.f32.xlu0 %v80
  %v82 = vpop.xlane.xlu0 %81
  %v83 = vsel %vm43, %v40, 0.0
  %84 = vadd.xlane.f32.xlu0 %v83
  %v85 = vpop.xlane.xlu0 %84
  %v86 = vsel %vm43, %v41, 0.0
  %87 = vadd.xlane.f32.xlu0 %v86
  %v88 = vpop.xlane.xlu0 %87
  %v89 = vsel %vm43, %v42, 0.0
  %90 = vadd.xlane.f32.xlu0 %v89
  %v91 = vpop.xlane.xlu0 %90
  %v92 = vrcp.pop 32.0
  %v93 = vmul.f32 %v46, %v92
  %v94 = vmul.f32 %v49, %v92
  %v95 = vmul.f32 %v52, %v92
  %v96 = vmul.f32 %v55, %v92
  %v97 = vmul.f32 %v58, %v92
  %v98 = vmul.f32 %v61, %v92
  %v99 = vmul.f32 %v64, %v92
  %v100 = vmul.f32 %v67, %v92
  %v101 = vmul.f32 %v70, %v92
  %v102 = vmul.f32 %v73, %v92
  %v103 = vmul.f32 %v76, %v92
  %v104 = vmul.f32 %v79, %v92
  %v105 = vmul.f32 %v82, %v92
  %v106 = vmul.f32 %v85, %v92
  %v107 = vmul.f32 %v88, %v92
  %v108 = vmul.f32 %v91, %v92
  %v109 = vsub.f32 %v27, %v93
  %v110 = vsub.f32 %v28, %v94
  %v111 = vsub.f32 %v29, %v95
  %v112 = vsub.f32 %v30, %v96
  %v113 = vsub.f32 %v31, %v97
  %v114 = vsub.f32 %v32, %v98
  %v115 = vsub.f32 %v33, %v99
  %v116 = vsub.f32 %v34, %v100
  %v117 = vsub.f32 %v35, %v101
  %v118 = vsub.f32 %v36, %v102
  %v119 = vsub.f32 %v37, %v103
  %v120 = vsub.f32 %v38, %v104
  %v121 = vsub.f32 %v39, %v105
  %v122 = vsub.f32 %v40, %v106
  %v123 = vsub.f32 %v41, %v107
  %v124 = vsub.f32 %v42, %v108
  %v125 = vmul.f32 %v109, %v109
  %v126 = vmul.f32 %v110, %v110
  %v127 = vmul.f32 %v111, %v111
  %v128 = vmul.f32 %v112, %v112
  %v129 = vmul.f32 %v113, %v113
  %v130 = vmul.f32 %v114, %v114
  %v131 = vmul.f32 %v115, %v115
  %v132 = vmul.f32 %v116, %v116
  %v133 = vmul.f32 %v117, %v117
  %v134 = vmul.f32 %v118, %v118
  %v135 = vmul.f32 %v119, %v119
  %v136 = vmul.f32 %v120, %v120
  %v137 = vmul.f32 %v121, %v121
  %v138 = vmul.f32 %v122, %v122
  %v139 = vmul.f32 %v123, %v123
  %v140 = vmul.f32 %v124, %v124
  %v141 = vsel %vm43, %v125, 0.0
  %142 = vadd.xlane.f32.xlu0 %v141
  %v143 = vpop.xlane.xlu0 %142
  %v144 = vsel %vm43, %v126, 0.0
  %145 = vadd.xlane.f32.xlu0 %v144
  %v146 = vpop.xlane.xlu0 %145
  %v147 = vsel %vm43, %v127, 0.0
  %148 = vadd.xlane.f32.xlu0 %v147
  %v149 = vpop.xlane.xlu0 %148
  %v150 = vsel %vm43, %v128, 0.0
  %151 = vadd.xlane.f32.xlu0 %v150
  %v152 = vpop.xlane.xlu0 %151
  %v153 = vsel %vm43, %v129, 0.0
  %154 = vadd.xlane.f32.xlu0 %v153
  %v155 = vpop.xlane.xlu0 %154
  %v156 = vsel %vm43, %v130, 0.0
  %157 = vadd.xlane.f32.xlu0 %v156
  %v158 = vpop.xlane.xlu0 %157
  %v159 = vsel %vm43, %v131, 0.0
  %160 = vadd.xlane.f32.xlu0 %v159
  %v161 = vpop.xlane.xlu0 %160
  %v162 = vsel %vm43, %v132, 0.0
  %163 = vadd.xlane.f32.xlu0 %v162
  %v164 = vpop.xlane.xlu0 %163
  %v165 = vsel %vm43, %v133, 0.0
  %166 = vadd.xlane.f32.xlu0 %v165
  %v167 = vpop.xlane.xlu0 %166
  %v168 = vsel %vm43, %v134, 0.0
  %169 = vadd.xlane.f32.xlu0 %v168
  %v170 = vpop.xlane.xlu0 %169
  %v171 = vsel %vm43, %v135, 0.0
  %172 = vadd.xlane.f32.xlu0 %v171
  %v173 = vpop.xlane.xlu0 %172
  %v174 = vsel %vm43, %v136, 0.0
  %175 = vadd.xlane.f32.xlu0 %v174
  %v176 = vpop.xlane.xlu0 %175
  %v177 = vsel %vm43, %v137, 0.0
  %178 = vadd.xlane.f32.xlu0 %v177
  %v179 = vpop.xlane.xlu0 %178
  %v180 = vsel %vm43, %v138, 0.0
  %181 = vadd.xlane.f32.xlu0 %v180
  %v182 = vpop.xlane.xlu0 %181
  %v183 = vsel %vm43, %v139, 0.0
  %184 = vadd.xlane.f32.xlu0 %v183
  %v185 = vpop.xlane.xlu0 %184
  %v186 = vsel %vm43, %v140, 0.0
  %187 = vadd.xlane.f32.xlu0 %v186
  %v188 = vpop.xlane.xlu0 %187
  %v189 = vmul.f32 %v143, %v92
  %v190 = vmul.f32 %v146, %v92
  %v191 = vmul.f32 %v149, %v92
  %v192 = vmul.f32 %v152, %v92
  %v193 = vmul.f32 %v155, %v92
  %v194 = vmul.f32 %v158, %v92
  %v195 = vmul.f32 %v161, %v92
  %v196 = vmul.f32 %v164, %v92
  %v197 = vmul.f32 %v167, %v92
  %v198 = vmul.f32 %v170, %v92
  %v199 = vmul.f32 %v173, %v92
  %v200 = vmul.f32 %v176, %v92
  %v201 = vmul.f32 %v179, %v92
  %v202 = vmul.f32 %v182, %v92
  %v203 = vmul.f32 %v185, %v92
  %v204 = vmul.f32 %v188, %v92
  %v205 = vadd.f32 %v189, 1e-05
  %v206 = vadd.f32 %v190, 1e-05
  %v207 = vadd.f32 %v191, 1e-05
  %v208 = vadd.f32 %v192, 1e-05
  %v209 = vadd.f32 %v193, 1e-05
  %v210 = vadd.f32 %v194, 1e-05
  %v211 = vadd.f32 %v195, 1e-05
  %v212 = vadd.f32 %v196, 1e-05
  %v213 = vadd.f32 %v197, 1e-05
  %v214 = vadd.f32 %v198, 1e-05
  %v215 = vadd.f32 %v199, 1e-05
  %v216 = vadd.f32 %v200, 1e-05
  %v217 = vadd.f32 %v201, 1e-05
  %v218 = vadd.f32 %v202, 1e-05
  %v219 = vadd.f32 %v203, 1e-05
  %v220 = vadd.f32 %v204, 1e-05
  %v221 = vrsqrt.pop %v205
  %v222 = vrsqrt.pop %v206
  %v223 = vrsqrt.pop %v207
  %v224 = vrsqrt.pop %v208
  %v225 = vrsqrt.pop %v209
  %v226 = vrsqrt.pop %v210
  %v227 = vrsqrt.pop %v211
  %v228 = vrsqrt.pop %v212
  %v229 = vrsqrt.pop %v213
  %v230 = vrsqrt.pop %v214
  %v231 = vrsqrt.pop %v215
  %v232 = vrsqrt.pop %v216
  %v233 = vrsqrt.pop %v217
  %v234 = vrsqrt.pop %v218
  %v235 = vrsqrt.pop %v219
  %v236 = vrsqrt.pop %v220
  %v237 = vmul.f32 %v109, %v221
  %v238 = vmul.f32 %v110, %v222
  %v239 = vmul.f32 %v111, %v223
  %v240 = vmul.f32 %v112, %v224
  %v241 = vmul.f32 %v113, %v225
  %v242 = vmul.f32 %v114, %v226
  %v243 = vmul.f32 %v115, %v227
  %v244 = vmul.f32 %v116, %v228
  %v245 = vmul.f32 %v117, %v229
  %v246 = vmul.f32 %v118, %v230
  %v247 = vmul.f32 %v119, %v231
  %v248 = vmul.f32 %v120, %v232
  %v249 = vmul.f32 %v121, %v233
  %v250 = vmul.f32 %v122, %v234
  %v251 = vmul.f32 %v123, %v235
  %v252 = vmul.f32 %v124, %v236
  %v253 = vld [vmem:[%s1] sm:$0x1]
  %v255 = vlaneseq
  %v256 = vshrl.u32 %v255, 7
  %v257 = vsub.s32 0, %v256
  %v258 = vrot.slane %v253, %v257
  %v260 = vmul.f32 %v237, %v258
  %v261 = vmul.f32 %v238, %v258
  %v262 = vmul.f32 %v239, %v258
  %v263 = vmul.f32 %v240, %v258
  %v264 = vmul.f32 %v241, %v258
  %v265 = vmul.f32 %v242, %v258
  %v266 = vmul.f32 %v243, %v258
  %v267 = vmul.f32 %v244, %v258
  %v268 = vmul.f32 %v245, %v258
  %v269 = vmul.f32 %v246, %v258
  %v270 = vmul.f32 %v247, %v258
  %v271 = vmul.f32 %v248, %v258
  %v272 = vmul.f32 %v249, %v258
  %v273 = vmul.f32 %v250, %v258
  %v274 = vmul.f32 %v251, %v258
  %v275 = vmul.f32 %v252, %v258
  %v276 = vld [vmem:[%s2] sm:$0x1]
  %v278 = vlaneseq
  %v279 = vshrl.u32 %v278, 7
  %v280 = vsub.s32 0, %v279
  %v281 = vrot.slane %v276, %v280
  %v283 = vadd.f32 %v260, %v281
  %v284 = vadd.f32 %v261, %v281
  %v285 = vadd.f32 %v262, %v281
  %v286 = vadd.f32 %v263, %v281
  %v287 = vadd.f32 %v264, %v281
  %v288 = vadd.f32 %v265, %v281
  %v289 = vadd.f32 %v266, %v281
  %v290 = vadd.f32 %v267, %v281
  %v291 = vadd.f32 %v268, %v281
  %v292 = vadd.f32 %v269, %v281
  %v293 = vadd.f32 %v270, %v281
  %v294 = vadd.f32 %v271, %v281
  %v295 = vadd.f32 %v272, %v281
  %v296 = vadd.f32 %v273, %v281
  %v297 = vadd.f32 %v274, %v281
  %v298 = vadd.f32 %v275, %v281
  %v299 = vpack.c.bf16 %v284, %v283
  %v300 = vpack.c.bf16 %v286, %v285
  %v301 = vpack.c.bf16 %v288, %v287
  %v302 = vpack.c.bf16 %v290, %v289
  %v303 = vpack.c.bf16 %v292, %v291
  %v304 = vpack.c.bf16 %v294, %v293
  %v305 = vpack.c.bf16 %v296, %v295
  %v306 = vpack.c.bf16 %v298, %v297
  %v307 = vld [vmem:[%s3] sm:$0xf]
  %v308 = vld [vmem:[%s3 + $0x4] sm:$0xf]
  %v309 = vld [vmem:[%s3 + $0x8] sm:$0xf]
  %v310 = vld [vmem:[%s3 + $0xc] sm:$0xf]
  %v311 = vld [vmem:[%s4] sm:$0x1]
  %v313 = vlaneseq
  %v314 = vshrl.u32 %v313, 7
  %v315 = vsub.s32 0, %v314
  %v316 = vrot.slane %v311, %v315
  %v322 = vunpack.c.l.b16 %v307
  %v323 = vunpack.c.l.b16 %v308
  %v324 = vunpack.c.l.b16 %v309
  %v325 = vunpack.c.l.b16 %v310
  %v326 = vpack.c.b16 %v323, %v322
  %v327 = vpack.c.b16 %v325, %v324
  %v331 = vsel %vm43, %v299, 0
  %v334 = vsel %vm43, %v300, 0
  %v337 = vsel %vm43, %v301, 0
  %v340 = vsel %vm43, %v302, 0
  %v343 = vsel %vm43, %v303, 0
  %v346 = vsel %vm43, %v304, 0
  %v349 = vsel %vm43, %v305, 0
  %v352 = vsel %vm43, %v306, 0
  %354 = vmatprep.subr.bf16.mxu0 0
  %355 = vmatpush1.bf16.msra.mxu0 %v326
  %356 = vmatprep.subr.bf16.mxu0 0
  %357 = vmatpush1.bf16.msra.mxu0 %v327
  %358 = vmatprep.subr.bf16.mxu0 0
  %359 = vmatpush1.bf16.msra.mxu0 0
  %360 = vmatprep.subr.bf16.mxu0 0
  %361 = vmatpush1.bf16.msra.mxu0 0
  %362 = vmatprep.subr.bf16.mxu0 0
  %363 = vmatpush1.bf16.msra.mxu0 0
  %364 = vmatprep.subr.bf16.mxu0 0
  %365 = vmatpush1.bf16.msra.mxu0 0
  %366 = vmatprep.subr.bf16.mxu0 0
  %367 = vmatpush1.bf16.msra.mxu0 0
  %368 = vmatprep.subr.bf16.mxu0 0
  %369 = vmatpush1.bf16.msra.mxu0 0
  %370 = vmatprep.subr.bf16.mxu0 0
  %371 = vmatpush1.bf16.msra.mxu0 0
  %372 = vmatprep.subr.bf16.mxu0 0
  %373 = vmatpush1.bf16.msra.mxu0 0
  %374 = vmatprep.subr.bf16.mxu0 0
  %375 = vmatpush1.bf16.msra.mxu0 0
  %376 = vmatprep.subr.bf16.mxu0 0
  %377 = vmatpush1.bf16.msra.mxu0 0
  %378 = vmatprep.subr.bf16.mxu0 0
  %379 = vmatpush1.bf16.msra.mxu0 0
  %380 = vmatprep.subr.bf16.mxu0 0
  %381 = vmatpush1.bf16.msra.mxu0 0
  %382 = vmatprep.subr.bf16.mxu0 0
  %383 = vmatpush1.bf16.msra.mxu0 0
  %384 = vmatprep.subr.bf16.mxu0 0
  %385 = vmatpush1.bf16.msra.mxu0 0
  %386 = vmatprep.mubr.bf16.mxu0 0
  %387 = vmatmul.mubr.bf16.gmra.mrb[0].mxu0 %v331
  %v388 = vpop.f32.mrb[0].mxu0
  %v389 = vadd.f32 %v316, %v388
  %v390 = vpop.f32.mrb[0].mxu0
  %v391 = vpop.f32.mrb[0].mxu0
  %v392 = vadd.f32 %v316, %v391
  %v393 = vpop.f32.mrb[0].mxu0
  %394 = vmatprep.mubr.bf16.mxu0 0
  %395 = vmatmul.mubr.bf16.gmra.mrb[0].mxu0 %v334
  %v396 = vpop.f32.mrb[0].mxu0
  %v397 = vadd.f32 %v316, %v396
  %v398 = vpop.f32.mrb[0].mxu0
  %v399 = vpop.f32.mrb[0].mxu0
  %v400 = vadd.f32 %v316, %v399
  %v401 = vpop.f32.mrb[0].mxu0
  %402 = vmatprep.mubr.bf16.mxu0 0
  %403 = vmatmul.mubr.bf16.gmra.mrb[0].mxu0 %v337
  %v404 = vpop.f32.mrb[0].mxu0
  %v405 = vadd.f32 %v316, %v404
  %v406 = vpop.f32.mrb[0].mxu0
  %v407 = vpop.f32.mrb[0].mxu0
  %v408 = vadd.f32 %v316, %v407
  %v409 = vpop.f32.mrb[0].mxu0
  %410 = vmatprep.mubr.bf16.mxu0 0
  %411 = vmatmul.mubr.bf16.gmra.mrb[0].mxu0 %v340
  %v412 = vpop.f32.mrb[0].mxu0
  %v413 = vadd.f32 %v316, %v412
  %v414 = vpop.f32.mrb[0].mxu0
  %v415 = vpop.f32.mrb[0].mxu0
  %v416 = vadd.f32 %v316, %v415
  %v417 = vpop.f32.mrb[0].mxu0
  %418 = vmatprep.mubr.bf16.mxu0 0
  %419 = vmatmul.mubr.bf16.gmra.mrb[0].mxu0 %v343
  %v420 = vpop.f32.mrb[0].mxu0
  %v421 = vadd.f32 %v316, %v420
  %v422 = vpop.f32.mrb[0].mxu0
  %v423 = vpop.f32.mrb[0].mxu0
  %v424 = vadd.f32 %v316, %v423
  %v425 = vpop.f32.mrb[0].mxu0
  %426 = vmatprep.mubr.bf16.mxu0 0
  %427 = vmatmul.mubr.bf16.gmra.mrb[0].mxu0 %v346
  %v428 = vpop.f32.mrb[0].mxu0
  %v429 = vadd.f32 %v316, %v428
  %v430 = vpop.f32.mrb[0].mxu0
  %v431 = vpop.f32.mrb[0].mxu0
  %v432 = vadd.f32 %v316, %v431
  %v433 = vpop.f32.mrb[0].mxu0
  %434 = vmatprep.mubr.bf16.mxu0 0
  %435 = vmatmul.mubr.bf16.gmra.mrb[0].mxu0 %v349
  %v436 = vpop.f32.mrb[0].mxu0
  %v437 = vadd.f32 %v316, %v436
  %v438 = vpop.f32.mrb[0].mxu0
  %v439 = vpop.f32.mrb[0].mxu0
  %v440 = vadd.f32 %v316, %v439
  %v441 = vpop.f32.mrb[0].mxu0
  %442 = vmatprep.mubr.bf16.mxu0 0
  %443 = vmatmul.mubr.bf16.gmra.mrb[0].mxu0 %v352
  %v444 = vpop.f32.mrb[0].mxu0
  %v445 = vadd.f32 %v316, %v444
  %v446 = vpop.f32.mrb[0].mxu0
  %v447 = vpop.f32.mrb[0].mxu0
  %v448 = vadd.f32 %v316, %v447
  %v449 = vpop.f32.mrb[0].mxu0
  %450 = vdwg.mxu0
  %v451 = vmul.f32 %v389, %v389
  %v452 = vmul.f32 %v392, %v392
  %v453 = vmul.f32 %v397, %v397
  %v454 = vmul.f32 %v400, %v400
  %v455 = vmul.f32 %v405, %v405
  %v456 = vmul.f32 %v408, %v408
  %v457 = vmul.f32 %v413, %v413
  %v458 = vmul.f32 %v416, %v416
  %v459 = vmul.f32 %v421, %v421
  %v460 = vmul.f32 %v424, %v424
  %v461 = vmul.f32 %v429, %v429
  %v462 = vmul.f32 %v432, %v432
  %v463 = vmul.f32 %v437, %v437
  %v464 = vmul.f32 %v440, %v440
  %v465 = vmul.f32 %v445, %v445
  %v466 = vmul.f32 %v448, %v448
  %v467 = vmul.f32 %v389, %v451
  %v468 = vmul.f32 %v392, %v452
  %v469 = vmul.f32 %v397, %v453
  %v470 = vmul.f32 %v400, %v454
  %v471 = vmul.f32 %v405, %v455
  %v472 = vmul.f32 %v408, %v456
  %v473 = vmul.f32 %v413, %v457
  %v474 = vmul.f32 %v416, %v458
  %v475 = vmul.f32 %v421, %v459
  %v476 = vmul.f32 %v424, %v460
  %v477 = vmul.f32 %v429, %v461
  %v478 = vmul.f32 %v432, %v462
  %v479 = vmul.f32 %v437, %v463
  %v480 = vmul.f32 %v440, %v464
  %v481 = vmul.f32 %v445, %v465
  %v482 = vmul.f32 %v448, %v466
  %v483 = vmul.f32 %v467, 0.044715
  %v484 = vmul.f32 %v468, 0.044715
  %v485 = vmul.f32 %v469, 0.044715
  %v486 = vmul.f32 %v470, 0.044715
  %v487 = vmul.f32 %v471, 0.044715
  %v488 = vmul.f32 %v472, 0.044715
  %v489 = vmul.f32 %v473, 0.044715
  %v490 = vmul.f32 %v474, 0.044715
  %v491 = vmul.f32 %v475, 0.044715
  %v492 = vmul.f32 %v476, 0.044715
  %v493 = vmul.f32 %v477, 0.044715
  %v494 = vmul.f32 %v478, 0.044715
  %v495 = vmul.f32 %v479, 0.044715
  %v496 = vmul.f32 %v480, 0.044715
  %v497 = vmul.f32 %v481, 0.044715
  %v498 = vmul.f32 %v482, 0.044715
  %v499 = vadd.f32 %v389, %v483
  %v500 = vadd.f32 %v392, %v484
  %v501 = vadd.f32 %v397, %v485
  %v502 = vadd.f32 %v400, %v486
  %v503 = vadd.f32 %v405, %v487
  %v504 = vadd.f32 %v408, %v488
  %v505 = vadd.f32 %v413, %v489
  %v506 = vadd.f32 %v416, %v490
  %v507 = vadd.f32 %v421, %v491
  %v508 = vadd.f32 %v424, %v492
  %v509 = vadd.f32 %v429, %v493
  %v510 = vadd.f32 %v432, %v494
  %v511 = vadd.f32 %v437, %v495
  %v512 = vadd.f32 %v440, %v496
  %v513 = vadd.f32 %v445, %v497
  %v514 = vadd.f32 %v448, %v498
  %v515 = vmul.f32 %v499, 0.7978846
  %v516 = vmul.f32 %v500, 0.7978846
  %v517 = vmul.f32 %v501, 0.7978846
  %v518 = vmul.f32 %v502, 0.7978846
  %v519 = vmul.f32 %v503, 0.7978846
  %v520 = vmul.f32 %v504, 0.7978846
  %v521 = vmul.f32 %v505, 0.7978846
  %v522 = vmul.f32 %v506, 0.7978846
  %v523 = vmul.f32 %v507, 0.7978846
  %v524 = vmul.f32 %v508, 0.7978846
  %v525 = vmul.f32 %v509, 0.7978846
  %v526 = vmul.f32 %v510, 0.7978846
  %v527 = vmul.f32 %v511, 0.7978846
  %v528 = vmul.f32 %v512, 0.7978846
  %v529 = vmul.f32 %v513, 0.7978846
  %v530 = vmul.f32 %v514, 0.7978846
  %v531 = vtanh.pop %v515
  %v532 = vtanh.pop %v516
  %v533 = vtanh.pop %v517
  %v534 = vtanh.pop %v518
  %v535 = vtanh.pop %v519
  %v536 = vtanh.pop %v520
  %v537 = vtanh.pop %v521
  %v538 = vtanh.pop %v522
  %v539 = vtanh.pop %v523
  %v540 = vtanh.pop %v524
  %v541 = vtanh.pop %v525
  %v542 = vtanh.pop %v526
  %v543 = vtanh.pop %v527
  %v544 = vtanh.pop %v528
  %v545 = vtanh.pop %v529
  %v546 = vtanh.pop %v530
  %v547 = vadd.f32 %v531, 1.0
  %v548 = vadd.f32 %v532, 1.0
  %v549 = vadd.f32 %v533, 1.0
  %v550 = vadd.f32 %v534, 1.0
  %v551 = vadd.f32 %v535, 1.0
  %v552 = vadd.f32 %v536, 1.0
  %v553 = vadd.f32 %v537, 1.0
  %v554 = vadd.f32 %v538, 1.0
  %v555 = vadd.f32 %v539, 1.0
  %v556 = vadd.f32 %v540, 1.0
  %v557 = vadd.f32 %v541, 1.0
  %v558 = vadd.f32 %v542, 1.0
  %v559 = vadd.f32 %v543, 1.0
  %v560 = vadd.f32 %v544, 1.0
  %v561 = vadd.f32 %v545, 1.0
  %v562 = vadd.f32 %v546, 1.0
  %v563 = vmul.f32 %v547, 0.5
  %v564 = vmul.f32 %v548, 0.5
  %v565 = vmul.f32 %v549, 0.5
  %v566 = vmul.f32 %v550, 0.5
  %v567 = vmul.f32 %v551, 0.5
  %v568 = vmul.f32 %v552, 0.5
  %v569 = vmul.f32 %v553, 0.5
  %v570 = vmul.f32 %v554, 0.5
  %v571 = vmul.f32 %v555, 0.5
  %v572 = vmul.f32 %v556, 0.5
  %v573 = vmul.f32 %v557, 0.5
  %v574 = vmul.f32 %v558, 0.5
  %v575 = vmul.f32 %v559, 0.5
  %v576 = vmul.f32 %v560, 0.5
  %v577 = vmul.f32 %v561, 0.5
  %v578 = vmul.f32 %v562, 0.5
  %v579 = vmul.f32 %v389, %v563
  %v580 = vmul.f32 %v392, %v564
  %v581 = vmul.f32 %v397, %v565
  %v582 = vmul.f32 %v400, %v566
  %v583 = vmul.f32 %v405, %v567
  %v584 = vmul.f32 %v408, %v568
  %v585 = vmul.f32 %v413, %v569
  %v586 = vmul.f32 %v416, %v570
  %v587 = vmul.f32 %v421, %v571
  %v588 = vmul.f32 %v424, %v572
  %v589 = vmul.f32 %v429, %v573
  %v590 = vmul.f32 %v432, %v574
  %v591 = vmul.f32 %v437, %v575
  %v592 = vmul.f32 %v440, %v576
  %v593 = vmul.f32 %v445, %v577
  %v594 = vmul.f32 %v448, %v578
  %v595 = vpack.c.bf16 %v580, %v579
  %v596 = vpack.c.bf16 %v582, %v581
  %v597 = vpack.c.bf16 %v584, %v583
  %v598 = vpack.c.bf16 %v586, %v585
  %v599 = vpack.c.bf16 %v588, %v587
  %v600 = vpack.c.bf16 %v590, %v589
  %v601 = vpack.c.bf16 %v592, %v591
  %v602 = vpack.c.bf16 %v594, %v593
  %v603 = vld [vmem:[%s5] sm:$0xf]
  %v604 = vld [vmem:[%s5 + $0x4] sm:$0xf]
  %v605 = vld [vmem:[%s5 + $0x8] sm:$0xf]
  %v606 = vld [vmem:[%s5 + $0xc] sm:$0xf]
  %v607 = vld [vmem:[%s5 + $0x10] sm:$0xf]
  %v608 = vld [vmem:[%s5 + $0x14] sm:$0xf]
  %v609 = vld [vmem:[%s5 + $0x18] sm:$0xf]
  %v610 = vld [vmem:[%s5 + $0x1c] sm:$0xf]
  %v611 = vld [vmem:[%s6] sm:$0x1]
  %v613 = vlaneseq
  %v614 = vshrl.u32 %v613, 7
  %v615 = vsub.s32 0, %v614
  %v616 = vrot.slane %v611, %v615
  %v626 = vunpack.c.l.b16 %v603
  %v627 = vunpack.c.l.b16 %v604
  %v628 = vunpack.c.l.b16 %v605
  %v629 = vunpack.c.l.b16 %v606
  %v630 = vunpack.c.l.b16 %v607
  %v631 = vunpack.c.l.b16 %v608
  %v632 = vunpack.c.l.b16 %v609
  %v633 = vunpack.c.l.b16 %v610
  %v634 = vpack.c.b16 %v627, %v626
  %v635 = vpack.c.b16 %v629, %v628
  %v636 = vpack.c.b16 %v631, %v630
  %v637 = vpack.c.b16 %v633, %v632
  %vm642 = vcmask 523264
  %v644 = vsel %vm642, %v595, 0
  %v647 = vsel %vm642, %v596, 0
  %v650 = vsel %vm642, %v597, 0
  %v653 = vsel %vm642, %v598, 0
  %v656 = vsel %vm642, %v599, 0
  %v659 = vsel %vm642, %v600, 0
  %v662 = vsel %vm642, %v601, 0
  %v665 = vsel %vm642, %v602, 0
  %667 = vmatprep.subr.bf16.mxu0 0
  %668 = vmatpush1.bf16.msra.mxu0 %v634
  %669 = vmatprep.subr.bf16.mxu0 0
  %670 = vmatpush1.bf16.msra.mxu0 %v635
  %671 = vmatprep.subr.bf16.mxu0 0
  %672 = vmatpush1.bf16.msra.mxu0 %v636
  %673 = vmatprep.subr.bf16.mxu0 0
  %674 = vmatpush1.bf16.msra.mxu0 %v637
  %675 = vmatprep.subr.bf16.mxu0 0
  %676 = vmatpush1.bf16.msra.mxu0 0
  %677 = vmatprep.subr.bf16.mxu0 0
  %678 = vmatpush1.bf16.msra.mxu0 0
  %679 = vmatprep.subr.bf16.mxu0 0
  %680 = vmatpush1.bf16.msra.mxu0 0
  %681 = vmatprep.subr.bf16.mxu0 0
  %682 = vmatpush1.bf16.msra.mxu0 0
  %683 = vmatprep.subr.bf16.mxu0 0
  %684 = vmatpush1.bf16.msra.mxu0 0
  %685 = vmatprep.subr.bf16.mxu0 0
  %686 = vmatpush1.bf16.msra.mxu0 0
  %687 = vmatprep.subr.bf16.mxu0 0
  %688 = vmatpush1.bf16.msra.mxu0 0
  %689 = vmatprep.subr.bf16.mxu0 0
  %690 = vmatpush1.bf16.msra.mxu0 0
  %691 = vmatprep.subr.bf16.mxu0 0
  %692 = vmatpush1.bf16.msra.mxu0 0
  %693 = vmatprep.subr.bf16.mxu0 0
  %694 = vmatpush1.bf16.msra.mxu0 0
  %695 = vmatprep.subr.bf16.mxu0 0
  %696 = vmatpush1.bf16.msra.mxu0 0
  %697 = vmatprep.subr.bf16.mxu0 0
  %698 = vmatpush1.bf16.msra.mxu0 0
  %699 = vmatprep.mubr.bf16.mxu0 0
  %700 = vmatmul.mubr.bf16.gmra.mrb[0].mxu0 %v644
  %v701 = vpop.f32.mrb[0].mxu0
  %v702 = vadd.f32 %v616, %v701
  %v703 = vpop.f32.mrb[0].mxu0
  %v704 = vpop.f32.mrb[0].mxu0
  %v705 = vadd.f32 %v616, %v704
  %v706 = vpop.f32.mrb[0].mxu0
  %707 = vmatprep.mubr.bf16.mxu0 0
  %708 = vmatmul.mubr.bf16.gmra.mrb[0].mxu0 %v647
  %v709 = vpop.f32.mrb[0].mxu0
  %v710 = vadd.f32 %v616, %v709
  %v711 = vpop.f32.mrb[0].mxu0
  %v712 = vpop.f32.mrb[0].mxu0
  %v713 = vadd.f32 %v616, %v712
  %v714 = vpop.f32.mrb[0].mxu0
  %715 = vmatprep.mubr.bf16.mxu0 0
  %716 = vmatmul.mubr.bf16.gmra.mrb[0].mxu0 %v650
  %v717 = vpop.f32.mrb[0].mxu0
  %v718 = vadd.f32 %v616, %v717
  %v719 = vpop.f32.mrb[0].mxu0
  %v720 = vpop.f32.mrb[0].mxu0
  %v721 = vadd.f32 %v616, %v720
  %v722 = vpop.f32.mrb[0].mxu0
  %723 = vmatprep.mubr.bf16.mxu0 0
  %724 = vmatmul.mubr.bf16.gmra.mrb[0].mxu0 %v653
  %v725 = vpop.f32.mrb[0].mxu0
  %v726 = vadd.f32 %v616, %v725
  %v727 = vpop.f32.mrb[0].mxu0
  %v728 = vpop.f32.mrb[0].mxu0
  %v729 = vadd.f32 %v616, %v728
  %v730 = vpop.f32.mrb[0].mxu0
  %731 = vmatprep.mubr.bf16.mxu0 0
  %732 = vmatmul.mubr.bf16.gmra.mrb[0].mxu0 %v656
  %v733 = vpop.f32.mrb[0].mxu0
  %v734 = vadd.f32 %v616, %v733
  %v735 = vpop.f32.mrb[0].mxu0
  %v736 = vpop.f32.mrb[0].mxu0
  %v737 = vadd.f32 %v616, %v736
  %v738 = vpop.f32.mrb[0].mxu0
  %739 = vmatprep.mubr.bf16.mxu0 0
  %740 = vmatmul.mubr.bf16.gmra.mrb[0].mxu0 %v659
  %v741 = vpop.f32.mrb[0].mxu0
  %v742 = vadd.f32 %v616, %v741
  %v743 = vpop.f32.mrb[0].mxu0
  %v744 = vpop.f32.mrb[0].mxu0
  %v745 = vadd.f32 %v616, %v744
  %v746 = vpop.f32.mrb[0].mxu0
  %747 = vmatprep.mubr.bf16.mxu0 0
  %748 = vmatmul.mubr.bf16.gmra.mrb[0].mxu0 %v662
  %v749 = vpop.f32.mrb[0].mxu0
  %v750 = vadd.f32 %v616, %v749
  %v751 = vpop.f32.mrb[0].mxu0
  %v752 = vpop.f32.mrb[0].mxu0
  %v753 = vadd.f32 %v616, %v752
  %v754 = vpop.f32.mrb[0].mxu0
  %755 = vmatprep.mubr.bf16.mxu0 0
  %756 = vmatmul.mubr.bf16.gmra.mrb[0].mxu0 %v665
  %v757 = vpop.f32.mrb[0].mxu0
  %v758 = vadd.f32 %v616, %v757
  %v759 = vpop.f32.mrb[0].mxu0
  %v760 = vpop.f32.mrb[0].mxu0
  %v761 = vadd.f32 %v616, %v760
  %v762 = vpop.f32.mrb[0].mxu0
  %763 = vdwg.mxu0
  %v764 = vadd.f32 %v27, %v702
  %v765 = vadd.f32 %v28, %v705
  %v766 = vadd.f32 %v29, %v710
  %v767 = vadd.f32 %v30, %v713
  %v768 = vadd.f32 %v31, %v718
  %v769 = vadd.f32 %v32, %v721
  %v770 = vadd.f32 %v33, %v726
  %v771 = vadd.f32 %v34, %v729
  %v772 = vadd.f32 %v35, %v734
  %v773 = vadd.f32 %v36, %v737
  %v774 = vadd.f32 %v37, %v742
  %v775 = vadd.f32 %v38, %v745
  %v776 = vadd.f32 %v39, %v750
  %v777 = vadd.f32 %v40, %v753
  %v778 = vadd.f32 %v41, %v758
  %v779 = vadd.f32 %v42, %v761
  %780 = vst.msk [vmem:[%s7] sm:$0xff] %vm43, %v764
  %781 = vst.msk [vmem:[%s7 + $0x8] sm:$0xff] %vm43, %v765
  %782 = vst.msk [vmem:[%s7 + $0x10] sm:$0xff] %vm43, %v766
  %783 = vst.msk [vmem:[%s7 + $0x18] sm:$0xff] %vm43, %v767
  %784 = vst.msk [vmem:[%s7 + $0x20] sm:$0xff] %vm43, %v768
  %785 = vst.msk [vmem:[%s7 + $0x28] sm:$0xff] %vm43, %v769
  %786 = vst.msk [vmem:[%s7 + $0x30] sm:$0xff] %vm43, %v770
  %787 = vst.msk [vmem:[%s7 + $0x38] sm:$0xff] %vm43, %v771
  %788 = vst.msk [vmem:[%s7 + $0x40] sm:$0xff] %vm43, %v772
  %789 = vst.msk [vmem:[%s7 + $0x48] sm:$0xff] %vm43, %v773
  %790 = vst.msk [vmem:[%s7 + $0x50] sm:$0xff] %vm43, %v774
  %791 = vst.msk [vmem:[%s7 + $0x58] sm:$0xff] %vm43, %v775
  %792 = vst.msk [vmem:[%s7 + $0x60] sm:$0xff] %vm43, %v776
  %793 = vst.msk [vmem:[%s7 + $0x68] sm:$0xff] %vm43, %v777
  %794 = vst.msk [vmem:[%s7 + $0x70] sm:$0xff] %vm43, %v778
  %795 = vst.msk [vmem:[%s7 + $0x78] sm:$0xff] %vm43, %v779
  // Predicated region
  $region30: #{cvt_stage_forward.12} parent=0 // pred_check
    _
  $region31: #{cvt_stage_forward.12} parent=0 // pred_check_branch
    %797 = sbr.rel (0) target = $region33
  $region32: #{cvt_stage_forward.12} parent=0 // pred_region
    _
  $region33: #{cvt_stage_forward.12} parent=0 // pred_fallthru
    _
  // Predicated region
  $region34: #{cvt_stage_forward.12} parent=0 // pred_check
    _
  $region35: #{cvt_stage_forward.12} parent=0 // pred_check_branch
    %799 = sbr.rel (0) target = $region37
  $region36: #{cvt_stage_forward.12} parent=0 // pred_region
    _
  $region37: #{cvt_stage_forward.12} parent=0 // pred_fallthru
    _

// kernel: cvt_stage_forward.15
$region0: #{cvt_stage_forward.15}
  #allocation0 [shape = 'u32[]', space=smem, size = 0x4, offset = 0x4, fixed_abs, tag = 'smem constant byte address 0x4 - core index']
  #allocation1 [shape = 'u32[144,128]{1,0:T(1,128)}', space=vmem, size = 0x12000, scoped, tag = 'internal scratch']
  %s0 = inlined_call_operand.vmem [shape: f32[128,32], index: 0, kind: input, shape index: {}]
  %s1 = inlined_call_operand.vmem [shape: f32[1,32], index: 1, kind: input, shape index: {}]
  %s2 = inlined_call_operand.vmem [shape: f32[1,32], index: 2, kind: input, shape index: {}]
  %s3 = inlined_call_operand.vmem [shape: bf16[32,64], index: 3, kind: input, shape index: {}]
  %s4 = inlined_call_operand.vmem [shape: f32[1,64], index: 4, kind: input, shape index: {}]
  %s5 = inlined_call_operand.vmem [shape: bf16[64,32], index: 5, kind: input, shape index: {}]
  %s6 = inlined_call_operand.vmem [shape: f32[1,32], index: 6, kind: input, shape index: {}]
  %s7 = inlined_call_operand.hbm [shape: f32[128,32], index: 7, kind: output, shape index: {}]
  %s8 = sld [smem:[#allocation0]]
  $region38: #{cvt_stage_forward.15} parent=0
    _
  %s10 = ssub.s32 1, %s8
  %s11 = scalar_select 0, %s10, %s8
  $region1: #{cvt_stage_forward.15} parent=0
    #allocation2 [shape = 'u8[65536]{0}', space=vmem, size = 0x10000, scoped, tag = 'output window, operand 0, single buffered']
    #allocation3 [shape = 's32[1]{0}', space=sflag, size = 0x4, scoped, tag = 'scoped memory for cvt_stage_forward.15']
    %12 = vsyncpa [#allocation3], 0
    // Predicated region
    $region2: #{cvt_stage_forward.15} parent=1 // pred_check
      _
    $region3: #{cvt_stage_forward.15} parent=1 // pred_check_branch
      %14 = sbr.rel (0) target = $region5
    $region4: #{cvt_stage_forward.15} parent=1 // pred_region
      _
    $region5: #{cvt_stage_forward.15} parent=1 // pred_fallthru
      _
    // Predicated region
    $region6: #{cvt_stage_forward.15} parent=1 // pred_check
      _
    $region7: #{cvt_stage_forward.15} parent=1 // pred_check_branch
      %16 = sbr.rel (0) target = $region9
    $region8: #{cvt_stage_forward.15} parent=1 // pred_region
      _
    $region9: #{cvt_stage_forward.15} parent=1 // pred_fallthru
      _
    // Predicated region
    $region10: #{cvt_stage_forward.15} parent=1 // pred_check
      _
    $region11: #{cvt_stage_forward.15} parent=1 // pred_check_branch
      %18 = sbr.rel (0) target = $region13
    $region12: #{cvt_stage_forward.15} parent=1 // pred_region
      _
    $region13: #{cvt_stage_forward.15} parent=1 // pred_fallthru
      _
    // Predicated region
    $region14: #{cvt_stage_forward.15} parent=1 // pred_check
      _
    $region15: #{cvt_stage_forward.15} parent=1 // pred_check_branch
      %20 = sbr.rel (0) target = $region17
    $region16: #{cvt_stage_forward.15} parent=1 // pred_region
      _
    $region17: #{cvt_stage_forward.15} parent=1 // pred_fallthru
      _
    // Predicated region
    $region18: #{cvt_stage_forward.15} parent=1 // pred_check
      _
    $region19: #{cvt_stage_forward.15} parent=1 // pred_check_branch
      %22 = sbr.rel (0) target = $region21
    $region20: #{cvt_stage_forward.15} parent=1 // pred_region
      _
    $region21: #{cvt_stage_forward.15} parent=1 // pred_fallthru
      _
    // Predicated region
    $region22: #{cvt_stage_forward.15} parent=1 // pred_check
      _
    $region23: #{cvt_stage_forward.15} parent=1 // pred_check_branch
      %24 = sbr.rel (0) target = $region25
    $region24: #{cvt_stage_forward.15} parent=1 // pred_region
      _
    $region25: #{cvt_stage_forward.15} parent=1 // pred_fallthru
      _
    // Predicated region
    $region26: #{cvt_stage_forward.15} parent=1 // pred_check
      _
    $region27: #{cvt_stage_forward.15} parent=1 // pred_check_branch
      %26 = sbr.rel (0) target = $region29
    $region28: #{cvt_stage_forward.15} parent=1 // pred_region
      _
    $region29: #{cvt_stage_forward.15} parent=1 // pred_fallthru
      _
    %v28 = vld [vmem:[%s0] sm:$0xff]
    %v29 = vld [vmem:[%s0 + $0x8] sm:$0xff]
    %v30 = vld [vmem:[%s0 + $0x10] sm:$0xff]
    %v31 = vld [vmem:[%s0 + $0x18] sm:$0xff]
    %v32 = vld [vmem:[%s0 + $0x20] sm:$0xff]
    %v33 = vld [vmem:[%s0 + $0x28] sm:$0xff]
    %v34 = vld [vmem:[%s0 + $0x30] sm:$0xff]
    %v35 = vld [vmem:[%s0 + $0x38] sm:$0xff]
    %v36 = vld [vmem:[%s0 + $0x40] sm:$0xff]
    %v37 = vld [vmem:[%s0 + $0x48] sm:$0xff]
    %v38 = vld [vmem:[%s0 + $0x50] sm:$0xff]
    %v39 = vld [vmem:[%s0 + $0x58] sm:$0xff]
    %v40 = vld [vmem:[%s0 + $0x60] sm:$0xff]
    %v41 = vld [vmem:[%s0 + $0x68] sm:$0xff]
    %v42 = vld [vmem:[%s0 + $0x70] sm:$0xff]
    %v43 = vld [vmem:[%s0 + $0x78] sm:$0xff]
    %vm44 = vcmask 261120
    %v45 = vsel %vm44, %v28, 0.0
    %46 = vadd.xlane.f32.xlu0 %v45
    %v47 = vpop.xlane.xlu0 %46
    %v48 = vsel %vm44, %v29, 0.0
    %49 = vadd.xlane.f32.xlu0 %v48
    %v50 = vpop.xlane.xlu0 %49
    %v51 = vsel %vm44, %v30, 0.0
    %52 = vadd.xlane.f32.xlu0 %v51
    %v53 = vpop.xlane.xlu0 %52
    %v54 = vsel %vm44, %v31, 0.0
    %55 = vadd.xlane.f32.xlu0 %v54
    %v56 = vpop.xlane.xlu0 %55
    %v57 = vsel %vm44, %v32, 0.0
    %58 = vadd.xlane.f32.xlu0 %v57
    %v59 = vpop.xlane.xlu0 %58
    %v60 = vsel %vm44, %v33, 0.0
    %61 = vadd.xlane.f32.xlu0 %v60
    %v62 = vpop.xlane.xlu0 %61
    %v63 = vsel %vm44, %v34, 0.0
    %64 = vadd.xlane.f32.xlu0 %v63
    %v65 = vpop.xlane.xlu0 %64
    %v66 = vsel %vm44, %v35, 0.0
    %67 = vadd.xlane.f32.xlu0 %v66
    %v68 = vpop.xlane.xlu0 %67
    %v69 = vsel %vm44, %v36, 0.0
    %70 = vadd.xlane.f32.xlu0 %v69
    %v71 = vpop.xlane.xlu0 %70
    %v72 = vsel %vm44, %v37, 0.0
    %73 = vadd.xlane.f32.xlu0 %v72
    %v74 = vpop.xlane.xlu0 %73
    %v75 = vsel %vm44, %v38, 0.0
    %76 = vadd.xlane.f32.xlu0 %v75
    %v77 = vpop.xlane.xlu0 %76
    %v78 = vsel %vm44, %v39, 0.0
    %79 = vadd.xlane.f32.xlu0 %v78
    %v80 = vpop.xlane.xlu0 %79
    %v81 = vsel %vm44, %v40, 0.0
    %82 = vadd.xlane.f32.xlu0 %v81
    %v83 = vpop.xlane.xlu0 %82
    %v84 = vsel %vm44, %v41, 0.0
    %85 = vadd.xlane.f32.xlu0 %v84
    %v86 = vpop.xlane.xlu0 %85
    %v87 = vsel %vm44, %v42, 0.0
    %88 = vadd.xlane.f32.xlu0 %v87
    %v89 = vpop.xlane.xlu0 %88
    %v90 = vsel %vm44, %v43, 0.0
    %91 = vadd.xlane.f32.xlu0 %v90
    %v92 = vpop.xlane.xlu0 %91
    %v93 = vrcp.pop 32.0
    %v94 = vmul.f32 %v47, %v93
    %v95 = vmul.f32 %v50, %v93
    %v96 = vmul.f32 %v53, %v93
    %v97 = vmul.f32 %v56, %v93
    %v98 = vmul.f32 %v59, %v93
    %v99 = vmul.f32 %v62, %v93
    %v100 = vmul.f32 %v65, %v93
    %v101 = vmul.f32 %v68, %v93
    %v102 = vmul.f32 %v71, %v93
    %v103 = vmul.f32 %v74, %v93
    %v104 = vmul.f32 %v77, %v93
    %v105 = vmul.f32 %v80, %v93
    %v106 = vmul.f32 %v83, %v93
    %v107 = vmul.f32 %v86, %v93
    %v108 = vmul.f32 %v89, %v93
    %v109 = vmul.f32 %v92, %v93
    %v110 = vsub.f32 %v28, %v94
    %v111 = vsub.f32 %v29, %v95
    %v112 = vsub.f32 %v30, %v96
    %v113 = vsub.f32 %v31, %v97
    %v114 = vsub.f32 %v32, %v98
    %v115 = vsub.f32 %v33, %v99
    %v116 = vsub.f32 %v34, %v100
    %v117 = vsub.f32 %v35, %v101
    %v118 = vsub.f32 %v36, %v102
    %v119 = vsub.f32 %v37, %v103
    %v120 = vsub.f32 %v38, %v104
    %v121 = vsub.f32 %v39, %v105
    %v122 = vsub.f32 %v40, %v106
    %v123 = vsub.f32 %v41, %v107
    %v124 = vsub.f32 %v42, %v108
    %v125 = vsub.f32 %v43, %v109
    %v126 = vmul.f32 %v110, %v110
    %v127 = vmul.f32 %v111, %v111
    %v128 = vmul.f32 %v112, %v112
    %v129 = vmul.f32 %v113, %v113
    %v130 = vmul.f32 %v114, %v114
    %v131 = vmul.f32 %v115, %v115
    %v132 = vmul.f32 %v116, %v116
    %v133 = vmul.f32 %v117, %v117
    %v134 = vmul.f32 %v118, %v118
    %v135 = vmul.f32 %v119, %v119
    %v136 = vmul.f32 %v120, %v120
    %v137 = vmul.f32 %v121, %v121
    %v138 = vmul.f32 %v122, %v122
    %v139 = vmul.f32 %v123, %v123
    %v140 = vmul.f32 %v124, %v124
    %v141 = vmul.f32 %v125, %v125
    %v142 = vsel %vm44, %v126, 0.0
    %143 = vadd.xlane.f32.xlu0 %v142
    %v144 = vpop.xlane.xlu0 %143
    %v145 = vsel %vm44, %v127, 0.0
    %146 = vadd.xlane.f32.xlu0 %v145
    %v147 = vpop.xlane.xlu0 %146
    %v148 = vsel %vm44, %v128, 0.0
    %149 = vadd.xlane.f32.xlu0 %v148
    %v150 = vpop.xlane.xlu0 %149
    %v151 = vsel %vm44, %v129, 0.0
    %152 = vadd.xlane.f32.xlu0 %v151
    %v153 = vpop.xlane.xlu0 %152
    %v154 = vsel %vm44, %v130, 0.0
    %155 = vadd.xlane.f32.xlu0 %v154
    %v156 = vpop.xlane.xlu0 %155
    %v157 = vsel %vm44, %v131, 0.0
    %158 = vadd.xlane.f32.xlu0 %v157
    %v159 = vpop.xlane.xlu0 %158
    %v160 = vsel %vm44, %v132, 0.0
    %161 = vadd.xlane.f32.xlu0 %v160
    %v162 = vpop.xlane.xlu0 %161
    %v163 = vsel %vm44, %v133, 0.0
    %164 = vadd.xlane.f32.xlu0 %v163
    %v165 = vpop.xlane.xlu0 %164
    %v166 = vsel %vm44, %v134, 0.0
    %167 = vadd.xlane.f32.xlu0 %v166
    %v168 = vpop.xlane.xlu0 %167
    %v169 = vsel %vm44, %v135, 0.0
    %170 = vadd.xlane.f32.xlu0 %v169
    %v171 = vpop.xlane.xlu0 %170
    %v172 = vsel %vm44, %v136, 0.0
    %173 = vadd.xlane.f32.xlu0 %v172
    %v174 = vpop.xlane.xlu0 %173
    %v175 = vsel %vm44, %v137, 0.0
    %176 = vadd.xlane.f32.xlu0 %v175
    %v177 = vpop.xlane.xlu0 %176
    %v178 = vsel %vm44, %v138, 0.0
    %179 = vadd.xlane.f32.xlu0 %v178
    %v180 = vpop.xlane.xlu0 %179
    %v181 = vsel %vm44, %v139, 0.0
    %182 = vadd.xlane.f32.xlu0 %v181
    %v183 = vpop.xlane.xlu0 %182
    %v184 = vsel %vm44, %v140, 0.0
    %185 = vadd.xlane.f32.xlu0 %v184
    %v186 = vpop.xlane.xlu0 %185
    %v187 = vsel %vm44, %v141, 0.0
    %188 = vadd.xlane.f32.xlu0 %v187
    %v189 = vpop.xlane.xlu0 %188
    %v190 = vmul.f32 %v144, %v93
    %v191 = vmul.f32 %v147, %v93
    %v192 = vmul.f32 %v150, %v93
    %v193 = vmul.f32 %v153, %v93
    %v194 = vmul.f32 %v156, %v93
    %v195 = vmul.f32 %v159, %v93
    %v196 = vmul.f32 %v162, %v93
    %v197 = vmul.f32 %v165, %v93
    %v198 = vmul.f32 %v168, %v93
    %v199 = vmul.f32 %v171, %v93
    %v200 = vmul.f32 %v174, %v93
    %v201 = vmul.f32 %v177, %v93
    %v202 = vmul.f32 %v180, %v93
    %v203 = vmul.f32 %v183, %v93
    %v204 = vmul.f32 %v186, %v93
    %v205 = vmul.f32 %v189, %v93
    %v206 = vadd.f32 %v190, 1e-05
    %v207 = vadd.f32 %v191, 1e-05
    %v208 = vadd.f32 %v192, 1e-05
    %v209 = vadd.f32 %v193, 1e-05
    %v210 = vadd.f32 %v194, 1e-05
    %v211 = vadd.f32 %v195, 1e-05
    %v212 = vadd.f32 %v196, 1e-05
    %v213 = vadd.f32 %v197, 1e-05
    %v214 = vadd.f32 %v198, 1e-05
    %v215 = vadd.f32 %v199, 1e-05
    %v216 = vadd.f32 %v200, 1e-05
    %v217 = vadd.f32 %v201, 1e-05
    %v218 = vadd.f32 %v202, 1e-05
    %v219 = vadd.f32 %v203, 1e-05
    %v220 = vadd.f32 %v204, 1e-05
    %v221 = vadd.f32 %v205, 1e-05
    %v222 = vrsqrt.pop %v206
    %v223 = vrsqrt.pop %v207
    %v224 = vrsqrt.pop %v208
    %v225 = vrsqrt.pop %v209
    %v226 = vrsqrt.pop %v210
    %v227 = vrsqrt.pop %v211
    %v228 = vrsqrt.pop %v212
    %v229 = vrsqrt.pop %v213
    %v230 = vrsqrt.pop %v214
    %v231 = vrsqrt.pop %v215
    %v232 = vrsqrt.pop %v216
    %v233 = vrsqrt.pop %v217
    %v234 = vrsqrt.pop %v218
    %v235 = vrsqrt.pop %v219
    %v236 = vrsqrt.pop %v220
    %v237 = vrsqrt.pop %v221
    %v238 = vmul.f32 %v110, %v222
    %v239 = vmul.f32 %v111, %v223
    %v240 = vmul.f32 %v112, %v224
    %v241 = vmul.f32 %v113, %v225
    %v242 = vmul.f32 %v114, %v226
    %v243 = vmul.f32 %v115, %v227
    %v244 = vmul.f32 %v116, %v228
    %v245 = vmul.f32 %v117, %v229
    %v246 = vmul.f32 %v118, %v230
    %v247 = vmul.f32 %v119, %v231
    %v248 = vmul.f32 %v120, %v232
    %v249 = vmul.f32 %v121, %v233
    %v250 = vmul.f32 %v122, %v234
    %v251 = vmul.f32 %v123, %v235
    %v252 = vmul.f32 %v124, %v236
    %v253 = vmul.f32 %v125, %v237
    %v254 = vld [vmem:[%s1] sm:$0x1]
    %v256 = vlaneseq
    %v257 = vshrl.u32 %v256, 7
    %v258 = vsub.s32 0, %v257
    %v259 = vrot.slane %v254, %v258
    %v261 = vmul.f32 %v238, %v259
    %v262 = vmul.f32 %v239, %v259
    %v263 = vmul.f32 %v240, %v259
    %v264 = vmul.f32 %v241, %v259
    %v265 = vmul.f32 %v242, %v259
    %v266 = vmul.f32 %v243, %v259
    %v267 = vmul.f32 %v244, %v259
    %v268 = vmul.f32 %v245, %v259
    %v269 = vmul.f32 %v246, %v259
    %v270 = vmul.f32 %v247, %v259
    %v271 = vmul.f32 %v248, %v259
    %v272 = vmul.f32 %v249, %v259
    %v273 = vmul.f32 %v250, %v259
    %v274 = vmul.f32 %v251, %v259
    %v275 = vmul.f32 %v252, %v259
    %v276 = vmul.f32 %v253, %v259
    %v277 = vld [vmem:[%s2] sm:$0x1]
    %v279 = vlaneseq
    %v280 = vshrl.u32 %v279, 7
    %v281 = vsub.s32 0, %v280
    %v282 = vrot.slane %v277, %v281
    %v284 = vadd.f32 %v261, %v282
    %v285 = vadd.f32 %v262, %v282
    %v286 = vadd.f32 %v263, %v282
    %v287 = vadd.f32 %v264, %v282
    %v288 = vadd.f32 %v265, %v282
    %v289 = vadd.f32 %v266, %v282
    %v290 = vadd.f32 %v267, %v282
    %v291 = vadd.f32 %v268, %v282
    %v292 = vadd.f32 %v269, %v282
    %v293 = vadd.f32 %v270, %v282
    %v294 = vadd.f32 %v271, %v282
    %v295 = vadd.f32 %v272, %v282
    %v296 = vadd.f32 %v273, %v282
    %v297 = vadd.f32 %v274, %v282
    %v298 = vadd.f32 %v275, %v282
    %v299 = vadd.f32 %v276, %v282
    %v300 = vpack.c.bf16 %v285, %v284
    %v301 = vpack.c.bf16 %v287, %v286
    %v302 = vpack.c.bf16 %v289, %v288
    %v303 = vpack.c.bf16 %v291, %v290
    %v304 = vpack.c.bf16 %v293, %v292
    %v305 = vpack.c.bf16 %v295, %v294
    %v306 = vpack.c.bf16 %v297, %v296
    %v307 = vpack.c.bf16 %v299, %v298
    %v308 = vld [vmem:[%s3] sm:$0xf]
    %v309 = vld [vmem:[%s3 + $0x4] sm:$0xf]
    %v310 = vld [vmem:[%s3 + $0x8] sm:$0xf]
    %v311 = vld [vmem:[%s3 + $0xc] sm:$0xf]
    %v312 = vld [vmem:[%s4] sm:$0x1]
    %v314 = vlaneseq
    %v315 = vshrl.u32 %v314, 7
    %v316 = vsub.s32 0, %v315
    %v317 = vrot.slane %v312, %v316
    %v323 = vunpack.c.l.b16 %v308
    %v324 = vunpack.c.l.b16 %v309
    %v325 = vunpack.c.l.b16 %v310
    %v326 = vunpack.c.l.b16 %v311
    %v327 = vpack.c.b16 %v324, %v323
    %v328 = vpack.c.b16 %v326, %v325
    %v332 = vsel %vm44, %v300, 0
    %v335 = vsel %vm44, %v301, 0
    %v338 = vsel %vm44, %v302, 0
    %v341 = vsel %vm44, %v303, 0
    %v344 = vsel %vm44, %v304, 0
    %v347 = vsel %vm44, %v305, 0
    %v350 = vsel %vm44, %v306, 0
    %v353 = vsel %vm44, %v307, 0
    %355 = vmatprep.subr.bf16.mxu0 0
    %356 = vmatpush1.bf16.msra.mxu0 %v327
    %357 = vmatprep.subr.bf16.mxu0 0
    %358 = vmatpush1.bf16.msra.mxu0 %v328
    %359 = vmatprep.subr.bf16.mxu0 0
    %360 = vmatpush1.bf16.msra.mxu0 0
    %361 = vmatprep.subr.bf16.mxu0 0
    %362 = vmatpush1.bf16.msra.mxu0 0
    %363 = vmatprep.subr.bf16.mxu0 0
    %364 = vmatpush1.bf16.msra.mxu0 0
    %365 = vmatprep.subr.bf16.mxu0 0
    %366 = vmatpush1.bf16.msra.mxu0 0
    %367 = vmatprep.subr.bf16.mxu0 0
    %368 = vmatpush1.bf16.msra.mxu0 0
    %369 = vmatprep.subr.bf16.mxu0 0
    %370 = vmatpush1.bf16.msra.mxu0 0
    %371 = vmatprep.subr.bf16.mxu0 0
    %372 = vmatpush1.bf16.msra.mxu0 0
    %373 = vmatprep.subr.bf16.mxu0 0
    %374 = vmatpush1.bf16.msra.mxu0 0
    %375 = vmatprep.subr.bf16.mxu0 0
    %376 = vmatpush1.bf16.msra.mxu0 0
    %377 = vmatprep.subr.bf16.mxu0 0
    %378 = vmatpush1.bf16.msra.mxu0 0
    %379 = vmatprep.subr.bf16.mxu0 0
    %380 = vmatpush1.bf16.msra.mxu0 0
    %381 = vmatprep.subr.bf16.mxu0 0
    %382 = vmatpush1.bf16.msra.mxu0 0
    %383 = vmatprep.subr.bf16.mxu0 0
    %384 = vmatpush1.bf16.msra.mxu0 0
    %385 = vmatprep.subr.bf16.mxu0 0
    %386 = vmatpush1.bf16.msra.mxu0 0
    %387 = vmatprep.mubr.bf16.mxu0 0
    %388 = vmatmul.mubr.bf16.gmra.mrb[0].mxu0 %v332
    %v389 = vpop.f32.mrb[0].mxu0
    %v390 = vadd.f32 %v317, %v389
    %v391 = vpop.f32.mrb[0].mxu0
    %v392 = vpop.f32.mrb[0].mxu0
    %v393 = vadd.f32 %v317, %v392
    %v394 = vpop.f32.mrb[0].mxu0
    %395 = vmatprep.mubr.bf16.mxu0 0
    %396 = vmatmul.mubr.bf16.gmra.mrb[0].mxu0 %v335
    %v397 = vpop.f32.mrb[0].mxu0
    %v398 = vadd.f32 %v317, %v397
    %v399 = vpop.f32.mrb[0].mxu0
    %v400 = vpop.f32.mrb[0].mxu0
    %v401 = vadd.f32 %v317, %v400
    %v402 = vpop.f32.mrb[0].mxu0
    %403 = vmatprep.mubr.bf16.mxu0 0
    %404 = vmatmul.mubr.bf16.gmra.mrb[0].mxu0 %v338
    %v405 = vpop.f32.mrb[0].mxu0
    %v406 = vadd.f32 %v317, %v405
    %v407 = vpop.f32.mrb[0].mxu0
    %v408 = vpop.f32.mrb[0].mxu0
    %v409 = vadd.f32 %v317, %v408
    %v410 = vpop.f32.mrb[0].mxu0
    %411 = vmatprep.mubr.bf16.mxu0 0
    %412 = vmatmul.mubr.bf16.gmra.mrb[0].mxu0 %v341
    %v413 = vpop.f32.mrb[0].mxu0
    %v414 = vadd.f32 %v317, %v413
    %v415 = vpop.f32.mrb[0].mxu0
    %v416 = vpop.f32.mrb[0].mxu0
    %v417 = vadd.f32 %v317, %v416
    %v418 = vpop.f32.mrb[0].mxu0
    %419 = vmatprep.mubr.bf16.mxu0 0
    %420 = vmatmul.mubr.bf16.gmra.mrb[0].mxu0 %v344
    %v421 = vpop.f32.mrb[0].mxu0
    %v422 = vadd.f32 %v317, %v421
    %v423 = vpop.f32.mrb[0].mxu0
    %v424 = vpop.f32.mrb[0].mxu0
    %v425 = vadd.f32 %v317, %v424
    %v426 = vpop.f32.mrb[0].mxu0
    %427 = vmatprep.mubr.bf16.mxu0 0
    %428 = vmatmul.mubr.bf16.gmra.mrb[0].mxu0 %v347
    %v429 = vpop.f32.mrb[0].mxu0
    %v430 = vadd.f32 %v317, %v429
    %v431 = vpop.f32.mrb[0].mxu0
    %v432 = vpop.f32.mrb[0].mxu0
    %v433 = vadd.f32 %v317, %v432
    %v434 = vpop.f32.mrb[0].mxu0
    %435 = vmatprep.mubr.bf16.mxu0 0
    %436 = vmatmul.mubr.bf16.gmra.mrb[0].mxu0 %v350
    %v437 = vpop.f32.mrb[0].mxu0
    %v438 = vadd.f32 %v317, %v437
    %v439 = vpop.f32.mrb[0].mxu0
    %v440 = vpop.f32.mrb[0].mxu0
    %v441 = vadd.f32 %v317, %v440
    %v442 = vpop.f32.mrb[0].mxu0
    %443 = vmatprep.mubr.bf16.mxu0 0
    %444 = vmatmul.mubr.bf16.gmra.mrb[0].mxu0 %v353
    %v445 = vpop.f32.mrb[0].mxu0
    %v446 = vadd.f32 %v317, %v445
    %v447 = vpop.f32.mrb[0].mxu0
    %v448 = vpop.f32.mrb[0].mxu0
    %v449 = vadd.f32 %v317, %v448
    %v450 = vpop.f32.mrb[0].mxu0
    %451 = vdwg.mxu0
    %v452 = vmul.f32 %v390, %v390
    %v453 = vmul.f32 %v393, %v393
    %v454 = vmul.f32 %v398, %v398
    %v455 = vmul.f32 %v401, %v401
    %v456 = vmul.f32 %v406, %v406
    %v457 = vmul.f32 %v409, %v409
    %v458 = vmul.f32 %v414, %v414
    %v459 = vmul.f32 %v417, %v417
    %v460 = vmul.f32 %v422, %v422
    %v461 = vmul.f32 %v425, %v425
    %v462 = vmul.f32 %v430, %v430
    %v463 = vmul.f32 %v433, %v433
    %v464 = vmul.f32 %v438, %v438
    %v465 = vmul.f32 %v441, %v441
    %v466 = vmul.f32 %v446, %v446
    %v467 = vmul.f32 %v449, %v449
    %v468 = vmul.f32 %v390, %v452
    %v469 = vmul.f32 %v393, %v453
    %v470 = vmul.f32 %v398, %v454
    %v471 = vmul.f32 %v401, %v455
    %v472 = vmul.f32 %v406, %v456
    %v473 = vmul.f32 %v409, %v457
    %v474 = vmul.f32 %v414, %v458
    %v475 = vmul.f32 %v417, %v459
    %v476 = vmul.f32 %v422, %v460
    %v477 = vmul.f32 %v425, %v461
    %v478 = vmul.f32 %v430, %v462
    %v479 = vmul.f32 %v433, %v463
    %v480 = vmul.f32 %v438, %v464
    %v481 = vmul.f32 %v441, %v465
    %v482 = vmul.f32 %v446, %v466
    %v483 = vmul.f32 %v449, %v467
    %v484 = vmul.f32 %v468, 0.044715
    %v485 = vmul.f32 %v469, 0.044715
    %v486 = vmul.f32 %v470, 0.044715
    %v487 = vmul.f32 %v471, 0.044715
    %v488 = vmul.f32 %v472, 0.044715
    %v489 = vmul.f32 %v473, 0.044715
    %v490 = vmul.f32 %v474, 0.044715
    %v491 = vmul.f32 %v475, 0.044715
    %v492 = vmul.f32 %v476, 0.044715
    %v493 = vmul.f32 %v477, 0.044715
    %v494 = vmul.f32 %v478, 0.044715
    %v495 = vmul.f32 %v479, 0.044715
    %v496 = vmul.f32 %v480, 0.044715
    %v497 = vmul.f32 %v481, 0.044715
    %v498 = vmul.f32 %v482, 0.044715
    %v499 = vmul.f32 %v483, 0.044715
    %v500 = vadd.f32 %v390, %v484
    %v501 = vadd.f32 %v393, %v485
    %v502 = vadd.f32 %v398, %v486
    %v503 = vadd.f32 %v401, %v487
    %v504 = vadd.f32 %v406, %v488
    %v505 = vadd.f32 %v409, %v489
    %v506 = vadd.f32 %v414, %v490
    %v507 = vadd.f32 %v417, %v491
    %v508 = vadd.f32 %v422, %v492
    %v509 = vadd.f32 %v425, %v493
    %v510 = vadd.f32 %v430, %v494
    %v511 = vadd.f32 %v433, %v495
    %v512 = vadd.f32 %v438, %v496
    %v513 = vadd.f32 %v441, %v497
    %v514 = vadd.f32 %v446, %v498
    %v515 = vadd.f32 %v449, %v499
    %v516 = vmul.f32 %v500, 0.7978846
    %v517 = vmul.f32 %v501, 0.7978846
    %v518 = vmul.f32 %v502, 0.7978846
    %v519 = vmul.f32 %v503, 0.7978846
    %v520 = vmul.f32 %v504, 0.7978846
    %v521 = vmul.f32 %v505, 0.7978846
    %v522 = vmul.f32 %v506, 0.7978846
    %v523 = vmul.f32 %v507, 0.7978846
    %v524 = vmul.f32 %v508, 0.7978846
    %v525 = vmul.f32 %v509, 0.7978846
    %v526 = vmul.f32 %v510, 0.7978846
    %v527 = vmul.f32 %v511, 0.7978846
    %v528 = vmul.f32 %v512, 0.7978846
    %v529 = vmul.f32 %v513, 0.7978846
    %v530 = vmul.f32 %v514, 0.7978846
    %v531 = vmul.f32 %v515, 0.7978846
    %v532 = vtanh.pop %v516
    %v533 = vtanh.pop %v517
    %v534 = vtanh.pop %v518
    %v535 = vtanh.pop %v519
    %v536 = vtanh.pop %v520
    %v537 = vtanh.pop %v521
    %v538 = vtanh.pop %v522
    %v539 = vtanh.pop %v523
    %v540 = vtanh.pop %v524
    %v541 = vtanh.pop %v525
    %v542 = vtanh.pop %v526
    %v543 = vtanh.pop %v527
    %v544 = vtanh.pop %v528
    %v545 = vtanh.pop %v529
    %v546 = vtanh.pop %v530
    %v547 = vtanh.pop %v531
    %v548 = vadd.f32 %v532, 1.0
    %v549 = vadd.f32 %v533, 1.0
    %v550 = vadd.f32 %v534, 1.0
    %v551 = vadd.f32 %v535, 1.0
    %v552 = vadd.f32 %v536, 1.0
    %v553 = vadd.f32 %v537, 1.0
    %v554 = vadd.f32 %v538, 1.0
    %v555 = vadd.f32 %v539, 1.0
    %v556 = vadd.f32 %v540, 1.0
    %v557 = vadd.f32 %v541, 1.0
    %v558 = vadd.f32 %v542, 1.0
    %v559 = vadd.f32 %v543, 1.0
    %v560 = vadd.f32 %v544, 1.0
    %v561 = vadd.f32 %v545, 1.0
    %v562 = vadd.f32 %v546, 1.0
    %v563 = vadd.f32 %v547, 1.0
    %v564 = vmul.f32 %v548, 0.5
    %v565 = vmul.f32 %v549, 0.5
    %v566 = vmul.f32 %v550, 0.5
    %v567 = vmul.f32 %v551, 0.5
    %v568 = vmul.f32 %v552, 0.5
    %v569 = vmul.f32 %v553, 0.5
    %v570 = vmul.f32 %v554, 0.5
    %v571 = vmul.f32 %v555, 0.5
    %v572 = vmul.f32 %v556, 0.5
    %v573 = vmul.f32 %v557, 0.5
    %v574 = vmul.f32 %v558, 0.5
    %v575 = vmul.f32 %v559, 0.5
    %v576 = vmul.f32 %v560, 0.5
    %v577 = vmul.f32 %v561, 0.5
    %v578 = vmul.f32 %v562, 0.5
    %v579 = vmul.f32 %v563, 0.5
    %v580 = vmul.f32 %v390, %v564
    %v581 = vmul.f32 %v393, %v565
    %v582 = vmul.f32 %v398, %v566
    %v583 = vmul.f32 %v401, %v567
    %v584 = vmul.f32 %v406, %v568
    %v585 = vmul.f32 %v409, %v569
    %v586 = vmul.f32 %v414, %v570
    %v587 = vmul.f32 %v417, %v571
    %v588 = vmul.f32 %v422, %v572
    %v589 = vmul.f32 %v425, %v573
    %v590 = vmul.f32 %v430, %v574
    %v591 = vmul.f32 %v433, %v575
    %v592 = vmul.f32 %v438, %v576
    %v593 = vmul.f32 %v441, %v577
    %v594 = vmul.f32 %v446, %v578
    %v595 = vmul.f32 %v449, %v579
    %v596 = vpack.c.bf16 %v581, %v580
    %v597 = vpack.c.bf16 %v583, %v582
    %v598 = vpack.c.bf16 %v585, %v584
    %v599 = vpack.c.bf16 %v587, %v586
    %v600 = vpack.c.bf16 %v589, %v588
    %v601 = vpack.c.bf16 %v591, %v590
    %v602 = vpack.c.bf16 %v593, %v592
    %v603 = vpack.c.bf16 %v595, %v594
    %v604 = vld [vmem:[%s5] sm:$0xf]
    %v605 = vld [vmem:[%s5 + $0x4] sm:$0xf]
    %v606 = vld [vmem:[%s5 + $0x8] sm:$0xf]
    %v607 = vld [vmem:[%s5 + $0xc] sm:$0xf]
    %v608 = vld [vmem:[%s5 + $0x10] sm:$0xf]
    %v609 = vld [vmem:[%s5 + $0x14] sm:$0xf]
    %v610 = vld [vmem:[%s5 + $0x18] sm:$0xf]
    %v611 = vld [vmem:[%s5 + $0x1c] sm:$0xf]
    %v612 = vld [vmem:[%s6] sm:$0x1]
    %v614 = vlaneseq
    %v615 = vshrl.u32 %v614, 7
    %v616 = vsub.s32 0, %v615
    %v617 = vrot.slane %v612, %v616
    %v627 = vunpack.c.l.b16 %v604
    %v628 = vunpack.c.l.b16 %v605
    %v629 = vunpack.c.l.b16 %v606
    %v630 = vunpack.c.l.b16 %v607
    %v631 = vunpack.c.l.b16 %v608
    %v632 = vunpack.c.l.b16 %v609
    %v633 = vunpack.c.l.b16 %v610
    %v634 = vunpack.c.l.b16 %v611
    %v635 = vpack.c.b16 %v628, %v627
    %v636 = vpack.c.b16 %v630, %v629
    %v637 = vpack.c.b16 %v632, %v631
    %v638 = vpack.c.b16 %v634, %v633
    %vm643 = vcmask 523264
    %v645 = vsel %vm643, %v596, 0
    %v648 = vsel %vm643, %v597, 0
    %v651 = vsel %vm643, %v598, 0
    %v654 = vsel %vm643, %v599, 0
    %v657 = vsel %vm643, %v600, 0
    %v660 = vsel %vm643, %v601, 0
    %v663 = vsel %vm643, %v602, 0
    %v666 = vsel %vm643, %v603, 0
    %668 = vmatprep.subr.bf16.mxu0 0
    %669 = vmatpush1.bf16.msra.mxu0 %v635
    %670 = vmatprep.subr.bf16.mxu0 0
    %671 = vmatpush1.bf16.msra.mxu0 %v636
    %672 = vmatprep.subr.bf16.mxu0 0
    %673 = vmatpush1.bf16.msra.mxu0 %v637
    %674 = vmatprep.subr.bf16.mxu0 0
    %675 = vmatpush1.bf16.msra.mxu0 %v638
    %676 = vmatprep.subr.bf16.mxu0 0
    %677 = vmatpush1.bf16.msra.mxu0 0
    %678 = vmatprep.subr.bf16.mxu0 0
    %679 = vmatpush1.bf16.msra.mxu0 0
    %680 = vmatprep.subr.bf16.mxu0 0
    %681 = vmatpush1.bf16.msra.mxu0 0
    %682 = vmatprep.subr.bf16.mxu0 0
    %683 = vmatpush1.bf16.msra.mxu0 0
    %684 = vmatprep.subr.bf16.mxu0 0
    %685 = vmatpush1.bf16.msra.mxu0 0
    %686 = vmatprep.subr.bf16.mxu0 0
    %687 = vmatpush1.bf16.msra.mxu0 0
    %688 = vmatprep.subr.bf16.mxu0 0
    %689 = vmatpush1.bf16.msra.mxu0 0
    %690 = vmatprep.subr.bf16.mxu0 0
    %691 = vmatpush1.bf16.msra.mxu0 0
    %692 = vmatprep.subr.bf16.mxu0 0
    %693 = vmatpush1.bf16.msra.mxu0 0
    %694 = vmatprep.subr.bf16.mxu0 0
    %695 = vmatpush1.bf16.msra.mxu0 0
    %696 = vmatprep.subr.bf16.mxu0 0
    %697 = vmatpush1.bf16.msra.mxu0 0
    %698 = vmatprep.subr.bf16.mxu0 0
    %699 = vmatpush1.bf16.msra.mxu0 0
    %700 = vmatprep.mubr.bf16.mxu0 0
    %701 = vmatmul.mubr.bf16.gmra.mrb[0].mxu0 %v645
    %v702 = vpop.f32.mrb[0].mxu0
    %v703 = vadd.f32 %v617, %v702
    %v704 = vpop.f32.mrb[0].mxu0
    %v705 = vpop.f32.mrb[0].mxu0
    %v706 = vadd.f32 %v617, %v705
    %v707 = vpop.f32.mrb[0].mxu0
    %708 = vmatprep.mubr.bf16.mxu0 0
    %709 = vmatmul.mubr.bf16.gmra.mrb[0].mxu0 %v648
    %v710 = vpop.f32.mrb[0].mxu0
    %v711 = vadd.f32 %v617, %v710
    %v712 = vpop.f32.mrb[0].mxu0
    %v713 = vpop.f32.mrb[0].mxu0
    %v714 = vadd.f32 %v617, %v713
    %v715 = vpop.f32.mrb[0].mxu0
    %716 = vmatprep.mubr.bf16.mxu0 0
    %717 = vmatmul.mubr.bf16.gmra.mrb[0].mxu0 %v651
    %v718 = vpop.f32.mrb[0].mxu0
    %v719 = vadd.f32 %v617, %v718
    %v720 = vpop.f32.mrb[0].mxu0
    %v721 = vpop.f32.mrb[0].mxu0
    %v722 = vadd.f32 %v617, %v721
    %v723 = vpop.f32.mrb[0].mxu0
    %724 = vmatprep.mubr.bf16.mxu0 0
    %725 = vmatmul.mubr.bf16.gmra.mrb[0].mxu0 %v654
    %v726 = vpop.f32.mrb[0].mxu0
    %v727 = vadd.f32 %v617, %v726
    %v728 = vpop.f32.mrb[0].mxu0
    %v729 = vpop.f32.mrb[0].mxu0
    %v730 = vadd.f32 %v617, %v729
    %v731 = vpop.f32.mrb[0].mxu0
    %732 = vmatprep.mubr.bf16.mxu0 0
    %733 = vmatmul.mubr.bf16.gmra.mrb[0].mxu0 %v657
    %v734 = vpop.f32.mrb[0].mxu0
    %v735 = vadd.f32 %v617, %v734
    %v736 = vpop.f32.mrb[0].mxu0
    %v737 = vpop.f32.mrb[0].mxu0
    %v738 = vadd.f32 %v617, %v737
    %v739 = vpop.f32.mrb[0].mxu0
    %740 = vmatprep.mubr.bf16.mxu0 0
    %741 = vmatmul.mubr.bf16.gmra.mrb[0].mxu0 %v660
    %v742 = vpop.f32.mrb[0].mxu0
    %v743 = vadd.f32 %v617, %v742
    %v744 = vpop.f32.mrb[0].mxu0
    %v745 = vpop.f32.mrb[0].mxu0
    %v746 = vadd.f32 %v617, %v745
    %v747 = vpop.f32.mrb[0].mxu0
    %748 = vmatprep.mubr.bf16.mxu0 0
    %749 = vmatmul.mubr.bf16.gmra.mrb[0].mxu0 %v663
    %v750 = vpop.f32.mrb[0].mxu0
    %v751 = vadd.f32 %v617, %v750
    %v752 = vpop.f32.mrb[0].mxu0
    %v753 = vpop.f32.mrb[0].mxu0
    %v754 = vadd.f32 %v617, %v753
    %v755 = vpop.f32.mrb[0].mxu0
    %756 = vmatprep.mubr.bf16.mxu0 0
    %757 = vmatmul.mubr.bf16.gmra.mrb[0].mxu0 %v666
    %v758 = vpop.f32.mrb[0].mxu0
    %v759 = vadd.f32 %v617, %v758
    %v760 = vpop.f32.mrb[0].mxu0
    %v761 = vpop.f32.mrb[0].mxu0
    %v762 = vadd.f32 %v617, %v761
    %v763 = vpop.f32.mrb[0].mxu0
    %764 = vdwg.mxu0
    %v765 = vadd.f32 %v28, %v703
    %v766 = vadd.f32 %v29, %v706
    %v767 = vadd.f32 %v30, %v711
    %v768 = vadd.f32 %v31, %v714
    %v769 = vadd.f32 %v32, %v719
    %v770 = vadd.f32 %v33, %v722
    %v771 = vadd.f32 %v34, %v727
    %v772 = vadd.f32 %v35, %v730
    %v773 = vadd.f32 %v36, %v735
    %v774 = vadd.f32 %v37, %v738
    %v775 = vadd.f32 %v38, %v743
    %v776 = vadd.f32 %v39, %v746
    %v777 = vadd.f32 %v40, %v751
    %v778 = vadd.f32 %v41, %v754
    %v779 = vadd.f32 %v42, %v759
    %v780 = vadd.f32 %v43, %v762
    %781 = vst.msk [vmem:[#allocation2] sm:$0xff] %vm44, %v765
    %782 = vst.msk [vmem:[#allocation2 + $0x8] sm:$0xff] %vm44, %v766
    %783 = vst.msk [vmem:[#allocation2 + $0x10] sm:$0xff] %vm44, %v767
    %784 = vst.msk [vmem:[#allocation2 + $0x18] sm:$0xff] %vm44, %v768
    %785 = vst.msk [vmem:[#allocation2 + $0x20] sm:$0xff] %vm44, %v769
    %786 = vst.msk [vmem:[#allocation2 + $0x28] sm:$0xff] %vm44, %v770
    %787 = vst.msk [vmem:[#allocation2 + $0x30] sm:$0xff] %vm44, %v771
    %788 = vst.msk [vmem:[#allocation2 + $0x38] sm:$0xff] %vm44, %v772
    %789 = vst.msk [vmem:[#allocation2 + $0x40] sm:$0xff] %vm44, %v773
    %790 = vst.msk [vmem:[#allocation2 + $0x48] sm:$0xff] %vm44, %v774
    %791 = vst.msk [vmem:[#allocation2 + $0x50] sm:$0xff] %vm44, %v775
    %792 = vst.msk [vmem:[#allocation2 + $0x58] sm:$0xff] %vm44, %v776
    %793 = vst.msk [vmem:[#allocation2 + $0x60] sm:$0xff] %vm44, %v777
    %794 = vst.msk [vmem:[#allocation2 + $0x68] sm:$0xff] %vm44, %v778
    %795 = vst.msk [vmem:[#allocation2 + $0x70] sm:$0xff] %vm44, %v779
    %796 = vst.msk [vmem:[#allocation2 + $0x78] sm:$0xff] %vm44, %v780
    // Predicated region
    $region30: #{cvt_stage_forward.15} parent=1 // pred_check
      _
    $region31: #{cvt_stage_forward.15} parent=1 // pred_check_branch
      %798 = sbr.rel (0) target = $region33
    $region32: #{cvt_stage_forward.15} parent=1 // pred_region
      %s800 = ssub.s32 2048, 2048
      %801 = vsyncadd [#allocation3], %s800
      %s802 = sshll.u32 [#allocation2], 4
      %s803 = int_to_ptr.vmem [resolvable:$true] %s802
      %808 = dma.vmem_to_hbm [thread:$0]  %s803, 2048, %s7, [#allocation3], 128, 128, 8
    $region33: #{cvt_stage_forward.15} parent=1 // pred_fallthru
      _
    // Predicated region
    $region34: #{cvt_stage_forward.15} parent=1 // pred_check
      _
    $region35: #{cvt_stage_forward.15} parent=1 // pred_check_branch
      %810 = sbr.rel (0) target = $region37
    $region36: #{cvt_stage_forward.15} parent=1 // pred_region
      %811 = dma.done [#allocation3], 2048
    $region37: #{cvt_stage_forward.15} parent=1 // pred_fallthru
      _
    %812 = vsyncpa [#allocation3], 1

// kernel: cvt_stage_forward.11
$region0: #{cvt_stage_forward.11}
  #allocation0 [shape = 'u32[]', space=smem, size = 0x4, offset = 0x4, fixed_abs, tag = 'smem constant byte address 0x4 - core index']
  #allocation1 [shape = 'u32[144,128]{1,0:T(1,128)}', space=vmem, size = 0x12000, scoped, tag = 'internal scratch']
  #allocation2 [shape = 'bf16[16,32]{1,0:T(16,128)(2,1)}', space=vmem, size = 0x1000, scoped, tag = 'scratch operand']
  #allocation3 [shape = 'bf16[16,32]{1,0:T(16,128)(2,1)}', space=vmem, size = 0x1000, scoped, tag = 'scratch operand']
  %s0 = inlined_call_operand.vmem [shape: bf16[2,64,32], index: 0, kind: input, shape index: {}]
  %s1 = inlined_call_operand.vmem [shape: bf16[2,16,32], index: 1, kind: input, shape index: {}]
  %s2 = inlined_call_operand.vmem [shape: bf16[2,16,32], index: 2, kind: input, shape index: {}]
  %s3 = inlined_call_operand.vmem [shape: f32[2,64,32], index: 3, kind: input, shape index: {}]
  %s4 = inlined_call_operand.vmem [shape: bf16[4,32,32], index: 4, kind: input, shape index: {}]
  %s5 = inlined_call_operand.vmem [shape: f32[4,32], index: 5, kind: input, shape index: {}]
  %s6 = inlined_call_operand.vmem [shape: f32[2,64,32], index: 6, kind: output, shape index: {}]
  %s7 = sld [smem:[#allocation0]]
  $region61: #{cvt_stage_forward.11} parent=0
    _
  %s9 = ssub.s32 1, %s7
  %s10 = scalar_select 0, %s9, %s7
  loop: start=0, step=1, limit=4
  $region2: #{cvt_stage_forward.11} parent=0 // loop_pre_header
    _
  $region3: #{cvt_stage_forward.11} parent=0 // loop_header
    %s12 = sphi 0, %s16
    %p13 = scmp.ge.s32.totalorder %s12, 4
    %s19 = sphi 0, %s31
    %s20 = sphi 0, %s27
    %s21 = sphi 0, %s19
    %s22 = sphi 0, %s20
    %s23 = sphi 0, %s21
    %s24 = sphi 0, %s22
    %s36 = sphi 0, %s38
    %s39 = sphi 0, %s36
    %s40 = sphi 0, %s39
    %s56 = sphi 0, %s40
    %s62 = sphi 0, %s64
    %s65 = sphi 0, %s62
    %s66 = sphi 0, %s65
    %s82 = sphi 0, %s66
    %s88 = sphi 0, %s90
    %s91 = sphi 0, %s88
    %s92 = sphi 0, %s91
    %s108 = sphi 0, %s92
    %s116 = sphi 0, %s118
    %s119 = sphi 0, %s116
    %s120 = sphi 0, %s119
    %s136 = sphi 0, %s120
    %s140 = sphi 0, %s140
    %s142 = sphi 0, %s140
    %s143 = sphi 0, %s142
    %s157 = sphi 0, %s143
    %s161 = sphi 0, %s161
    %s163 = sphi 0, %s161
    %s164 = sphi 0, %s163
    %s178 = sphi 0, %s164
    %s186 = sphi 0, %s188
    %s189 = sphi 0, %s186
    %s190 = sphi 0, %s189
    %s206 = sphi 0, %s190
  $region4: #{cvt_stage_forward.11} parent=0 // loop_header_branch
    %15 = sbr.rel (%p13) target = $region8
  $region5: #{cvt_stage_forward.11} parent=0 // loop_body
    %s17 = ssub.s32 %s12, 1
    %s18 = ssub.s32 %s12, 2
    %s25 = sadd.s32 1, %s20
    %p26 = scmp.ge.s32.totalorder %s25, 1
    %s27 = scalar_select %p26, 0, %s25
    %s28 = sadd.s32 1, %s19
    %s29 = scalar_select %p26, %s28, %s19
    %p30 = scmp.ge.s32.totalorder %s29, 2
    %s31 = scalar_select %p30, 0, %s29
    %s32 = ssub.s32 %s19, %s31
    %s33 = ssub.s32 %s20, %s27
    %s34 = sor.u32 %s32, %s33
    %p35 = scmp.eq.s32.totalorder %s34, 0
    %s37 = sadd.s32 %s36, 1
    %s38 = scalar_select %p35, %s36, %s37
    %p41 = pneg %p35
    %p42 = scmp.eq.s32.totalorder %s12, 1
    %p43 = por %p41, %p42
    %p44 = scmp.ne.s32.totalorder %s36, %s39
    %p45 = scmp.eq.s32.totalorder %s12, 0
    %p46 = por %p44, %p45
    %p47 = scmp.ne.s32.totalorder %s36, %s39
    %p48 = scmp.eq.s32.totalorder %s17, 1
    %p49 = por %p47, %p48
    %p50 = scmp.ne.s32.totalorder %s39, %s40
    %p51 = scmp.eq.s32.totalorder %s17, 0
    %p52 = por %p50, %p51
    %p53 = scmp.ne.s32.totalorder %s39, %s40
    %p54 = scmp.eq.s32.totalorder %s18, 1
    %p55 = por %p53, %p54
    %p57 = scmp.ne.s32.totalorder %s40, %s56
    %p58 = scmp.eq.s32.totalorder %s18, 0
    %p59 = por %p57, %p58
    %s60 = ssub.s32 %s19, %s31
    %p61 = scmp.eq.s32.totalorder %s60, 0
    %s63 = sadd.s32 %s62, 1
    %s64 = scalar_select %p61, %s62, %s63
    %p67 = pneg %p61
    %p68 = scmp.eq.s32.totalorder %s12, 1
    %p69 = por %p67, %p68
    %p70 = scmp.ne.s32.totalorder %s62, %s65
    %p71 = scmp.eq.s32.totalorder %s12, 0
    %p72 = por %p70, %p71
    %p73 = scmp.ne.s32.totalorder %s62, %s65
    %p74 = scmp.eq.s32.totalorder %s17, 1
    %p75 = por %p73, %p74
    %p76 = scmp.ne.s32.totalorder %s65, %s66
    %p77 = scmp.eq.s32.totalorder %s17, 0
    %p78 = por %p76, %p77
    %p79 = scmp.ne.s32.totalorder %s65, %s66
    %p80 = scmp.eq.s32.totalorder %s18, 1
    %p81 = por %p79, %p80
    %p83 = scmp.ne.s32.totalorder %s66, %s82
    %p84 = scmp.eq.s32.totalorder %s18, 0
    %p85 = por %p83, %p84
    %s86 = ssub.s32 %s19, %s31
    %p87 = scmp.eq.s32.totalorder %s86, 0
    %s89 = sadd.s32 %s88, 1
    %s90 = scalar_select %p87, %s88, %s89
    %p93 = pneg %p87
    %p94 = scmp.eq.s32.totalorder %s12, 1
    %p95 = por %p93, %p94
    %p96 = scmp.ne.s32.totalorder %s88, %s91
    %p97 = scmp.eq.s32.totalorder %s12, 0
    %p98 = por %p96, %p97
    %p99 = scmp.ne.s32.totalorder %s88, %s91
    %p100 = scmp.eq.s32.totalorder %s17, 1
    %p101 = por %p99, %p100
    %p102 = scmp.ne.s32.totalorder %s91, %s92
    %p103 = scmp.eq.s32.totalorder %s17, 0
    %p104 = por %p102, %p103
    %p105 = scmp.ne.s32.totalorder %s91, %s92
    %p106 = scmp.eq.s32.totalorder %s18, 1
    %p107 = por %p105, %p106
    %p109 = scmp.ne.s32.totalorder %s92, %s108
    %p110 = scmp.eq.s32.totalorder %s18, 0
    %p111 = por %p109, %p110
    %s112 = ssub.s32 %s19, %s31
    %s113 = ssub.s32 %s20, %s27
    %s114 = sor.u32 %s112, %s113
    %p115 = scmp.eq.s32.totalorder %s114, 0
    %s117 = sadd.s32 %s116, 1
    %s118 = scalar_select %p115, %s116, %s117
    %p121 = pneg %p115
    %p122 = scmp.eq.s32.totalorder %s12, 1
    %p123 = por %p121, %p122
    %p124 = scmp.ne.s32.totalorder %s116, %s119
    %p125 = scmp.eq.s32.totalorder %s12, 0
    %p126 = por %p124, %p125
    %p127 = scmp.ne.s32.totalorder %s116, %s119
    %p128 = scmp.eq.s32.totalorder %s17, 1
    %p129 = por %p127, %p128
    %p130 = scmp.ne.s32.totalorder %s119, %s120
    %p131 = scmp.eq.s32.totalorder %s17, 0
    %p132 = por %p130, %p131
    %p133 = scmp.ne.s32.totalorder %s119, %s120
    %p134 = scmp.eq.s32.totalorder %s18, 1
    %p135 = por %p133, %p134
    %p137 = scmp.ne.s32.totalorder %s120, %s136
    %p138 = scmp.eq.s32.totalorder %s18, 0
    %p139 = por %p137, %p138
    %s141 = sadd.s32 %s140, 1
    %p144 = scmp.eq.s32.totalorder %s12, 1
    %p145 = scmp.ne.s32.totalorder %s140, %s142
    %p146 = scmp.eq.s32.totalorder %s12, 0
    %p147 = por %p145, %p146
    %p148 = scmp.ne.s32.totalorder %s140, %s142
    %p149 = scmp.eq.s32.totalorder %s17, 1
    %p150 = por %p148, %p149
    %p151 = scmp.ne.s32.totalorder %s142, %s143
    %p152 = scmp.eq.s32.totalorder %s17, 0
    %p153 = por %p151, %p152
    %p154 = scmp.ne.s32.totalorder %s142, %s143
    %p155 = scmp.eq.s32.totalorder %s18, 1
    %p156 = por %p154, %p155
    %p158 = scmp.ne.s32.totalorder %s143, %s157
    %p159 = scmp.eq.s32.totalorder %s18, 0
    %p160 = por %p158, %p159
    %s162 = sadd.s32 %s161, 1
    %p165 = scmp.eq.s32.totalorder %s12, 1
    %p166 = scmp.ne.s32.totalorder %s161, %s163
    %p167 = scmp.eq.s32.totalorder %s12, 0
    %p168 = por %p166, %p167
    %p169 = scmp.ne.s32.totalorder %s161, %s163
    %p170 = scmp.eq.s32.totalorder %s17, 1
    %p171 = por %p169, %p170
    %p172 = scmp.ne.s32.totalorder %s163, %s164
    %p173 = scmp.eq.s32.totalorder %s17, 0
    %p174 = por %p172, %p173
    %p175 = scmp.ne.s32.totalorder %s163, %s164
    %p176 = scmp.eq.s32.totalorder %s18, 1
    %p177 = por %p175, %p176
    %p179 = scmp.ne.s32.totalorder %s164, %s178
    %p180 = scmp.eq.s32.totalorder %s18, 0
    %p181 = por %p179, %p180
    %s182 = ssub.s32 %s19, %s31
    %s183 = ssub.s32 %s20, %s27
    %s184 = sor.u32 %s182, %s183
    %p185 = scmp.eq.s32.totalorder %s184, 0
    %s187 = sadd.s32 %s186, 1
    %s188 = scalar_select %p185, %s186, %s187
    %p191 = pneg %p185
    %p192 = scmp.eq.s32.totalorder %s12, 1
    %p193 = por %p191, %p192
    %p194 = scmp.ne.s32.totalorder %s186, %s189
    %p195 = scmp.eq.s32.totalorder %s12, 0
    %p196 = por %p194, %p195
    %p197 = scmp.ne.s32.totalorder %s186, %s189
    %p198 = scmp.eq.s32.totalorder %s17, 1
    %p199 = por %p197, %p198
    %p200 = scmp.ne.s32.totalorder %s189, %s190
    %p201 = scmp.eq.s32.totalorder %s17, 0
    %p202 = por %p200, %p201
    %p203 = scmp.ne.s32.totalorder %s189, %s190
    %p204 = scmp.eq.s32.totalorder %s18, 1
    %p205 = por %p203, %p204
    %p207 = scmp.ne.s32.totalorder %s190, %s206
    %p208 = scmp.eq.s32.totalorder %s18, 0
    %p209 = por %p207, %p208
    %p210 = scmp.le.s32.totalorder 1, %s12
    %p211 = scmp.lt.s32.totalorder %s12, 3
    %p212 = pnand %p210, %p211
    %p213 = pneg %p212
    // Predicated region
    $region9: #{cvt_stage_forward.11} parent=5 // pred_check
      _
    $region10: #{cvt_stage_forward.11} parent=5 // pred_check_branch
      %215 = sbr.rel (%p212) target = $region12
    $region11: #{cvt_stage_forward.11} parent=5 // pred_region
      %s216 = ssub.s32 %s12, 1
      // Predicated region
      $region13: #{cvt_stage_forward.11} parent=11 // pred_check
        %p217 = pneg %p153
      $region14: #{cvt_stage_forward.11} parent=11 // pred_check_branch
        %219 = sbr.rel (%p217) target = $region16
      $region15: #{cvt_stage_forward.11} parent=11 // pred_region
        _
      $region16: #{cvt_stage_forward.11} parent=11 // pred_fallthru
        _
      // Predicated region
      $region17: #{cvt_stage_forward.11} parent=11 // pred_check
        %p220 = pneg %p174
      $region18: #{cvt_stage_forward.11} parent=11 // pred_check_branch
        %222 = sbr.rel (%p220) target = $region20
      $region19: #{cvt_stage_forward.11} parent=11 // pred_region
        _
      $region20: #{cvt_stage_forward.11} parent=11 // pred_fallthru
        _
    $region12: #{cvt_stage_forward.11} parent=5 // pred_fallthru
      _
    %p223 = scmp.lt.s32.totalorder %s12, 2
    // Predicated region
    $region21: #{cvt_stage_forward.11} parent=5 // pred_check
      %p224 = pneg %p223
    $region22: #{cvt_stage_forward.11} parent=5 // pred_check_branch
      %226 = sbr.rel (%p224) target = $region24
    $region23: #{cvt_stage_forward.11} parent=5 // pred_region
      // Predicated region
      $region25: #{cvt_stage_forward.11} parent=23 // pred_check
        %p227 = pneg %p46
      $region26: #{cvt_stage_forward.11} parent=23 // pred_check_branch
        %229 = sbr.rel (%p227) target = $region28
      $region27: #{cvt_stage_forward.11} parent=23 // pred_region
        %s230 = smul.u32 8, %s20
        %p231 = scmp.lt.s32.totalorder %s19, 1
        %s232 = scalar_select %p231, %s19, 1
        %p233 = scmp.lt.s32.totalorder %s230, 7
        %s234 = scalar_select %p233, %s230, 7
        %s235 = smul.addr %s232, 8
        %s236 = sadd.s32 %s234, %s235
        %s237 = smul.addr %s236, 4
        %s238 = scalar_lea.vmem %s0, %s237
        %s239 = smul.u32 8, %s20
      $region28: #{cvt_stage_forward.11} parent=23 // pred_fallthru
        _
      // Predicated region
      $region29: #{cvt_stage_forward.11} parent=23 // pred_check
        %p240 = pneg %p72
      $region30: #{cvt_stage_forward.11} parent=23 // pred_check_branch
        %242 = sbr.rel (%p240) target = $region32
      $region31: #{cvt_stage_forward.11} parent=23 // pred_region
        %p243 = scmp.lt.s32.totalorder %s19, 1
        %s244 = scalar_select %p243, %s19, 1
        %s245 = smul.addr %s244, 2
        %s246 = smul.addr %s245, 4
        %s247 = scalar_lea.vmem %s1, %s246
      $region32: #{cvt_stage_forward.11} parent=23 // pred_fallthru
        _
      // Predicated region
      $region33: #{cvt_stage_forward.11} parent=23 // pred_check
        %p248 = pneg %p98
      $region34: #{cvt_stage_forward.11} parent=23 // pred_check_branch
        %250 = sbr.rel (%p248) target = $region36
      $region35: #{cvt_stage_forward.11} parent=23 // pred_region
        %p251 = scmp.lt.s32.totalorder %s19, 1
        %s252 = scalar_select %p251, %s19, 1
        %s253 = smul.addr %s252, 2
        %s254 = smul.addr %s253, 4
        %s255 = scalar_lea.vmem %s2, %s254
      $region36: #{cvt_stage_forward.11} parent=23 // pred_fallthru
        _
      // Predicated region
      $region37: #{cvt_stage_forward.11} parent=23 // pred_check
        %p256 = pneg %p126
      $region38: #{cvt_stage_forward.11} parent=23 // pred_check_branch
        %258 = sbr.rel (%p256) target = $region40
      $region39: #{cvt_stage_forward.11} parent=23 // pred_region
        %s259 = smul.u32 8, %s20
        %p260 = scmp.lt.s32.totalorder %s19, 1
        %s261 = scalar_select %p260, %s19, 1
        %p262 = scmp.lt.s32.totalorder %s259, 7
        %s263 = scalar_select %p262, %s259, 7
        %s264 = smul.addr %s261, 8
        %s265 = sadd.s32 %s263, %s264
        %s266 = smul.addr %s265, 8
        %s267 = scalar_lea.vmem %s3, %s266
        %s268 = smul.u32 8, %s20
      $region40: #{cvt_stage_forward.11} parent=23 // pred_fallthru
        _
    $region24: #{cvt_stage_forward.11} parent=5 // pred_fallthru
      _
    %p269 = scmp.le.s32.totalorder 1, %s12
    %p270 = scmp.lt.s32.totalorder %s12, 3
    %p271 = pnand %p269, %p270
    %p272 = pneg %p271
    // Predicated region
    $region41: #{cvt_stage_forward.11} parent=5 // pred_check
      _
    $region42: #{cvt_stage_forward.11} parent=5 // pred_check_branch
      %274 = sbr.rel (%p271) target = $region44
    $region43: #{cvt_stage_forward.11} parent=5 // pred_region
      %s275 = ssub.s32 %s12, 1
      %s276 = smul.u32 8, %s22
      %p277 = scmp.lt.s32.totalorder %s21, 1
      %s278 = scalar_select %p277, %s21, 1
      %p279 = scmp.lt.s32.totalorder %s276, 7
      %s280 = scalar_select %p279, %s276, 7
      %s281 = smul.addr %s278, 8
      %s282 = sadd.s32 %s280, %s281
      %s283 = smul.addr %s282, 4
      %s284 = scalar_lea.vmem %s0, %s283
      %p285 = pneg %p52
      %p286 = pneg %p49
      %p287 = scmp.lt.s32.totalorder %s21, 1
      %s288 = scalar_select %p287, %s21, 1
      %s289 = smul.addr %s288, 2
      %s290 = smul.addr %s289, 4
      %s291 = scalar_lea.vmem %s1, %s290
      %p292 = pneg %p78
      %p293 = pneg %p75
      %p294 = scmp.lt.s32.totalorder %s21, 1
      %s295 = scalar_select %p294, %s21, 1
      %s296 = smul.addr %s295, 2
      %s297 = smul.addr %s296, 4
      %s298 = scalar_lea.vmem %s2, %s297
      %p299 = pneg %p104
      %p300 = pneg %p101
      %s301 = smul.u32 8, %s22
      %p302 = scmp.lt.s32.totalorder %s21, 1
      %s303 = scalar_select %p302, %s21, 1
      %p304 = scmp.lt.s32.totalorder %s301, 7
      %s305 = scalar_select %p304, %s301, 7
      %s306 = smul.addr %s303, 8
      %s307 = sadd.s32 %s305, %s306
      %s308 = smul.addr %s307, 8
      %s309 = scalar_lea.vmem %s3, %s308
      %p310 = pneg %p132
      %p311 = pneg %p129
      %p312 = pneg %p153
      %p313 = pneg %p150
      %p314 = pneg %p174
      %p315 = pneg %p171
      %p316 = pneg %p202
      %p317 = pneg %p199
      %s318 = smul.u32 8, %s22
      %p319 = scmp.lt.s32.totalorder %s21, 1
      %s320 = scalar_select %p319, %s21, 1
      %p321 = scmp.lt.s32.totalorder %s318, 7
      %s322 = scalar_select %p321, %s318, 7
      %s323 = smul.addr %s320, 8
      %s324 = sadd.s32 %s322, %s323
      %s325 = smul.addr %s324, 8
      %s326 = scalar_lea.vmem %s6, %s325
      %s327 = smul.u32 8, %s22
      %p328 = scmp.lt.s32.totalorder %s21, 1
      %s329 = scalar_select %p328, %s21, 1
      %p330 = scmp.lt.s32.totalorder %s327, 7
      %s331 = scalar_select %p330, %s327, 7
      %s332 = smul.addr %s329, 8
      %s333 = sadd.s32 %s331, %s332
      %s334 = smul.addr %s333, 4
      %s335 = scalar_lea.vmem %s0, %s334
      %s336 = smul.u32 8, %s22
      %p337 = scmp.lt.s32.totalorder %s21, 1
      %s338 = scalar_select %p337, %s21, 1
      %s339 = smul.addr %s338, 2
      %s340 = smul.addr %s339, 4
      %s341 = scalar_lea.vmem %s1, %s340
      %p342 = scmp.lt.s32.totalorder %s21, 1
      %s343 = scalar_select %p342, %s21, 1
      %s344 = smul.addr %s343, 2
      %s345 = smul.addr %s344, 4
      %s346 = scalar_lea.vmem %s2, %s345
      %s347 = smul.u32 8, %s22
      %p348 = scmp.lt.s32.totalorder %s21, 1
      %s349 = scalar_select %p348, %s21, 1
      %p350 = scmp.lt.s32.totalorder %s347, 7
      %s351 = scalar_select %p350, %s347, 7
      %s352 = smul.addr %s349, 8
      %s353 = sadd.s32 %s351, %s352
      %s354 = smul.addr %s353, 8
      %s355 = scalar_lea.vmem %s3, %s354
      %s356 = smul.u32 8, %s22
      %s357 = smul.u32 8, %s22
      %p358 = scmp.lt.s32.totalorder %s21, 1
      %s359 = scalar_select %p358, %s21, 1
      %p360 = scmp.lt.s32.totalorder %s357, 7
      %s361 = scalar_select %p360, %s357, 7
      %s362 = smul.addr %s359, 8
      %s363 = sadd.s32 %s361, %s362
      %s364 = smul.addr %s363, 8
      %s365 = scalar_lea.vmem %s6, %s364
      %s366 = smul.u32 8, %s22
      %p368 = scmp.eq.s32.totalorder %s22, 0
      // Predicated region
      $region45: #{cvt_stage_forward.11} parent=43 // pred_check
        %p369 = pneg %p368
      $region46: #{cvt_stage_forward.11} parent=43 // pred_check_branch
        %371 = sbr.rel (%p369) target = $region48
      $region47: #{cvt_stage_forward.11} parent=43 // pred_region
        %v372 = vld [vmem:[%s341] sm:$0xf]
        %v373 = vld [vmem:[%s341 + $0x4] sm:$0xf]
        %s374 = scalar_lea.vmem %s4, 16
        %v375 = vld [vmem:[%s374] sm:$0xf]
        %v376 = vld [vmem:[%s374 + $0x4] sm:$0xf]
        %v377 = vld [vmem:[%s374 + $0x8] sm:$0xf]
        %v378 = vld [vmem:[%s374 + $0xc] sm:$0xf]
        %v379 = vld [vmem:[%s5 + $0x1] sm:$0x1]
        %v380 = vlaneseq
        %v381 = vshrl.u32 %v380, 7
        %v382 = vsub.s32 0, %v381
        %v383 = vrot.slane %v379, %v382
        %v386 = vunpack.c.l.b16 %v372
        %v387 = vunpack.c.l.b16 %v373
        %v388 = vpack.c.b16 %v387, %v386
        %v393 = vunpack.c.l.b16 %v375
        %v394 = vunpack.c.l.b16 %v376
        %v395 = vunpack.c.l.b16 %v377
        %v396 = vunpack.c.l.b16 %v378
        %v397 = vpack.c.b16 %v394, %v393
        %v398 = vpack.c.b16 %v396, %v395
        %vm401 = vcmask 261120
        %v403 = vsel %vm401, %v388, 0
        %405 = vmatprep.subr.bf16.mxu0 0
        %406 = vmatpush1.bf16.msra.mxu0 %v397
        %407 = vmatprep.subr.bf16.mxu0 0
        %408 = vmatpush1.bf16.msra.mxu0 %v398
        %409 = vmatprep.subr.bf16.mxu0 0
        %410 = vmatpush1.bf16.msra.mxu0 0
        %411 = vmatprep.subr.bf16.mxu0 0
        %412 = vmatpush1.bf16.msra.mxu0 0
        %413 = vmatprep.subr.bf16.mxu0 0
        %414 = vmatpush1.bf16.msra.mxu0 0
        %415 = vmatprep.subr.bf16.mxu0 0
        %416 = vmatpush1.bf16.msra.mxu0 0
        %417 = vmatprep.subr.bf16.mxu0 0
        %418 = vmatpush1.bf16.msra.mxu0 0
        %419 = vmatprep.subr.bf16.mxu0 0
        %420 = vmatpush1.bf16.msra.mxu0 0
        %421 = vmatprep.subr.bf16.mxu0 0
        %422 = vmatpush1.bf16.msra.mxu0 0
        %423 = vmatprep.subr.bf16.mxu0 0
        %424 = vmatpush1.bf16.msra.mxu0 0
        %425 = vmatprep.subr.bf16.mxu0 0
        %426 = vmatpush1.bf16.msra.mxu0 0
        %427 = vmatprep.subr.bf16.mxu0 0
        %428 = vmatpush1.bf16.msra.mxu0 0
        %429 = vmatprep.subr.bf16.mxu0 0
        %430 = vmatpush1.bf16.msra.mxu0 0
        %431 = vmatprep.subr.bf16.mxu0 0
        %432 = vmatpush1.bf16.msra.mxu0 0
        %433 = vmatprep.subr.bf16.mxu0 0
        %434 = vmatpush1.bf16.msra.mxu0 0
        %435 = vmatprep.subr.bf16.mxu0 0
        %436 = vmatpush1.bf16.msra.mxu0 0
        %437 = vmatprep.mubr.bf16.mxu0 0
        %438 = vmatmul.mubr.bf16.gmra.mrb[0].mxu0 %v403
        %v439 = vpop.f32.mrb[0].mxu0
        %v440 = vadd.f32 %v383, %v439
        %v441 = vpop.f32.mrb[0].mxu0
        %v442 = vpop.f32.mrb[0].mxu0
        %v443 = vadd.f32 %v383, %v442
        %v444 = vpop.f32.mrb[0].mxu0
        %445 = vdwg.mxu0
        %v446 = vpack.c.bf16 %v443, %v440
        %447 = vst.msk [vmem:[#allocation2] sm:$0xff] %vm401, %v446
        %v448 = vld [vmem:[%s346] sm:$0xf]
        %v449 = vld [vmem:[%s346 + $0x4] sm:$0xf]
        %s450 = scalar_lea.vmem %s4, 32
        %v451 = vld [vmem:[%s450] sm:$0xf]
        %v452 = vld [vmem:[%s450 + $0x4] sm:$0xf]
        %v453 = vld [vmem:[%s450 + $0x8] sm:$0xf]
        %v454 = vld [vmem:[%s450 + $0xc] sm:$0xf]
        %v455 = vld [vmem:[%s5 + $0x2] sm:$0x1]
        %v456 = vlaneseq
        %v457 = vshrl.u32 %v456, 7
        %v458 = vsub.s32 0, %v457
        %v459 = vrot.slane %v455, %v458
        %v462 = vunpack.c.l.b16 %v448
        %v463 = vunpack.c.l.b16 %v449
        %v464 = vpack.c.b16 %v463, %v462
        %v469 = vunpack.c.l.b16 %v451
        %v470 = vunpack.c.l.b16 %v452
        %v471 = vunpack.c.l.b16 %v453
        %v472 = vunpack.c.l.b16 %v454
        %v473 = vpack.c.b16 %v470, %v469
        %v474 = vpack.c.b16 %v472, %v471
        %v478 = vsel %vm401, %v464, 0
        %480 = vmatprep.subr.bf16.mxu0 0
        %481 = vmatpush1.bf16.msra.mxu0 %v473
        %482 = vmatprep.subr.bf16.mxu0 0
        %483 = vmatpush1.bf16.msra.mxu0 %v474
        %484 = vmatprep.subr.bf16.mxu0 0
        %485 = vmatpush1.bf16.msra.mxu0 0
        %486 = vmatprep.subr.bf16.mxu0 0
        %487 = vmatpush1.bf16.msra.mxu0 0
        %488 = vmatprep.subr.bf16.mxu0 0
        %489 = vmatpush1.bf16.msra.mxu0 0
        %490 = vmatprep.subr.bf16.mxu0 0
        %491 = vmatpush1.bf16.msra.mxu0 0
        %492 = vmatprep.subr.bf16.mxu0 0
        %493 = vmatpush1.bf16.msra.mxu0 0
        %494 = vmatprep.subr.bf16.mxu0 0
        %495 = vmatpush1.bf16.msra.mxu0 0
        %496 = vmatprep.subr.bf16.mxu0 0
        %497 = vmatpush1.bf16.msra.mxu0 0
        %498 = vmatprep.subr.bf16.mxu0 0
        %499 = vmatpush1.bf16.msra.mxu0 0
        %500 = vmatprep.subr.bf16.mxu0 0
        %501 = vmatpush1.bf16.msra.mxu0 0
        %502 = vmatprep.subr.bf16.mxu0 0
        %503 = vmatpush1.bf16.msra.mxu0 0
        %504 = vmatprep.subr.bf16.mxu0 0
        %505 = vmatpush1.bf16.msra.mxu0 0
        %506 = vmatprep.subr.bf16.mxu0 0
        %507 = vmatpush1.bf16.msra.mxu0 0
        %508 = vmatprep.subr.bf16.mxu0 0
        %509 = vmatpush1.bf16.msra.mxu0 0
        %510 = vmatprep.subr.bf16.mxu0 0
        %511 = vmatpush1.bf16.msra.mxu0 0
        %512 = vmatprep.mubr.bf16.mxu0 0
        %513 = vmatmul.mubr.bf16.gmra.mrb[0].mxu0 %v478
        %v514 = vpop.f32.mrb[0].mxu0
        %v515 = vadd.f32 %v459, %v514
        %v516 = vpop.f32.mrb[0].mxu0
        %v517 = vpop.f32.mrb[0].mxu0
        %v518 = vadd.f32 %v459, %v517
        %v519 = vpop.f32.mrb[0].mxu0
        %520 = vdwg.mxu0
        %v521 = vpack.c.bf16 %v518, %v515
        %522 = vst.msk [vmem:[#allocation3] sm:$0xff] %vm401, %v521
      $region48: #{cvt_stage_forward.11} parent=43 // pred_fallthru
        _
      %v523 = vld [vmem:[%s335] sm:$0xf]
      %v524 = vld [vmem:[%s335 + $0x4] sm:$0xf]
      %v525 = vld [vmem:[%s335 + $0x8] sm:$0xf]
      %v526 = vld [vmem:[%s335 + $0xc] sm:$0xf]
      %v527 = vld [vmem:[%s335 + $0x10] sm:$0xf]
      %v528 = vld [vmem:[%s335 + $0x14] sm:$0xf]
      %v529 = vld [vmem:[%s335 + $0x18] sm:$0xf]
      %v530 = vld [vmem:[%s335 + $0x1c] sm:$0xf]
      %v531 = vld [vmem:[%s4] sm:$0xf]
      %v532 = vld [vmem:[%s4 + $0x4] sm:$0xf]
      %v533 = vld [vmem:[%s4 + $0x8] sm:$0xf]
      %v534 = vld [vmem:[%s4 + $0xc] sm:$0xf]
      %v535 = vld [vmem:[%s5] sm:$0x1]
      %v536 = vlaneseq
      %v537 = vshrl.u32 %v536, 7
      %v538 = vsub.s32 0, %v537
      %v539 = vrot.slane %v535, %v538
      %v548 = vunpack.c.l.b16 %v523
      %v549 = vunpack.c.l.b16 %v524
      %v550 = vunpack.c.l.b16 %v525
      %v551 = vunpack.c.l.b16 %v526
      %v552 = vunpack.c.l.b16 %v527
      %v553 = vunpack.c.l.b16 %v528
      %v554 = vunpack.c.l.b16 %v529
      %v555 = vunpack.c.l.b16 %v530
      %v556 = vpack.c.b16 %v549, %v548
      %v557 = vpack.c.b16 %v551, %v550
      %v558 = vpack.c.b16 %v553, %v552
      %v559 = vpack.c.b16 %v555, %v554
      %v564 = vunpack.c.l.b16 %v531
      %v565 = vunpack.c.l.b16 %v532
      %v566 = vunpack.c.l.b16 %v533
      %v567 = vunpack.c.l.b16 %v534
      %v568 = vpack.c.b16 %v565, %v564
      %v569 = vpack.c.b16 %v567, %v566
      %vm572 = vcmask 261120
      %v574 = vsel %vm572, %v556, 0
      %v577 = vsel %vm572, %v557, 0
      %v580 = vsel %vm572, %v558, 0
      %v583 = vsel %vm572, %v559, 0
      %585 = vmatprep.subr.bf16.mxu0 0
      %586 = vmatpush1.bf16.msra.mxu0 %v568
      %587 = vmatprep.subr.bf16.mxu0 0
      %588 = vmatpush1.bf16.msra.mxu0 %v569
      %589 = vmatprep.subr.bf16.mxu0 0
      %590 = vmatpush1.bf16.msra.mxu0 0
      %591 = vmatprep.subr.bf16.mxu0 0
      %592 = vmatpush1.bf16.msra.mxu0 0
      %593 = vmatprep.subr.bf16.mxu0 0
      %594 = vmatpush1.bf16.msra.mxu0 0
      %595 = vmatprep.subr.bf16.mxu0 0
      %596 = vmatpush1.bf16.msra.mxu0 0
      %597 = vmatprep.subr.bf16.mxu0 0
      %598 = vmatpush1.bf16.msra.mxu0 0
      %599 = vmatprep.subr.bf16.mxu0 0
      %600 = vmatpush1.bf16.msra.mxu0 0
      %601 = vmatprep.subr.bf16.mxu0 0
      %602 = vmatpush1.bf16.msra.mxu0 0
      %603 = vmatprep.subr.bf16.mxu0 0
      %604 = vmatpush1.bf16.msra.mxu0 0
      %605 = vmatprep.subr.bf16.mxu0 0
      %606 = vmatpush1.bf16.msra.mxu0 0
      %607 = vmatprep.subr.bf16.mxu0 0
      %608 = vmatpush1.bf16.msra.mxu0 0
      %609 = vmatprep.subr.bf16.mxu0 0
      %610 = vmatpush1.bf16.msra.mxu0 0
      %611 = vmatprep.subr.bf16.mxu0 0
      %612 = vmatpush1.bf16.msra.mxu0 0
      %613 = vmatprep.subr.bf16.mxu0 0
      %614 = vmatpush1.bf16.msra.mxu0 0
      %615 = vmatprep.subr.bf16.mxu0 0
      %616 = vmatpush1.bf16.msra.mxu0 0
      %617 = vmatprep.mubr.bf16.mxu0 0
      %618 = vmatmul.mubr.bf16.gmra.mrb[0].mxu0 %v574
      %v619 = vpop.f32.mrb[0].mxu0
      %v620 = vadd.f32 %v539, %v619
      %v621 = vpop.f32.mrb[0].mxu0
      %v622 = vpop.f32.mrb[0].mxu0
      %v623 = vadd.f32 %v539, %v622
      %v624 = vpop.f32.mrb[0].mxu0
      %625 = vmatprep.mubr.bf16.mxu0 0
      %626 = vmatmul.mubr.bf16.gmra.mrb[0].mxu0 %v577
      %v627 = vpop.f32.mrb[0].mxu0
      %v628 = vadd.f32 %v539, %v627
      %v629 = vpop.f32.mrb[0].mxu0
      %v630 = vpop.f32.mrb[0].mxu0
      %v631 = vadd.f32 %v539, %v630
      %v632 = vpop.f32.mrb[0].mxu0
      %633 = vmatprep.mubr.bf16.mxu0 0
      %634 = vmatmul.mubr.bf16.gmra.mrb[0].mxu0 %v580
      %v635 = vpop.f32.mrb[0].mxu0
      %v636 = vadd.f32 %v539, %v635
      %v637 = vpop.f32.mrb[0].mxu0
      %v638 = vpop.f32.mrb[0].mxu0
      %v639 = vadd.f32 %v539, %v638
      %v640 = vpop.f32.mrb[0].mxu0
      %641 = vmatprep.mubr.bf16.mxu0 0
      %642 = vmatmul.mubr.bf16.gmra.mrb[0].mxu0 %v583
      %v643 = vpop.f32.mrb[0].mxu0
      %v644 = vadd.f32 %v539, %v643
      %v645 = vpop.f32.mrb[0].mxu0
      %v646 = vpop.f32.mrb[0].mxu0
      %v647 = vadd.f32 %v539, %v646
      %v648 = vpop.f32.mrb[0].mxu0
      %649 = vdwg.mxu0
      %v650 = vpack.c.bf16 %v623, %v620
      %v651 = vpack.c.bf16 %v631, %v628
      %v652 = vpack.c.bf16 %v639, %v636
      %v653 = vpack.c.bf16 %v647, %v644
      %v654 = vld [vmem:[#allocation2] sm:$0xff]
      %v655 = vld [vmem:[#allocation3] sm:$0xff]
      %vm656 = vcmask 64512
      %v658 = vsel %vm656, %v650, 0
      %v661 = vsel %vm656, %v651, 0
      %v664 = vsel %vm656, %v652, 0
      %v667 = vsel %vm656, %v653, 0
      %v670 = vsel %vm656, %v654, 0
      %672 = vmatprep.subr.bf16.mxu0 0
      %673 = vmatpush1.bf16.xpose.msra.mxu0 %v670
      %674 = vmatprep.subr.bf16.mxu0 0
      %675 = vmatpush1.bf16.xpose.msra.mxu0 0
      %676 = vmatprep.subr.bf16.mxu0 0
      %677 = vmatpush1.bf16.xpose.msra.mxu0 0
      %678 = vmatprep.subr.bf16.mxu0 0
      %679 = vmatpush1.bf16.xpose.msra.mxu0 0
      %680 = vmatprep.subr.bf16.mxu0 0
      %681 = vmatpush1.bf16.xpose.msra.mxu0 0
      %682 = vmatprep.subr.bf16.mxu0 0
      %683 = vmatpush1.bf16.xpose.msra.mxu0 0
      %684 = vmatprep.subr.bf16.mxu0 0
      %685 = vmatpush1.bf16.xpose.msra.mxu0 0
      %686 = vmatprep.subr.bf16.mxu0 0
      %687 = vmatpush1.bf16.xpose.msra.mxu0 0
      %688 = vmatprep.subr.bf16.mxu0 0
      %689 = vmatpush1.bf16.xpose.msra.mxu0 0
      %690 = vmatprep.subr.bf16.mxu0 0
      %691 = vmatpush1.bf16.xpose.msra.mxu0 0
      %692 = vmatprep.subr.bf16.mxu0 0
      %693 = vmatpush1.bf16.xpose.msra.mxu0 0
      %694 = vmatprep.subr.bf16.mxu0 0
      %695 = vmatpush1.bf16.xpose.msra.mxu0 0
      %696 = vmatprep.subr.bf16.mxu0 0
      %697 = vmatpush1.bf16.xpose.msra.mxu0 0
      %698 = vmatprep.subr.bf16.mxu0 0
      %699 = vmatpush1.bf16.xpose.msra.mxu0 0
      %700 = vmatprep.subr.bf16.mxu0 0
      %701 = vmatpush1.bf16.xpose.msra.mxu0 0
      %702 = vmatprep.subr.bf16.mxu0 0
      %703 = vmatpush1.bf16.xpose.msra.mxu0 0
      %704 = vmatprep.mubr.bf16.mxu0 0
      %705 = vmatmul.mubr.bf16.gmra.mrb[0].mxu0 %v658
      %v706 = vpop.f32.mrb[0].mxu0
      %v707 = vadd.f32 0.0, %v706
      %v708 = vpop.f32.mrb[0].mxu0
      %v709 = vpop.f32.mrb[0].mxu0
      %v710 = vadd.f32 0.0, %v709
      %v711 = vpop.f32.mrb[0].mxu0
      %712 = vmatprep.mubr.bf16.mxu0 0
      %713 = vmatmul.mubr.bf16.gmra.mrb[0].mxu0 %v661
      %v714 = vpop.f32.mrb[0].mxu0
      %v715 = vadd.f32 0.0, %v714
      %v716 = vpop.f32.mrb[0].mxu0
      %v717 = vpop.f32.mrb[0].mxu0
      %v718 = vadd.f32 0.0, %v717
      %v719 = vpop.f32.mrb[0].mxu0
      %720 = vmatprep.mubr.bf16.mxu0 0
      %721 = vmatmul.mubr.bf16.gmra.mrb[0].mxu0 %v664
      %v722 = vpop.f32.mrb[0].mxu0
      %v723 = vadd.f32 0.0, %v722
      %v724 = vpop.f32.mrb[0].mxu0
      %v725 = vpop.f32.mrb[0].mxu0
      %v726 = vadd.f32 0.0, %v725
      %v727 = vpop.f32.mrb[0].mxu0
      %728 = vmatprep.mubr.bf16.mxu0 0
      %729 = vmatmul.mubr.bf16.gmra.mrb[0].mxu0 %v667
      %v730 = vpop.f32.mrb[0].mxu0
      %v731 = vadd.f32 0.0, %v730
      %v732 = vpop.f32.mrb[0].mxu0
      %v733 = vpop.f32.mrb[0].mxu0
      %v734 = vadd.f32 0.0, %v733
      %v735 = vpop.f32.mrb[0].mxu0
      %736 = vdwg.mxu0
      %v737 = vmul.f32 %v707, 0.35355338
      %v738 = vmul.f32 %v710, 0.35355338
      %v739 = vmul.f32 %v715, 0.35355338
      %v740 = vmul.f32 %v718, 0.35355338
      %v741 = vmul.f32 %v723, 0.35355338
      %v742 = vmul.f32 %v726, 0.35355338
      %v743 = vmul.f32 %v731, 0.35355338
      %v744 = vmul.f32 %v734, 0.35355338
      %vm745 = vcmask 130048
      %v746 = vsel %vm745, %v737, -inf
      %747 = vmax.xlane.f32.xlu0 %v746
      %v748 = vpop.xlane.xlu0 %747
      %v749 = vsel %vm745, %v738, -inf
      %750 = vmax.xlane.f32.xlu0 %v749
      %v751 = vpop.xlane.xlu0 %750
      %v752 = vsel %vm745, %v739, -inf
      %753 = vmax.xlane.f32.xlu0 %v752
      %v754 = vpop.xlane.xlu0 %753
      %v755 = vsel %vm745, %v740, -inf
      %756 = vmax.xlane.f32.xlu0 %v755
      %v757 = vpop.xlane.xlu0 %756
      %v758 = vsel %vm745, %v741, -inf
      %759 = vmax.xlane.f32.xlu0 %v758
      %v760 = vpop.xlane.xlu0 %759
      %v761 = vsel %vm745, %v742, -inf
      %762 = vmax.xlane.f32.xlu0 %v761
      %v763 = vpop.xlane.xlu0 %762
      %v764 = vsel %vm745, %v743, -inf
      %765 = vmax.xlane.f32.xlu0 %v764
      %v766 = vpop.xlane.xlu0 %765
      %v767 = vsel %vm745, %v744, -inf
      %768 = vmax.xlane.f32.xlu0 %v767
      %v769 = vpop.xlane.xlu0 %768
      %v770 = vsub.f32 %v737, %v748
      %v771 = vsub.f32 %v738, %v751
      %v772 = vsub.f32 %v739, %v754
      %v773 = vsub.f32 %v740, %v757
      %v774 = vsub.f32 %v741, %v760
      %v775 = vsub.f32 %v742, %v763
      %v776 = vsub.f32 %v743, %v766
      %v777 = vsub.f32 %v744, %v769
      %v778 = vmul.f32 %v770, 1.442695
      %v779 = vpow.pop %v778
      %v780 = vmul.f32 %v771, 1.442695
      %v781 = vpow.pop %v780
      %v782 = vmul.f32 %v772, 1.442695
      %v783 = vpow.pop %v782
      %v784 = vmul.f32 %v773, 1.442695
      %v785 = vpow.pop %v784
      %v786 = vmul.f32 %v774, 1.442695
      %v787 = vpow.pop %v786
      %v788 = vmul.f32 %v775, 1.442695
      %v789 = vpow.pop %v788
      %v790 = vmul.f32 %v776, 1.442695
      %v791 = vpow.pop %v790
      %v792 = vmul.f32 %v777, 1.442695
      %v793 = vpow.pop %v792
      %v794 = vsel %vm745, %v779, 0.0
      %795 = vadd.xlane.f32.xlu0 %v794
      %v796 = vpop.xlane.xlu0 %795
      %v797 = vsel %vm745, %v781, 0.0
      %798 = vadd.xlane.f32.xlu0 %v797
      %v799 = vpop.xlane.xlu0 %798
      %v800 = vsel %vm745, %v783, 0.0
      %801 = vadd.xlane.f32.xlu0 %v800
      %v802 = vpop.xlane.xlu0 %801
      %v803 = vsel %vm745, %v785, 0.0
      %804 = vadd.xlane.f32.xlu0 %v803
      %v805 = vpop.xlane.xlu0 %804
      %v806 = vsel %vm745, %v787, 0.0
      %807 = vadd.xlane.f32.xlu0 %v806
      %v808 = vpop.xlane.xlu0 %807
      %v809 = vsel %vm745, %v789, 0.0
      %810 = vadd.xlane.f32.xlu0 %v809
      %v811 = vpop.xlane.xlu0 %810
      %v812 = vsel %vm745, %v791, 0.0
      %813 = vadd.xlane.f32.xlu0 %v812
      %v814 = vpop.xlane.xlu0 %813
      %v815 = vsel %vm745, %v793, 0.0
      %816 = vadd.xlane.f32.xlu0 %v815
      %v817 = vpop.xlane.xlu0 %816
      %v818 = vrcp.pop %v796
      %v819 = vmul.f32 %v779, %v818
      %v820 = vrcp.pop %v799
      %v821 = vmul.f32 %v781, %v820
      %v822 = vrcp.pop %v802
      %v823 = vmul.f32 %v783, %v822
      %v824 = vrcp.pop %v805
      %v825 = vmul.f32 %v785, %v824
      %v826 = vrcp.pop %v808
      %v827 = vmul.f32 %v787, %v826
      %v828 = vrcp.pop %v811
      %v829 = vmul.f32 %v789, %v828
      %v830 = vrcp.pop %v814
      %v831 = vmul.f32 %v791, %v830
      %v832 = vrcp.pop %v817
      %v833 = vmul.f32 %v793, %v832
      %v834 = vpack.c.bf16 %v821, %v819
      %v835 = vpack.c.bf16 %v825, %v823
      %v836 = vpack.c.bf16 %v829, %v827
      %v837 = vpack.c.bf16 %v833, %v831
      %v839 = vsel %vm745, %v834, 0
      %v842 = vsel %vm745, %v835, 0
      %v845 = vsel %vm745, %v836, 0
      %v848 = vsel %vm745, %v837, 0
      %850 = vmatprep.subr.bf16.mxu0 0
      %851 = vmatpush1.bf16.msra.mxu0 %v655
      %852 = vmatprep.subr.bf16.mxu0 0
      %853 = vmatpush1.bf16.msra.mxu0 0
      %854 = vmatprep.subr.bf16.mxu0 0
      %855 = vmatpush1.bf16.msra.mxu0 0
      %856 = vmatprep.subr.bf16.mxu0 0
      %857 = vmatpush1.bf16.msra.mxu0 0
      %858 = vmatprep.subr.bf16.mxu0 0
      %859 = vmatpush1.bf16.msra.mxu0 0
      %860 = vmatprep.subr.bf16.mxu0 0
      %861 = vmatpush1.bf16.msra.mxu0 0
      %862 = vmatprep.subr.bf16.mxu0 0
      %863 = vmatpush1.bf16.msra.mxu0 0
      %864 = vmatprep.subr.bf16.mxu0 0
      %865 = vmatpush1.bf16.msra.mxu0 0
      %866 = vmatprep.subr.bf16.mxu0 0
      %867 = vmatpush1.bf16.msra.mxu0 0
      %868 = vmatprep.subr.bf16.mxu0 0
      %869 = vmatpush1.bf16.msra.mxu0 0
      %870 = vmatprep.subr.bf16.mxu0 0
      %871 = vmatpush1.bf16.msra.mxu0 0
      %872 = vmatprep.subr.bf16.mxu0 0
      %873 = vmatpush1.bf16.msra.mxu0 0
      %874 = vmatprep.subr.bf16.mxu0 0
      %875 = vmatpush1.bf16.msra.mxu0 0
      %876 = vmatprep.subr.bf16.mxu0 0
      %877 = vmatpush1.bf16.msra.mxu0 0
      %878 = vmatprep.subr.bf16.mxu0 0
      %879 = vmatpush1.bf16.msra.mxu0 0
      %880 = vmatprep.subr.bf16.mxu0 0
      %881 = vmatpush1.bf16.msra.mxu0 0
      %882 = vmatprep.mubr.bf16.mxu0 0
      %883 = vmatmul.mubr.bf16.gmra.mrb[0].mxu0 %v839
      %v884 = vpop.f32.mrb[0].mxu0
      %v885 = vadd.f32 0.0, %v884
      %v886 = vpop.f32.mrb[0].mxu0
      %v887 = vpop.f32.mrb[0].mxu0
      %v888 = vadd.f32 0.0, %v887
      %v889 = vpop.f32.mrb[0].mxu0
      %890 = vmatprep.mubr.bf16.mxu0 0
      %891 = vmatmul.mubr.bf16.gmra.mrb[0].mxu0 %v842
      %v892 = vpop.f32.mrb[0].mxu0
      %v893 = vadd.f32 0.0, %v892
      %v894 = vpop.f32.mrb[0].mxu0
      %v895 = vpop.f32.mrb[0].mxu0
      %v896 = vadd.f32 0.0, %v895
      %v897 = vpop.f32.mrb[0].mxu0
      %898 = vmatprep.mubr.bf16.mxu0 0
      %899 = vmatmul.mubr.bf16.gmra.mrb[0].mxu0 %v845
      %v900 = vpop.f32.mrb[0].mxu0
      %v901 = vadd.f32 0.0, %v900
      %v902 = vpop.f32.mrb[0].mxu0
      %v903 = vpop.f32.mrb[0].mxu0
      %v904 = vadd.f32 0.0, %v903
      %v905 = vpop.f32.mrb[0].mxu0
      %906 = vmatprep.mubr.bf16.mxu0 0
      %907 = vmatmul.mubr.bf16.gmra.mrb[0].mxu0 %v848
      %v908 = vpop.f32.mrb[0].mxu0
      %v909 = vadd.f32 0.0, %v908
      %v910 = vpop.f32.mrb[0].mxu0
      %v911 = vpop.f32.mrb[0].mxu0
      %v912 = vadd.f32 0.0, %v911
      %v913 = vpop.f32.mrb[0].mxu0
      %914 = vdwg.mxu0
      %919 = vrot.lane.b32.xlu0 %v650, 120
      %v920 = vpop.permute.xlu0 %919
      %921 = vrot.lane.b32.xlu0 %v651, 120
      %v922 = vpop.permute.xlu0 %921
      %923 = vrot.lane.b32.xlu0 %v652, 120
      %v924 = vpop.permute.xlu0 %923
      %925 = vrot.lane.b32.xlu0 %v653, 120
      %v926 = vpop.permute.xlu0 %925
      %928 = vrot.lane.b32.xlu0 %v654, 120
      %v929 = vpop.permute.xlu0 %928
      %v931 = vsel %vm656, %v920, 0
      %v934 = vsel %vm656, %v922, 0
      %v937 = vsel %vm656, %v924, 0
      %v940 = vsel %vm656, %v926, 0
      %v943 = vsel %vm656, %v929, 0
      %945 = vmatprep.subr.bf16.mxu0 0
      %946 = vmatpush1.bf16.xpose.msra.mxu0 %v943
      %947 = vmatprep.subr.bf16.mxu0 0
      %948 = vmatpush1.bf16.xpose.msra.mxu0 0
      %949 = vmatprep.subr.bf16.mxu0 0
      %950 = vmatpush1.bf16.xpose.msra.mxu0 0
      %951 = vmatprep.subr.bf16.mxu0 0
      %952 = vmatpush1.bf16.xpose.msra.mxu0 0
      %953 = vmatprep.subr.bf16.mxu0 0
      %954 = vmatpush1.bf16.xpose.msra.mxu0 0
      %955 = vmatprep.subr.bf16.mxu0 0
      %956 = vmatpush1.bf16.xpose.msra.mxu0 0
      %957 = vmatprep.subr.bf16.mxu0 0
      %958 = vmatpush1.bf16.xpose.msra.mxu0 0
      %959 = vmatprep.subr.bf16.mxu0 0
      %960 = vmatpush1.bf16.xpose.msra.mxu0 0
      %961 = vmatprep.subr.bf16.mxu0 0
      %962 = vmatpush1.bf16.xpose.msra.mxu0 0
      %963 = vmatprep.subr.bf16.mxu0 0
      %964 = vmatpush1.bf16.xpose.msra.mxu0 0
      %965 = vmatprep.subr.bf16.mxu0 0
      %966 = vmatpush1.bf16.xpose.msra.mxu0 0
      %967 = vmatprep.subr.bf16.mxu0 0
      %968 = vmatpush1.bf16.xpose.msra.mxu0 0
      %969 = vmatprep.subr.bf16.mxu0 0
      %970 = vmatpush1.bf16.xpose.msra.mxu0 0
      %971 = vmatprep.subr.bf16.mxu0 0
      %972 = vmatpush1.bf16.xpose.msra.mxu0 0
      %973 = vmatprep.subr.bf16.mxu0 0
      %974 = vmatpush1.bf16.xpose.msra.mxu0 0
      %975 = vmatprep.subr.bf16.mxu0 0
      %976 = vmatpush1.bf16.xpose.msra.mxu0 0
      %977 = vmatprep.mubr.bf16.mxu0 0
      %978 = vmatmul.mubr.bf16.gmra.mrb[0].mxu0 %v931
      %v979 = vpop.f32.mrb[0].mxu0
      %v980 = vadd.f32 0.0, %v979
      %v981 = vpop.f32.mrb[0].mxu0
      %v982 = vpop.f32.mrb[0].mxu0
      %v983 = vadd.f32 0.0, %v982
      %v984 = vpop.f32.mrb[0].mxu0
      %985 = vmatprep.mubr.bf16.mxu0 0
      %986 = vmatmul.mubr.bf16.gmra.mrb[0].mxu0 %v934
      %v987 = vpop.f32.mrb[0].mxu0
      %v988 = vadd.f32 0.0, %v987
      %v989 = vpop.f32.mrb[0].mxu0
      %v990 = vpop.f32.mrb[0].mxu0
      %v991 = vadd.f32 0.0, %v990
      %v992 = vpop.f32.mrb[0].mxu0
      %993 = vmatprep.mubr.bf16.mxu0 0
      %994 = vmatmul.mubr.bf16.gmra.mrb[0].mxu0 %v937
      %v995 = vpop.f32.mrb[0].mxu0
      %v996 = vadd.f32 0.0, %v995
      %v997 = vpop.f32.mrb[0].mxu0
      %v998 = vpop.f32.mrb[0].mxu0
      %v999 = vadd.f32 0.0, %v998
      %v1000 = vpop.f32.mrb[0].mxu0
      %1001 = vmatprep.mubr.bf16.mxu0 0
      %1002 = vmatmul.mubr.bf16.gmra.mrb[0].mxu0 %v940
      %v1003 = vpop.f32.mrb[0].mxu0
      %v1004 = vadd.f32 0.0, %v1003
      %v1005 = vpop.f32.mrb[0].mxu0
      %v1006 = vpop.f32.mrb[0].mxu0
      %v1007 = vadd.f32 0.0, %v1006
      %v1008 = vpop.f32.mrb[0].mxu0
      %1009 = vdwg.mxu0
      %v1010 = vmul.f32 %v980, 0.35355338
      %v1011 = vmul.f32 %v983, 0.35355338
      %v1012 = vmul.f32 %v988, 0.35355338
      %v1013 = vmul.f32 %v991, 0.35355338
      %v1014 = vmul.f32 %v996, 0.35355338
      %v1015 = vmul.f32 %v999, 0.35355338
      %v1016 = vmul.f32 %v1004, 0.35355338
      %v1017 = vmul.f32 %v1007, 0.35355338
      %v1018 = vsel %vm745, %v1010, -inf
      %1019 = vmax.xlane.f32.xlu0 %v1018
      %v1020 = vpop.xlane.xlu0 %1019
      %v1021 = vsel %vm745, %v1011, -inf
      %1022 = vmax.xlane.f32.xlu0 %v1021
      %v1023 = vpop.xlane.xlu0 %1022
      %v1024 = vsel %vm745, %v1012, -inf
      %1025 = vmax.xlane.f32.xlu0 %v1024
      %v1026 = vpop.xlane.xlu0 %1025
      %v1027 = vsel %vm745, %v1013, -inf
      %1028 = vmax.xlane.f32.xlu0 %v1027
      %v1029 = vpop.xlane.xlu0 %1028
      %v1030 = vsel %vm745, %v1014, -inf
      %1031 = vmax.xlane.f32.xlu0 %v1030
      %v1032 = vpop.xlane.xlu0 %1031
      %v1033 = vsel %vm745, %v1015, -inf
      %1034 = vmax.xlane.f32.xlu0 %v1033
      %v1035 = vpop.xlane.xlu0 %1034
      %v1036 = vsel %vm745, %v1016, -inf
      %1037 = vmax.xlane.f32.xlu0 %v1036
      %v1038 = vpop.xlane.xlu0 %1037
      %v1039 = vsel %vm745, %v1017, -inf
      %1040 = vmax.xlane.f32.xlu0 %v1039
      %v1041 = vpop.xlane.xlu0 %1040
      %v1042 = vsub.f32 %v1010, %v1020
      %v1043 = vsub.f32 %v1011, %v1023
      %v1044 = vsub.f32 %v1012, %v1026
      %v1045 = vsub.f32 %v1013, %v1029
      %v1046 = vsub.f32 %v1014, %v1032
      %v1047 = vsub.f32 %v1015, %v1035
      %v1048 = vsub.f32 %v1016, %v1038
      %v1049 = vsub.f32 %v1017, %v1041
      %v1050 = vmul.f32 %v1042, 1.442695
      %v1051 = vpow.pop %v1050
      %v1052 = vmul.f32 %v1043, 1.442695
      %v1053 = vpow.pop %v1052
      %v1054 = vmul.f32 %v1044, 1.442695
      %v1055 = vpow.pop %v1054
      %v1056 = vmul.f32 %v1045, 1.442695
      %v1057 = vpow.pop %v1056
      %v1058 = vmul.f32 %v1046, 1.442695
      %v1059 = vpow.pop %v1058
      %v1060 = vmul.f32 %v1047, 1.442695
      %v1061 = vpow.pop %v1060
      %v1062 = vmul.f32 %v1048, 1.442695
      %v1063 = vpow.pop %v1062
      %v1064 = vmul.f32 %v1049, 1.442695
      %v1065 = vpow.pop %v1064
      %v1066 = vsel %vm745, %v1051, 0.0
      %1067 = vadd.xlane.f32.xlu0 %v1066
      %v1068 = vpop.xlane.xlu0 %1067
      %v1069 = vsel %vm745, %v1053, 0.0
      %1070 = vadd.xlane.f32.xlu0 %v1069
      %v1071 = vpop.xlane.xlu0 %1070
      %v1072 = vsel %vm745, %v1055, 0.0
      %1073 = vadd.xlane.f32.xlu0 %v1072
      %v1074 = vpop.xlane.xlu0 %1073
      %v1075 = vsel %vm745, %v1057, 0.0
      %1076 = vadd.xlane.f32.xlu0 %v1075
      %v1077 = vpop.xlane.xlu0 %1076
      %v1078 = vsel %vm745, %v1059, 0.0
      %1079 = vadd.xlane.f32.xlu0 %v1078
      %v1080 = vpop.xlane.xlu0 %1079
      %v1081 = vsel %vm745, %v1061, 0.0
      %1082 = vadd.xlane.f32.xlu0 %v1081
      %v1083 = vpop.xlane.xlu0 %1082
      %v1084 = vsel %vm745, %v1063, 0.0
      %1085 = vadd.xlane.f32.xlu0 %v1084
      %v1086 = vpop.xlane.xlu0 %1085
      %v1087 = vsel %vm745, %v1065, 0.0
      %1088 = vadd.xlane.f32.xlu0 %v1087
      %v1089 = vpop.xlane.xlu0 %1088
      %v1090 = vrcp.pop %v1068
      %v1091 = vmul.f32 %v1051, %v1090
      %v1092 = vrcp.pop %v1071
      %v1093 = vmul.f32 %v1053, %v1092
      %v1094 = vrcp.pop %v1074
      %v1095 = vmul.f32 %v1055, %v1094
      %v1096 = vrcp.pop %v1077
      %v1097 = vmul.f32 %v1057, %v1096
      %v1098 = vrcp.pop %v1080
      %v1099 = vmul.f32 %v1059, %v1098
      %v1100 = vrcp.pop %v1083
      %v1101 = vmul.f32 %v1061, %v1100
      %v1102 = vrcp.pop %v1086
      %v1103 = vmul.f32 %v1063, %v1102
      %v1104 = vrcp.pop %v1089
      %v1105 = vmul.f32 %v1065, %v1104
      %v1106 = vpack.c.bf16 %v1093, %v1091
      %v1107 = vpack.c.bf16 %v1097, %v1095
      %v1108 = vpack.c.bf16 %v1101, %v1099
      %v1109 = vpack.c.bf16 %v1105, %v1103
      %1111 = vrot.lane.b32.xlu0 %v655, 120
      %v1112 = vpop.permute.xlu0 %1111
      %v1115 = vsel %vm745, %v1106, 0
      %v1118 = vsel %vm745, %v1107, 0
      %v1121 = vsel %vm745, %v1108, 0
      %v1124 = vsel %vm745, %v1109, 0
      %1126 = vmatprep.subr.bf16.mxu0 0
      %1127 = vmatpush1.bf16.msra.mxu0 %v1112
      %1128 = vmatprep.subr.bf16.mxu0 0
      %1129 = vmatpush1.bf16.msra.mxu0 0
      %1130 = vmatprep.subr.bf16.mxu0 0
      %1131 = vmatpush1.bf16.msra.mxu0 0
      %1132 = vmatprep.subr.bf16.mxu0 0
      %1133 = vmatpush1.bf16.msra.mxu0 0
      %1134 = vmatprep.subr.bf16.mxu0 0
      %1135 = vmatpush1.bf16.msra.mxu0 0
      %1136 = vmatprep.subr.bf16.mxu0 0
      %1137 = vmatpush1.bf16.msra.mxu0 0
      %1138 = vmatprep.subr.bf16.mxu0 0
      %1139 = vmatpush1.bf16.msra.mxu0 0
      %1140 = vmatprep.subr.bf16.mxu0 0
      %1141 = vmatpush1.bf16.msra.mxu0 0
      %1142 = vmatprep.subr.bf16.mxu0 0
      %1143 = vmatpush1.bf16.msra.mxu0 0
      %1144 = vmatprep.subr.bf16.mxu0 0
      %1145 = vmatpush1.bf16.msra.mxu0 0
      %1146 = vmatprep.subr.bf16.mxu0 0
      %1147 = vmatpush1.bf16.msra.mxu0 0
      %1148 = vmatprep.subr.bf16.mxu0 0
      %1149 = vmatpush1.bf16.msra.mxu0 0
      %1150 = vmatprep.subr.bf16.mxu0 0
      %1151 = vmatpush1.bf16.msra.mxu0 0
      %1152 = vmatprep.subr.bf16.mxu0 0
      %1153 = vmatpush1.bf16.msra.mxu0 0
      %1154 = vmatprep.subr.bf16.mxu0 0
      %1155 = vmatpush1.bf16.msra.mxu0 0
      %1156 = vmatprep.subr.bf16.mxu0 0
      %1157 = vmatpush1.bf16.msra.mxu0 0
      %1158 = vmatprep.mubr.bf16.mxu0 0
      %1159 = vmatmul.mubr.bf16.gmra.mrb[0].mxu0 %v1115
      %v1160 = vpop.f32.mrb[0].mxu0
      %v1161 = vadd.f32 0.0, %v1160
      %v1162 = vpop.f32.mrb[0].mxu0
      %v1163 = vpop.f32.mrb[0].mxu0
      %v1164 = vadd.f32 0.0, %v1163
      %v1165 = vpop.f32.mrb[0].mxu0
      %1166 = vmatprep.mubr.bf16.mxu0 0
      %1167 = vmatmul.mubr.bf16.gmra.mrb[0].mxu0 %v1118
      %v1168 = vpop.f32.mrb[0].mxu0
      %v1169 = vadd.f32 0.0, %v1168
      %v1170 = vpop.f32.mrb[0].mxu0
      %v1171 = vpop.f32.mrb[0].mxu0
      %v1172 = vadd.f32 0.0, %v1171
      %v1173 = vpop.f32.mrb[0].mxu0
      %1174 = vmatprep.mubr.bf16.mxu0 0
      %1175 = vmatmul.mubr.bf16.gmra.mrb[0].mxu0 %v1121
      %v1176 = vpop.f32.mrb[0].mxu0
      %v1177 = vadd.f32 0.0, %v1176
      %v1178 = vpop.f32.mrb[0].mxu0
      %v1179 = vpop.f32.mrb[0].mxu0
      %v1180 = vadd.f32 0.0, %v1179
      %v1181 = vpop.f32.mrb[0].mxu0
      %1182 = vmatprep.mubr.bf16.mxu0 0
      %1183 = vmatmul.mubr.bf16.gmra.mrb[0].mxu0 %v1124
      %v1184 = vpop.f32.mrb[0].mxu0
      %v1185 = vadd.f32 0.0, %v1184
      %v1186 = vpop.f32.mrb[0].mxu0
      %v1187 = vpop.f32.mrb[0].mxu0
      %v1188 = vadd.f32 0.0, %v1187
      %v1189 = vpop.f32.mrb[0].mxu0
      %1190 = vdwg.mxu0
      %1191 = vrot.lane.b32.xlu0 %v650, 112
      %v1192 = vpop.permute.xlu0 %1191
      %1193 = vrot.lane.b32.xlu0 %v651, 112
      %v1194 = vpop.permute.xlu0 %1193
      %1195 = vrot.lane.b32.xlu0 %v652, 112
      %v1196 = vpop.permute.xlu0 %1195
      %1197 = vrot.lane.b32.xlu0 %v653, 112
      %v1198 = vpop.permute.xlu0 %1197
      %1199 = vrot.lane.b32.xlu0 %v654, 112
      %v1200 = vpop.permute.xlu0 %1199
      %v1202 = vsel %vm656, %v1192, 0
      %v1205 = vsel %vm656, %v1194, 0
      %v1208 = vsel %vm656, %v1196, 0
      %v1211 = vsel %vm656, %v1198, 0
      %v1214 = vsel %vm656, %v1200, 0
      %1216 = vmatprep.subr.bf16.mxu0 0
      %1217 = vmatpush1.bf16.xpose.msra.mxu0 %v1214
      %1218 = vmatprep.subr.bf16.mxu0 0
      %1219 = vmatpush1.bf16.xpose.msra.mxu0 0
      %1220 = vmatprep.subr.bf16.mxu0 0
      %1221 = vmatpush1.bf16.xpose.msra.mxu0 0
      %1222 = vmatprep.subr.bf16.mxu0 0
      %1223 = vmatpush1.bf16.xpose.msra.mxu0 0
      %1224 = vmatprep.subr.bf16.mxu0 0
      %1225 = vmatpush1.bf16.xpose.msra.mxu0 0
      %1226 = vmatprep.subr.bf16.mxu0 0
      %1227 = vmatpush1.bf16.xpose.msra.mxu0 0
      %1228 = vmatprep.subr.bf16.mxu0 0
      %1229 = vmatpush1.bf16.xpose.msra.mxu0 0
      %1230 = vmatprep.subr.bf16.mxu0 0
      %1231 = vmatpush1.bf16.xpose.msra.mxu0 0
      %1232 = vmatprep.subr.bf16.mxu0 0
      %1233 = vmatpush1.bf16.xpose.msra.mxu0 0
      %1234 = vmatprep.subr.bf16.mxu0 0
      %1235 = vmatpush1.bf16.xpose.msra.mxu0 0
      %1236 = vmatprep.subr.bf16.mxu0 0
      %1237 = vmatpush1.bf16.xpose.msra.mxu0 0
      %1238 = vmatprep.subr.bf16.mxu0 0
      %1239 = vmatpush1.bf16.xpose.msra.mxu0 0
      %1240 = vmatprep.subr.bf16.mxu0 0
      %1241 = vmatpush1.bf16.xpose.msra.mxu0 0
      %1242 = vmatprep.subr.bf16.mxu0 0
      %1243 = vmatpush1.bf16.xpose.msra.mxu0 0
      %1244 = vmatprep.subr.bf16.mxu0 0
      %1245 = vmatpush1.bf16.xpose.msra.mxu0 0
      %1246 = vmatprep.subr.bf16.mxu0 0
      %1247 = vmatpush1.bf16.xpose.msra.mxu0 0
      %1248 = vmatprep.mubr.bf16.mxu0 0
      %1249 = vmatmul.mubr.bf16.gmra.mrb[0].mxu0 %v1202
      %v1250 = vpop.f32.mrb[0].mxu0
      %v1251 = vadd.f32 0.0, %v1250
      %v1252 = vpop.f32.mrb[0].mxu0
      %v1253 = vpop.f32.mrb[0].mxu0
      %v1254 = vadd.f32 0.0, %v1253
      %v1255 = vpop.f32.mrb[0].mxu0
      %1256 = vmatprep.mubr.bf16.mxu0 0
      %1257 = vmatmul.mubr.bf16.gmra.mrb[0].mxu0 %v1205
      %v1258 = vpop.f32.mrb[0].mxu0
      %v1259 = vadd.f32 0.0, %v1258
      %v1260 = vpop.f32.mrb[0].mxu0
      %v1261 = vpop.f32.mrb[0].mxu0
      %v1262 = vadd.f32 0.0, %v1261
      %v1263 = vpop.f32.mrb[0].mxu0
      %1264 = vmatprep.mubr.bf16.mxu0 0
      %1265 = vmatmul.mubr.bf16.gmra.mrb[0].mxu0 %v1208
      %v1266 = vpop.f32.mrb[0].mxu0
      %v1267 = vadd.f32 0.0, %v1266
      %v1268 = vpop.f32.mrb[0].mxu0
      %v1269 = vpop.f32.mrb[0].mxu0
      %v1270 = vadd.f32 0.0, %v1269
      %v1271 = vpop.f32.mrb[0].mxu0
      %1272 = vmatprep.mubr.bf16.mxu0 0
      %1273 = vmatmul.mubr.bf16.gmra.mrb[0].mxu0 %v1211
      %v1274 = vpop.f32.mrb[0].mxu0
      %v1275 = vadd.f32 0.0, %v1274
      %v1276 = vpop.f32.mrb[0].mxu0
      %v1277 = vpop.f32.mrb[0].mxu0
      %v1278 = vadd.f32 0.0, %v1277
      %v1279 = vpop.f32.mrb[0].mxu0
      %1280 = vdwg.mxu0
      %v1281 = vmul.f32 %v1251, 0.35355338
      %v1282 = vmul.f32 %v1254, 0.35355338
      %v1283 = vmul.f32 %v1259, 0.35355338
      %v1284 = vmul.f32 %v1262, 0.35355338
      %v1285 = vmul.f32 %v1267, 0.35355338
      %v1286 = vmul.f32 %v1270, 0.35355338
      %v1287 = vmul.f32 %v1275, 0.35355338
      %v1288 = vmul.f32 %v1278, 0.35355338
      %v1289 = vsel %vm745, %v1281, -inf
      %1290 = vmax.xlane.f32.xlu0 %v1289
      %v1291 = vpop.xlane.xlu0 %1290
      %v1292 = vsel %vm745, %v1282, -inf
      %1293 = vmax.xlane.f32.xlu0 %v1292
      %v1294 = vpop.xlane.xlu0 %1293
      %v1295 = vsel %vm745, %v1283, -inf
      %1296 = vmax.xlane.f32.xlu0 %v1295
      %v1297 = vpop.xlane.xlu0 %1296
      %v1298 = vsel %vm745, %v1284, -inf
      %1299 = vmax.xlane.f32.xlu0 %v1298
      %v1300 = vpop.xlane.xlu0 %1299
      %v1301 = vsel %vm745, %v1285, -inf
      %1302 = vmax.xlane.f32.xlu0 %v1301
      %v1303 = vpop.xlane.xlu0 %1302
      %v1304 = vsel %vm745, %v1286, -inf
      %1305 = vmax.xlane.f32.xlu0 %v1304
      %v1306 = vpop.xlane.xlu0 %1305
      %v1307 = vsel %vm745, %v1287, -inf
      %1308 = vmax.xlane.f32.xlu0 %v1307
      %v1309 = vpop.xlane.xlu0 %1308
      %v1310 = vsel %vm745, %v1288, -inf
      %1311 = vmax.xlane.f32.xlu0 %v1310
      %v1312 = vpop.xlane.xlu0 %1311
      %v1313 = vsub.f32 %v1281, %v1291
      %v1314 = vsub.f32 %v1282, %v1294
      %v1315 = vsub.f32 %v1283, %v1297
      %v1316 = vsub.f32 %v1284, %v1300
      %v1317 = vsub.f32 %v1285, %v1303
      %v1318 = vsub.f32 %v1286, %v1306
      %v1319 = vsub.f32 %v1287, %v1309
      %v1320 = vsub.f32 %v1288, %v1312
      %v1321 = vmul.f32 %v1313, 1.442695
      %v1322 = vpow.pop %v1321
      %v1323 = vmul.f32 %v1314, 1.442695
      %v1324 = vpow.pop %v1323
      %v1325 = vmul.f32 %v1315, 1.442695
      %v1326 = vpow.pop %v1325
      %v1327 = vmul.f32 %v1316, 1.442695
      %v1328 = vpow.pop %v1327
      %v1329 = vmul.f32 %v1317, 1.442695
      %v1330 = vpow.pop %v1329
      %v1331 = vmul.f32 %v1318, 1.442695
      %v1332 = vpow.pop %v1331
      %v1333 = vmul.f32 %v1319, 1.442695
      %v1334 = vpow.pop %v1333
      %v1335 = vmul.f32 %v1320, 1.442695
      %v1336 = vpow.pop %v1335
      %v1337 = vsel %vm745, %v1322, 0.0
      %1338 = vadd.xlane.f32.xlu0 %v1337
      %v1339 = vpop.xlane.xlu0 %1338
      %v1340 = vsel %vm745, %v1324, 0.0
      %1341 = vadd.xlane.f32.xlu0 %v1340
      %v1342 = vpop.xlane.xlu0 %1341
      %v1343 = vsel %vm745, %v1326, 0.0
      %1344 = vadd.xlane.f32.xlu0 %v1343
      %v1345 = vpop.xlane.xlu0 %1344
      %v1346 = vsel %vm745, %v1328, 0.0
      %1347 = vadd.xlane.f32.xlu0 %v1346
      %v1348 = vpop.xlane.xlu0 %1347
      %v1349 = vsel %vm745, %v1330, 0.0
      %1350 = vadd.xlane.f32.xlu0 %v1349
      %v1351 = vpop.xlane.xlu0 %1350
      %v1352 = vsel %vm745, %v1332, 0.0
      %1353 = vadd.xlane.f32.xlu0 %v1352
      %v1354 = vpop.xlane.xlu0 %1353
      %v1355 = vsel %vm745, %v1334, 0.0
      %1356 = vadd.xlane.f32.xlu0 %v1355
      %v1357 = vpop.xlane.xlu0 %1356
      %v1358 = vsel %vm745, %v1336, 0.0
      %1359 = vadd.xlane.f32.xlu0 %v1358
      %v1360 = vpop.xlane.xlu0 %1359
      %v1361 = vrcp.pop %v1339
      %v1362 = vmul.f32 %v1322, %v1361
      %v1363 = vrcp.pop %v1342
      %v1364 = vmul.f32 %v1324, %v1363
      %v1365 = vrcp.pop %v1345
      %v1366 = vmul.f32 %v1326, %v1365
      %v1367 = vrcp.pop %v1348
      %v1368 = vmul.f32 %v1328, %v1367
      %v1369 = vrcp.pop %v1351
      %v1370 = vmul.f32 %v1330, %v1369
      %v1371 = vrcp.pop %v1354
      %v1372 = vmul.f32 %v1332, %v1371
      %v1373 = vrcp.pop %v1357
      %v1374 = vmul.f32 %v1334, %v1373
      %v1375 = vrcp.pop %v1360
      %v1376 = vmul.f32 %v1336, %v1375
      %v1377 = vpack.c.bf16 %v1364, %v1362
      %v1378 = vpack.c.bf16 %v1368, %v1366
      %v1379 = vpack.c.bf16 %v1372, %v1370
      %v1380 = vpack.c.bf16 %v1376, %v1374
      %1381 = vrot.lane.b32.xlu0 %v655, 112
      %v1382 = vpop.permute.xlu0 %1381
      %v1385 = vsel %vm745, %v1377, 0
      %v1388 = vsel %vm745, %v1378, 0
      %v1391 = vsel %vm745, %v1379, 0
      %v1394 = vsel %vm745, %v1380, 0
      %1396 = vmatprep.subr.bf16.mxu0 0
      %1397 = vmatpush1.bf16.msra.mxu0 %v1382
      %1398 = vmatprep.subr.bf16.mxu0 0
      %1399 = vmatpush1.bf16.msra.mxu0 0
      %1400 = vmatprep.subr.bf16.mxu0 0
      %1401 = vmatpush1.bf16.msra.mxu0 0
      %1402 = vmatprep.subr.bf16.mxu0 0
      %1403 = vmatpush1.bf16.msra.mxu0 0
      %1404 = vmatprep.subr.bf16.mxu0 0
      %1405 = vmatpush1.bf16.msra.mxu0 0
      %1406 = vmatprep.subr.bf16.mxu0 0
      %1407 = vmatpush1.bf16.msra.mxu0 0
      %1408 = vmatprep.subr.bf16.mxu0 0
      %1409 = vmatpush1.bf16.msra.mxu0 0
      %1410 = vmatprep.subr.bf16.mxu0 0
      %1411 = vmatpush1.bf16.msra.mxu0 0
      %1412 = vmatprep.subr.bf16.mxu0 0
      %1413 = vmatpush1.bf16.msra.mxu0 0
      %1414 = vmatprep.subr.bf16.mxu0 0
      %1415 = vmatpush1.bf16.msra.mxu0 0
      %1416 = vmatprep.subr.bf16.mxu0 0
      %1417 = vmatpush1.bf16.msra.mxu0 0
      %1418 = vmatprep.subr.bf16.mxu0 0
      %1419 = vmatpush1.bf16.msra.mxu0 0
      %1420 = vmatprep.subr.bf16.mxu0 0
      %1421 = vmatpush1.bf16.msra.mxu0 0
      %1422 = vmatprep.subr.bf16.mxu0 0
      %1423 = vmatpush1.bf16.msra.mxu0 0
      %1424 = vmatprep.subr.bf16.mxu0 0
      %1425 = vmatpush1.bf16.msra.mxu0 0
      %1426 = vmatprep.subr.bf16.mxu0 0
      %1427 = vmatpush1.bf16.msra.mxu0 0
      %1428 = vmatprep.mubr.bf16.mxu0 0
      %1429 = vmatmul.mubr.bf16.gmra.mrb[0].mxu0 %v1385
      %v1430 = vpop.f32.mrb[0].mxu0
      %v1431 = vadd.f32 0.0, %v1430
      %v1432 = vpop.f32.mrb[0].mxu0
      %v1433 = vpop.f32.mrb[0].mxu0
      %v1434 = vadd.f32 0.0, %v1433
      %v1435 = vpop.f32.mrb[0].mxu0
      %1436 = vmatprep.mubr.bf16.mxu0 0
      %1437 = vmatmul.mubr.bf16.gmra.mrb[0].mxu0 %v1388
      %v1438 = vpop.f32.mrb[0].mxu0
      %v1439 = vadd.f32 0.0, %v1438
      %v1440 = vpop.f32.mrb[0].mxu0
      %v1441 = vpop.f32.mrb[0].mxu0
      %v1442 = vadd.f32 0.0, %v1441
      %v1443 = vpop.f32.mrb[0].mxu0
      %1444 = vmatprep.mubr.bf16.mxu0 0
      %1445 = vmatmul.mubr.bf16.gmra.mrb[0].mxu0 %v1391
      %v1446 = vpop.f32.mrb[0].mxu0
      %v1447 = vadd.f32 0.0, %v1446
      %v1448 = vpop.f32.mrb[0].mxu0
      %v1449 = vpop.f32.mrb[0].mxu0
      %v1450 = vadd.f32 0.0, %v1449
      %v1451 = vpop.f32.mrb[0].mxu0
      %1452 = vmatprep.mubr.bf16.mxu0 0
      %1453 = vmatmul.mubr.bf16.gmra.mrb[0].mxu0 %v1394
      %v1454 = vpop.f32.mrb[0].mxu0
      %v1455 = vadd.f32 0.0, %v1454
      %v1456 = vpop.f32.mrb[0].mxu0
      %v1457 = vpop.f32.mrb[0].mxu0
      %v1458 = vadd.f32 0.0, %v1457
      %v1459 = vpop.f32.mrb[0].mxu0
      %1460 = vdwg.mxu0
      %1461 = vrot.lane.b32.xlu0 %v650, 104
      %v1462 = vpop.permute.xlu0 %1461
      %1463 = vrot.lane.b32.xlu0 %v651, 104
      %v1464 = vpop.permute.xlu0 %1463
      %1465 = vrot.lane.b32.xlu0 %v652, 104
      %v1466 = vpop.permute.xlu0 %1465
      %1467 = vrot.lane.b32.xlu0 %v653, 104
      %v1468 = vpop.permute.xlu0 %1467
      %1469 = vrot.lane.b32.xlu0 %v654, 104
      %v1470 = vpop.permute.xlu0 %1469
      %v1472 = vsel %vm656, %v1462, 0
      %v1475 = vsel %vm656, %v1464, 0
      %v1478 = vsel %vm656, %v1466, 0
      %v1481 = vsel %vm656, %v1468, 0
      %v1484 = vsel %vm656, %v1470, 0
      %1486 = vmatprep.subr.bf16.mxu0 0
      %1487 = vmatpush1.bf16.xpose.msra.mxu0 %v1484
      %1488 = vmatprep.subr.bf16.mxu0 0
      %1489 = vmatpush1.bf16.xpose.msra.mxu0 0
      %1490 = vmatprep.subr.bf16.mxu0 0
      %1491 = vmatpush1.bf16.xpose.msra.mxu0 0
      %1492 = vmatprep.subr.bf16.mxu0 0
      %1493 = vmatpush1.bf16.xpose.msra.mxu0 0
      %1494 = vmatprep.subr.bf16.mxu0 0
      %1495 = vmatpush1.bf16.xpose.msra.mxu0 0
      %1496 = vmatprep.subr.bf16.mxu0 0
      %1497 = vmatpush1.bf16.xpose.msra.mxu0 0
      %1498 = vmatprep.subr.bf16.mxu0 0
      %1499 = vmatpush1.bf16.xpose.msra.mxu0 0
      %1500 = vmatprep.subr.bf16.mxu0 0
      %1501 = vmatpush1.bf16.xpose.msra.mxu0 0
      %1502 = vmatprep.subr.bf16.mxu0 0
      %1503 = vmatpush1.bf16.xpose.msra.mxu0 0
      %1504 = vmatprep.subr.bf16.mxu0 0
      %1505 = vmatpush1.bf16.xpose.msra.mxu0 0
      %1506 = vmatprep.subr.bf16.mxu0 0
      %1507 = vmatpush1.bf16.xpose.msra.mxu0 0
      %1508 = vmatprep.subr.bf16.mxu0 0
      %1509 = vmatpush1.bf16.xpose.msra.mxu0 0
      %1510 = vmatprep.subr.bf16.mxu0 0
      %1511 = vmatpush1.bf16.xpose.msra.mxu0 0
      %1512 = vmatprep.subr.bf16.mxu0 0
      %1513 = vmatpush1.bf16.xpose.msra.mxu0 0
      %1514 = vmatprep.subr.bf16.mxu0 0
      %1515 = vmatpush1.bf16.xpose.msra.mxu0 0
      %1516 = vmatprep.subr.bf16.mxu0 0
      %1517 = vmatpush1.bf16.xpose.msra.mxu0 0
      %1518 = vmatprep.mubr.bf16.mxu0 0
      %1519 = vmatmul.mubr.bf16.gmra.mrb[0].mxu0 %v1472
      %v1520 = vpop.f32.mrb[0].mxu0
      %v1521 = vadd.f32 0.0, %v1520
      %v1522 = vpop.f32.mrb[0].mxu0
      %v1523 = vpop.f32.mrb[0].mxu0
      %v1524 = vadd.f32 0.0, %v1523
      %v1525 = vpop.f32.mrb[0].mxu0
      %1526 = vmatprep.mubr.bf16.mxu0 0
      %1527 = vmatmul.mubr.bf16.gmra.mrb[0].mxu0 %v1475
      %v1528 = vpop.f32.mrb[0].mxu0
      %v1529 = vadd.f32 0.0, %v1528
      %v1530 = vpop.f32.mrb[0].mxu0
      %v1531 = vpop.f32.mrb[0].mxu0
      %v1532 = vadd.f32 0.0, %v1531
      %v1533 = vpop.f32.mrb[0].mxu0
      %1534 = vmatprep.mubr.bf16.mxu0 0
      %1535 = vmatmul.mubr.bf16.gmra.mrb[0].mxu0 %v1478
      %v1536 = vpop.f32.mrb[0].mxu0
      %v1537 = vadd.f32 0.0, %v1536
      %v1538 = vpop.f32.mrb[0].mxu0
      %v1539 = vpop.f32.mrb[0].mxu0
      %v1540 = vadd.f32 0.0, %v1539
      %v1541 = vpop.f32.mrb[0].mxu0
      %1542 = vmatprep.mubr.bf16.mxu0 0
      %1543 = vmatmul.mubr.bf16.gmra.mrb[0].mxu0 %v1481
      %v1544 = vpop.f32.mrb[0].mxu0
      %v1545 = vadd.f32 0.0, %v1544
      %v1546 = vpop.f32.mrb[0].mxu0
      %v1547 = vpop.f32.mrb[0].mxu0
      %v1548 = vadd.f32 0.0, %v1547
      %v1549 = vpop.f32.mrb[0].mxu0
      %1550 = vdwg.mxu0
      %v1551 = vmul.f32 %v1521, 0.35355338
      %v1552 = vmul.f32 %v1524, 0.35355338
      %v1553 = vmul.f32 %v1529, 0.35355338
      %v1554 = vmul.f32 %v1532, 0.35355338
      %v1555 = vmul.f32 %v1537, 0.35355338
      %v1556 = vmul.f32 %v1540, 0.35355338
      %v1557 = vmul.f32 %v1545, 0.35355338
      %v1558 = vmul.f32 %v1548, 0.35355338
      %v1559 = vsel %vm745, %v1551, -inf
      %1560 = vmax.xlane.f32.xlu0 %v1559
      %v1561 = vpop.xlane.xlu0 %1560
      %v1562 = vsel %vm745, %v1552, -inf
      %1563 = vmax.xlane.f32.xlu0 %v1562
      %v1564 = vpop.xlane.xlu0 %1563
      %v1565 = vsel %vm745, %v1553, -inf
      %1566 = vmax.xlane.f32.xlu0 %v1565
      %v1567 = vpop.xlane.xlu0 %1566
      %v1568 = vsel %vm745, %v1554, -inf
      %1569 = vmax.xlane.f32.xlu0 %v1568
      %v1570 = vpop.xlane.xlu0 %1569
      %v1571 = vsel %vm745, %v1555, -inf
      %1572 = vmax.xlane.f32.xlu0 %v1571
      %v1573 = vpop.xlane.xlu0 %1572
      %v1574 = vsel %vm745, %v1556, -inf
      %1575 = vmax.xlane.f32.xlu0 %v1574
      %v1576 = vpop.xlane.xlu0 %1575
      %v1577 = vsel %vm745, %v1557, -inf
      %1578 = vmax.xlane.f32.xlu0 %v1577
      %v1579 = vpop.xlane.xlu0 %1578
      %v1580 = vsel %vm745, %v1558, -inf
      %1581 = vmax.xlane.f32.xlu0 %v1580
      %v1582 = vpop.xlane.xlu0 %1581
      %v1583 = vsub.f32 %v1551, %v1561
      %v1584 = vsub.f32 %v1552, %v1564
      %v1585 = vsub.f32 %v1553, %v1567
      %v1586 = vsub.f32 %v1554, %v1570
      %v1587 = vsub.f32 %v1555, %v1573
      %v1588 = vsub.f32 %v1556, %v1576
      %v1589 = vsub.f32 %v1557, %v1579
      %v1590 = vsub.f32 %v1558, %v1582
      %v1591 = vmul.f32 %v1583, 1.442695
      %v1592 = vpow.pop %v1591
      %v1593 = vmul.f32 %v1584, 1.442695
      %v1594 = vpow.pop %v1593
      %v1595 = vmul.f32 %v1585, 1.442695
      %v1596 = vpow.pop %v1595
      %v1597 = vmul.f32 %v1586, 1.442695
      %v1598 = vpow.pop %v1597
      %v1599 = vmul.f32 %v1587, 1.442695
      %v1600 = vpow.pop %v1599
      %v1601 = vmul.f32 %v1588, 1.442695
      %v1602 = vpow.pop %v1601
      %v1603 = vmul.f32 %v1589, 1.442695
      %v1604 = vpow.pop %v1603
      %v1605 = vmul.f32 %v1590, 1.442695
      %v1606 = vpow.pop %v1605
      %v1607 = vsel %vm745, %v1592, 0.0
      %1608 = vadd.xlane.f32.xlu0 %v1607
      %v1609 = vpop.xlane.xlu0 %1608
      %v1610 = vsel %vm745, %v1594, 0.0
      %1611 = vadd.xlane.f32.xlu0 %v1610
      %v1612 = vpop.xlane.xlu0 %1611
      %v1613 = vsel %vm745, %v1596, 0.0
      %1614 = vadd.xlane.f32.xlu0 %v1613
      %v1615 = vpop.xlane.xlu0 %1614
      %v1616 = vsel %vm745, %v1598, 0.0
      %1617 = vadd.xlane.f32.xlu0 %v1616
      %v1618 = vpop.xlane.xlu0 %1617
      %v1619 = vsel %vm745, %v1600, 0.0
      %1620 = vadd.xlane.f32.xlu0 %v1619
      %v1621 = vpop.xlane.xlu0 %1620
      %v1622 = vsel %vm745, %v1602, 0.0
      %1623 = vadd.xlane.f32.xlu0 %v1622
      %v1624 = vpop.xlane.xlu0 %1623
      %v1625 = vsel %vm745, %v1604, 0.0
      %1626 = vadd.xlane.f32.xlu0 %v1625
      %v1627 = vpop.xlane.xlu0 %1626
      %v1628 = vsel %vm745, %v1606, 0.0
      %1629 = vadd.xlane.f32.xlu0 %v1628
      %v1630 = vpop.xlane.xlu0 %1629
      %v1631 = vrcp.pop %v1609
      %v1632 = vmul.f32 %v1592, %v1631
      %v1633 = vrcp.pop %v1612
      %v1634 = vmul.f32 %v1594, %v1633
      %v1635 = vrcp.pop %v1615
      %v1636 = vmul.f32 %v1596, %v1635
      %v1637 = vrcp.pop %v1618
      %v1638 = vmul.f32 %v1598, %v1637
      %v1639 = vrcp.pop %v1621
      %v1640 = vmul.f32 %v1600, %v1639
      %v1641 = vrcp.pop %v1624
      %v1642 = vmul.f32 %v1602, %v1641
      %v1643 = vrcp.pop %v1627
      %v1644 = vmul.f32 %v1604, %v1643
      %v1645 = vrcp.pop %v1630
      %v1646 = vmul.f32 %v1606, %v1645
      %v1647 = vpack.c.bf16 %v1634, %v1632
      %v1648 = vpack.c.bf16 %v1638, %v1636
      %v1649 = vpack.c.bf16 %v1642, %v1640
      %v1650 = vpack.c.bf16 %v1646, %v1644
      %1651 = vrot.lane.b32.xlu0 %v655, 104
      %v1652 = vpop.permute.xlu0 %1651
      %v1655 = vsel %vm745, %v1647, 0
      %v1658 = vsel %vm745, %v1648, 0
      %v1661 = vsel %vm745, %v1649, 0
      %v1664 = vsel %vm745, %v1650, 0
      %1666 = vmatprep.subr.bf16.mxu0 0
      %1667 = vmatpush1.bf16.msra.mxu0 %v1652
      %1668 = vmatprep.subr.bf16.mxu0 0
      %1669 = vmatpush1.bf16.msra.mxu0 0
      %1670 = vmatprep.subr.bf16.mxu0 0
      %1671 = vmatpush1.bf16.msra.mxu0 0
      %1672 = vmatprep.subr.bf16.mxu0 0
      %1673 = vmatpush1.bf16.msra.mxu0 0
      %1674 = vmatprep.subr.bf16.mxu0 0
      %1675 = vmatpush1.bf16.msra.mxu0 0
      %1676 = vmatprep.subr.bf16.mxu0 0
      %1677 = vmatpush1.bf16.msra.mxu0 0
      %1678 = vmatprep.subr.bf16.mxu0 0
      %1679 = vmatpush1.bf16.msra.mxu0 0
      %1680 = vmatprep.subr.bf16.mxu0 0
      %1681 = vmatpush1.bf16.msra.mxu0 0
      %1682 = vmatprep.subr.bf16.mxu0 0
      %1683 = vmatpush1.bf16.msra.mxu0 0
      %1684 = vmatprep.subr.bf16.mxu0 0
      %1685 = vmatpush1.bf16.msra.mxu0 0
      %1686 = vmatprep.subr.bf16.mxu0 0
      %1687 = vmatpush1.bf16.msra.mxu0 0
      %1688 = vmatprep.subr.bf16.mxu0 0
      %1689 = vmatpush1.bf16.msra.mxu0 0
      %1690 = vmatprep.subr.bf16.mxu0 0
      %1691 = vmatpush1.bf16.msra.mxu0 0
      %1692 = vmatprep.subr.bf16.mxu0 0
      %1693 = vmatpush1.bf16.msra.mxu0 0
      %1694 = vmatprep.subr.bf16.mxu0 0
      %1695 = vmatpush1.bf16.msra.mxu0 0
      %1696 = vmatprep.subr.bf16.mxu0 0
      %1697 = vmatpush1.bf16.msra.mxu0 0
      %1698 = vmatprep.mubr.bf16.mxu0 0
      %1699 = vmatmul.mubr.bf16.gmra.mrb[0].mxu0 %v1655
      %v1700 = vpop.f32.mrb[0].mxu0
      %v1701 = vadd.f32 0.0, %v1700
      %v1702 = vpop.f32.mrb[0].mxu0
      %v1703 = vpop.f32.mrb[0].mxu0
      %v1704 = vadd.f32 0.0, %v1703
      %v1705 = vpop.f32.mrb[0].mxu0
      %1706 = vmatprep.mubr.bf16.mxu0 0
      %1707 = vmatmul.mubr.bf16.gmra.mrb[0].mxu0 %v1658
      %v1708 = vpop.f32.mrb[0].mxu0
      %v1709 = vadd.f32 0.0, %v1708
      %v1710 = vpop.f32.mrb[0].mxu0
      %v1711 = vpop.f32.mrb[0].mxu0
      %v1712 = vadd.f32 0.0, %v1711
      %v1713 = vpop.f32.mrb[0].mxu0
      %1714 = vmatprep.mubr.bf16.mxu0 0
      %1715 = vmatmul.mubr.bf16.gmra.mrb[0].mxu0 %v1661
      %v1716 = vpop.f32.mrb[0].mxu0
      %v1717 = vadd.f32 0.0, %v1716
      %v1718 = vpop.f32.mrb[0].mxu0
      %v1719 = vpop.f32.mrb[0].mxu0
      %v1720 = vadd.f32 0.0, %v1719
      %v1721 = vpop.f32.mrb[0].mxu0
      %1722 = vmatprep.mubr.bf16.mxu0 0
      %1723 = vmatmul.mubr.bf16.gmra.mrb[0].mxu0 %v1664
      %v1724 = vpop.f32.mrb[0].mxu0
      %v1725 = vadd.f32 0.0, %v1724
      %v1726 = vpop.f32.mrb[0].mxu0
      %v1727 = vpop.f32.mrb[0].mxu0
      %v1728 = vadd.f32 0.0, %v1727
      %v1729 = vpop.f32.mrb[0].mxu0
      %1730 = vdwg.mxu0
      %1739 = vrot.lane.b32.xlu0 %v1161, 8
      %v1740 = vpop.permute.xlu0 %1739
      %1741 = vrot.lane.b32.xlu0 %v1164, 8
      %v1742 = vpop.permute.xlu0 %1741
      %1743 = vrot.lane.b32.xlu0 %v1169, 8
      %v1744 = vpop.permute.xlu0 %1743
      %1745 = vrot.lane.b32.xlu0 %v1172, 8
      %v1746 = vpop.permute.xlu0 %1745
      %1747 = vrot.lane.b32.xlu0 %v1177, 8
      %v1748 = vpop.permute.xlu0 %1747
      %1749 = vrot.lane.b32.xlu0 %v1180, 8
      %v1750 = vpop.permute.xlu0 %1749
      %1751 = vrot.lane.b32.xlu0 %v1185, 8
      %v1752 = vpop.permute.xlu0 %1751
      %1753 = vrot.lane.b32.xlu0 %v1188, 8
      %v1754 = vpop.permute.xlu0 %1753
      %1771 = vrot.lane.b32.xlu0 %v1431, 16
      %v1772 = vpop.permute.xlu0 %1771
      %1773 = vrot.lane.b32.xlu0 %v1434, 16
      %v1774 = vpop.permute.xlu0 %1773
      %1775 = vrot.lane.b32.xlu0 %v1439, 16
      %v1776 = vpop.permute.xlu0 %1775
      %1777 = vrot.lane.b32.xlu0 %v1442, 16
      %v1778 = vpop.permute.xlu0 %1777
      %1779 = vrot.lane.b32.xlu0 %v1447, 16
      %v1780 = vpop.permute.xlu0 %1779
      %1781 = vrot.lane.b32.xlu0 %v1450, 16
      %v1782 = vpop.permute.xlu0 %1781
      %1783 = vrot.lane.b32.xlu0 %v1455, 16
      %v1784 = vpop.permute.xlu0 %1783
      %1785 = vrot.lane.b32.xlu0 %v1458, 16
      %v1786 = vpop.permute.xlu0 %1785
      %1803 = vrot.lane.b32.xlu0 %v1701, 24
      %v1804 = vpop.permute.xlu0 %1803
      %1805 = vrot.lane.b32.xlu0 %v1704, 24
      %v1806 = vpop.permute.xlu0 %1805
      %1807 = vrot.lane.b32.xlu0 %v1709, 24
      %v1808 = vpop.permute.xlu0 %1807
      %1809 = vrot.lane.b32.xlu0 %v1712, 24
      %v1810 = vpop.permute.xlu0 %1809
      %1811 = vrot.lane.b32.xlu0 %v1717, 24
      %v1812 = vpop.permute.xlu0 %1811
      %1813 = vrot.lane.b32.xlu0 %v1720, 24
      %v1814 = vpop.permute.xlu0 %1813
      %1815 = vrot.lane.b32.xlu0 %v1725, 24
      %v1816 = vpop.permute.xlu0 %1815
      %1817 = vrot.lane.b32.xlu0 %v1728, 24
      %v1818 = vpop.permute.xlu0 %1817
      %v1827 = vsel %vm656, %v885, %v1740
      %v1828 = vsel %vm656, %v888, %v1742
      %v1829 = vsel %vm656, %v893, %v1744
      %v1830 = vsel %vm656, %v896, %v1746
      %v1831 = vsel %vm656, %v901, %v1748
      %v1832 = vsel %vm656, %v904, %v1750
      %v1833 = vsel %vm656, %v909, %v1752
      %v1834 = vsel %vm656, %v912, %v1754
      %v1835 = vsel %vm745, %v1827, %v1772
      %v1836 = vsel %vm745, %v1828, %v1774
      %v1837 = vsel %vm745, %v1829, %v1776
      %v1838 = vsel %vm745, %v1830, %v1778
      %v1839 = vsel %vm745, %v1831, %v1780
      %v1840 = vsel %vm745, %v1832, %v1782
      %v1841 = vsel %vm745, %v1833, %v1784
      %v1842 = vsel %vm745, %v1834, %v1786
      %vm1843 = vcmask 195584
      %v1844 = vsel %vm1843, %v1835, %v1804
      %v1845 = vsel %vm1843, %v1836, %v1806
      %v1846 = vsel %vm1843, %v1837, %v1808
      %v1847 = vsel %vm1843, %v1838, %v1810
      %v1848 = vsel %vm1843, %v1839, %v1812
      %v1849 = vsel %vm1843, %v1840, %v1814
      %v1850 = vsel %vm1843, %v1841, %v1816
      %v1851 = vsel %vm1843, %v1842, %v1818
      %v1852 = vpack.c.bf16 %v1845, %v1844
      %v1853 = vpack.c.bf16 %v1847, %v1846
      %v1854 = vpack.c.bf16 %v1849, %v1848
      %v1855 = vpack.c.bf16 %v1851, %v1850
      %s1856 = scalar_lea.vmem %s4, 48
      %v1857 = vld [vmem:[%s1856] sm:$0xf]
      %v1858 = vld [vmem:[%s1856 + $0x4] sm:$0xf]
      %v1859 = vld [vmem:[%s1856 + $0x8] sm:$0xf]
      %v1860 = vld [vmem:[%s1856 + $0xc] sm:$0xf]
      %v1861 = vld [vmem:[%s5 + $0x3] sm:$0x1]
      %v1862 = vlaneseq
      %v1863 = vshrl.u32 %v1862, 7
      %v1864 = vsub.s32 0, %v1863
      %v1865 = vrot.slane %v1861, %v1864
      %v1870 = vunpack.c.l.b16 %v1857
      %v1871 = vunpack.c.l.b16 %v1858
      %v1872 = vunpack.c.l.b16 %v1859
      %v1873 = vunpack.c.l.b16 %v1860
      %v1874 = vpack.c.b16 %v1871, %v1870
      %v1875 = vpack.c.b16 %v1873, %v1872
      %v1879 = vsel %vm572, %v1852, 0
      %v1882 = vsel %vm572, %v1853, 0
      %v1885 = vsel %vm572, %v1854, 0
      %v1888 = vsel %vm572, %v1855, 0
      %1890 = vmatprep.subr.bf16.mxu0 0
      %1891 = vmatpush1.bf16.msra.mxu0 %v1874
      %1892 = vmatprep.subr.bf16.mxu0 0
      %1893 = vmatpush1.bf16.msra.mxu0 %v1875
      %1894 = vmatprep.subr.bf16.mxu0 0
      %1895 = vmatpush1.bf16.msra.mxu0 0
      %1896 = vmatprep.subr.bf16.mxu0 0
      %1897 = vmatpush1.bf16.msra.mxu0 0
      %1898 = vmatprep.subr.bf16.mxu0 0
      %1899 = vmatpush1.bf16.msra.mxu0 0
      %1900 = vmatprep.subr.bf16.mxu0 0
      %1901 = vmatpush1.bf16.msra.mxu0 0
      %1902 = vmatprep.subr.bf16.mxu0 0
      %1903 = vmatpush1.bf16.msra.mxu0 0
      %1904 = vmatprep.subr.bf16.mxu0 0
      %1905 = vmatpush1.bf16.msra.mxu0 0
      %1906 = vmatprep.subr.bf16.mxu0 0
      %1907 = vmatpush1.bf16.msra.mxu0 0
      %1908 = vmatprep.subr.bf16.mxu0 0
      %1909 = vmatpush1.bf16.msra.mxu0 0
      %1910 = vmatprep.subr.bf16.mxu0 0
      %1911 = vmatpush1.bf16.msra.mxu0 0
      %1912 = vmatprep.subr.bf16.mxu0 0
      %1913 = vmatpush1.bf16.msra.mxu0 0
      %1914 = vmatprep.subr.bf16.mxu0 0
      %1915 = vmatpush1.bf16.msra.mxu0 0
      %1916 = vmatprep.subr.bf16.mxu0 0
      %1917 = vmatpush1.bf16.msra.mxu0 0
      %1918 = vmatprep.subr.bf16.mxu0 0
      %1919 = vmatpush1.bf16.msra.mxu0 0
      %1920 = vmatprep.subr.bf16.mxu0 0
      %1921 = vmatpush1.bf16.msra.mxu0 0
      %1922 = vmatprep.mubr.bf16.mxu0 0
      %1923 = vmatmul.mubr.bf16.gmra.mrb[0].mxu0 %v1879
      %v1924 = vpop.f32.mrb[0].mxu0
      %v1925 = vadd.f32 %v1865, %v1924
      %v1926 = vpop.f32.mrb[0].mxu0
      %v1927 = vpop.f32.mrb[0].mxu0
      %v1928 = vadd.f32 %v1865, %v1927
      %v1929 = vpop.f32.mrb[0].mxu0
      %1930 = vmatprep.mubr.bf16.mxu0 0
      %1931 = vmatmul.mubr.bf16.gmra.mrb[0].mxu0 %v1882
      %v1932 = vpop.f32.mrb[0].mxu0
      %v1933 = vadd.f32 %v1865, %v1932
      %v1934 = vpop.f32.mrb[0].mxu0
      %v1935 = vpop.f32.mrb[0].mxu0
      %v1936 = vadd.f32 %v1865, %v1935
      %v1937 = vpop.f32.mrb[0].mxu0
      %1938 = vmatprep.mubr.bf16.mxu0 0
      %1939 = vmatmul.mubr.bf16.gmra.mrb[0].mxu0 %v1885
      %v1940 = vpop.f32.mrb[0].mxu0
      %v1941 = vadd.f32 %v1865, %v1940
      %v1942 = vpop.f32.mrb[0].mxu0
      %v1943 = vpop.f32.mrb[0].mxu0
      %v1944 = vadd.f32 %v1865, %v1943
      %v1945 = vpop.f32.mrb[0].mxu0
      %1946 = vmatprep.mubr.bf16.mxu0 0
      %1947 = vmatmul.mubr.bf16.gmra.mrb[0].mxu0 %v1888
      %v1948 = vpop.f32.mrb[0].mxu0
      %v1949 = vadd.f32 %v1865, %v1948
      %v1950 = vpop.f32.mrb[0].mxu0
      %v1951 = vpop.f32.mrb[0].mxu0
      %v1952 = vadd.f32 %v1865, %v1951
      %v1953 = vpop.f32.mrb[0].mxu0
      %1954 = vdwg.mxu0
      %v1955 = vld [vmem:[%s355] sm:$0xff]
      %v1956 = vld [vmem:[%s355 + $0x8] sm:$0xff]
      %v1957 = vld [vmem:[%s355 + $0x10] sm:$0xff]
      %v1958 = vld [vmem:[%s355 + $0x18] sm:$0xff]
      %v1959 = vld [vmem:[%s355 + $0x20] sm:$0xff]
      %v1960 = vld [vmem:[%s355 + $0x28] sm:$0xff]
      %v1961 = vld [vmem:[%s355 + $0x30] sm:$0xff]
      %v1962 = vld [vmem:[%s355 + $0x38] sm:$0xff]
      %v1963 = vadd.f32 %v1955, %v1925
      %v1964 = vadd.f32 %v1956, %v1928
      %v1965 = vadd.f32 %v1957, %v1933
      %v1966 = vadd.f32 %v1958, %v1936
      %v1967 = vadd.f32 %v1959, %v1941
      %v1968 = vadd.f32 %v1960, %v1944
      %v1969 = vadd.f32 %v1961, %v1949
      %v1970 = vadd.f32 %v1962, %v1952
      %1971 = vst.msk [vmem:[%s365] sm:$0xff] %vm572, %v1963
      %1972 = vst.msk [vmem:[%s365 + $0x8] sm:$0xff] %vm572, %v1964
      %1973 = vst.msk [vmem:[%s365 + $0x10] sm:$0xff] %vm572, %v1965
      %1974 = vst.msk [vmem:[%s365 + $0x18] sm:$0xff] %vm572, %v1966
      %1975 = vst.msk [vmem:[%s365 + $0x20] sm:$0xff] %vm572, %v1967
      %1976 = vst.msk [vmem:[%s365 + $0x28] sm:$0xff] %vm572, %v1968
      %1977 = vst.msk [vmem:[%s365 + $0x30] sm:$0xff] %vm572, %v1969
      %1978 = vst.msk [vmem:[%s365 + $0x38] sm:$0xff] %vm572, %v1970
      %s1979 = smul.u32 8, %s22
      %p1980 = scmp.lt.s32.totalorder %s21, 1
      %s1981 = scalar_select %p1980, %s21, 1
      %p1982 = scmp.lt.s32.totalorder %s1979, 7
      %s1983 = scalar_select %p1982, %s1979, 7
      %s1984 = smul.addr %s1981, 8
      %s1985 = sadd.s32 %s1983, %s1984
      %s1986 = smul.addr %s1985, 8
      %s1987 = scalar_lea.vmem %s6, %s1986
      // Predicated region
      $region49: #{cvt_stage_forward.11} parent=43 // pred_check
        %p1988 = pneg %p199
      $region50: #{cvt_stage_forward.11} parent=43 // pred_check_branch
        %1990 = sbr.rel (%p1988) target = $region52
      $region51: #{cvt_stage_forward.11} parent=43 // pred_region
        %s1991 = smul.u32 8, %s22
      $region52: #{cvt_stage_forward.11} parent=43 // pred_fallthru
        _
    $region44: #{cvt_stage_forward.11} parent=5 // pred_fallthru
      _
    %p1992 = scmp.le.s32.totalorder 2, %s12
    // Predicated region
    $region53: #{cvt_stage_forward.11} parent=5 // pred_check
      %p1993 = pneg %p1992
    $region54: #{cvt_stage_forward.11} parent=5 // pred_check_branch
      %1995 = sbr.rel (%p1993) target = $region56
    $region55: #{cvt_stage_forward.11} parent=5 // pred_region
      %s1996 = ssub.s32 %s12, 2
      // Predicated region
      $region57: #{cvt_stage_forward.11} parent=55 // pred_check
        %p1997 = pneg %p205
      $region58: #{cvt_stage_forward.11} parent=55 // pred_check_branch
        %1999 = sbr.rel (%p1997) target = $region60
      $region59: #{cvt_stage_forward.11} parent=55 // pred_region
        %s2000 = smul.u32 8, %s24
        %p2001 = scmp.lt.s32.totalorder %s23, 1
        %s2002 = scalar_select %p2001, %s23, 1
        %p2003 = scmp.lt.s32.totalorder %s2000, 7
        %s2004 = scalar_select %p2003, %s2000, 7
        %s2005 = smul.addr %s2002, 8
        %s2006 = sadd.s32 %s2004, %s2005
        %s2007 = smul.addr %s2006, 8
        %s2008 = scalar_lea.vmem %s6, %s2007
      $region60: #{cvt_stage_forward.11} parent=55 // pred_fallthru
        _
    $region56: #{cvt_stage_forward.11} parent=5 // pred_fallthru
      _
  $region6: #{cvt_stage_forward.11} parent=0 // loop_footer
    %s16 = sadd.s32 1, %s12
  $region7: #{cvt_stage_forward.11} parent=0 // loop_footer_branch
    %11 = sbr.rel target = $region3
  $region8: #{cvt_stage_forward.11} parent=0 // loop_exit
    _

</llo_original>
